<compile_context>
chip_gen: v7x
topology: tpu7x:2x2x1
jax: 0.10.0
libtpu: 0.0.40
codegen_flags: <defaults>
</compile_context>

<pallas_src>
import functools

import jax
import jax.numpy as jnp
from jax.experimental import pallas as pl
from jax.experimental.pallas import tpu as pltpu

_COMPUTE_DTYPE = jnp.bfloat16
_VMEM_BLOCK_BUDGET = 12 * 1024 * 1024   # per-kernel working-set target (fits v5e 16 MiB default)
_VMEM_LIMIT = 48 * 1024 * 1024          # scoped limit for Mosaic (below v7x 64 MiB physical)


def _divisors_desc(n):
    return [d for d in range(n, 0, -1) if n % d == 0]


def _choose_tr_fused(H, W, C, Ch):
    """Coarse-row tile for the fused conv1 + upsample + concat + s0 kernel."""
    Wf = 2 * W
    cands = [d for d in _divisors_desc(H) if (d * W) % 8 == 0 and (2 * d * Wf) % 8 == 0]
    if not cands:
        return H
    pref = [d for d in cands if d <= max(1, H // 2)] or cands   # >= 2 row blocks
    for tr in pref:
        mc, mf = tr * W, 2 * tr * Wf
        blocks = 2 * 2 * (mc * C + mf * C + mf * Ch)            # double-buffered bf16 blocks
        live = 2 * mc * Ch + 2 * tr * Wf * W + 6 * tr * Wf * Ch + 12 * mf * Ch
        if blocks + live <= _VMEM_BLOCK_BUDGET:
            return tr
    return pref[-1]


def _choose_tr_conv(H, W, Cin, Cmid, Cout):
    """Row tile for the fused 3x3-conv + following 1x1-conv kernel."""
    cands = [d for d in _divisors_desc(H) if (d * W) % 8 == 0]
    if not cands:
        return H
    pref = [d for d in cands if d <= max(1, H // 2)] or cands
    for tr in pref:
        m = tr * W
        blocks = 2 * 2 * (m * Cin + m * Cout)                   # double-buffered bf16 in/out
        live = (tr + 2) * W * Cin * 2 + 5 * m * Cmid * 4 + m * Cmid * 2 + m * Cout * 4
        if blocks + live <= _VMEM_BLOCK_BUDGET:
            return tr
    return pref[-1]


# ----------------------------------------------------------------------------
# Fused head: conv1(x) -> nearest 2x upsample -> concat with conv2(up) -> s0.
# Bottom branch is computed at coarse resolution and replicated in-kernel.
# ----------------------------------------------------------------------------
def _fused_head_kernel(x_ref, up_ref, w1_ref, w2_ref, wt_ref, wb_ref, r_ref, o_ref,
                       *, tr, W, Wf, Ch):
    dt = x_ref.dtype
    mf = 2 * tr * Wf

    # Bottom branch (coarse): conv1, exact nearest-2x replication (width via the 0/1
    # matmul, height via a leading-dim broadcast), then s0's lower weight rows.
    c1 = jnp.dot(x_ref[0], w1_ref[...], preferred_element_type=jnp.float32).astype(dt)
    c1 = c1.reshape(tr, W, Ch)
    rrep = jnp.broadcast_to(r_ref[...][None], (tr, Wf, W))
    c1w = jax.lax.dot_general(
        rrep, c1, dimension_numbers=(((2,), (1,)), ((0,), (0,))),
        preferred_element_type=jnp.float32).astype(dt)                  # (tr, Wf, Ch)
    c1u = jnp.broadcast_to(c1w[:, None], (tr, 2, Wf, Ch)).reshape(mf, Ch)
    bot = jnp.dot(c1u, wb_ref[...], preferred_element_type=jnp.float32)

    # Top branch (fine): conv2(up) then s0's upper weight rows.
    a = jnp.dot(up_ref[0], w2_ref[...], preferred_element_type=jnp.float32).astype(dt)
    out = jnp.dot(a, wt_ref[...], preferred_element_type=jnp.float32) + bot
    o_ref[...] = out[None].astype(o_ref.dtype)


def fused_conv1_up_concat_s0(x_nhwc, up_nhwc, w1, w2, ws0):
    N, H, W, C = x_nhwc.shape
    _, Hf, Wf, _ = up_nhwc.shape
    Ch = w1.shape[1]
    wt = ws0[:Ch]            # s0 rows acting on conv2(up) channels (first in concat)
    wb = ws0[Ch:]            # s0 rows acting on upsample(conv1(x)) channels (second)
    tr = _choose_tr_fused(H, W, C, Ch)
    nj = H // tr

    x2 = x_nhwc.reshape(N, H * W, C)          # metadata-only reshapes
    u2 = up_nhwc.reshape(N, Hf * Wf, C)
    rmat = (jnp.arange(Wf)[:, None] // 2 == jnp.arange(W)[None, :]).astype(x_nhwc.dtype)

    mc_tot, mf_tot = N * H * W, N * Hf * Wf
    cost = pl.CostEstimate(
        flops=2 * (mc_tot * C * Ch + N * H * Wf * W * Ch + 2 * mf_tot * Ch * Ch
                   + mf_tot * C * Ch),
        transcendentals=0,
        bytes_accessed=int(2 * (mc_tot * C + mf_tot * C + mf_tot * Ch
                                + 2 * C * Ch + 2 * Ch * Ch + Wf * W)),
    )
    kernel = functools.partial(_fused_head_kernel, tr=tr, W=W, Wf=Wf, Ch=Ch)
    out = pl.pallas_call(
        kernel,
        out_shape=jax.ShapeDtypeStruct((N, Hf * Wf, Ch), x_nhwc.dtype),
        grid=(N, nj),
        in_specs=[
            pl.BlockSpec((1, tr * W, C), lambda n, j: (n, j, 0)),
            pl.BlockSpec((1, 2 * tr * Wf, C), lambda n, j: (n, j, 0)),
            pl.BlockSpec((C, Ch), lambda n, j: (0, 0)),
            pl.BlockSpec((C, Ch), lambda n, j: (0, 0)),
            pl.BlockSpec((Ch, Ch), lambda n, j: (0, 0)),
            pl.BlockSpec((Ch, Ch), lambda n, j: (0, 0)),
            pl.BlockSpec((Wf, W), lambda n, j: (0, 0)),
        ],
        out_specs=pl.BlockSpec((1, 2 * tr * Wf, Ch), lambda n, j: (n, j, 0)),
        compiler_params=pltpu.CompilerParams(
            dimension_semantics=("parallel", "parallel"),
            vmem_limit_bytes=_VMEM_LIMIT),
        cost_estimate=cost,
    )(x2, u2, w1, w2, wt, wb, rmat)
    return out.reshape(N, Hf, Wf, Ch)


# ----------------------------------------------------------------------------
# Fused 3x3 conv (pad=1, stride=1, bias-free) + following 1x1 conv epilogue.
# Row-strip streaming; row halo via 1-row halo blocks, column halo via roll+mask.
# ----------------------------------------------------------------------------
def _conv3x3_1x1_kernel(xc_ref, xt_ref, xb_ref, w3_ref, we_ref, o_ref,
                        *, tr, W, Cin, Cmid):
    j = pl.program_id(1)
    nj = pl.num_programs(1)
    dt = xc_ref.dtype

    top = jnp.where(j > 0, xt_ref[0], jnp.zeros_like(xt_ref[0]))
    bot = jnp.where(j < nj - 1, xb_ref[0], jnp.zeros_like(xb_ref[0]))
    rows = jnp.concatenate([top, xc_ref[0], bot], axis=0)          # (tr+2, W, Cin)

    # Per-dx partial sums over the 3 dy taps (unshifted columns), f32 accumulation.
    p0 = jnp.zeros((tr * W, Cmid), jnp.float32)
    p1 = jnp.zeros((tr * W, Cmid), jnp.float32)
    p2 = jnp.zeros((tr * W, Cmid), jnp.float32)
    for dy in range(3):
        slab = rows[dy:dy + tr].reshape(tr * W, Cin)
        p0 = p0 + jnp.dot(slab, w3_ref[dy, 0], preferred_element_type=jnp.float32)
        p1 = p1 + jnp.dot(slab, w3_ref[dy, 1], preferred_element_type=jnp.float32)
        p2 = p2 + jnp.dot(slab, w3_ref[dy, 2], preferred_element_type=jnp.float32)

    p0 = p0.reshape(tr, W, Cmid)
    p1 = p1.reshape(tr, W, Cmid)
    p2 = p2.reshape(tr, W, Cmid)
    col = jax.lax.broadcasted_iota(jnp.int32, (tr, W, 1), 1)
    left = jnp.where(col >= 1, pltpu.roll(p0, 1, 1), 0.0)            # tap dx=0 -> src col w-1
    right = jnp.where(col <= W - 2, pltpu.roll(p2, W - 1, 1), 0.0)   # tap dx=2 -> src col w+1
    acc = p1 + left + right                                          # (tr, W, Cmid) f32

    mid = acc.reshape(tr * W, Cmid).astype(dt)                       # bf16 layer boundary
    out = jnp.dot(mid, we_ref[...], preferred_element_type=jnp.float32)
    o_ref[...] = out[None].astype(o_ref.dtype)


def conv3x3_then_1x1(x_nhwc, w3_hwio, wepi_io):
    N, H, W, Cin = x_nhwc.shape
    Cmid = w3_hwio.shape[-1]
    Cout = wepi_io.shape[-1]
    tr = _choose_tr_conv(H, W, Cin, Cmid, Cout)
    nj = H // tr

    cost = pl.CostEstimate(
        flops=2 * N * H * W * (9 * Cin * Cmid + Cmid * Cout),
        transcendentals=0,
        bytes_accessed=int(2 * (N * H * W * (Cin + Cout) + 9 * Cin * Cmid + Cmid * Cout)),
    )
    kernel = functools.partial(_conv3x3_1x1_kernel, tr=tr, W=W, Cin=Cin, Cmid=Cmid)
    out = pl.pallas_call(
        kernel,
        out_shape=jax.ShapeDtypeStruct((N, H * W, Cout), x_nhwc.dtype),
        grid=(N, nj),
        in_specs=[
            pl.BlockSpec((1, tr, W, Cin), lambda n, j: (n, j, 0, 0)),
            pl.BlockSpec((1, 1, W, Cin),
                         lambda n, j: (n, jnp.maximum(j * tr - 1, 0), 0, 0)),
            pl.BlockSpec((1, 1, W, Cin),
                         lambda n, j: (n, jnp.minimum(j * tr + tr, H - 1), 0, 0)),
            pl.BlockSpec((3, 3, Cin, Cmid), lambda n, j: (0, 0, 0, 0)),
            pl.BlockSpec((Cmid, Cout), lambda n, j: (0, 0)),
        ],
        out_specs=pl.BlockSpec((1, tr * W, Cout), lambda n, j: (n, j, 0)),
        compiler_params=pltpu.CompilerParams(
            dimension_semantics=("parallel", "parallel"),
            vmem_limit_bytes=_VMEM_LIMIT),
        cost_estimate=cost,
    )(x_nhwc, x_nhwc, x_nhwc, w3_hwio, wepi_io)
    return out.reshape(N, H, W, Cout)


# ----------------------------------------------------------------------------
# Parameters (deterministic, PyTorch-like kaiming-uniform fan-in scaling).
# 1x1 weights stored as (Cin, Cout); 3x3 weights as (3,3,Cin,Cout) [HWIO].
# ----------------------------------------------------------------------------
def init_pan_params(key, in_channels):
    C = in_channels
    Ch = C // 2
    ks = jax.random.split(key, 7)

    def w1x1(k, cin, cout):
        s = 1.0 / jnp.sqrt(cin)
        return jax.random.uniform(k, (cin, cout), jnp.float32, -s, s)

    def w3x3(k, cin, cout):
        s = 1.0 / jnp.sqrt(9 * cin)
        return jax.random.uniform(k, (3, 3, cin, cout), jnp.float32, -s, s)

    return {
        "conv1": w1x1(ks[0], C, Ch),
        "conv2": w1x1(ks[1], C, Ch),
        "s0": w1x1(ks[2], C, Ch),
        "s1": w3x3(ks[3], Ch, C),
        "s2": w1x1(ks[4], C, Ch),
        "s3": w3x3(ks[5], Ch, C),
        "s4": w1x1(ks[6], C, Ch),
    }


# ----------------------------------------------------------------------------
# PAN forward. PyTorch NCHW at the boundary:
#   x : (N, C, H, W)     up : (N, C, 2H, 2W)   ->   out : (N, C//2, 2H, 2W)
# ----------------------------------------------------------------------------
@jax.jit
def pan_forward(params, x_nchw, up_nchw):
    cd = _COMPUTE_DTYPE
    p = jax.tree_util.tree_map(lambda v: v.astype(cd), params)
    x = jnp.transpose(x_nchw, (0, 2, 3, 1)).astype(cd)
    up = jnp.transpose(up_nchw, (0, 2, 3, 1)).astype(cd)

    out = fused_conv1_up_concat_s0(x, up, p["conv1"], p["conv2"], p["s0"])
    out = conv3x3_then_1x1(out, p["s1"], p["s2"])     # s1 (3x3) + s2 (1x1) fused
    out = conv3x3_then_1x1(out, p["s3"], p["s4"])     # s3 (3x3) + s4 (1x1) fused
    return jnp.transpose(out, (0, 3, 1, 2)).astype(jnp.float32)


# ----------------------------------------------------------------------------
# Reference (lax.conv) with the same bf16 layer-boundary casts / f32 accumulate.
# ----------------------------------------------------------------------------
def upsample2x_nearest(x_nhwc):
    return jnp.repeat(jnp.repeat(x_nhwc, 2, axis=1), 2, axis=2)


@jax.jit
def pan_reference(params, x_nchw, up_nchw):
    cd = _COMPUTE_DTYPE
    p = jax.tree_util.tree_map(lambda v: v.astype(cd), params)
    x = jnp.transpose(x_nchw, (0, 2, 3, 1)).astype(cd)
    up = jnp.transpose(up_nchw, (0, 2, 3, 1)).astype(cd)

    def conv(xv, w_hwio, pad):
        return jax.lax.conv_general_dilated(
            xv, w_hwio, (1, 1), pad,
            dimension_numbers=("NHWC", "HWIO", "NHWC"),
            preferred_element_type=jnp.float32).astype(cd)

    as4d = lambda w: w[None, None]
    out = conv(x, as4d(p["conv1"]), "VALID")
    out = upsample2x_nearest(out)
    out = jnp.concatenate([conv(up, as4d(p["conv2"]), "VALID"), out], axis=-1)
    out = conv(out, as4d(p["s0"]), "VALID")
    out = conv(out, p["s1"], "SAME")
    out = conv(out, as4d(p["s2"]), "VALID")
    out = conv(out, p["s3"], "SAME")
    out = conv(out, as4d(p["s4"]), "VALID")
    return jnp.transpose(out, (0, 3, 1, 2)).astype(jnp.float32)


if __name__ == "__main__":
    N, C, H, W = 2, 4, 16, 16      # x is the coarse map; up is 2x finer, same channels
    key = jax.random.PRNGKey(0)
    kx, kup, kp = jax.random.split(key, 3)
    x = jax.random.normal(kx, (N, C, H, W), jnp.float32)
    up = jax.random.normal(kup, (N, C, 2 * H, 2 * W), jnp.float32)
    params = init_pan_params(kp, C)

    out = jax.block_until_ready(pan_forward(params, x, up))
    assert out.shape == (N, C // 2, 2 * H, 2 * W), out.shape

    ref = jax.block_until_ready(pan_reference(params, x, up))
    max_err = float(jnp.max(jnp.abs(out - ref)))
    assert jnp.allclose(out, ref, atol=5e-2, rtol=5e-2), f"mismatch vs reference (max abs err {max_err})"

    print("KERNEL_OK")
</pallas_src>

<mosaic_0001>
module attributes {stable_mosaic.version = 11 : i64} {
  func.func @_fused_head_kernel(%arg0: i32, %arg1: i32, %arg2: memref<1x128x4xbf16, #tpu.memory_space<vmem>>, %arg3: memref<1x512x4xbf16, #tpu.memory_space<vmem>>, %arg4: memref<4x2xbf16, #tpu.memory_space<vmem>>, %arg5: memref<4x2xbf16, #tpu.memory_space<vmem>>, %arg6: memref<2x2xbf16, #tpu.memory_space<vmem>>, %arg7: memref<2x2xbf16, #tpu.memory_space<vmem>>, %arg8: memref<32x16xbf16, #tpu.memory_space<vmem>>, %arg9: memref<1x512x2xbf16, #tpu.memory_space<vmem>>) attributes {dimension_semantics = [#tpu.dimension_semantics<parallel>, #tpu.dimension_semantics<parallel>], iteration_bounds = array<i64: 2, 2>, scalar_prefetch = 0 : i64, scratch_operands = 0 : i64, tpu.core_type = #tpu.core_type<tc>, window_params = [{transform_indices = @transform_0, window_bounds = array<i64: 1, 128, 4>}, {transform_indices = @transform_1, window_bounds = array<i64: 1, 512, 4>}, {pipeline_mode = #tpu.pipeline_mode<synchronous>, transform_indices = @transform_2, window_bounds = array<i64: 4, 2>}, {pipeline_mode = #tpu.pipeline_mode<synchronous>, transform_indices = @transform_3, window_bounds = array<i64: 4, 2>}, {pipeline_mode = #tpu.pipeline_mode<synchronous>, transform_indices = @transform_4, window_bounds = array<i64: 2, 2>}, {pipeline_mode = #tpu.pipeline_mode<synchronous>, transform_indices = @transform_5, window_bounds = array<i64: 2, 2>}, {pipeline_mode = #tpu.pipeline_mode<synchronous>, transform_indices = @transform_6, window_bounds = array<i64: 32, 16>}, {transform_indices = @transform_7, window_bounds = array<i64: 1, 512, 2>}]} {
    %c0 = arith.constant 0 : index
    %c0_0 = arith.constant 0 : index
    %c0_1 = arith.constant 0 : index
    %0 = vector.load %arg2[%c0, %c0_0, %c0_1] : memref<1x128x4xbf16, #tpu.memory_space<vmem>>, vector<1x128x4xbf16>
    %1 = vector.shape_cast %0 : vector<1x128x4xbf16> to vector<128x4xbf16>
    %c0_2 = arith.constant 0 : index
    %c0_3 = arith.constant 0 : index
    %2 = vector.load %arg4[%c0_2, %c0_3] : memref<4x2xbf16, #tpu.memory_space<vmem>>, vector<4x2xbf16>
    %cst = arith.constant dense<0.000000e+00> : vector<128x2xf32>
    %3 = tpu.matmul %1, %2, %cst {dimension_numbers = #tpu.dot_dimension_numbers<[1], [0], [0], [1], [0, 0, 1, 1], [], []>} : vector<128x4xbf16>, vector<4x2xbf16>, vector<128x2xf32> -> vector<128x2xf32>
    %4 = arith.truncf %3 : vector<128x2xf32> to vector<128x2xbf16>
    %5 = vector.shape_cast %4 : vector<128x2xbf16> to vector<8x16x2xbf16>
    %c0_4 = arith.constant 0 : index
    %c0_5 = arith.constant 0 : index
    %6 = vector.load %arg8[%c0_4, %c0_5] : memref<32x16xbf16, #tpu.memory_space<vmem>>, vector<32x16xbf16>
    %7 = vector.shape_cast %6 : vector<32x16xbf16> to vector<1x32x16xbf16>
    %8 = vector.shape_cast %7 : vector<1x32x16xbf16> to vector<1x32x16xbf16>
    %9 = vector.broadcast %8 : vector<1x32x16xbf16> to vector<8x32x16xbf16>
    %cst_6 = arith.constant dense<0.000000e+00> : vector<8x32x2xf32>
    %10 = tpu.matmul %9, %5, %cst_6 {dimension_numbers = #tpu.dot_dimension_numbers<[2], [1], [1], [2], [0, 0, 0, 1, 1, 2], [0], [0]>} : vector<8x32x16xbf16>, vector<8x16x2xbf16>, vector<8x32x2xf32> -> vector<8x32x2xf32>
    %11 = arith.truncf %10 : vector<8x32x2xf32> to vector<8x32x2xbf16>
    %12 = vector.shape_cast %11 : vector<8x32x2xbf16> to vector<8x1x32x2xbf16>
    %13 = vector.shape_cast %12 : vector<8x1x32x2xbf16> to vector<8x1x32x2xbf16>
    %14 = vector.broadcast %13 : vector<8x1x32x2xbf16> to vector<8x2x32x2xbf16>
    %15 = vector.shape_cast %14 : vector<8x2x32x2xbf16> to vector<512x2xbf16>
    %c0_7 = arith.constant 0 : index
    %c0_8 = arith.constant 0 : index
    %16 = vector.load %arg7[%c0_7, %c0_8] : memref<2x2xbf16, #tpu.memory_space<vmem>>, vector<2x2xbf16>
    %cst_9 = arith.constant dense<0.000000e+00> : vector<512x2xf32>
    %17 = tpu.matmul %15, %16, %cst_9 {dimension_numbers = #tpu.dot_dimension_numbers<[1], [0], [0], [1], [0, 0, 1, 1], [], []>} : vector<512x2xbf16>, vector<2x2xbf16>, vector<512x2xf32> -> vector<512x2xf32>
    %c0_10 = arith.constant 0 : index
    %c0_11 = arith.constant 0 : index
    %c0_12 = arith.constant 0 : index
    %18 = vector.load %arg3[%c0_10, %c0_11, %c0_12] : memref<1x512x4xbf16, #tpu.memory_space<vmem>>, vector<1x512x4xbf16>
    %19 = vector.shape_cast %18 : vector<1x512x4xbf16> to vector<512x4xbf16>
    %c0_13 = arith.constant 0 : index
    %c0_14 = arith.constant 0 : index
    %20 = vector.load %arg5[%c0_13, %c0_14] : memref<4x2xbf16, #tpu.memory_space<vmem>>, vector<4x2xbf16>
    %cst_15 = arith.constant dense<0.000000e+00> : vector<512x2xf32>
    %21 = tpu.matmul %19, %20, %cst_15 {dimension_numbers = #tpu.dot_dimension_numbers<[1], [0], [0], [1], [0, 0, 1, 1], [], []>} : vector<512x4xbf16>, vector<4x2xbf16>, vector<512x2xf32> -> vector<512x2xf32>
    %22 = arith.truncf %21 : vector<512x2xf32> to vector<512x2xbf16>
    %c0_16 = arith.constant 0 : index
    %c0_17 = arith.constant 0 : index
    %23 = vector.load %arg6[%c0_16, %c0_17] : memref<2x2xbf16, #tpu.memory_space<vmem>>, vector<2x2xbf16>
    %cst_18 = arith.constant dense<0.000000e+00> : vector<512x2xf32>
    %24 = tpu.matmul %22, %23, %cst_18 {dimension_numbers = #tpu.dot_dimension_numbers<[1], [0], [0], [1], [0, 0, 1, 1], [], []>} : vector<512x2xbf16>, vector<2x2xbf16>, vector<512x2xf32> -> vector<512x2xf32>
    %25 = arith.addf %24, %17 : vector<512x2xf32>
    %26 = vector.shape_cast %25 : vector<512x2xf32> to vector<1x512x2xf32>
    %27 = arith.truncf %26 : vector<1x512x2xf32> to vector<1x512x2xbf16>
    %c0_19 = arith.constant 0 : index
    %c0_20 = arith.constant 0 : index
    %c0_21 = arith.constant 0 : index
    %28 = vector.load %arg9[%c0_19, %c0_20, %c0_21] : memref<1x512x2xbf16, #tpu.memory_space<vmem>>, vector<1x512x2xbf16>
    tpu.vector_store %arg9[%c0_19, %c0_20, %c0_21], %27 {strides = array<i32>} : memref<1x512x2xbf16, #tpu.memory_space<vmem>>, vector<1x512x2xbf16>,
    return
  }
  func.func @transform_0(%arg0: i32, %arg1: i32) -> (i32, i32, i32) {
    %c0_i32 = arith.constant 0 : i32
    %c0_i32_0 = arith.constant 0 : i32
    return %arg0, %arg1, %c0_i32 : i32, i32, i32
  }
  func.func @transform_1(%arg0: i32, %arg1: i32) -> (i32, i32, i32) {
    %c0_i32 = arith.constant 0 : i32
    %c0_i32_0 = arith.constant 0 : i32
    return %arg0, %arg1, %c0_i32 : i32, i32, i32
  }
  func.func @transform_2(%arg0: i32, %arg1: i32) -> (i32, i32) {
    %c0_i32 = arith.constant 0 : i32
    %c0_i32_0 = arith.constant 0 : i32
    %c0_i32_1 = arith.constant 0 : i32
    return %c0_i32, %c0_i32_0 : i32, i32
  }
  func.func @transform_3(%arg0: i32, %arg1: i32) -> (i32, i32) {
    %c0_i32 = arith.constant 0 : i32
    %c0_i32_0 = arith.constant 0 : i32
    %c0_i32_1 = arith.constant 0 : i32
    return %c0_i32, %c0_i32_0 : i32, i32
  }
  func.func @transform_4(%arg0: i32, %arg1: i32) -> (i32, i32) {
    %c0_i32 = arith.constant 0 : i32
    %c0_i32_0 = arith.constant 0 : i32
    %c0_i32_1 = arith.constant 0 : i32
    return %c0_i32, %c0_i32_0 : i32, i32
  }
  func.func @transform_5(%arg0: i32, %arg1: i32) -> (i32, i32) {
    %c0_i32 = arith.constant 0 : i32
    %c0_i32_0 = arith.constant 0 : i32
    %c0_i32_1 = arith.constant 0 : i32
    return %c0_i32, %c0_i32_0 : i32, i32
  }
  func.func @transform_6(%arg0: i32, %arg1: i32) -> (i32, i32) {
    %c0_i32 = arith.constant 0 : i32
    %c0_i32_0 = arith.constant 0 : i32
    %c0_i32_1 = arith.constant 0 : i32
    return %c0_i32, %c0_i32_0 : i32, i32
  }
  func.func @transform_7(%arg0: i32, %arg1: i32) -> (i32, i32, i32) {
    %c0_i32 = arith.constant 0 : i32
    %c0_i32_0 = arith.constant 0 : i32
    return %arg0, %arg1, %c0_i32 : i32, i32, i32
  }
}

module attributes {stable_mosaic.version = 11 : i64} {
  func.func @_conv3x3_1x1_kernel(%arg0: i32, %arg1: i32, %arg2: memref<1x16x32x2xbf16, #tpu.memory_space<vmem>>, %arg3: memref<1x1x32x2xbf16, #tpu.memory_space<vmem>>, %arg4: memref<1x1x32x2xbf16, #tpu.memory_space<vmem>>, %arg5: memref<3x3x2x4xbf16, #tpu.memory_space<vmem>>, %arg6: memref<4x2xbf16, #tpu.memory_space<vmem>>, %arg7: memref<1x512x2xbf16, #tpu.memory_space<vmem>>) attributes {dimension_semantics = [#tpu.dimension_semantics<parallel>, #tpu.dimension_semantics<parallel>], iteration_bounds = array<i64: 2, 2>, scalar_prefetch = 0 : i64, scratch_operands = 0 : i64, tpu.core_type = #tpu.core_type<tc>, window_params = [{transform_indices = @transform_0, window_bounds = array<i64: 1, 16, 32, 2>}, {transform_indices = @transform_1, window_bounds = array<i64: 1, 1, 32, 2>}, {transform_indices = @transform_2, window_bounds = array<i64: 1, 1, 32, 2>}, {pipeline_mode = #tpu.pipeline_mode<synchronous>, transform_indices = @transform_3, window_bounds = array<i64: 3, 3, 2, 4>}, {pipeline_mode = #tpu.pipeline_mode<synchronous>, transform_indices = @transform_4, window_bounds = array<i64: 4, 2>}, {transform_indices = @transform_5, window_bounds = array<i64: 1, 512, 2>}]} {
    %c0_i32 = arith.constant 0 : i32
    %0 = arith.cmpi sgt, %arg1, %c0_i32 : i32
    %c0 = arith.constant 0 : index
    %c0_0 = arith.constant 0 : index
    %c0_1 = arith.constant 0 : index
    %c0_2 = arith.constant 0 : index
    %1 = vector.load %arg3[%c0, %c0_0, %c0_1, %c0_2] : memref<1x1x32x2xbf16, #tpu.memory_space<vmem>>, vector<1x1x32x2xbf16>
    %2 = vector.shape_cast %1 : vector<1x1x32x2xbf16> to vector<1x32x2xbf16>
    %cst = arith.constant 0.000000e+00 : bf16
    %3 = vector.broadcast %cst : bf16 to vector<1x32x2xbf16>
    %4 = arith.select %0, %2, %3 : vector<1x32x2xbf16>
    %c1_i32 = arith.constant 1 : i32
    %5 = arith.cmpi slt, %arg1, %c1_i32 : i32
    %c0_3 = arith.constant 0 : index
    %c0_4 = arith.constant 0 : index
    %c0_5 = arith.constant 0 : index
    %c0_6 = arith.constant 0 : index
    %6 = vector.load %arg4[%c0_3, %c0_4, %c0_5, %c0_6] : memref<1x1x32x2xbf16, #tpu.memory_space<vmem>>, vector<1x1x32x2xbf16>
    %7 = vector.shape_cast %6 : vector<1x1x32x2xbf16> to vector<1x32x2xbf16>
    %cst_7 = arith.constant 0.000000e+00 : bf16
    %8 = vector.broadcast %cst_7 : bf16 to vector<1x32x2xbf16>
    %9 = arith.select %5, %7, %8 : vector<1x32x2xbf16>
    %c0_8 = arith.constant 0 : index
    %c0_9 = arith.constant 0 : index
    %c0_10 = arith.constant 0 : index
    %c0_11 = arith.constant 0 : index
    %10 = vector.load %arg2[%c0_8, %c0_9, %c0_10, %c0_11] : memref<1x16x32x2xbf16, #tpu.memory_space<vmem>>, vector<1x16x32x2xbf16>
    %11 = vector.shape_cast %10 : vector<1x16x32x2xbf16> to vector<16x32x2xbf16>
    %12 = tpu.concatenate %4, %11, %9 in 0 : vector<1x32x2xbf16>, vector<16x32x2xbf16>, vector<1x32x2xbf16> -> vector<18x32x2xbf16>
    %cst_12 = arith.constant 0.000000e+00 : f32
    %13 = vector.broadcast %cst_12 : f32 to vector<512x4xf32>
    %cst_13 = arith.constant 0.000000e+00 : f32
    %14 = vector.broadcast %cst_13 : f32 to vector<512x4xf32>
    %cst_14 = arith.constant 0.000000e+00 : f32
    %15 = vector.broadcast %cst_14 : f32 to vector<512x4xf32>
    %16 = vector.extract_strided_slice %12 {offsets = [0, 0, 0], sizes = [16, 32, 2], strides = [1, 1, 1]} : vector<18x32x2xbf16> to vector<16x32x2xbf16>
    %17 = vector.shape_cast %16 : vector<16x32x2xbf16> to vector<512x2xbf16>
    %c0_15 = arith.constant 0 : index
    %c0_16 = arith.constant 0 : index
    %c0_17 = arith.constant 0 : index
    %c0_18 = arith.constant 0 : index
    %18 = vector.load %arg5[%c0_15, %c0_16, %c0_17, %c0_18] : memref<3x3x2x4xbf16, #tpu.memory_space<vmem>>, vector<1x1x2x4xbf16>
    %19 = vector.shape_cast %18 : vector<1x1x2x4xbf16> to vector<2x4xbf16>
    %cst_19 = arith.constant dense<0.000000e+00> : vector<512x4xf32>
    %20 = tpu.matmul %17, %19, %cst_19 {dimension_numbers = #tpu.dot_dimension_numbers<[1], [0], [0], [1], [0, 0, 1, 1], [], []>} : vector<512x2xbf16>, vector<2x4xbf16>, vector<512x4xf32> -> vector<512x4xf32>
    %21 = arith.addf %13, %20 : vector<512x4xf32>
    %c0_20 = arith.constant 0 : index
    %c1 = arith.constant 1 : index
    %c0_21 = arith.constant 0 : index
    %c0_22 = arith.constant 0 : index
    %22 = vector.load %arg5[%c0_20, %c1, %c0_21, %c0_22] : memref<3x3x2x4xbf16, #tpu.memory_space<vmem>>, vector<1x1x2x4xbf16>
    %23 = vector.shape_cast %22 : vector<1x1x2x4xbf16> to vector<2x4xbf16>
    %cst_23 = arith.constant dense<0.000000e+00> : vector<512x4xf32>
    %24 = tpu.matmul %17, %23, %cst_23 {dimension_numbers = #tpu.dot_dimension_numbers<[1], [0], [0], [1], [0, 0, 1, 1], [], []>} : vector<512x2xbf16>, vector<2x4xbf16>, vector<512x4xf32> -> vector<512x4xf32>
    %25 = arith.addf %14, %24 : vector<512x4xf32>
    %c0_24 = arith.constant 0 : index
    %c2 = arith.constant 2 : index
    %c0_25 = arith.constant 0 : index
    %c0_26 = arith.constant 0 : index
    %26 = vector.load %arg5[%c0_24, %c2, %c0_25, %c0_26] : memref<3x3x2x4xbf16, #tpu.memory_space<vmem>>, vector<1x1x2x4xbf16>
    %27 = vector.shape_cast %26 : vector<1x1x2x4xbf16> to vector<2x4xbf16>
    %cst_27 = arith.constant dense<0.000000e+00> : vector<512x4xf32>
    %28 = tpu.matmul %17, %27, %cst_27 {dimension_numbers = #tpu.dot_dimension_numbers<[1], [0], [0], [1], [0, 0, 1, 1], [], []>} : vector<512x2xbf16>, vector<2x4xbf16>, vector<512x4xf32> -> vector<512x4xf32>
    %29 = arith.addf %15, %28 : vector<512x4xf32>
    %30 = vector.extract_strided_slice %12 {offsets = [1, 0, 0], sizes = [16, 32, 2], strides = [1, 1, 1]} : vector<18x32x2xbf16> to vector<16x32x2xbf16>
    %31 = vector.shape_cast %30 : vector<16x32x2xbf16> to vector<512x2xbf16>
    %c1_28 = arith.constant 1 : index
    %c0_29 = arith.constant 0 : index
    %c0_30 = arith.constant 0 : index
    %c0_31 = arith.constant 0 : index
    %32 = vector.load %arg5[%c1_28, %c0_29, %c0_30, %c0_31] : memref<3x3x2x4xbf16, #tpu.memory_space<vmem>>, vector<1x1x2x4xbf16>
    %33 = vector.shape_cast %32 : vector<1x1x2x4xbf16> to vector<2x4xbf16>
    %cst_32 = arith.constant dense<0.000000e+00> : vector<512x4xf32>
    %34 = tpu.matmul %31, %33, %cst_32 {dimension_numbers = #tpu.dot_dimension_numbers<[1], [0], [0], [1], [0, 0, 1, 1], [], []>} : vector<512x2xbf16>, vector<2x4xbf16>, vector<512x4xf32> -> vector<512x4xf32>
    %35 = arith.addf %21, %34 : vector<512x4xf32>
    %c1_33 = arith.constant 1 : index
    %c1_34 = arith.constant 1 : index
    %c0_35 = arith.constant 0 : index
    %c0_36 = arith.constant 0 : index
    %36 = vector.load %arg5[%c1_33, %c1_34, %c0_35, %c0_36] : memref<3x3x2x4xbf16, #tpu.memory_space<vmem>>, vector<1x1x2x4xbf16>
    %37 = vector.shape_cast %36 : vector<1x1x2x4xbf16> to vector<2x4xbf16>
    %cst_37 = arith.constant dense<0.000000e+00> : vector<512x4xf32>
    %38 = tpu.matmul %31, %37, %cst_37 {dimension_numbers = #tpu.dot_dimension_numbers<[1], [0], [0], [1], [0, 0, 1, 1], [], []>} : vector<512x2xbf16>, vector<2x4xbf16>, vector<512x4xf32> -> vector<512x4xf32>
    %39 = arith.addf %25, %38 : vector<512x4xf32>
    %c1_38 = arith.constant 1 : index
    %c2_39 = arith.constant 2 : index
    %c0_40 = arith.constant 0 : index
    %c0_41 = arith.constant 0 : index
    %40 = vector.load %arg5[%c1_38, %c2_39, %c0_40, %c0_41] : memref<3x3x2x4xbf16, #tpu.memory_space<vmem>>, vector<1x1x2x4xbf16>
    %41 = vector.shape_cast %40 : vector<1x1x2x4xbf16> to vector<2x4xbf16>
    %cst_42 = arith.constant dense<0.000000e+00> : vector<512x4xf32>
    %42 = tpu.matmul %31, %41, %cst_42 {dimension_numbers = #tpu.dot_dimension_numbers<[1], [0], [0], [1], [0, 0, 1, 1], [], []>} : vector<512x2xbf16>, vector<2x4xbf16>, vector<512x4xf32> -> vector<512x4xf32>
    %43 = arith.addf %29, %42 : vector<512x4xf32>
    %44 = vector.extract_strided_slice %12 {offsets = [2, 0, 0], sizes = [16, 32, 2], strides = [1, 1, 1]} : vector<18x32x2xbf16> to vector<16x32x2xbf16>
    %45 = vector.shape_cast %44 : vector<16x32x2xbf16> to vector<512x2xbf16>
    %c2_43 = arith.constant 2 : index
    %c0_44 = arith.constant 0 : index
    %c0_45 = arith.constant 0 : index
    %c0_46 = arith.constant 0 : index
    %46 = vector.load %arg5[%c2_43, %c0_44, %c0_45, %c0_46] : memref<3x3x2x4xbf16, #tpu.memory_space<vmem>>, vector<1x1x2x4xbf16>
    %47 = vector.shape_cast %46 : vector<1x1x2x4xbf16> to vector<2x4xbf16>
    %cst_47 = arith.constant dense<0.000000e+00> : vector<512x4xf32>
    %48 = tpu.matmul %45, %47, %cst_47 {dimension_numbers = #tpu.dot_dimension_numbers<[1], [0], [0], [1], [0, 0, 1, 1], [], []>} : vector<512x2xbf16>, vector<2x4xbf16>, vector<512x4xf32> -> vector<512x4xf32>
    %49 = arith.addf %35, %48 : vector<512x4xf32>
    %c2_48 = arith.constant 2 : index
    %c1_49 = arith.constant 1 : index
    %c0_50 = arith.constant 0 : index
    %c0_51 = arith.constant 0 : index
    %50 = vector.load %arg5[%c2_48, %c1_49, %c0_50, %c0_51] : memref<3x3x2x4xbf16, #tpu.memory_space<vmem>>, vector<1x1x2x4xbf16>
    %51 = vector.shape_cast %50 : vector<1x1x2x4xbf16> to vector<2x4xbf16>
    %cst_52 = arith.constant dense<0.000000e+00> : vector<512x4xf32>
    %52 = tpu.matmul %45, %51, %cst_52 {dimension_numbers = #tpu.dot_dimension_numbers<[1], [0], [0], [1], [0, 0, 1, 1], [], []>} : vector<512x2xbf16>, vector<2x4xbf16>, vector<512x4xf32> -> vector<512x4xf32>
    %53 = arith.addf %39, %52 : vector<512x4xf32>
    %c2_53 = arith.constant 2 : index
    %c2_54 = arith.constant 2 : index
    %c0_55 = arith.constant 0 : index
    %c0_56 = arith.constant 0 : index
    %54 = vector.load %arg5[%c2_53, %c2_54, %c0_55, %c0_56] : memref<3x3x2x4xbf16, #tpu.memory_space<vmem>>, vector<1x1x2x4xbf16>
    %55 = vector.shape_cast %54 : vector<1x1x2x4xbf16> to vector<2x4xbf16>
    %cst_57 = arith.constant dense<0.000000e+00> : vector<512x4xf32>
    %56 = tpu.matmul %45, %55, %cst_57 {dimension_numbers = #tpu.dot_dimension_numbers<[1], [0], [0], [1], [0, 0, 1, 1], [], []>} : vector<512x2xbf16>, vector<2x4xbf16>, vector<512x4xf32> -> vector<512x4xf32>
    %57 = arith.addf %43, %56 : vector<512x4xf32>
    %58 = vector.shape_cast %49 : vector<512x4xf32> to vector<16x32x4xf32>
    %59 = vector.shape_cast %53 : vector<512x4xf32> to vector<16x32x4xf32>
    %60 = vector.shape_cast %57 : vector<512x4xf32> to vector<16x32x4xf32>
    %61 = tpu.iota {dimensions = array<i32: 1>} : vector<16x32x1xi32>
    %c1_i32_58 = arith.constant 1 : i32
    %62 = vector.broadcast %c1_i32_58 : i32 to vector<16x32x1xi32>
    %63 = arith.cmpi sge, %61, %62 : vector<16x32x1xi32>
    %c1_i32_59 = arith.constant 1 : i32
    %64 = tpu.dynamic_rotate %58 by %c1_i32_59 dim 1 : vector<16x32x4xf32>, i32 -> vector<16x32x4xf32>
    %cst_60 = arith.constant 0.000000e+00 : f32
    %65 = vector.shape_cast %63 : vector<16x32x1xi1> to vector<16x32x1xi1>
    %66 = vector.broadcast %65 : vector<16x32x1xi1> to vector<16x32x4xi1>
    %67 = vector.broadcast %cst_60 : f32 to vector<16x32x4xf32>
    %68 = arith.select %66, %64, %67 : vector<16x32x4xi1>, vector<16x32x4xf32>
    %c30_i32 = arith.constant 30 : i32
    %69 = vector.broadcast %c30_i32 : i32 to vector<16x32x1xi32>
    %70 = arith.cmpi sle, %61, %69 : vector<16x32x1xi32>
    %c31_i32 = arith.constant 31 : i32
    %71 = tpu.dynamic_rotate %60 by %c31_i32 dim 1 : vector<16x32x4xf32>, i32 -> vector<16x32x4xf32>
    %cst_61 = arith.constant 0.000000e+00 : f32
    %72 = vector.shape_cast %70 : vector<16x32x1xi1> to vector<16x32x1xi1>
    %73 = vector.broadcast %72 : vector<16x32x1xi1> to vector<16x32x4xi1>
    %74 = vector.broadcast %cst_61 : f32 to vector<16x32x4xf32>
    %75 = arith.select %73, %71, %74 : vector<16x32x4xi1>, vector<16x32x4xf32>
    %76 = arith.addf %59, %68 : vector<16x32x4xf32>
    %77 = arith.addf %76, %75 : vector<16x32x4xf32>
    %78 = vector.shape_cast %77 : vector<16x32x4xf32> to vector<512x4xf32>
    %79 = arith.truncf %78 : vector<512x4xf32> to vector<512x4xbf16>
    %c0_62 = arith.constant 0 : index
    %c0_63 = arith.constant 0 : index
    %80 = vector.load %arg6[%c0_62, %c0_63] : memref<4x2xbf16, #tpu.memory_space<vmem>>, vector<4x2xbf16>
    %cst_64 = arith.constant dense<0.000000e+00> : vector<512x2xf32>
    %81 = tpu.matmul %79, %80, %cst_64 {dimension_numbers = #tpu.dot_dimension_numbers<[1], [0], [0], [1], [0, 0, 1, 1], [], []>} : vector<512x4xbf16>, vector<4x2xbf16>, vector<512x2xf32> -> vector<512x2xf32>
    %82 = vector.shape_cast %81 : vector<512x2xf32> to vector<1x512x2xf32>
    %83 = arith.truncf %82 : vector<1x512x2xf32> to vector<1x512x2xbf16>
    %c0_65 = arith.constant 0 : index
    %c0_66 = arith.constant 0 : index
    %c0_67 = arith.constant 0 : index
    %84 = vector.load %arg7[%c0_65, %c0_66, %c0_67] : memref<1x512x2xbf16, #tpu.memory_space<vmem>>, vector<1x512x2xbf16>
    tpu.vector_store %arg7[%c0_65, %c0_66, %c0_67], %83 {strides = array<i32>} : memref<1x512x2xbf16, #tpu.memory_space<vmem>>, vector<1x512x2xbf16>,
    return
  }
  func.func @transform_0(%arg0: i32, %arg1: i32) -> (i32, i32, i32, i32) {
    %c0_i32 = arith.constant 0 : i32
    %c0_i32_0 = arith.constant 0 : i32
    %c0_i32_1 = arith.constant 0 : i32
    return %arg0, %arg1, %c0_i32, %c0_i32_0 : i32, i32, i32, i32
  }
  func.func @transform_1(%arg0: i32, %arg1: i32) -> (i32, i32, i32, i32) {
    %c16_i32 = arith.constant 16 : i32
    %0 = arith.muli %arg1, %c16_i32 : i32
    %c1_i32 = arith.constant 1 : i32
    %1 = arith.subi %0, %c1_i32 : i32
    %c0_i32 = arith.constant 0 : i32
    %2 = arith.maxsi %1, %c0_i32 : i32
    %c0_i32_0 = arith.constant 0 : i32
    %c0_i32_1 = arith.constant 0 : i32
    %c0_i32_2 = arith.constant 0 : i32
    return %arg0, %2, %c0_i32_0, %c0_i32_1 : i32, i32, i32, i32
  }
  func.func @transform_2(%arg0: i32, %arg1: i32) -> (i32, i32, i32, i32) {
    %c16_i32 = arith.constant 16 : i32
    %0 = arith.muli %arg1, %c16_i32 : i32
    %c16_i32_0 = arith.constant 16 : i32
    %1 = arith.addi %0, %c16_i32_0 : i32
    %c31_i32 = arith.constant 31 : i32
    %2 = arith.minsi %1, %c31_i32 : i32
    %c0_i32 = arith.constant 0 : i32
    %c0_i32_1 = arith.constant 0 : i32
    %c0_i32_2 = arith.constant 0 : i32
    return %arg0, %2, %c0_i32, %c0_i32_1 : i32, i32, i32, i32
  }
  func.func @transform_3(%arg0: i32, %arg1: i32) -> (i32, i32, i32, i32) {
    %c0_i32 = arith.constant 0 : i32
    %c0_i32_0 = arith.constant 0 : i32
    %c0_i32_1 = arith.constant 0 : i32
    %c0_i32_2 = arith.constant 0 : i32
    %c0_i32_3 = arith.constant 0 : i32
    return %c0_i32, %c0_i32_0, %c0_i32_1, %c0_i32_2 : i32, i32, i32, i32
  }
  func.func @transform_4(%arg0: i32, %arg1: i32) -> (i32, i32) {
    %c0_i32 = arith.constant 0 : i32
    %c0_i32_0 = arith.constant 0 : i32
    %c0_i32_1 = arith.constant 0 : i32
    return %c0_i32, %c0_i32_0 : i32, i32
  }
  func.func @transform_5(%arg0: i32, %arg1: i32) -> (i32, i32, i32) {
    %c0_i32 = arith.constant 0 : i32
    %c0_i32_0 = arith.constant 0 : i32
    return %arg0, %arg1, %c0_i32 : i32, i32, i32
  }
}

</mosaic_0001>

<llo_original>
// kernel: pan_forward.3
$region0: #{pan_forward.3}
  #allocation0 [shape = 'u32[]', space=smem, size = 0x4, offset = 0x4, fixed_abs, tag = 'smem constant byte address 0x4 - core index']
  #allocation1 [shape = 'u32[144,128]{1,0:T(1,128)}', space=vmem, size = 0x12000, scoped, tag = 'internal scratch']
  %s0 = inlined_call_operand.vmem [shape: bf16[2,256,4], index: 0, kind: input, shape index: {}]
  %s1 = inlined_call_operand.vmem [shape: bf16[2,1024,4], index: 1, kind: input, shape index: {}]
  %s2 = inlined_call_operand.vmem [shape: bf16[4,2], index: 2, kind: input, shape index: {}]
  %s3 = inlined_call_operand.vmem [shape: bf16[4,2], index: 3, kind: input, shape index: {}]
  %s4 = inlined_call_operand.vmem [shape: bf16[2,2], index: 4, kind: input, shape index: {}]
  %s5 = inlined_call_operand.vmem [shape: bf16[2,2], index: 5, kind: input, shape index: {}]
  %s6 = inlined_call_operand.vmem [shape: bf16[32,16], index: 6, kind: input, shape index: {}]
  %s7 = inlined_call_operand.vmem [shape: bf16[2,1024,2], index: 7, kind: output, shape index: {}]
  %s8 = sld [smem:[#allocation0]]
  $region61: #{pan_forward.3} parent=0
    _
  %s10 = ssub.s32 1, %s8
  %s11 = scalar_select 0, %s10, %s8
  loop: start=0, step=1, limit=6
  $region2: #{pan_forward.3} parent=0 // loop_pre_header
    _
  $region3: #{pan_forward.3} parent=0 // loop_header
    %s13 = sphi 0, %s17
    %p14 = scmp.ge.s32.totalorder %s13, 6
    %s20 = sphi 0, %s32
    %s21 = sphi 0, %s28
    %s22 = sphi 0, %s20
    %s23 = sphi 0, %s21
    %s24 = sphi 0, %s22
    %s25 = sphi 0, %s23
    %s37 = sphi 0, %s39
    %s40 = sphi 0, %s37
    %s41 = sphi 0, %s40
    %s57 = sphi 0, %s41
    %s65 = sphi 0, %s67
    %s68 = sphi 0, %s65
    %s69 = sphi 0, %s68
    %s85 = sphi 0, %s69
    %s89 = sphi 0, %s89
    %s91 = sphi 0, %s89
    %s92 = sphi 0, %s91
    %s106 = sphi 0, %s92
    %s110 = sphi 0, %s110
    %s112 = sphi 0, %s110
    %s113 = sphi 0, %s112
    %s127 = sphi 0, %s113
    %s131 = sphi 0, %s131
    %s133 = sphi 0, %s131
    %s134 = sphi 0, %s133
    %s148 = sphi 0, %s134
    %s152 = sphi 0, %s152
    %s154 = sphi 0, %s152
    %s155 = sphi 0, %s154
    %s169 = sphi 0, %s155
    %s173 = sphi 0, %s173
    %s175 = sphi 0, %s173
    %s176 = sphi 0, %s175
    %s190 = sphi 0, %s176
    %s198 = sphi 0, %s200
    %s201 = sphi 0, %s198
    %s202 = sphi 0, %s201
    %s218 = sphi 0, %s202
  $region4: #{pan_forward.3} parent=0 // loop_header_branch
    %16 = sbr.rel (%p14) target = $region8
  $region5: #{pan_forward.3} parent=0 // loop_body
    %s18 = ssub.s32 %s13, 1
    %s19 = ssub.s32 %s13, 2
    %s26 = sadd.s32 1, %s21
    %p27 = scmp.ge.s32.totalorder %s26, 2
    %s28 = scalar_select %p27, 0, %s26
    %s29 = sadd.s32 1, %s20
    %s30 = scalar_select %p27, %s29, %s20
    %p31 = scmp.ge.s32.totalorder %s30, 2
    %s32 = scalar_select %p31, 0, %s30
    %s33 = ssub.s32 %s20, %s32
    %s34 = ssub.s32 %s21, %s28
    %s35 = sor.u32 %s33, %s34
    %p36 = scmp.eq.s32.totalorder %s35, 0
    %s38 = sadd.s32 %s37, 1
    %s39 = scalar_select %p36, %s37, %s38
    %p42 = pneg %p36
    %p43 = scmp.eq.s32.totalorder %s13, 3
    %p44 = por %p42, %p43
    %p45 = scmp.ne.s32.totalorder %s37, %s40
    %p46 = scmp.eq.s32.totalorder %s13, 0
    %p47 = por %p45, %p46
    %p48 = scmp.ne.s32.totalorder %s37, %s40
    %p49 = scmp.eq.s32.totalorder %s18, 3
    %p50 = por %p48, %p49
    %p51 = scmp.ne.s32.totalorder %s40, %s41
    %p52 = scmp.eq.s32.totalorder %s18, 0
    %p53 = por %p51, %p52
    %p54 = scmp.ne.s32.totalorder %s40, %s41
    %p55 = scmp.eq.s32.totalorder %s19, 3
    %p56 = por %p54, %p55
    %p58 = scmp.ne.s32.totalorder %s41, %s57
    %p59 = scmp.eq.s32.totalorder %s19, 0
    %p60 = por %p58, %p59
    %s61 = ssub.s32 %s20, %s32
    %s62 = ssub.s32 %s21, %s28
    %s63 = sor.u32 %s61, %s62
    %p64 = scmp.eq.s32.totalorder %s63, 0
    %s66 = sadd.s32 %s65, 1
    %s67 = scalar_select %p64, %s65, %s66
    %p70 = pneg %p64
    %p71 = scmp.eq.s32.totalorder %s13, 3
    %p72 = por %p70, %p71
    %p73 = scmp.ne.s32.totalorder %s65, %s68
    %p74 = scmp.eq.s32.totalorder %s13, 0
    %p75 = por %p73, %p74
    %p76 = scmp.ne.s32.totalorder %s65, %s68
    %p77 = scmp.eq.s32.totalorder %s18, 3
    %p78 = por %p76, %p77
    %p79 = scmp.ne.s32.totalorder %s68, %s69
    %p80 = scmp.eq.s32.totalorder %s18, 0
    %p81 = por %p79, %p80
    %p82 = scmp.ne.s32.totalorder %s68, %s69
    %p83 = scmp.eq.s32.totalorder %s19, 3
    %p84 = por %p82, %p83
    %p86 = scmp.ne.s32.totalorder %s69, %s85
    %p87 = scmp.eq.s32.totalorder %s19, 0
    %p88 = por %p86, %p87
    %s90 = sadd.s32 %s89, 1
    %p93 = scmp.eq.s32.totalorder %s13, 3
    %p94 = scmp.ne.s32.totalorder %s89, %s91
    %p95 = scmp.eq.s32.totalorder %s13, 0
    %p96 = por %p94, %p95
    %p97 = scmp.ne.s32.totalorder %s89, %s91
    %p98 = scmp.eq.s32.totalorder %s18, 3
    %p99 = por %p97, %p98
    %p100 = scmp.ne.s32.totalorder %s91, %s92
    %p101 = scmp.eq.s32.totalorder %s18, 0
    %p102 = por %p100, %p101
    %p103 = scmp.ne.s32.totalorder %s91, %s92
    %p104 = scmp.eq.s32.totalorder %s19, 3
    %p105 = por %p103, %p104
    %p107 = scmp.ne.s32.totalorder %s92, %s106
    %p108 = scmp.eq.s32.totalorder %s19, 0
    %p109 = por %p107, %p108
    %s111 = sadd.s32 %s110, 1
    %p114 = scmp.eq.s32.totalorder %s13, 3
    %p115 = scmp.ne.s32.totalorder %s110, %s112
    %p116 = scmp.eq.s32.totalorder %s13, 0
    %p117 = por %p115, %p116
    %p118 = scmp.ne.s32.totalorder %s110, %s112
    %p119 = scmp.eq.s32.totalorder %s18, 3
    %p120 = por %p118, %p119
    %p121 = scmp.ne.s32.totalorder %s112, %s113
    %p122 = scmp.eq.s32.totalorder %s18, 0
    %p123 = por %p121, %p122
    %p124 = scmp.ne.s32.totalorder %s112, %s113
    %p125 = scmp.eq.s32.totalorder %s19, 3
    %p126 = por %p124, %p125
    %p128 = scmp.ne.s32.totalorder %s113, %s127
    %p129 = scmp.eq.s32.totalorder %s19, 0
    %p130 = por %p128, %p129
    %s132 = sadd.s32 %s131, 1
    %p135 = scmp.eq.s32.totalorder %s13, 3
    %p136 = scmp.ne.s32.totalorder %s131, %s133
    %p137 = scmp.eq.s32.totalorder %s13, 0
    %p138 = por %p136, %p137
    %p139 = scmp.ne.s32.totalorder %s131, %s133
    %p140 = scmp.eq.s32.totalorder %s18, 3
    %p141 = por %p139, %p140
    %p142 = scmp.ne.s32.totalorder %s133, %s134
    %p143 = scmp.eq.s32.totalorder %s18, 0
    %p144 = por %p142, %p143
    %p145 = scmp.ne.s32.totalorder %s133, %s134
    %p146 = scmp.eq.s32.totalorder %s19, 3
    %p147 = por %p145, %p146
    %p149 = scmp.ne.s32.totalorder %s134, %s148
    %p150 = scmp.eq.s32.totalorder %s19, 0
    %p151 = por %p149, %p150
    %s153 = sadd.s32 %s152, 1
    %p156 = scmp.eq.s32.totalorder %s13, 3
    %p157 = scmp.ne.s32.totalorder %s152, %s154
    %p158 = scmp.eq.s32.totalorder %s13, 0
    %p159 = por %p157, %p158
    %p160 = scmp.ne.s32.totalorder %s152, %s154
    %p161 = scmp.eq.s32.totalorder %s18, 3
    %p162 = por %p160, %p161
    %p163 = scmp.ne.s32.totalorder %s154, %s155
    %p164 = scmp.eq.s32.totalorder %s18, 0
    %p165 = por %p163, %p164
    %p166 = scmp.ne.s32.totalorder %s154, %s155
    %p167 = scmp.eq.s32.totalorder %s19, 3
    %p168 = por %p166, %p167
    %p170 = scmp.ne.s32.totalorder %s155, %s169
    %p171 = scmp.eq.s32.totalorder %s19, 0
    %p172 = por %p170, %p171
    %s174 = sadd.s32 %s173, 1
    %p177 = scmp.eq.s32.totalorder %s13, 3
    %p178 = scmp.ne.s32.totalorder %s173, %s175
    %p179 = scmp.eq.s32.totalorder %s13, 0
    %p180 = por %p178, %p179
    %p181 = scmp.ne.s32.totalorder %s173, %s175
    %p182 = scmp.eq.s32.totalorder %s18, 3
    %p183 = por %p181, %p182
    %p184 = scmp.ne.s32.totalorder %s175, %s176
    %p185 = scmp.eq.s32.totalorder %s18, 0
    %p186 = por %p184, %p185
    %p187 = scmp.ne.s32.totalorder %s175, %s176
    %p188 = scmp.eq.s32.totalorder %s19, 3
    %p189 = por %p187, %p188
    %p191 = scmp.ne.s32.totalorder %s176, %s190
    %p192 = scmp.eq.s32.totalorder %s19, 0
    %p193 = por %p191, %p192
    %s194 = ssub.s32 %s20, %s32
    %s195 = ssub.s32 %s21, %s28
    %s196 = sor.u32 %s194, %s195
    %p197 = scmp.eq.s32.totalorder %s196, 0
    %s199 = sadd.s32 %s198, 1
    %s200 = scalar_select %p197, %s198, %s199
    %p203 = pneg %p197
    %p204 = scmp.eq.s32.totalorder %s13, 3
    %p205 = por %p203, %p204
    %p206 = scmp.ne.s32.totalorder %s198, %s201
    %p207 = scmp.eq.s32.totalorder %s13, 0
    %p208 = por %p206, %p207
    %p209 = scmp.ne.s32.totalorder %s198, %s201
    %p210 = scmp.eq.s32.totalorder %s18, 3
    %p211 = por %p209, %p210
    %p212 = scmp.ne.s32.totalorder %s201, %s202
    %p213 = scmp.eq.s32.totalorder %s18, 0
    %p214 = por %p212, %p213
    %p215 = scmp.ne.s32.totalorder %s201, %s202
    %p216 = scmp.eq.s32.totalorder %s19, 3
    %p217 = por %p215, %p216
    %p219 = scmp.ne.s32.totalorder %s202, %s218
    %p220 = scmp.eq.s32.totalorder %s19, 0
    %p221 = por %p219, %p220
    %p222 = scmp.le.s32.totalorder 1, %s13
    %p223 = scmp.lt.s32.totalorder %s13, 5
    %p224 = pnand %p222, %p223
    %p225 = pneg %p224
    // Predicated region
    $region9: #{pan_forward.3} parent=5 // pred_check
      _
    $region10: #{pan_forward.3} parent=5 // pred_check_branch
      %227 = sbr.rel (%p224) target = $region12
    $region11: #{pan_forward.3} parent=5 // pred_region
      %s228 = ssub.s32 %s13, 1
      // Predicated region
      $region13: #{pan_forward.3} parent=11 // pred_check
        %p229 = pneg %p102
      $region14: #{pan_forward.3} parent=11 // pred_check_branch
        %231 = sbr.rel (%p229) target = $region16
      $region15: #{pan_forward.3} parent=11 // pred_region
        _
      $region16: #{pan_forward.3} parent=11 // pred_fallthru
        _
      // Predicated region
      $region17: #{pan_forward.3} parent=11 // pred_check
        %p232 = pneg %p123
      $region18: #{pan_forward.3} parent=11 // pred_check_branch
        %234 = sbr.rel (%p232) target = $region20
      $region19: #{pan_forward.3} parent=11 // pred_region
        _
      $region20: #{pan_forward.3} parent=11 // pred_fallthru
        _
      // Predicated region
      $region21: #{pan_forward.3} parent=11 // pred_check
        %p235 = pneg %p144
      $region22: #{pan_forward.3} parent=11 // pred_check_branch
        %237 = sbr.rel (%p235) target = $region24
      $region23: #{pan_forward.3} parent=11 // pred_region
        _
      $region24: #{pan_forward.3} parent=11 // pred_fallthru
        _
      // Predicated region
      $region25: #{pan_forward.3} parent=11 // pred_check
        %p238 = pneg %p165
      $region26: #{pan_forward.3} parent=11 // pred_check_branch
        %240 = sbr.rel (%p238) target = $region28
      $region27: #{pan_forward.3} parent=11 // pred_region
        _
      $region28: #{pan_forward.3} parent=11 // pred_fallthru
        _
      // Predicated region
      $region29: #{pan_forward.3} parent=11 // pred_check
        %p241 = pneg %p186
      $region30: #{pan_forward.3} parent=11 // pred_check_branch
        %243 = sbr.rel (%p241) target = $region32
      $region31: #{pan_forward.3} parent=11 // pred_region
        _
      $region32: #{pan_forward.3} parent=11 // pred_fallthru
        _
    $region12: #{pan_forward.3} parent=5 // pred_fallthru
      _
    %p244 = scmp.lt.s32.totalorder %s13, 4
    // Predicated region
    $region33: #{pan_forward.3} parent=5 // pred_check
      %p245 = pneg %p244
    $region34: #{pan_forward.3} parent=5 // pred_check_branch
      %247 = sbr.rel (%p245) target = $region36
    $region35: #{pan_forward.3} parent=5 // pred_region
      // Predicated region
      $region37: #{pan_forward.3} parent=35 // pred_check
        %p248 = pneg %p47
      $region38: #{pan_forward.3} parent=35 // pred_check_branch
        %250 = sbr.rel (%p248) target = $region40
      $region39: #{pan_forward.3} parent=35 // pred_region
        %s251 = smul.u32 16, %s21
        %p252 = scmp.lt.s32.totalorder %s20, 1
        %s253 = scalar_select %p252, %s20, 1
        %p254 = scmp.lt.s32.totalorder %s251, 31
        %s255 = scalar_select %p254, %s251, 31
        %s256 = smul.addr %s253, 32
        %s257 = sadd.s32 %s255, %s256
        %s258 = smul.addr %s257, 4
        %s259 = scalar_lea.vmem %s0, %s258
        %s260 = smul.u32 16, %s21
      $region40: #{pan_forward.3} parent=35 // pred_fallthru
        _
      // Predicated region
      $region41: #{pan_forward.3} parent=35 // pred_check
        %p261 = pneg %p75
      $region42: #{pan_forward.3} parent=35 // pred_check_branch
        %263 = sbr.rel (%p261) target = $region44
      $region43: #{pan_forward.3} parent=35 // pred_region
        %s264 = smul.u32 64, %s21
        %p265 = scmp.lt.s32.totalorder %s20, 1
        %s266 = scalar_select %p265, %s20, 1
        %p267 = scmp.lt.s32.totalorder %s264, 127
        %s268 = scalar_select %p267, %s264, 127
        %s269 = smul.addr %s266, 128
        %s270 = sadd.s32 %s268, %s269
        %s271 = smul.addr %s270, 4
        %s272 = scalar_lea.vmem %s1, %s271
        %s273 = smul.u32 64, %s21
      $region44: #{pan_forward.3} parent=35 // pred_fallthru
        _
    $region36: #{pan_forward.3} parent=5 // pred_fallthru
      _
    %p274 = scmp.le.s32.totalorder 1, %s13
    %p275 = scmp.lt.s32.totalorder %s13, 5
    %p276 = pnand %p274, %p275
    %p277 = pneg %p276
    // Predicated region
    $region45: #{pan_forward.3} parent=5 // pred_check
      _
    $region46: #{pan_forward.3} parent=5 // pred_check_branch
      %279 = sbr.rel (%p276) target = $region48
    $region47: #{pan_forward.3} parent=5 // pred_region
      %s280 = ssub.s32 %s13, 1
      %s281 = smul.u32 16, %s23
      %p282 = scmp.lt.s32.totalorder %s22, 1
      %s283 = scalar_select %p282, %s22, 1
      %p284 = scmp.lt.s32.totalorder %s281, 31
      %s285 = scalar_select %p284, %s281, 31
      %s286 = smul.addr %s283, 32
      %s287 = sadd.s32 %s285, %s286
      %s288 = smul.addr %s287, 4
      %s289 = scalar_lea.vmem %s0, %s288
      %p290 = pneg %p53
      %p291 = pneg %p50
      %s292 = smul.u32 64, %s23
      %p293 = scmp.lt.s32.totalorder %s22, 1
      %s294 = scalar_select %p293, %s22, 1
      %p295 = scmp.lt.s32.totalorder %s292, 127
      %s296 = scalar_select %p295, %s292, 127
      %s297 = smul.addr %s294, 128
      %s298 = sadd.s32 %s296, %s297
      %s299 = smul.addr %s298, 4
      %s300 = scalar_lea.vmem %s1, %s299
      %p301 = pneg %p81
      %p302 = pneg %p78
      %p303 = pneg %p102
      %p304 = pneg %p99
      %p305 = pneg %p123
      %p306 = pneg %p120
      %p307 = pneg %p144
      %p308 = pneg %p141
      %p309 = pneg %p165
      %p310 = pneg %p162
      %p311 = pneg %p186
      %p312 = pneg %p183
      %p313 = pneg %p214
      %p314 = pneg %p211
      %s315 = smul.u32 64, %s23
      %p316 = scmp.lt.s32.totalorder %s22, 1
      %s317 = scalar_select %p316, %s22, 1
      %p318 = scmp.lt.s32.totalorder %s315, 127
      %s319 = scalar_select %p318, %s315, 127
      %s320 = smul.addr %s317, 128
      %s321 = sadd.s32 %s319, %s320
      %s322 = smul.addr %s321, 4
      %s323 = scalar_lea.vmem %s7, %s322
      %s324 = smul.u32 16, %s23
      %p325 = scmp.lt.s32.totalorder %s22, 1
      %s326 = scalar_select %p325, %s22, 1
      %p327 = scmp.lt.s32.totalorder %s324, 31
      %s328 = scalar_select %p327, %s324, 31
      %s329 = smul.addr %s326, 32
      %s330 = sadd.s32 %s328, %s329
      %s331 = smul.addr %s330, 4
      %s332 = scalar_lea.vmem %s0, %s331
      %s333 = smul.u32 16, %s23
      %s334 = smul.u32 64, %s23
      %p335 = scmp.lt.s32.totalorder %s22, 1
      %s336 = scalar_select %p335, %s22, 1
      %p337 = scmp.lt.s32.totalorder %s334, 127
      %s338 = scalar_select %p337, %s334, 127
      %s339 = smul.addr %s336, 128
      %s340 = sadd.s32 %s338, %s339
      %s341 = smul.addr %s340, 4
      %s342 = scalar_lea.vmem %s1, %s341
      %s343 = smul.u32 64, %s23
      %s344 = smul.u32 64, %s23
      %p345 = scmp.lt.s32.totalorder %s22, 1
      %s346 = scalar_select %p345, %s22, 1
      %p347 = scmp.lt.s32.totalorder %s344, 127
      %s348 = scalar_select %p347, %s344, 127
      %s349 = smul.addr %s346, 128
      %s350 = sadd.s32 %s348, %s349
      %s351 = smul.addr %s350, 4
      %s352 = scalar_lea.vmem %s7, %s351
      %s353 = smul.u32 64, %s23
      %v355 = vld [vmem:[%s332] sm:$0xf]
      %v356 = vld [vmem:[%s332 + $0x4] sm:$0xf]
      %v357 = vld [vmem:[%s332 + $0x8] sm:$0xf]
      %v358 = vld [vmem:[%s332 + $0xc] sm:$0xf]
      %v359 = vld [vmem:[%s332 + $0x10] sm:$0xf]
      %v360 = vld [vmem:[%s332 + $0x14] sm:$0xf]
      %v361 = vld [vmem:[%s332 + $0x18] sm:$0xf]
      %v362 = vld [vmem:[%s332 + $0x1c] sm:$0xf]
      %v363 = vld [vmem:[%s332 + $0x20] sm:$0xf]
      %v364 = vld [vmem:[%s332 + $0x24] sm:$0xf]
      %v365 = vld [vmem:[%s332 + $0x28] sm:$0xf]
      %v366 = vld [vmem:[%s332 + $0x2c] sm:$0xf]
      %v367 = vld [vmem:[%s332 + $0x30] sm:$0xf]
      %v368 = vld [vmem:[%s332 + $0x34] sm:$0xf]
      %v369 = vld [vmem:[%s332 + $0x38] sm:$0xf]
      %v370 = vld [vmem:[%s332 + $0x3c] sm:$0xf]
      %v371 = vld [vmem:[%s2] sm:$0x3]
      %v388 = vunpack.c.l.b16 %v355
      %v389 = vunpack.c.l.b16 %v356
      %v390 = vunpack.c.l.b16 %v357
      %v391 = vunpack.c.l.b16 %v358
      %v392 = vunpack.c.l.b16 %v359
      %v393 = vunpack.c.l.b16 %v360
      %v394 = vunpack.c.l.b16 %v361
      %v395 = vunpack.c.l.b16 %v362
      %v396 = vunpack.c.l.b16 %v363
      %v397 = vunpack.c.l.b16 %v364
      %v398 = vunpack.c.l.b16 %v365
      %v399 = vunpack.c.l.b16 %v366
      %v400 = vunpack.c.l.b16 %v367
      %v401 = vunpack.c.l.b16 %v368
      %v402 = vunpack.c.l.b16 %v369
      %v403 = vunpack.c.l.b16 %v370
      %v404 = vpack.c.b16 %v389, %v388
      %v405 = vpack.c.b16 %v391, %v390
      %v406 = vpack.c.b16 %v393, %v392
      %v407 = vpack.c.b16 %v395, %v394
      %v408 = vpack.c.b16 %v397, %v396
      %v409 = vpack.c.b16 %v399, %v398
      %v410 = vpack.c.b16 %v401, %v400
      %v411 = vpack.c.b16 %v403, %v402
      %vm412 = vcmask 31744
      %v414 = vsel %vm412, %v404, 0
      %v417 = vsel %vm412, %v405, 0
      %v420 = vsel %vm412, %v406, 0
      %v423 = vsel %vm412, %v407, 0
      %v426 = vsel %vm412, %v408, 0
      %v429 = vsel %vm412, %v409, 0
      %v432 = vsel %vm412, %v410, 0
      %v435 = vsel %vm412, %v411, 0
      %vm437 = vcmask 1041408
      %v439 = vsel %vm437, %v371, 0
      %441 = vmatprep.subr.bf16.mxu0 0
      %442 = vmatpush1.bf16.msra.mxu0 %v439
      %443 = vmatprep.subr.bf16.mxu0 0
      %444 = vmatpush1.bf16.msra.mxu0 0
      %445 = vmatprep.subr.bf16.mxu0 0
      %446 = vmatpush1.bf16.msra.mxu0 0
      %447 = vmatprep.subr.bf16.mxu0 0
      %448 = vmatpush1.bf16.msra.mxu0 0
      %449 = vmatprep.subr.bf16.mxu0 0
      %450 = vmatpush1.bf16.msra.mxu0 0
      %451 = vmatprep.subr.bf16.mxu0 0
      %452 = vmatpush1.bf16.msra.mxu0 0
      %453 = vmatprep.subr.bf16.mxu0 0
      %454 = vmatpush1.bf16.msra.mxu0 0
      %455 = vmatprep.subr.bf16.mxu0 0
      %456 = vmatpush1.bf16.msra.mxu0 0
      %457 = vmatprep.subr.bf16.mxu0 0
      %458 = vmatpush1.bf16.msra.mxu0 0
      %459 = vmatprep.subr.bf16.mxu0 0
      %460 = vmatpush1.bf16.msra.mxu0 0
      %461 = vmatprep.subr.bf16.mxu0 0
      %462 = vmatpush1.bf16.msra.mxu0 0
      %463 = vmatprep.subr.bf16.mxu0 0
      %464 = vmatpush1.bf16.msra.mxu0 0
      %465 = vmatprep.subr.bf16.mxu0 0
      %466 = vmatpush1.bf16.msra.mxu0 0
      %467 = vmatprep.subr.bf16.mxu0 0
      %468 = vmatpush1.bf16.msra.mxu0 0
      %469 = vmatprep.subr.bf16.mxu0 0
      %470 = vmatpush1.bf16.msra.mxu0 0
      %471 = vmatprep.subr.bf16.mxu0 0
      %472 = vmatpush1.bf16.msra.mxu0 0
      %473 = vmatprep.mubr.bf16.mxu0 0
      %474 = vmatmul.mubr.bf16.gmra.mrb[0].mxu0 %v414
      %v475 = vpop.f32.mrb[0].mxu0
      %v476 = vadd.f32 0.0, %v475
      %v477 = vpop.f32.mrb[0].mxu0
      %v478 = vpop.f32.mrb[0].mxu0
      %v479 = vadd.f32 0.0, %v478
      %v480 = vpop.f32.mrb[0].mxu0
      %481 = vmatprep.mubr.bf16.mxu0 0
      %482 = vmatmul.mubr.bf16.gmra.mrb[0].mxu0 %v417
      %v483 = vpop.f32.mrb[0].mxu0
      %v484 = vadd.f32 0.0, %v483
      %v485 = vpop.f32.mrb[0].mxu0
      %v486 = vpop.f32.mrb[0].mxu0
      %v487 = vadd.f32 0.0, %v486
      %v488 = vpop.f32.mrb[0].mxu0
      %489 = vmatprep.mubr.bf16.mxu0 0
      %490 = vmatmul.mubr.bf16.gmra.mrb[0].mxu0 %v420
      %v491 = vpop.f32.mrb[0].mxu0
      %v492 = vadd.f32 0.0, %v491
      %v493 = vpop.f32.mrb[0].mxu0
      %v494 = vpop.f32.mrb[0].mxu0
      %v495 = vadd.f32 0.0, %v494
      %v496 = vpop.f32.mrb[0].mxu0
      %497 = vmatprep.mubr.bf16.mxu0 0
      %498 = vmatmul.mubr.bf16.gmra.mrb[0].mxu0 %v423
      %v499 = vpop.f32.mrb[0].mxu0
      %v500 = vadd.f32 0.0, %v499
      %v501 = vpop.f32.mrb[0].mxu0
      %v502 = vpop.f32.mrb[0].mxu0
      %v503 = vadd.f32 0.0, %v502
      %v504 = vpop.f32.mrb[0].mxu0
      %505 = vmatprep.mubr.bf16.mxu0 0
      %506 = vmatmul.mubr.bf16.gmra.mrb[0].mxu0 %v426
      %v507 = vpop.f32.mrb[0].mxu0
      %v508 = vadd.f32 0.0, %v507
      %v509 = vpop.f32.mrb[0].mxu0
      %v510 = vpop.f32.mrb[0].mxu0
      %v511 = vadd.f32 0.0, %v510
      %v512 = vpop.f32.mrb[0].mxu0
      %513 = vmatprep.mubr.bf16.mxu0 0
      %514 = vmatmul.mubr.bf16.gmra.mrb[0].mxu0 %v429
      %v515 = vpop.f32.mrb[0].mxu0
      %v516 = vadd.f32 0.0, %v515
      %v517 = vpop.f32.mrb[0].mxu0
      %v518 = vpop.f32.mrb[0].mxu0
      %v519 = vadd.f32 0.0, %v518
      %v520 = vpop.f32.mrb[0].mxu0
      %521 = vmatprep.mubr.bf16.mxu0 0
      %522 = vmatmul.mubr.bf16.gmra.mrb[0].mxu0 %v432
      %v523 = vpop.f32.mrb[0].mxu0
      %v524 = vadd.f32 0.0, %v523
      %v525 = vpop.f32.mrb[0].mxu0
      %v526 = vpop.f32.mrb[0].mxu0
      %v527 = vadd.f32 0.0, %v526
      %v528 = vpop.f32.mrb[0].mxu0
      %529 = vmatprep.mubr.bf16.mxu0 0
      %530 = vmatmul.mubr.bf16.gmra.mrb[0].mxu0 %v435
      %v531 = vpop.f32.mrb[0].mxu0
      %v532 = vadd.f32 0.0, %v531
      %v533 = vpop.f32.mrb[0].mxu0
      %v534 = vpop.f32.mrb[0].mxu0
      %v535 = vadd.f32 0.0, %v534
      %v536 = vpop.f32.mrb[0].mxu0
      %537 = vdwg.mxu0
      %v538 = vpack.c.bf16 %v479, %v476
      %v539 = vpack.c.bf16 %v487, %v484
      %v540 = vpack.c.bf16 %v495, %v492
      %v541 = vpack.c.bf16 %v503, %v500
      %v542 = vpack.c.bf16 %v511, %v508
      %v543 = vpack.c.bf16 %v519, %v516
      %v544 = vpack.c.bf16 %v527, %v524
      %v545 = vpack.c.bf16 %v535, %v532
      %v546 = vld [vmem:[%s6] sm:$0xf]
      %v547 = vld [vmem:[%s6 + $0x4] sm:$0xf]
      %v548 = vld [vmem:[%s6 + $0x8] sm:$0xf]
      %v549 = vld [vmem:[%s6 + $0xc] sm:$0xf]
      %v554 = vunpack.c.l.b16 %v546
      %v555 = vunpack.c.l.b16 %v547
      %v556 = vunpack.c.l.b16 %v548
      %v557 = vunpack.c.l.b16 %v549
      %v558 = vpack.c.b16 %v555, %v554
      %v559 = vpack.c.b16 %v557, %v556
      %vm560 = vcmask 130048
      %v562 = vsel %vm560, %v558, 0
      %v565 = vsel %vm560, %v559, 0
      %567 = vmatprep.subr.bf16.mxu0 0
      %568 = vmatpush1.bf16.msra.mxu0 %v538
      %569 = vmatprep.subr.bf16.mxu0 0
      %570 = vmatpush1.bf16.msra.mxu0 0
      %571 = vmatprep.subr.bf16.mxu0 0
      %572 = vmatpush1.bf16.msra.mxu0 0
      %573 = vmatprep.subr.bf16.mxu0 0
      %574 = vmatpush1.bf16.msra.mxu0 0
      %575 = vmatprep.subr.bf16.mxu0 0
      %576 = vmatpush1.bf16.msra.mxu0 0
      %577 = vmatprep.subr.bf16.mxu0 0
      %578 = vmatpush1.bf16.msra.mxu0 0
      %579 = vmatprep.subr.bf16.mxu0 0
      %580 = vmatpush1.bf16.msra.mxu0 0
      %581 = vmatprep.subr.bf16.mxu0 0
      %582 = vmatpush1.bf16.msra.mxu0 0
      %583 = vmatprep.subr.bf16.mxu0 0
      %584 = vmatpush1.bf16.msra.mxu0 0
      %585 = vmatprep.subr.bf16.mxu0 0
      %586 = vmatpush1.bf16.msra.mxu0 0
      %587 = vmatprep.subr.bf16.mxu0 0
      %588 = vmatpush1.bf16.msra.mxu0 0
      %589 = vmatprep.subr.bf16.mxu0 0
      %590 = vmatpush1.bf16.msra.mxu0 0
      %591 = vmatprep.subr.bf16.mxu0 0
      %592 = vmatpush1.bf16.msra.mxu0 0
      %593 = vmatprep.subr.bf16.mxu0 0
      %594 = vmatpush1.bf16.msra.mxu0 0
      %595 = vmatprep.subr.bf16.mxu0 0
      %596 = vmatpush1.bf16.msra.mxu0 0
      %597 = vmatprep.subr.bf16.mxu0 0
      %598 = vmatpush1.bf16.msra.mxu0 0
      %599 = vmatprep.mubr.bf16.mxu0 0
      %600 = vmatmul.mubr.bf16.gmra.mrb[0].mxu0 %v562
      %v601 = vpop.f32.mrb[0].mxu0
      %v602 = vadd.f32 0.0, %v601
      %v603 = vpop.f32.mrb[0].mxu0
      %v604 = vpop.f32.mrb[0].mxu0
      %v605 = vadd.f32 0.0, %v604
      %v606 = vpop.f32.mrb[0].mxu0
      %607 = vmatprep.mubr.bf16.mxu0 0
      %608 = vmatmul.mubr.bf16.gmra.mrb[0].mxu0 %v565
      %v609 = vpop.f32.mrb[0].mxu0
      %v610 = vadd.f32 0.0, %v609
      %v611 = vpop.f32.mrb[0].mxu0
      %v612 = vpop.f32.mrb[0].mxu0
      %v613 = vadd.f32 0.0, %v612
      %v614 = vpop.f32.mrb[0].mxu0
      %615 = vdwg.mxu0
      %616 = vmatprep.subr.bf16.mxu0 0
      %617 = vmatpush1.bf16.msra.mxu0 %v539
      %618 = vmatprep.subr.bf16.mxu0 0
      %619 = vmatpush1.bf16.msra.mxu0 0
      %620 = vmatprep.subr.bf16.mxu0 0
      %621 = vmatpush1.bf16.msra.mxu0 0
      %622 = vmatprep.subr.bf16.mxu0 0
      %623 = vmatpush1.bf16.msra.mxu0 0
      %624 = vmatprep.subr.bf16.mxu0 0
      %625 = vmatpush1.bf16.msra.mxu0 0
      %626 = vmatprep.subr.bf16.mxu0 0
      %627 = vmatpush1.bf16.msra.mxu0 0
      %628 = vmatprep.subr.bf16.mxu0 0
      %629 = vmatpush1.bf16.msra.mxu0 0
      %630 = vmatprep.subr.bf16.mxu0 0
      %631 = vmatpush1.bf16.msra.mxu0 0
      %632 = vmatprep.subr.bf16.mxu0 0
      %633 = vmatpush1.bf16.msra.mxu0 0
      %634 = vmatprep.subr.bf16.mxu0 0
      %635 = vmatpush1.bf16.msra.mxu0 0
      %636 = vmatprep.subr.bf16.mxu0 0
      %637 = vmatpush1.bf16.msra.mxu0 0
      %638 = vmatprep.subr.bf16.mxu0 0
      %639 = vmatpush1.bf16.msra.mxu0 0
      %640 = vmatprep.subr.bf16.mxu0 0
      %641 = vmatpush1.bf16.msra.mxu0 0
      %642 = vmatprep.subr.bf16.mxu0 0
      %643 = vmatpush1.bf16.msra.mxu0 0
      %644 = vmatprep.subr.bf16.mxu0 0
      %645 = vmatpush1.bf16.msra.mxu0 0
      %646 = vmatprep.subr.bf16.mxu0 0
      %647 = vmatpush1.bf16.msra.mxu0 0
      %648 = vmatprep.mubr.bf16.mxu0 0
      %649 = vmatmul.mubr.bf16.gmra.mrb[0].mxu0 %v562
      %v650 = vpop.f32.mrb[0].mxu0
      %v651 = vadd.f32 0.0, %v650
      %v652 = vpop.f32.mrb[0].mxu0
      %v653 = vpop.f32.mrb[0].mxu0
      %v654 = vadd.f32 0.0, %v653
      %v655 = vpop.f32.mrb[0].mxu0
      %656 = vmatprep.mubr.bf16.mxu0 0
      %657 = vmatmul.mubr.bf16.gmra.mrb[0].mxu0 %v565
      %v658 = vpop.f32.mrb[0].mxu0
      %v659 = vadd.f32 0.0, %v658
      %v660 = vpop.f32.mrb[0].mxu0
      %v661 = vpop.f32.mrb[0].mxu0
      %v662 = vadd.f32 0.0, %v661
      %v663 = vpop.f32.mrb[0].mxu0
      %664 = vdwg.mxu0
      %665 = vmatprep.subr.bf16.mxu0 0
      %666 = vmatpush1.bf16.msra.mxu0 %v540
      %667 = vmatprep.subr.bf16.mxu0 0
      %668 = vmatpush1.bf16.msra.mxu0 0
      %669 = vmatprep.subr.bf16.mxu0 0
      %670 = vmatpush1.bf16.msra.mxu0 0
      %671 = vmatprep.subr.bf16.mxu0 0
      %672 = vmatpush1.bf16.msra.mxu0 0
      %673 = vmatprep.subr.bf16.mxu0 0
      %674 = vmatpush1.bf16.msra.mxu0 0
      %675 = vmatprep.subr.bf16.mxu0 0
      %676 = vmatpush1.bf16.msra.mxu0 0
      %677 = vmatprep.subr.bf16.mxu0 0
      %678 = vmatpush1.bf16.msra.mxu0 0
      %679 = vmatprep.subr.bf16.mxu0 0
      %680 = vmatpush1.bf16.msra.mxu0 0
      %681 = vmatprep.subr.bf16.mxu0 0
      %682 = vmatpush1.bf16.msra.mxu0 0
      %683 = vmatprep.subr.bf16.mxu0 0
      %684 = vmatpush1.bf16.msra.mxu0 0
      %685 = vmatprep.subr.bf16.mxu0 0
      %686 = vmatpush1.bf16.msra.mxu0 0
      %687 = vmatprep.subr.bf16.mxu0 0
      %688 = vmatpush1.bf16.msra.mxu0 0
      %689 = vmatprep.subr.bf16.mxu0 0
      %690 = vmatpush1.bf16.msra.mxu0 0
      %691 = vmatprep.subr.bf16.mxu0 0
      %692 = vmatpush1.bf16.msra.mxu0 0
      %693 = vmatprep.subr.bf16.mxu0 0
      %694 = vmatpush1.bf16.msra.mxu0 0
      %695 = vmatprep.subr.bf16.mxu0 0
      %696 = vmatpush1.bf16.msra.mxu0 0
      %697 = vmatprep.mubr.bf16.mxu0 0
      %698 = vmatmul.mubr.bf16.gmra.mrb[0].mxu0 %v562
      %v699 = vpop.f32.mrb[0].mxu0
      %v700 = vadd.f32 0.0, %v699
      %v701 = vpop.f32.mrb[0].mxu0
      %v702 = vpop.f32.mrb[0].mxu0
      %v703 = vadd.f32 0.0, %v702
      %v704 = vpop.f32.mrb[0].mxu0
      %705 = vmatprep.mubr.bf16.mxu0 0
      %706 = vmatmul.mubr.bf16.gmra.mrb[0].mxu0 %v565
      %v707 = vpop.f32.mrb[0].mxu0
      %v708 = vadd.f32 0.0, %v707
      %v709 = vpop.f32.mrb[0].mxu0
      %v710 = vpop.f32.mrb[0].mxu0
      %v711 = vadd.f32 0.0, %v710
      %v712 = vpop.f32.mrb[0].mxu0
      %713 = vdwg.mxu0
      %714 = vmatprep.subr.bf16.mxu0 0
      %715 = vmatpush1.bf16.msra.mxu0 %v541
      %716 = vmatprep.subr.bf16.mxu0 0
      %717 = vmatpush1.bf16.msra.mxu0 0
      %718 = vmatprep.subr.bf16.mxu0 0
      %719 = vmatpush1.bf16.msra.mxu0 0
      %720 = vmatprep.subr.bf16.mxu0 0
      %721 = vmatpush1.bf16.msra.mxu0 0
      %722 = vmatprep.subr.bf16.mxu0 0
      %723 = vmatpush1.bf16.msra.mxu0 0
      %724 = vmatprep.subr.bf16.mxu0 0
      %725 = vmatpush1.bf16.msra.mxu0 0
      %726 = vmatprep.subr.bf16.mxu0 0
      %727 = vmatpush1.bf16.msra.mxu0 0
      %728 = vmatprep.subr.bf16.mxu0 0
      %729 = vmatpush1.bf16.msra.mxu0 0
      %730 = vmatprep.subr.bf16.mxu0 0
      %731 = vmatpush1.bf16.msra.mxu0 0
      %732 = vmatprep.subr.bf16.mxu0 0
      %733 = vmatpush1.bf16.msra.mxu0 0
      %734 = vmatprep.subr.bf16.mxu0 0
      %735 = vmatpush1.bf16.msra.mxu0 0
      %736 = vmatprep.subr.bf16.mxu0 0
      %737 = vmatpush1.bf16.msra.mxu0 0
      %738 = vmatprep.subr.bf16.mxu0 0
      %739 = vmatpush1.bf16.msra.mxu0 0
      %740 = vmatprep.subr.bf16.mxu0 0
      %741 = vmatpush1.bf16.msra.mxu0 0
      %742 = vmatprep.subr.bf16.mxu0 0
      %743 = vmatpush1.bf16.msra.mxu0 0
      %744 = vmatprep.subr.bf16.mxu0 0
      %745 = vmatpush1.bf16.msra.mxu0 0
      %746 = vmatprep.mubr.bf16.mxu0 0
      %747 = vmatmul.mubr.bf16.gmra.mrb[0].mxu0 %v562
      %v748 = vpop.f32.mrb[0].mxu0
      %v749 = vadd.f32 0.0, %v748
      %v750 = vpop.f32.mrb[0].mxu0
      %v751 = vpop.f32.mrb[0].mxu0
      %v752 = vadd.f32 0.0, %v751
      %v753 = vpop.f32.mrb[0].mxu0
      %754 = vmatprep.mubr.bf16.mxu0 0
      %755 = vmatmul.mubr.bf16.gmra.mrb[0].mxu0 %v565
      %v756 = vpop.f32.mrb[0].mxu0
      %v757 = vadd.f32 0.0, %v756
      %v758 = vpop.f32.mrb[0].mxu0
      %v759 = vpop.f32.mrb[0].mxu0
      %v760 = vadd.f32 0.0, %v759
      %v761 = vpop.f32.mrb[0].mxu0
      %762 = vdwg.mxu0
      %763 = vmatprep.subr.bf16.mxu0 0
      %764 = vmatpush1.bf16.msra.mxu0 %v542
      %765 = vmatprep.subr.bf16.mxu0 0
      %766 = vmatpush1.bf16.msra.mxu0 0
      %767 = vmatprep.subr.bf16.mxu0 0
      %768 = vmatpush1.bf16.msra.mxu0 0
      %769 = vmatprep.subr.bf16.mxu0 0
      %770 = vmatpush1.bf16.msra.mxu0 0
      %771 = vmatprep.subr.bf16.mxu0 0
      %772 = vmatpush1.bf16.msra.mxu0 0
      %773 = vmatprep.subr.bf16.mxu0 0
      %774 = vmatpush1.bf16.msra.mxu0 0
      %775 = vmatprep.subr.bf16.mxu0 0
      %776 = vmatpush1.bf16.msra.mxu0 0
      %777 = vmatprep.subr.bf16.mxu0 0
      %778 = vmatpush1.bf16.msra.mxu0 0
      %779 = vmatprep.subr.bf16.mxu0 0
      %780 = vmatpush1.bf16.msra.mxu0 0
      %781 = vmatprep.subr.bf16.mxu0 0
      %782 = vmatpush1.bf16.msra.mxu0 0
      %783 = vmatprep.subr.bf16.mxu0 0
      %784 = vmatpush1.bf16.msra.mxu0 0
      %785 = vmatprep.subr.bf16.mxu0 0
      %786 = vmatpush1.bf16.msra.mxu0 0
      %787 = vmatprep.subr.bf16.mxu0 0
      %788 = vmatpush1.bf16.msra.mxu0 0
      %789 = vmatprep.subr.bf16.mxu0 0
      %790 = vmatpush1.bf16.msra.mxu0 0
      %791 = vmatprep.subr.bf16.mxu0 0
      %792 = vmatpush1.bf16.msra.mxu0 0
      %793 = vmatprep.subr.bf16.mxu0 0
      %794 = vmatpush1.bf16.msra.mxu0 0
      %795 = vmatprep.mubr.bf16.mxu0 0
      %796 = vmatmul.mubr.bf16.gmra.mrb[0].mxu0 %v562
      %v797 = vpop.f32.mrb[0].mxu0
      %v798 = vadd.f32 0.0, %v797
      %v799 = vpop.f32.mrb[0].mxu0
      %v800 = vpop.f32.mrb[0].mxu0
      %v801 = vadd.f32 0.0, %v800
      %v802 = vpop.f32.mrb[0].mxu0
      %803 = vmatprep.mubr.bf16.mxu0 0
      %804 = vmatmul.mubr.bf16.gmra.mrb[0].mxu0 %v565
      %v805 = vpop.f32.mrb[0].mxu0
      %v806 = vadd.f32 0.0, %v805
      %v807 = vpop.f32.mrb[0].mxu0
      %v808 = vpop.f32.mrb[0].mxu0
      %v809 = vadd.f32 0.0, %v808
      %v810 = vpop.f32.mrb[0].mxu0
      %811 = vdwg.mxu0
      %812 = vmatprep.subr.bf16.mxu0 0
      %813 = vmatpush1.bf16.msra.mxu0 %v543
      %814 = vmatprep.subr.bf16.mxu0 0
      %815 = vmatpush1.bf16.msra.mxu0 0
      %816 = vmatprep.subr.bf16.mxu0 0
      %817 = vmatpush1.bf16.msra.mxu0 0
      %818 = vmatprep.subr.bf16.mxu0 0
      %819 = vmatpush1.bf16.msra.mxu0 0
      %820 = vmatprep.subr.bf16.mxu0 0
      %821 = vmatpush1.bf16.msra.mxu0 0
      %822 = vmatprep.subr.bf16.mxu0 0
      %823 = vmatpush1.bf16.msra.mxu0 0
      %824 = vmatprep.subr.bf16.mxu0 0
      %825 = vmatpush1.bf16.msra.mxu0 0
      %826 = vmatprep.subr.bf16.mxu0 0
      %827 = vmatpush1.bf16.msra.mxu0 0
      %828 = vmatprep.subr.bf16.mxu0 0
      %829 = vmatpush1.bf16.msra.mxu0 0
      %830 = vmatprep.subr.bf16.mxu0 0
      %831 = vmatpush1.bf16.msra.mxu0 0
      %832 = vmatprep.subr.bf16.mxu0 0
      %833 = vmatpush1.bf16.msra.mxu0 0
      %834 = vmatprep.subr.bf16.mxu0 0
      %835 = vmatpush1.bf16.msra.mxu0 0
      %836 = vmatprep.subr.bf16.mxu0 0
      %837 = vmatpush1.bf16.msra.mxu0 0
      %838 = vmatprep.subr.bf16.mxu0 0
      %839 = vmatpush1.bf16.msra.mxu0 0
      %840 = vmatprep.subr.bf16.mxu0 0
      %841 = vmatpush1.bf16.msra.mxu0 0
      %842 = vmatprep.subr.bf16.mxu0 0
      %843 = vmatpush1.bf16.msra.mxu0 0
      %844 = vmatprep.mubr.bf16.mxu0 0
      %845 = vmatmul.mubr.bf16.gmra.mrb[0].mxu0 %v562
      %v846 = vpop.f32.mrb[0].mxu0
      %v847 = vadd.f32 0.0, %v846
      %v848 = vpop.f32.mrb[0].mxu0
      %v849 = vpop.f32.mrb[0].mxu0
      %v850 = vadd.f32 0.0, %v849
      %v851 = vpop.f32.mrb[0].mxu0
      %852 = vmatprep.mubr.bf16.mxu0 0
      %853 = vmatmul.mubr.bf16.gmra.mrb[0].mxu0 %v565
      %v854 = vpop.f32.mrb[0].mxu0
      %v855 = vadd.f32 0.0, %v854
      %v856 = vpop.f32.mrb[0].mxu0
      %v857 = vpop.f32.mrb[0].mxu0
      %v858 = vadd.f32 0.0, %v857
      %v859 = vpop.f32.mrb[0].mxu0
      %860 = vdwg.mxu0
      %861 = vmatprep.subr.bf16.mxu0 0
      %862 = vmatpush1.bf16.msra.mxu0 %v544
      %863 = vmatprep.subr.bf16.mxu0 0
      %864 = vmatpush1.bf16.msra.mxu0 0
      %865 = vmatprep.subr.bf16.mxu0 0
      %866 = vmatpush1.bf16.msra.mxu0 0
      %867 = vmatprep.subr.bf16.mxu0 0
      %868 = vmatpush1.bf16.msra.mxu0 0
      %869 = vmatprep.subr.bf16.mxu0 0
      %870 = vmatpush1.bf16.msra.mxu0 0
      %871 = vmatprep.subr.bf16.mxu0 0
      %872 = vmatpush1.bf16.msra.mxu0 0
      %873 = vmatprep.subr.bf16.mxu0 0
      %874 = vmatpush1.bf16.msra.mxu0 0
      %875 = vmatprep.subr.bf16.mxu0 0
      %876 = vmatpush1.bf16.msra.mxu0 0
      %877 = vmatprep.subr.bf16.mxu0 0
      %878 = vmatpush1.bf16.msra.mxu0 0
      %879 = vmatprep.subr.bf16.mxu0 0
      %880 = vmatpush1.bf16.msra.mxu0 0
      %881 = vmatprep.subr.bf16.mxu0 0
      %882 = vmatpush1.bf16.msra.mxu0 0
      %883 = vmatprep.subr.bf16.mxu0 0
      %884 = vmatpush1.bf16.msra.mxu0 0
      %885 = vmatprep.subr.bf16.mxu0 0
      %886 = vmatpush1.bf16.msra.mxu0 0
      %887 = vmatprep.subr.bf16.mxu0 0
      %888 = vmatpush1.bf16.msra.mxu0 0
      %889 = vmatprep.subr.bf16.mxu0 0
      %890 = vmatpush1.bf16.msra.mxu0 0
      %891 = vmatprep.subr.bf16.mxu0 0
      %892 = vmatpush1.bf16.msra.mxu0 0
      %893 = vmatprep.mubr.bf16.mxu0 0
      %894 = vmatmul.mubr.bf16.gmra.mrb[0].mxu0 %v562
      %v895 = vpop.f32.mrb[0].mxu0
      %v896 = vadd.f32 0.0, %v895
      %v897 = vpop.f32.mrb[0].mxu0
      %v898 = vpop.f32.mrb[0].mxu0
      %v899 = vadd.f32 0.0, %v898
      %v900 = vpop.f32.mrb[0].mxu0
      %901 = vmatprep.mubr.bf16.mxu0 0
      %902 = vmatmul.mubr.bf16.gmra.mrb[0].mxu0 %v565
      %v903 = vpop.f32.mrb[0].mxu0
      %v904 = vadd.f32 0.0, %v903
      %v905 = vpop.f32.mrb[0].mxu0
      %v906 = vpop.f32.mrb[0].mxu0
      %v907 = vadd.f32 0.0, %v906
      %v908 = vpop.f32.mrb[0].mxu0
      %909 = vdwg.mxu0
      %910 = vmatprep.subr.bf16.mxu0 0
      %911 = vmatpush1.bf16.msra.mxu0 %v545
      %912 = vmatprep.subr.bf16.mxu0 0
      %913 = vmatpush1.bf16.msra.mxu0 0
      %914 = vmatprep.subr.bf16.mxu0 0
      %915 = vmatpush1.bf16.msra.mxu0 0
      %916 = vmatprep.subr.bf16.mxu0 0
      %917 = vmatpush1.bf16.msra.mxu0 0
      %918 = vmatprep.subr.bf16.mxu0 0
      %919 = vmatpush1.bf16.msra.mxu0 0
      %920 = vmatprep.subr.bf16.mxu0 0
      %921 = vmatpush1.bf16.msra.mxu0 0
      %922 = vmatprep.subr.bf16.mxu0 0
      %923 = vmatpush1.bf16.msra.mxu0 0
      %924 = vmatprep.subr.bf16.mxu0 0
      %925 = vmatpush1.bf16.msra.mxu0 0
      %926 = vmatprep.subr.bf16.mxu0 0
      %927 = vmatpush1.bf16.msra.mxu0 0
      %928 = vmatprep.subr.bf16.mxu0 0
      %929 = vmatpush1.bf16.msra.mxu0 0
      %930 = vmatprep.subr.bf16.mxu0 0
      %931 = vmatpush1.bf16.msra.mxu0 0
      %932 = vmatprep.subr.bf16.mxu0 0
      %933 = vmatpush1.bf16.msra.mxu0 0
      %934 = vmatprep.subr.bf16.mxu0 0
      %935 = vmatpush1.bf16.msra.mxu0 0
      %936 = vmatprep.subr.bf16.mxu0 0
      %937 = vmatpush1.bf16.msra.mxu0 0
      %938 = vmatprep.subr.bf16.mxu0 0
      %939 = vmatpush1.bf16.msra.mxu0 0
      %940 = vmatprep.subr.bf16.mxu0 0
      %941 = vmatpush1.bf16.msra.mxu0 0
      %942 = vmatprep.mubr.bf16.mxu0 0
      %943 = vmatmul.mubr.bf16.gmra.mrb[0].mxu0 %v562
      %v944 = vpop.f32.mrb[0].mxu0
      %v945 = vadd.f32 0.0, %v944
      %v946 = vpop.f32.mrb[0].mxu0
      %v947 = vpop.f32.mrb[0].mxu0
      %v948 = vadd.f32 0.0, %v947
      %v949 = vpop.f32.mrb[0].mxu0
      %950 = vmatprep.mubr.bf16.mxu0 0
      %951 = vmatmul.mubr.bf16.gmra.mrb[0].mxu0 %v565
      %v952 = vpop.f32.mrb[0].mxu0
      %v953 = vadd.f32 0.0, %v952
      %v954 = vpop.f32.mrb[0].mxu0
      %v955 = vpop.f32.mrb[0].mxu0
      %v956 = vadd.f32 0.0, %v955
      %v957 = vpop.f32.mrb[0].mxu0
      %958 = vdwg.mxu0
      %v959 = vpack.c.bf16 %v605, %v602
      %v960 = vpack.c.bf16 %v613, %v610
      %v961 = vpack.c.bf16 %v654, %v651
      %v962 = vpack.c.bf16 %v662, %v659
      %v963 = vpack.c.bf16 %v703, %v700
      %v964 = vpack.c.bf16 %v711, %v708
      %v965 = vpack.c.bf16 %v752, %v749
      %v966 = vpack.c.bf16 %v760, %v757
      %v967 = vpack.c.bf16 %v801, %v798
      %v968 = vpack.c.bf16 %v809, %v806
      %v969 = vpack.c.bf16 %v850, %v847
      %v970 = vpack.c.bf16 %v858, %v855
      %v971 = vpack.c.bf16 %v899, %v896
      %v972 = vpack.c.bf16 %v907, %v904
      %v973 = vpack.c.bf16 %v948, %v945
      %v974 = vpack.c.bf16 %v956, %v953
      %v975 = vld [vmem:[%s5] sm:$0x1]
      %vm976 = vcmask 15360
      %v978 = vsel %vm976, %v959, 0
      %v981 = vsel %vm976, %v960, 0
      %v984 = vsel %vm976, %v961, 0
      %v987 = vsel %vm976, %v962, 0
      %v990 = vsel %vm976, %v963, 0
      %v993 = vsel %vm976, %v964, 0
      %v996 = vsel %vm976, %v965, 0
      %v999 = vsel %vm976, %v966, 0
      %v1002 = vsel %vm976, %v967, 0
      %v1005 = vsel %vm976, %v968, 0
      %v1008 = vsel %vm976, %v969, 0
      %v1011 = vsel %vm976, %v970, 0
      %v1014 = vsel %vm976, %v971, 0
      %v1017 = vsel %vm976, %v972, 0
      %v1020 = vsel %vm976, %v973, 0
      %v1023 = vsel %vm976, %v974, 0
      %vm1025 = vcmask 1040384
      %v1027 = vsel %vm1025, %v975, 0
      %1029 = vmatprep.subr.bf16.mxu0 0
      %1030 = vmatpush1.bf16.msra.mxu0 %v1027
      %1031 = vmatprep.subr.bf16.mxu0 0
      %1032 = vmatpush1.bf16.msra.mxu0 0
      %1033 = vmatprep.subr.bf16.mxu0 0
      %1034 = vmatpush1.bf16.msra.mxu0 0
      %1035 = vmatprep.subr.bf16.mxu0 0
      %1036 = vmatpush1.bf16.msra.mxu0 0
      %1037 = vmatprep.subr.bf16.mxu0 0
      %1038 = vmatpush1.bf16.msra.mxu0 0
      %1039 = vmatprep.subr.bf16.mxu0 0
      %1040 = vmatpush1.bf16.msra.mxu0 0
      %1041 = vmatprep.subr.bf16.mxu0 0
      %1042 = vmatpush1.bf16.msra.mxu0 0
      %1043 = vmatprep.subr.bf16.mxu0 0
      %1044 = vmatpush1.bf16.msra.mxu0 0
      %1045 = vmatprep.subr.bf16.mxu0 0
      %1046 = vmatpush1.bf16.msra.mxu0 0
      %1047 = vmatprep.subr.bf16.mxu0 0
      %1048 = vmatpush1.bf16.msra.mxu0 0
      %1049 = vmatprep.subr.bf16.mxu0 0
      %1050 = vmatpush1.bf16.msra.mxu0 0
      %1051 = vmatprep.subr.bf16.mxu0 0
      %1052 = vmatpush1.bf16.msra.mxu0 0
      %1053 = vmatprep.subr.bf16.mxu0 0
      %1054 = vmatpush1.bf16.msra.mxu0 0
      %1055 = vmatprep.subr.bf16.mxu0 0
      %1056 = vmatpush1.bf16.msra.mxu0 0
      %1057 = vmatprep.subr.bf16.mxu0 0
      %1058 = vmatpush1.bf16.msra.mxu0 0
      %1059 = vmatprep.subr.bf16.mxu0 0
      %1060 = vmatpush1.bf16.msra.mxu0 0
      %1061 = vmatprep.mubr.bf16.mxu0 0
      %1062 = vmatmul.mubr.bf16.gmra.mrb[0].mxu0 %v978
      %v1063 = vpop.f32.mrb[0].mxu0
      %v1064 = vadd.f32 0.0, %v1063
      %v1065 = vpop.f32.mrb[0].mxu0
      %v1066 = vpop.f32.mrb[0].mxu0
      %v1067 = vadd.f32 0.0, %v1066
      %v1068 = vpop.f32.mrb[0].mxu0
      %1069 = vmatprep.mubr.bf16.mxu0 0
      %1070 = vmatmul.mubr.bf16.gmra.mrb[0].mxu0 %v981
      %v1071 = vpop.f32.mrb[0].mxu0
      %v1072 = vadd.f32 0.0, %v1071
      %v1073 = vpop.f32.mrb[0].mxu0
      %v1074 = vpop.f32.mrb[0].mxu0
      %v1075 = vadd.f32 0.0, %v1074
      %v1076 = vpop.f32.mrb[0].mxu0
      %1077 = vmatprep.mubr.bf16.mxu0 0
      %1078 = vmatmul.mubr.bf16.gmra.mrb[0].mxu0 %v978
      %v1079 = vpop.f32.mrb[0].mxu0
      %v1080 = vadd.f32 0.0, %v1079
      %v1081 = vpop.f32.mrb[0].mxu0
      %v1082 = vpop.f32.mrb[0].mxu0
      %v1083 = vadd.f32 0.0, %v1082
      %v1084 = vpop.f32.mrb[0].mxu0
      %1085 = vmatprep.mubr.bf16.mxu0 0
      %1086 = vmatmul.mubr.bf16.gmra.mrb[0].mxu0 %v981
      %v1087 = vpop.f32.mrb[0].mxu0
      %v1088 = vadd.f32 0.0, %v1087
      %v1089 = vpop.f32.mrb[0].mxu0
      %v1090 = vpop.f32.mrb[0].mxu0
      %v1091 = vadd.f32 0.0, %v1090
      %v1092 = vpop.f32.mrb[0].mxu0
      %1093 = vmatprep.mubr.bf16.mxu0 0
      %1094 = vmatmul.mubr.bf16.gmra.mrb[0].mxu0 %v984
      %v1095 = vpop.f32.mrb[0].mxu0
      %v1096 = vadd.f32 0.0, %v1095
      %v1097 = vpop.f32.mrb[0].mxu0
      %v1098 = vpop.f32.mrb[0].mxu0
      %v1099 = vadd.f32 0.0, %v1098
      %v1100 = vpop.f32.mrb[0].mxu0
      %1101 = vmatprep.mubr.bf16.mxu0 0
      %1102 = vmatmul.mubr.bf16.gmra.mrb[0].mxu0 %v987
      %v1103 = vpop.f32.mrb[0].mxu0
      %v1104 = vadd.f32 0.0, %v1103
      %v1105 = vpop.f32.mrb[0].mxu0
      %v1106 = vpop.f32.mrb[0].mxu0
      %v1107 = vadd.f32 0.0, %v1106
      %v1108 = vpop.f32.mrb[0].mxu0
      %1109 = vmatprep.mubr.bf16.mxu0 0
      %1110 = vmatmul.mubr.bf16.gmra.mrb[0].mxu0 %v984
      %v1111 = vpop.f32.mrb[0].mxu0
      %v1112 = vadd.f32 0.0, %v1111
      %v1113 = vpop.f32.mrb[0].mxu0
      %v1114 = vpop.f32.mrb[0].mxu0
      %v1115 = vadd.f32 0.0, %v1114
      %v1116 = vpop.f32.mrb[0].mxu0
      %1117 = vmatprep.mubr.bf16.mxu0 0
      %1118 = vmatmul.mubr.bf16.gmra.mrb[0].mxu0 %v987
      %v1119 = vpop.f32.mrb[0].mxu0
      %v1120 = vadd.f32 0.0, %v1119
      %v1121 = vpop.f32.mrb[0].mxu0
      %v1122 = vpop.f32.mrb[0].mxu0
      %v1123 = vadd.f32 0.0, %v1122
      %v1124 = vpop.f32.mrb[0].mxu0
      %1125 = vmatprep.mubr.bf16.mxu0 0
      %1126 = vmatmul.mubr.bf16.gmra.mrb[0].mxu0 %v990
      %v1127 = vpop.f32.mrb[0].mxu0
      %v1128 = vadd.f32 0.0, %v1127
      %v1129 = vpop.f32.mrb[0].mxu0
      %v1130 = vpop.f32.mrb[0].mxu0
      %v1131 = vadd.f32 0.0, %v1130
      %v1132 = vpop.f32.mrb[0].mxu0
      %1133 = vmatprep.mubr.bf16.mxu0 0
      %1134 = vmatmul.mubr.bf16.gmra.mrb[0].mxu0 %v993
      %v1135 = vpop.f32.mrb[0].mxu0
      %v1136 = vadd.f32 0.0, %v1135
      %v1137 = vpop.f32.mrb[0].mxu0
      %v1138 = vpop.f32.mrb[0].mxu0
      %v1139 = vadd.f32 0.0, %v1138
      %v1140 = vpop.f32.mrb[0].mxu0
      %1141 = vmatprep.mubr.bf16.mxu0 0
      %1142 = vmatmul.mubr.bf16.gmra.mrb[0].mxu0 %v990
      %v1143 = vpop.f32.mrb[0].mxu0
      %v1144 = vadd.f32 0.0, %v1143
      %v1145 = vpop.f32.mrb[0].mxu0
      %v1146 = vpop.f32.mrb[0].mxu0
      %v1147 = vadd.f32 0.0, %v1146
      %v1148 = vpop.f32.mrb[0].mxu0
      %1149 = vmatprep.mubr.bf16.mxu0 0
      %1150 = vmatmul.mubr.bf16.gmra.mrb[0].mxu0 %v993
      %v1151 = vpop.f32.mrb[0].mxu0
      %v1152 = vadd.f32 0.0, %v1151
      %v1153 = vpop.f32.mrb[0].mxu0
      %v1154 = vpop.f32.mrb[0].mxu0
      %v1155 = vadd.f32 0.0, %v1154
      %v1156 = vpop.f32.mrb[0].mxu0
      %1157 = vmatprep.mubr.bf16.mxu0 0
      %1158 = vmatmul.mubr.bf16.gmra.mrb[0].mxu0 %v996
      %v1159 = vpop.f32.mrb[0].mxu0
      %v1160 = vadd.f32 0.0, %v1159
      %v1161 = vpop.f32.mrb[0].mxu0
      %v1162 = vpop.f32.mrb[0].mxu0
      %v1163 = vadd.f32 0.0, %v1162
      %v1164 = vpop.f32.mrb[0].mxu0
      %1165 = vmatprep.mubr.bf16.mxu0 0
      %1166 = vmatmul.mubr.bf16.gmra.mrb[0].mxu0 %v999
      %v1167 = vpop.f32.mrb[0].mxu0
      %v1168 = vadd.f32 0.0, %v1167
      %v1169 = vpop.f32.mrb[0].mxu0
      %v1170 = vpop.f32.mrb[0].mxu0
      %v1171 = vadd.f32 0.0, %v1170
      %v1172 = vpop.f32.mrb[0].mxu0
      %1173 = vmatprep.mubr.bf16.mxu0 0
      %1174 = vmatmul.mubr.bf16.gmra.mrb[0].mxu0 %v996
      %v1175 = vpop.f32.mrb[0].mxu0
      %v1176 = vadd.f32 0.0, %v1175
      %v1177 = vpop.f32.mrb[0].mxu0
      %v1178 = vpop.f32.mrb[0].mxu0
      %v1179 = vadd.f32 0.0, %v1178
      %v1180 = vpop.f32.mrb[0].mxu0
      %1181 = vmatprep.mubr.bf16.mxu0 0
      %1182 = vmatmul.mubr.bf16.gmra.mrb[0].mxu0 %v999
      %v1183 = vpop.f32.mrb[0].mxu0
      %v1184 = vadd.f32 0.0, %v1183
      %v1185 = vpop.f32.mrb[0].mxu0
      %v1186 = vpop.f32.mrb[0].mxu0
      %v1187 = vadd.f32 0.0, %v1186
      %v1188 = vpop.f32.mrb[0].mxu0
      %1189 = vmatprep.mubr.bf16.mxu0 0
      %1190 = vmatmul.mubr.bf16.gmra.mrb[0].mxu0 %v1002
      %v1191 = vpop.f32.mrb[0].mxu0
      %v1192 = vadd.f32 0.0, %v1191
      %v1193 = vpop.f32.mrb[0].mxu0
      %v1194 = vpop.f32.mrb[0].mxu0
      %v1195 = vadd.f32 0.0, %v1194
      %v1196 = vpop.f32.mrb[0].mxu0
      %1197 = vmatprep.mubr.bf16.mxu0 0
      %1198 = vmatmul.mubr.bf16.gmra.mrb[0].mxu0 %v1005
      %v1199 = vpop.f32.mrb[0].mxu0
      %v1200 = vadd.f32 0.0, %v1199
      %v1201 = vpop.f32.mrb[0].mxu0
      %v1202 = vpop.f32.mrb[0].mxu0
      %v1203 = vadd.f32 0.0, %v1202
      %v1204 = vpop.f32.mrb[0].mxu0
      %1205 = vmatprep.mubr.bf16.mxu0 0
      %1206 = vmatmul.mubr.bf16.gmra.mrb[0].mxu0 %v1002
      %v1207 = vpop.f32.mrb[0].mxu0
      %v1208 = vadd.f32 0.0, %v1207
      %v1209 = vpop.f32.mrb[0].mxu0
      %v1210 = vpop.f32.mrb[0].mxu0
      %v1211 = vadd.f32 0.0, %v1210
      %v1212 = vpop.f32.mrb[0].mxu0
      %1213 = vmatprep.mubr.bf16.mxu0 0
      %1214 = vmatmul.mubr.bf16.gmra.mrb[0].mxu0 %v1005
      %v1215 = vpop.f32.mrb[0].mxu0
      %v1216 = vadd.f32 0.0, %v1215
      %v1217 = vpop.f32.mrb[0].mxu0
      %v1218 = vpop.f32.mrb[0].mxu0
      %v1219 = vadd.f32 0.0, %v1218
      %v1220 = vpop.f32.mrb[0].mxu0
      %1221 = vmatprep.mubr.bf16.mxu0 0
      %1222 = vmatmul.mubr.bf16.gmra.mrb[0].mxu0 %v1008
      %v1223 = vpop.f32.mrb[0].mxu0
      %v1224 = vadd.f32 0.0, %v1223
      %v1225 = vpop.f32.mrb[0].mxu0
      %v1226 = vpop.f32.mrb[0].mxu0
      %v1227 = vadd.f32 0.0, %v1226
      %v1228 = vpop.f32.mrb[0].mxu0
      %1229 = vmatprep.mubr.bf16.mxu0 0
      %1230 = vmatmul.mubr.bf16.gmra.mrb[0].mxu0 %v1011
      %v1231 = vpop.f32.mrb[0].mxu0
      %v1232 = vadd.f32 0.0, %v1231
      %v1233 = vpop.f32.mrb[0].mxu0
      %v1234 = vpop.f32.mrb[0].mxu0
      %v1235 = vadd.f32 0.0, %v1234
      %v1236 = vpop.f32.mrb[0].mxu0
      %1237 = vmatprep.mubr.bf16.mxu0 0
      %1238 = vmatmul.mubr.bf16.gmra.mrb[0].mxu0 %v1008
      %v1239 = vpop.f32.mrb[0].mxu0
      %v1240 = vadd.f32 0.0, %v1239
      %v1241 = vpop.f32.mrb[0].mxu0
      %v1242 = vpop.f32.mrb[0].mxu0
      %v1243 = vadd.f32 0.0, %v1242
      %v1244 = vpop.f32.mrb[0].mxu0
      %1245 = vmatprep.mubr.bf16.mxu0 0
      %1246 = vmatmul.mubr.bf16.gmra.mrb[0].mxu0 %v1011
      %v1247 = vpop.f32.mrb[0].mxu0
      %v1248 = vadd.f32 0.0, %v1247
      %v1249 = vpop.f32.mrb[0].mxu0
      %v1250 = vpop.f32.mrb[0].mxu0
      %v1251 = vadd.f32 0.0, %v1250
      %v1252 = vpop.f32.mrb[0].mxu0
      %1253 = vmatprep.mubr.bf16.mxu0 0
      %1254 = vmatmul.mubr.bf16.gmra.mrb[0].mxu0 %v1014
      %v1255 = vpop.f32.mrb[0].mxu0
      %v1256 = vadd.f32 0.0, %v1255
      %v1257 = vpop.f32.mrb[0].mxu0
      %v1258 = vpop.f32.mrb[0].mxu0
      %v1259 = vadd.f32 0.0, %v1258
      %v1260 = vpop.f32.mrb[0].mxu0
      %1261 = vmatprep.mubr.bf16.mxu0 0
      %1262 = vmatmul.mubr.bf16.gmra.mrb[0].mxu0 %v1017
      %v1263 = vpop.f32.mrb[0].mxu0
      %v1264 = vadd.f32 0.0, %v1263
      %v1265 = vpop.f32.mrb[0].mxu0
      %v1266 = vpop.f32.mrb[0].mxu0
      %v1267 = vadd.f32 0.0, %v1266
      %v1268 = vpop.f32.mrb[0].mxu0
      %1269 = vmatprep.mubr.bf16.mxu0 0
      %1270 = vmatmul.mubr.bf16.gmra.mrb[0].mxu0 %v1014
      %v1271 = vpop.f32.mrb[0].mxu0
      %v1272 = vadd.f32 0.0, %v1271
      %v1273 = vpop.f32.mrb[0].mxu0
      %v1274 = vpop.f32.mrb[0].mxu0
      %v1275 = vadd.f32 0.0, %v1274
      %v1276 = vpop.f32.mrb[0].mxu0
      %1277 = vmatprep.mubr.bf16.mxu0 0
      %1278 = vmatmul.mubr.bf16.gmra.mrb[0].mxu0 %v1017
      %v1279 = vpop.f32.mrb[0].mxu0
      %v1280 = vadd.f32 0.0, %v1279
      %v1281 = vpop.f32.mrb[0].mxu0
      %v1282 = vpop.f32.mrb[0].mxu0
      %v1283 = vadd.f32 0.0, %v1282
      %v1284 = vpop.f32.mrb[0].mxu0
      %1285 = vmatprep.mubr.bf16.mxu0 0
      %1286 = vmatmul.mubr.bf16.gmra.mrb[0].mxu0 %v1020
      %v1287 = vpop.f32.mrb[0].mxu0
      %v1288 = vadd.f32 0.0, %v1287
      %v1289 = vpop.f32.mrb[0].mxu0
      %v1290 = vpop.f32.mrb[0].mxu0
      %v1291 = vadd.f32 0.0, %v1290
      %v1292 = vpop.f32.mrb[0].mxu0
      %1293 = vmatprep.mubr.bf16.mxu0 0
      %1294 = vmatmul.mubr.bf16.gmra.mrb[0].mxu0 %v1023
      %v1295 = vpop.f32.mrb[0].mxu0
      %v1296 = vadd.f32 0.0, %v1295
      %v1297 = vpop.f32.mrb[0].mxu0
      %v1298 = vpop.f32.mrb[0].mxu0
      %v1299 = vadd.f32 0.0, %v1298
      %v1300 = vpop.f32.mrb[0].mxu0
      %1301 = vmatprep.mubr.bf16.mxu0 0
      %1302 = vmatmul.mubr.bf16.gmra.mrb[0].mxu0 %v1020
      %v1303 = vpop.f32.mrb[0].mxu0
      %v1304 = vadd.f32 0.0, %v1303
      %v1305 = vpop.f32.mrb[0].mxu0
      %v1306 = vpop.f32.mrb[0].mxu0
      %v1307 = vadd.f32 0.0, %v1306
      %v1308 = vpop.f32.mrb[0].mxu0
      %1309 = vmatprep.mubr.bf16.mxu0 0
      %1310 = vmatmul.mubr.bf16.gmra.mrb[0].mxu0 %v1023
      %v1311 = vpop.f32.mrb[0].mxu0
      %v1312 = vadd.f32 0.0, %v1311
      %v1313 = vpop.f32.mrb[0].mxu0
      %v1314 = vpop.f32.mrb[0].mxu0
      %v1315 = vadd.f32 0.0, %v1314
      %v1316 = vpop.f32.mrb[0].mxu0
      %1317 = vdwg.mxu0
      %v1318 = vld [vmem:[%s342] sm:$0xf]
      %v1319 = vld [vmem:[%s342 + $0x4] sm:$0xf]
      %v1320 = vld [vmem:[%s342 + $0x8] sm:$0xf]
      %v1321 = vld [vmem:[%s342 + $0xc] sm:$0xf]
      %v1322 = vld [vmem:[%s342 + $0x10] sm:$0xf]
      %v1323 = vld [vmem:[%s342 + $0x14] sm:$0xf]
      %v1324 = vld [vmem:[%s342 + $0x18] sm:$0xf]
      %v1325 = vld [vmem:[%s342 + $0x1c] sm:$0xf]
      %v1326 = vld [vmem:[%s342 + $0x20] sm:$0xf]
      %v1327 = vld [vmem:[%s342 + $0x24] sm:$0xf]
      %v1328 = vld [vmem:[%s342 + $0x28] sm:$0xf]
      %v1329 = vld [vmem:[%s342 + $0x2c] sm:$0xf]
      %v1330 = vld [vmem:[%s342 + $0x30] sm:$0xf]
      %v1331 = vld [vmem:[%s342 + $0x34] sm:$0xf]
      %v1332 = vld [vmem:[%s342 + $0x38] sm:$0xf]
      %v1333 = vld [vmem:[%s342 + $0x3c] sm:$0xf]
      %v1334 = vld [vmem:[%s342 + $0x40] sm:$0xf]
      %v1335 = vld [vmem:[%s342 + $0x44] sm:$0xf]
      %v1336 = vld [vmem:[%s342 + $0x48] sm:$0xf]
      %v1337 = vld [vmem:[%s342 + $0x4c] sm:$0xf]
      %v1338 = vld [vmem:[%s342 + $0x50] sm:$0xf]
      %v1339 = vld [vmem:[%s342 + $0x54] sm:$0xf]
      %v1340 = vld [vmem:[%s342 + $0x58] sm:$0xf]
      %v1341 = vld [vmem:[%s342 + $0x5c] sm:$0xf]
      %v1342 = vld [vmem:[%s342 + $0x60] sm:$0xf]
      %v1343 = vld [vmem:[%s342 + $0x64] sm:$0xf]
      %v1344 = vld [vmem:[%s342 + $0x68] sm:$0xf]
      %v1345 = vld [vmem:[%s342 + $0x6c] sm:$0xf]
      %v1346 = vld [vmem:[%s342 + $0x70] sm:$0xf]
      %v1347 = vld [vmem:[%s342 + $0x74] sm:$0xf]
      %v1348 = vld [vmem:[%s342 + $0x78] sm:$0xf]
      %v1349 = vld [vmem:[%s342 + $0x7c] sm:$0xf]
      %v1350 = vld [vmem:[%s342 + $0x80] sm:$0xf]
      %v1351 = vld [vmem:[%s342 + $0x84] sm:$0xf]
      %v1352 = vld [vmem:[%s342 + $0x88] sm:$0xf]
      %v1353 = vld [vmem:[%s342 + $0x8c] sm:$0xf]
      %v1354 = vld [vmem:[%s342 + $0x90] sm:$0xf]
      %v1355 = vld [vmem:[%s342 + $0x94] sm:$0xf]
      %v1356 = vld [vmem:[%s342 + $0x98] sm:$0xf]
      %v1357 = vld [vmem:[%s342 + $0x9c] sm:$0xf]
      %v1358 = vld [vmem:[%s342 + $0xa0] sm:$0xf]
      %v1359 = vld [vmem:[%s342 + $0xa4] sm:$0xf]
      %v1360 = vld [vmem:[%s342 + $0xa8] sm:$0xf]
      %v1361 = vld [vmem:[%s342 + $0xac] sm:$0xf]
      %v1362 = vld [vmem:[%s342 + $0xb0] sm:$0xf]
      %v1363 = vld [vmem:[%s342 + $0xb4] sm:$0xf]
      %v1364 = vld [vmem:[%s342 + $0xb8] sm:$0xf]
      %v1365 = vld [vmem:[%s342 + $0xbc] sm:$0xf]
      %v1366 = vld [vmem:[%s342 + $0xc0] sm:$0xf]
      %v1367 = vld [vmem:[%s342 + $0xc4] sm:$0xf]
      %v1368 = vld [vmem:[%s342 + $0xc8] sm:$0xf]
      %v1369 = vld [vmem:[%s342 + $0xcc] sm:$0xf]
      %v1370 = vld [vmem:[%s342 + $0xd0] sm:$0xf]
      %v1371 = vld [vmem:[%s342 + $0xd4] sm:$0xf]
      %v1372 = vld [vmem:[%s342 + $0xd8] sm:$0xf]
      %v1373 = vld [vmem:[%s342 + $0xdc] sm:$0xf]
      %v1374 = vld [vmem:[%s342 + $0xe0] sm:$0xf]
      %v1375 = vld [vmem:[%s342 + $0xe4] sm:$0xf]
      %v1376 = vld [vmem:[%s342 + $0xe8] sm:$0xf]
      %v1377 = vld [vmem:[%s342 + $0xec] sm:$0xf]
      %v1378 = vld [vmem:[%s342 + $0xf0] sm:$0xf]
      %v1379 = vld [vmem:[%s342 + $0xf4] sm:$0xf]
      %v1380 = vld [vmem:[%s342 + $0xf8] sm:$0xf]
      %v1381 = vld [vmem:[%s342 + $0xfc] sm:$0xf]
      %v1382 = vld [vmem:[%s3] sm:$0x3]
      %v1447 = vunpack.c.l.b16 %v1318
      %v1448 = vunpack.c.l.b16 %v1319
      %v1449 = vunpack.c.l.b16 %v1320
      %v1450 = vunpack.c.l.b16 %v1321
      %v1451 = vunpack.c.l.b16 %v1322
      %v1452 = vunpack.c.l.b16 %v1323
      %v1453 = vunpack.c.l.b16 %v1324
      %v1454 = vunpack.c.l.b16 %v1325
      %v1455 = vunpack.c.l.b16 %v1326
      %v1456 = vunpack.c.l.b16 %v1327
      %v1457 = vunpack.c.l.b16 %v1328
      %v1458 = vunpack.c.l.b16 %v1329
      %v1459 = vunpack.c.l.b16 %v1330
      %v1460 = vunpack.c.l.b16 %v1331
      %v1461 = vunpack.c.l.b16 %v1332
      %v1462 = vunpack.c.l.b16 %v1333
      %v1463 = vunpack.c.l.b16 %v1334
      %v1464 = vunpack.c.l.b16 %v1335
      %v1465 = vunpack.c.l.b16 %v1336
      %v1466 = vunpack.c.l.b16 %v1337
      %v1467 = vunpack.c.l.b16 %v1338
      %v1468 = vunpack.c.l.b16 %v1339
      %v1469 = vunpack.c.l.b16 %v1340
      %v1470 = vunpack.c.l.b16 %v1341
      %v1471 = vunpack.c.l.b16 %v1342
      %v1472 = vunpack.c.l.b16 %v1343
      %v1473 = vunpack.c.l.b16 %v1344
      %v1474 = vunpack.c.l.b16 %v1345
      %v1475 = vunpack.c.l.b16 %v1346
      %v1476 = vunpack.c.l.b16 %v1347
      %v1477 = vunpack.c.l.b16 %v1348
      %v1478 = vunpack.c.l.b16 %v1349
      %v1479 = vunpack.c.l.b16 %v1350
      %v1480 = vunpack.c.l.b16 %v1351
      %v1481 = vunpack.c.l.b16 %v1352
      %v1482 = vunpack.c.l.b16 %v1353
      %v1483 = vunpack.c.l.b16 %v1354
      %v1484 = vunpack.c.l.b16 %v1355
      %v1485 = vunpack.c.l.b16 %v1356
      %v1486 = vunpack.c.l.b16 %v1357
      %v1487 = vunpack.c.l.b16 %v1358
      %v1488 = vunpack.c.l.b16 %v1359
      %v1489 = vunpack.c.l.b16 %v1360
      %v1490 = vunpack.c.l.b16 %v1361
      %v1491 = vunpack.c.l.b16 %v1362
      %v1492 = vunpack.c.l.b16 %v1363
      %v1493 = vunpack.c.l.b16 %v1364
      %v1494 = vunpack.c.l.b16 %v1365
      %v1495 = vunpack.c.l.b16 %v1366
      %v1496 = vunpack.c.l.b16 %v1367
      %v1497 = vunpack.c.l.b16 %v1368
      %v1498 = vunpack.c.l.b16 %v1369
      %v1499 = vunpack.c.l.b16 %v1370
      %v1500 = vunpack.c.l.b16 %v1371
      %v1501 = vunpack.c.l.b16 %v1372
      %v1502 = vunpack.c.l.b16 %v1373
      %v1503 = vunpack.c.l.b16 %v1374
      %v1504 = vunpack.c.l.b16 %v1375
      %v1505 = vunpack.c.l.b16 %v1376
      %v1506 = vunpack.c.l.b16 %v1377
      %v1507 = vunpack.c.l.b16 %v1378
      %v1508 = vunpack.c.l.b16 %v1379
      %v1509 = vunpack.c.l.b16 %v1380
      %v1510 = vunpack.c.l.b16 %v1381
      %v1511 = vpack.c.b16 %v1448, %v1447
      %v1512 = vpack.c.b16 %v1450, %v1449
      %v1513 = vpack.c.b16 %v1452, %v1451
      %v1514 = vpack.c.b16 %v1454, %v1453
      %v1515 = vpack.c.b16 %v1456, %v1455
      %v1516 = vpack.c.b16 %v1458, %v1457
      %v1517 = vpack.c.b16 %v1460, %v1459
      %v1518 = vpack.c.b16 %v1462, %v1461
      %v1519 = vpack.c.b16 %v1464, %v1463
      %v1520 = vpack.c.b16 %v1466, %v1465
      %v1521 = vpack.c.b16 %v1468, %v1467
      %v1522 = vpack.c.b16 %v1470, %v1469
      %v1523 = vpack.c.b16 %v1472, %v1471
      %v1524 = vpack.c.b16 %v1474, %v1473
      %v1525 = vpack.c.b16 %v1476, %v1475
      %v1526 = vpack.c.b16 %v1478, %v1477
      %v1527 = vpack.c.b16 %v1480, %v1479
      %v1528 = vpack.c.b16 %v1482, %v1481
      %v1529 = vpack.c.b16 %v1484, %v1483
      %v1530 = vpack.c.b16 %v1486, %v1485
      %v1531 = vpack.c.b16 %v1488, %v1487
      %v1532 = vpack.c.b16 %v1490, %v1489
      %v1533 = vpack.c.b16 %v1492, %v1491
      %v1534 = vpack.c.b16 %v1494, %v1493
      %v1535 = vpack.c.b16 %v1496, %v1495
      %v1536 = vpack.c.b16 %v1498, %v1497
      %v1537 = vpack.c.b16 %v1500, %v1499
      %v1538 = vpack.c.b16 %v1502, %v1501
      %v1539 = vpack.c.b16 %v1504, %v1503
      %v1540 = vpack.c.b16 %v1506, %v1505
      %v1541 = vpack.c.b16 %v1508, %v1507
      %v1542 = vpack.c.b16 %v1510, %v1509
      %v1544 = vsel %vm412, %v1511, 0
      %v1547 = vsel %vm412, %v1512, 0
      %v1550 = vsel %vm412, %v1513, 0
      %v1553 = vsel %vm412, %v1514, 0
      %v1556 = vsel %vm412, %v1515, 0
      %v1559 = vsel %vm412, %v1516, 0
      %v1562 = vsel %vm412, %v1517, 0
      %v1565 = vsel %vm412, %v1518, 0
      %v1568 = vsel %vm412, %v1519, 0
      %v1571 = vsel %vm412, %v1520, 0
      %v1574 = vsel %vm412, %v1521, 0
      %v1577 = vsel %vm412, %v1522, 0
      %v1580 = vsel %vm412, %v1523, 0
      %v1583 = vsel %vm412, %v1524, 0
      %v1586 = vsel %vm412, %v1525, 0
      %v1589 = vsel %vm412, %v1526, 0
      %v1592 = vsel %vm412, %v1527, 0
      %v1595 = vsel %vm412, %v1528, 0
      %v1598 = vsel %vm412, %v1529, 0
      %v1601 = vsel %vm412, %v1530, 0
      %v1604 = vsel %vm412, %v1531, 0
      %v1607 = vsel %vm412, %v1532, 0
      %v1610 = vsel %vm412, %v1533, 0
      %v1613 = vsel %vm412, %v1534, 0
      %v1616 = vsel %vm412, %v1535, 0
      %v1619 = vsel %vm412, %v1536, 0
      %v1622 = vsel %vm412, %v1537, 0
      %v1625 = vsel %vm412, %v1538, 0
      %v1628 = vsel %vm412, %v1539, 0
      %v1631 = vsel %vm412, %v1540, 0
      %v1634 = vsel %vm412, %v1541, 0
      %v1637 = vsel %vm412, %v1542, 0
      %v1640 = vsel %vm437, %v1382, 0
      %1642 = vmatprep.subr.bf16.mxu0 0
      %1643 = vmatpush1.bf16.msra.mxu0 %v1640
      %1644 = vmatprep.subr.bf16.mxu0 0
      %1645 = vmatpush1.bf16.msra.mxu0 0
      %1646 = vmatprep.subr.bf16.mxu0 0
      %1647 = vmatpush1.bf16.msra.mxu0 0
      %1648 = vmatprep.subr.bf16.mxu0 0
      %1649 = vmatpush1.bf16.msra.mxu0 0
      %1650 = vmatprep.subr.bf16.mxu0 0
      %1651 = vmatpush1.bf16.msra.mxu0 0
      %1652 = vmatprep.subr.bf16.mxu0 0
      %1653 = vmatpush1.bf16.msra.mxu0 0
      %1654 = vmatprep.subr.bf16.mxu0 0
      %1655 = vmatpush1.bf16.msra.mxu0 0
      %1656 = vmatprep.subr.bf16.mxu0 0
      %1657 = vmatpush1.bf16.msra.mxu0 0
      %1658 = vmatprep.subr.bf16.mxu0 0
      %1659 = vmatpush1.bf16.msra.mxu0 0
      %1660 = vmatprep.subr.bf16.mxu0 0
      %1661 = vmatpush1.bf16.msra.mxu0 0
      %1662 = vmatprep.subr.bf16.mxu0 0
      %1663 = vmatpush1.bf16.msra.mxu0 0
      %1664 = vmatprep.subr.bf16.mxu0 0
      %1665 = vmatpush1.bf16.msra.mxu0 0
      %1666 = vmatprep.subr.bf16.mxu0 0
      %1667 = vmatpush1.bf16.msra.mxu0 0
      %1668 = vmatprep.subr.bf16.mxu0 0
      %1669 = vmatpush1.bf16.msra.mxu0 0
      %1670 = vmatprep.subr.bf16.mxu0 0
      %1671 = vmatpush1.bf16.msra.mxu0 0
      %1672 = vmatprep.subr.bf16.mxu0 0
      %1673 = vmatpush1.bf16.msra.mxu0 0
      %1674 = vmatprep.mubr.bf16.mxu0 0
      %1675 = vmatmul.mubr.bf16.gmra.mrb[0].mxu0 %v1544
      %v1676 = vpop.f32.mrb[0].mxu0
      %v1677 = vadd.f32 0.0, %v1676
      %v1678 = vpop.f32.mrb[0].mxu0
      %v1679 = vpop.f32.mrb[0].mxu0
      %v1680 = vadd.f32 0.0, %v1679
      %v1681 = vpop.f32.mrb[0].mxu0
      %1682 = vmatprep.mubr.bf16.mxu0 0
      %1683 = vmatmul.mubr.bf16.gmra.mrb[0].mxu0 %v1547
      %v1684 = vpop.f32.mrb[0].mxu0
      %v1685 = vadd.f32 0.0, %v1684
      %v1686 = vpop.f32.mrb[0].mxu0
      %v1687 = vpop.f32.mrb[0].mxu0
      %v1688 = vadd.f32 0.0, %v1687
      %v1689 = vpop.f32.mrb[0].mxu0
      %1690 = vmatprep.mubr.bf16.mxu0 0
      %1691 = vmatmul.mubr.bf16.gmra.mrb[0].mxu0 %v1550
      %v1692 = vpop.f32.mrb[0].mxu0
      %v1693 = vadd.f32 0.0, %v1692
      %v1694 = vpop.f32.mrb[0].mxu0
      %v1695 = vpop.f32.mrb[0].mxu0
      %v1696 = vadd.f32 0.0, %v1695
      %v1697 = vpop.f32.mrb[0].mxu0
      %1698 = vmatprep.mubr.bf16.mxu0 0
      %1699 = vmatmul.mubr.bf16.gmra.mrb[0].mxu0 %v1553
      %v1700 = vpop.f32.mrb[0].mxu0
      %v1701 = vadd.f32 0.0, %v1700
      %v1702 = vpop.f32.mrb[0].mxu0
      %v1703 = vpop.f32.mrb[0].mxu0
      %v1704 = vadd.f32 0.0, %v1703
      %v1705 = vpop.f32.mrb[0].mxu0
      %1706 = vmatprep.mubr.bf16.mxu0 0
      %1707 = vmatmul.mubr.bf16.gmra.mrb[0].mxu0 %v1556
      %v1708 = vpop.f32.mrb[0].mxu0
      %v1709 = vadd.f32 0.0, %v1708
      %v1710 = vpop.f32.mrb[0].mxu0
      %v1711 = vpop.f32.mrb[0].mxu0
      %v1712 = vadd.f32 0.0, %v1711
      %v1713 = vpop.f32.mrb[0].mxu0
      %1714 = vmatprep.mubr.bf16.mxu0 0
      %1715 = vmatmul.mubr.bf16.gmra.mrb[0].mxu0 %v1559
      %v1716 = vpop.f32.mrb[0].mxu0
      %v1717 = vadd.f32 0.0, %v1716
      %v1718 = vpop.f32.mrb[0].mxu0
      %v1719 = vpop.f32.mrb[0].mxu0
      %v1720 = vadd.f32 0.0, %v1719
      %v1721 = vpop.f32.mrb[0].mxu0
      %1722 = vmatprep.mubr.bf16.mxu0 0
      %1723 = vmatmul.mubr.bf16.gmra.mrb[0].mxu0 %v1562
      %v1724 = vpop.f32.mrb[0].mxu0
      %v1725 = vadd.f32 0.0, %v1724
      %v1726 = vpop.f32.mrb[0].mxu0
      %v1727 = vpop.f32.mrb[0].mxu0
      %v1728 = vadd.f32 0.0, %v1727
      %v1729 = vpop.f32.mrb[0].mxu0
      %1730 = vmatprep.mubr.bf16.mxu0 0
      %1731 = vmatmul.mubr.bf16.gmra.mrb[0].mxu0 %v1565
      %v1732 = vpop.f32.mrb[0].mxu0
      %v1733 = vadd.f32 0.0, %v1732
      %v1734 = vpop.f32.mrb[0].mxu0
      %v1735 = vpop.f32.mrb[0].mxu0
      %v1736 = vadd.f32 0.0, %v1735
      %v1737 = vpop.f32.mrb[0].mxu0
      %1738 = vmatprep.mubr.bf16.mxu0 0
      %1739 = vmatmul.mubr.bf16.gmra.mrb[0].mxu0 %v1568
      %v1740 = vpop.f32.mrb[0].mxu0
      %v1741 = vadd.f32 0.0, %v1740
      %v1742 = vpop.f32.mrb[0].mxu0
      %v1743 = vpop.f32.mrb[0].mxu0
      %v1744 = vadd.f32 0.0, %v1743
      %v1745 = vpop.f32.mrb[0].mxu0
      %1746 = vmatprep.mubr.bf16.mxu0 0
      %1747 = vmatmul.mubr.bf16.gmra.mrb[0].mxu0 %v1571
      %v1748 = vpop.f32.mrb[0].mxu0
      %v1749 = vadd.f32 0.0, %v1748
      %v1750 = vpop.f32.mrb[0].mxu0
      %v1751 = vpop.f32.mrb[0].mxu0
      %v1752 = vadd.f32 0.0, %v1751
      %v1753 = vpop.f32.mrb[0].mxu0
      %1754 = vmatprep.mubr.bf16.mxu0 0
      %1755 = vmatmul.mubr.bf16.gmra.mrb[0].mxu0 %v1574
      %v1756 = vpop.f32.mrb[0].mxu0
      %v1757 = vadd.f32 0.0, %v1756
      %v1758 = vpop.f32.mrb[0].mxu0
      %v1759 = vpop.f32.mrb[0].mxu0
      %v1760 = vadd.f32 0.0, %v1759
      %v1761 = vpop.f32.mrb[0].mxu0
      %1762 = vmatprep.mubr.bf16.mxu0 0
      %1763 = vmatmul.mubr.bf16.gmra.mrb[0].mxu0 %v1577
      %v1764 = vpop.f32.mrb[0].mxu0
      %v1765 = vadd.f32 0.0, %v1764
      %v1766 = vpop.f32.mrb[0].mxu0
      %v1767 = vpop.f32.mrb[0].mxu0
      %v1768 = vadd.f32 0.0, %v1767
      %v1769 = vpop.f32.mrb[0].mxu0
      %1770 = vmatprep.mubr.bf16.mxu0 0
      %1771 = vmatmul.mubr.bf16.gmra.mrb[0].mxu0 %v1580
      %v1772 = vpop.f32.mrb[0].mxu0
      %v1773 = vadd.f32 0.0, %v1772
      %v1774 = vpop.f32.mrb[0].mxu0
      %v1775 = vpop.f32.mrb[0].mxu0
      %v1776 = vadd.f32 0.0, %v1775
      %v1777 = vpop.f32.mrb[0].mxu0
      %1778 = vmatprep.mubr.bf16.mxu0 0
      %1779 = vmatmul.mubr.bf16.gmra.mrb[0].mxu0 %v1583
      %v1780 = vpop.f32.mrb[0].mxu0
      %v1781 = vadd.f32 0.0, %v1780
      %v1782 = vpop.f32.mrb[0].mxu0
      %v1783 = vpop.f32.mrb[0].mxu0
      %v1784 = vadd.f32 0.0, %v1783
      %v1785 = vpop.f32.mrb[0].mxu0
      %1786 = vmatprep.mubr.bf16.mxu0 0
      %1787 = vmatmul.mubr.bf16.gmra.mrb[0].mxu0 %v1586
      %v1788 = vpop.f32.mrb[0].mxu0
      %v1789 = vadd.f32 0.0, %v1788
      %v1790 = vpop.f32.mrb[0].mxu0
      %v1791 = vpop.f32.mrb[0].mxu0
      %v1792 = vadd.f32 0.0, %v1791
      %v1793 = vpop.f32.mrb[0].mxu0
      %1794 = vmatprep.mubr.bf16.mxu0 0
      %1795 = vmatmul.mubr.bf16.gmra.mrb[0].mxu0 %v1589
      %v1796 = vpop.f32.mrb[0].mxu0
      %v1797 = vadd.f32 0.0, %v1796
      %v1798 = vpop.f32.mrb[0].mxu0
      %v1799 = vpop.f32.mrb[0].mxu0
      %v1800 = vadd.f32 0.0, %v1799
      %v1801 = vpop.f32.mrb[0].mxu0
      %1802 = vmatprep.mubr.bf16.mxu0 0
      %1803 = vmatmul.mubr.bf16.gmra.mrb[0].mxu0 %v1592
      %v1804 = vpop.f32.mrb[0].mxu0
      %v1805 = vadd.f32 0.0, %v1804
      %v1806 = vpop.f32.mrb[0].mxu0
      %v1807 = vpop.f32.mrb[0].mxu0
      %v1808 = vadd.f32 0.0, %v1807
      %v1809 = vpop.f32.mrb[0].mxu0
      %1810 = vmatprep.mubr.bf16.mxu0 0
      %1811 = vmatmul.mubr.bf16.gmra.mrb[0].mxu0 %v1595
      %v1812 = vpop.f32.mrb[0].mxu0
      %v1813 = vadd.f32 0.0, %v1812
      %v1814 = vpop.f32.mrb[0].mxu0
      %v1815 = vpop.f32.mrb[0].mxu0
      %v1816 = vadd.f32 0.0, %v1815
      %v1817 = vpop.f32.mrb[0].mxu0
      %1818 = vmatprep.mubr.bf16.mxu0 0
      %1819 = vmatmul.mubr.bf16.gmra.mrb[0].mxu0 %v1598
      %v1820 = vpop.f32.mrb[0].mxu0
      %v1821 = vadd.f32 0.0, %v1820
      %v1822 = vpop.f32.mrb[0].mxu0
      %v1823 = vpop.f32.mrb[0].mxu0
      %v1824 = vadd.f32 0.0, %v1823
      %v1825 = vpop.f32.mrb[0].mxu0
      %1826 = vmatprep.mubr.bf16.mxu0 0
      %1827 = vmatmul.mubr.bf16.gmra.mrb[0].mxu0 %v1601
      %v1828 = vpop.f32.mrb[0].mxu0
      %v1829 = vadd.f32 0.0, %v1828
      %v1830 = vpop.f32.mrb[0].mxu0
      %v1831 = vpop.f32.mrb[0].mxu0
      %v1832 = vadd.f32 0.0, %v1831
      %v1833 = vpop.f32.mrb[0].mxu0
      %1834 = vmatprep.mubr.bf16.mxu0 0
      %1835 = vmatmul.mubr.bf16.gmra.mrb[0].mxu0 %v1604
      %v1836 = vpop.f32.mrb[0].mxu0
      %v1837 = vadd.f32 0.0, %v1836
      %v1838 = vpop.f32.mrb[0].mxu0
      %v1839 = vpop.f32.mrb[0].mxu0
      %v1840 = vadd.f32 0.0, %v1839
      %v1841 = vpop.f32.mrb[0].mxu0
      %1842 = vmatprep.mubr.bf16.mxu0 0
      %1843 = vmatmul.mubr.bf16.gmra.mrb[0].mxu0 %v1607
      %v1844 = vpop.f32.mrb[0].mxu0
      %v1845 = vadd.f32 0.0, %v1844
      %v1846 = vpop.f32.mrb[0].mxu0
      %v1847 = vpop.f32.mrb[0].mxu0
      %v1848 = vadd.f32 0.0, %v1847
      %v1849 = vpop.f32.mrb[0].mxu0
      %1850 = vmatprep.mubr.bf16.mxu0 0
      %1851 = vmatmul.mubr.bf16.gmra.mrb[0].mxu0 %v1610
      %v1852 = vpop.f32.mrb[0].mxu0
      %v1853 = vadd.f32 0.0, %v1852
      %v1854 = vpop.f32.mrb[0].mxu0
      %v1855 = vpop.f32.mrb[0].mxu0
      %v1856 = vadd.f32 0.0, %v1855
      %v1857 = vpop.f32.mrb[0].mxu0
      %1858 = vmatprep.mubr.bf16.mxu0 0
      %1859 = vmatmul.mubr.bf16.gmra.mrb[0].mxu0 %v1613
      %v1860 = vpop.f32.mrb[0].mxu0
      %v1861 = vadd.f32 0.0, %v1860
      %v1862 = vpop.f32.mrb[0].mxu0
      %v1863 = vpop.f32.mrb[0].mxu0
      %v1864 = vadd.f32 0.0, %v1863
      %v1865 = vpop.f32.mrb[0].mxu0
      %1866 = vmatprep.mubr.bf16.mxu0 0
      %1867 = vmatmul.mubr.bf16.gmra.mrb[0].mxu0 %v1616
      %v1868 = vpop.f32.mrb[0].mxu0
      %v1869 = vadd.f32 0.0, %v1868
      %v1870 = vpop.f32.mrb[0].mxu0
      %v1871 = vpop.f32.mrb[0].mxu0
      %v1872 = vadd.f32 0.0, %v1871
      %v1873 = vpop.f32.mrb[0].mxu0
      %1874 = vmatprep.mubr.bf16.mxu0 0
      %1875 = vmatmul.mubr.bf16.gmra.mrb[0].mxu0 %v1619
      %v1876 = vpop.f32.mrb[0].mxu0
      %v1877 = vadd.f32 0.0, %v1876
      %v1878 = vpop.f32.mrb[0].mxu0
      %v1879 = vpop.f32.mrb[0].mxu0
      %v1880 = vadd.f32 0.0, %v1879
      %v1881 = vpop.f32.mrb[0].mxu0
      %1882 = vmatprep.mubr.bf16.mxu0 0
      %1883 = vmatmul.mubr.bf16.gmra.mrb[0].mxu0 %v1622
      %v1884 = vpop.f32.mrb[0].mxu0
      %v1885 = vadd.f32 0.0, %v1884
      %v1886 = vpop.f32.mrb[0].mxu0
      %v1887 = vpop.f32.mrb[0].mxu0
      %v1888 = vadd.f32 0.0, %v1887
      %v1889 = vpop.f32.mrb[0].mxu0
      %1890 = vmatprep.mubr.bf16.mxu0 0
      %1891 = vmatmul.mubr.bf16.gmra.mrb[0].mxu0 %v1625
      %v1892 = vpop.f32.mrb[0].mxu0
      %v1893 = vadd.f32 0.0, %v1892
      %v1894 = vpop.f32.mrb[0].mxu0
      %v1895 = vpop.f32.mrb[0].mxu0
      %v1896 = vadd.f32 0.0, %v1895
      %v1897 = vpop.f32.mrb[0].mxu0
      %1898 = vmatprep.mubr.bf16.mxu0 0
      %1899 = vmatmul.mubr.bf16.gmra.mrb[0].mxu0 %v1628
      %v1900 = vpop.f32.mrb[0].mxu0
      %v1901 = vadd.f32 0.0, %v1900
      %v1902 = vpop.f32.mrb[0].mxu0
      %v1903 = vpop.f32.mrb[0].mxu0
      %v1904 = vadd.f32 0.0, %v1903
      %v1905 = vpop.f32.mrb[0].mxu0
      %1906 = vmatprep.mubr.bf16.mxu0 0
      %1907 = vmatmul.mubr.bf16.gmra.mrb[0].mxu0 %v1631
      %v1908 = vpop.f32.mrb[0].mxu0
      %v1909 = vadd.f32 0.0, %v1908
      %v1910 = vpop.f32.mrb[0].mxu0
      %v1911 = vpop.f32.mrb[0].mxu0
      %v1912 = vadd.f32 0.0, %v1911
      %v1913 = vpop.f32.mrb[0].mxu0
      %1914 = vmatprep.mubr.bf16.mxu0 0
      %1915 = vmatmul.mubr.bf16.gmra.mrb[0].mxu0 %v1634
      %v1916 = vpop.f32.mrb[0].mxu0
      %v1917 = vadd.f32 0.0, %v1916
      %v1918 = vpop.f32.mrb[0].mxu0
      %v1919 = vpop.f32.mrb[0].mxu0
      %v1920 = vadd.f32 0.0, %v1919
      %v1921 = vpop.f32.mrb[0].mxu0
      %1922 = vmatprep.mubr.bf16.mxu0 0
      %1923 = vmatmul.mubr.bf16.gmra.mrb[0].mxu0 %v1637
      %v1924 = vpop.f32.mrb[0].mxu0
      %v1925 = vadd.f32 0.0, %v1924
      %v1926 = vpop.f32.mrb[0].mxu0
      %v1927 = vpop.f32.mrb[0].mxu0
      %v1928 = vadd.f32 0.0, %v1927
      %v1929 = vpop.f32.mrb[0].mxu0
      %1930 = vdwg.mxu0
      %v1931 = vpack.c.bf16 %v1680, %v1677
      %v1932 = vpack.c.bf16 %v1688, %v1685
      %v1933 = vpack.c.bf16 %v1696, %v1693
      %v1934 = vpack.c.bf16 %v1704, %v1701
      %v1935 = vpack.c.bf16 %v1712, %v1709
      %v1936 = vpack.c.bf16 %v1720, %v1717
      %v1937 = vpack.c.bf16 %v1728, %v1725
      %v1938 = vpack.c.bf16 %v1736, %v1733
      %v1939 = vpack.c.bf16 %v1744, %v1741
      %v1940 = vpack.c.bf16 %v1752, %v1749
      %v1941 = vpack.c.bf16 %v1760, %v1757
      %v1942 = vpack.c.bf16 %v1768, %v1765
      %v1943 = vpack.c.bf16 %v1776, %v1773
      %v1944 = vpack.c.bf16 %v1784, %v1781
      %v1945 = vpack.c.bf16 %v1792, %v1789
      %v1946 = vpack.c.bf16 %v1800, %v1797
      %v1947 = vpack.c.bf16 %v1808, %v1805
      %v1948 = vpack.c.bf16 %v1816, %v1813
      %v1949 = vpack.c.bf16 %v1824, %v1821
      %v1950 = vpack.c.bf16 %v1832, %v1829
      %v1951 = vpack.c.bf16 %v1840, %v1837
      %v1952 = vpack.c.bf16 %v1848, %v1845
      %v1953 = vpack.c.bf16 %v1856, %v1853
      %v1954 = vpack.c.bf16 %v1864, %v1861
      %v1955 = vpack.c.bf16 %v1872, %v1869
      %v1956 = vpack.c.bf16 %v1880, %v1877
      %v1957 = vpack.c.bf16 %v1888, %v1885
      %v1958 = vpack.c.bf16 %v1896, %v1893
      %v1959 = vpack.c.bf16 %v1904, %v1901
      %v1960 = vpack.c.bf16 %v1912, %v1909
      %v1961 = vpack.c.bf16 %v1920, %v1917
      %v1962 = vpack.c.bf16 %v1928, %v1925
      %v1963 = vld [vmem:[%s4] sm:$0x1]
      %v1965 = vsel %vm976, %v1931, 0
      %v1968 = vsel %vm976, %v1932, 0
      %v1971 = vsel %vm976, %v1933, 0
      %v1974 = vsel %vm976, %v1934, 0
      %v1977 = vsel %vm976, %v1935, 0
      %v1980 = vsel %vm976, %v1936, 0
      %v1983 = vsel %vm976, %v1937, 0
      %v1986 = vsel %vm976, %v1938, 0
      %v1989 = vsel %vm976, %v1939, 0
      %v1992 = vsel %vm976, %v1940, 0
      %v1995 = vsel %vm976, %v1941, 0
      %v1998 = vsel %vm976, %v1942, 0
      %v2001 = vsel %vm976, %v1943, 0
      %v2004 = vsel %vm976, %v1944, 0
      %v2007 = vsel %vm976, %v1945, 0
      %v2010 = vsel %vm976, %v1946, 0
      %v2013 = vsel %vm976, %v1947, 0
      %v2016 = vsel %vm976, %v1948, 0
      %v2019 = vsel %vm976, %v1949, 0
      %v2022 = vsel %vm976, %v1950, 0
      %v2025 = vsel %vm976, %v1951, 0
      %v2028 = vsel %vm976, %v1952, 0
      %v2031 = vsel %vm976, %v1953, 0
      %v2034 = vsel %vm976, %v1954, 0
      %v2037 = vsel %vm976, %v1955, 0
      %v2040 = vsel %vm976, %v1956, 0
      %v2043 = vsel %vm976, %v1957, 0
      %v2046 = vsel %vm976, %v1958, 0
      %v2049 = vsel %vm976, %v1959, 0
      %v2052 = vsel %vm976, %v1960, 0
      %v2055 = vsel %vm976, %v1961, 0
      %v2058 = vsel %vm976, %v1962, 0
      %v2061 = vsel %vm1025, %v1963, 0
      %2063 = vmatprep.subr.bf16.mxu0 0
      %2064 = vmatpush1.bf16.msra.mxu0 %v2061
      %2065 = vmatprep.subr.bf16.mxu0 0
      %2066 = vmatpush1.bf16.msra.mxu0 0
      %2067 = vmatprep.subr.bf16.mxu0 0
      %2068 = vmatpush1.bf16.msra.mxu0 0
      %2069 = vmatprep.subr.bf16.mxu0 0
      %2070 = vmatpush1.bf16.msra.mxu0 0
      %2071 = vmatprep.subr.bf16.mxu0 0
      %2072 = vmatpush1.bf16.msra.mxu0 0
      %2073 = vmatprep.subr.bf16.mxu0 0
      %2074 = vmatpush1.bf16.msra.mxu0 0
      %2075 = vmatprep.subr.bf16.mxu0 0
      %2076 = vmatpush1.bf16.msra.mxu0 0
      %2077 = vmatprep.subr.bf16.mxu0 0
      %2078 = vmatpush1.bf16.msra.mxu0 0
      %2079 = vmatprep.subr.bf16.mxu0 0
      %2080 = vmatpush1.bf16.msra.mxu0 0
      %2081 = vmatprep.subr.bf16.mxu0 0
      %2082 = vmatpush1.bf16.msra.mxu0 0
      %2083 = vmatprep.subr.bf16.mxu0 0
      %2084 = vmatpush1.bf16.msra.mxu0 0
      %2085 = vmatprep.subr.bf16.mxu0 0
      %2086 = vmatpush1.bf16.msra.mxu0 0
      %2087 = vmatprep.subr.bf16.mxu0 0
      %2088 = vmatpush1.bf16.msra.mxu0 0
      %2089 = vmatprep.subr.bf16.mxu0 0
      %2090 = vmatpush1.bf16.msra.mxu0 0
      %2091 = vmatprep.subr.bf16.mxu0 0
      %2092 = vmatpush1.bf16.msra.mxu0 0
      %2093 = vmatprep.subr.bf16.mxu0 0
      %2094 = vmatpush1.bf16.msra.mxu0 0
      %2095 = vmatprep.mubr.bf16.mxu0 0
      %2096 = vmatmul.mubr.bf16.gmra.mrb[0].mxu0 %v1965
      %v2097 = vpop.f32.mrb[0].mxu0
      %v2098 = vadd.f32 %v1064, %v2097
      %v2099 = vpop.f32.mrb[0].mxu0
      %v2100 = vpop.f32.mrb[0].mxu0
      %v2101 = vadd.f32 %v1067, %v2100
      %v2102 = vpop.f32.mrb[0].mxu0
      %2103 = vmatprep.mubr.bf16.mxu0 0
      %2104 = vmatmul.mubr.bf16.gmra.mrb[0].mxu0 %v1968
      %v2105 = vpop.f32.mrb[0].mxu0
      %v2106 = vadd.f32 %v1072, %v2105
      %v2107 = vpop.f32.mrb[0].mxu0
      %v2108 = vpop.f32.mrb[0].mxu0
      %v2109 = vadd.f32 %v1075, %v2108
      %v2110 = vpop.f32.mrb[0].mxu0
      %2111 = vmatprep.mubr.bf16.mxu0 0
      %2112 = vmatmul.mubr.bf16.gmra.mrb[0].mxu0 %v1971
      %v2113 = vpop.f32.mrb[0].mxu0
      %v2114 = vadd.f32 %v1080, %v2113
      %v2115 = vpop.f32.mrb[0].mxu0
      %v2116 = vpop.f32.mrb[0].mxu0
      %v2117 = vadd.f32 %v1083, %v2116
      %v2118 = vpop.f32.mrb[0].mxu0
      %2119 = vmatprep.mubr.bf16.mxu0 0
      %2120 = vmatmul.mubr.bf16.gmra.mrb[0].mxu0 %v1974
      %v2121 = vpop.f32.mrb[0].mxu0
      %v2122 = vadd.f32 %v1088, %v2121
      %v2123 = vpop.f32.mrb[0].mxu0
      %v2124 = vpop.f32.mrb[0].mxu0
      %v2125 = vadd.f32 %v1091, %v2124
      %v2126 = vpop.f32.mrb[0].mxu0
      %2127 = vmatprep.mubr.bf16.mxu0 0
      %2128 = vmatmul.mubr.bf16.gmra.mrb[0].mxu0 %v1977
      %v2129 = vpop.f32.mrb[0].mxu0
      %v2130 = vadd.f32 %v1096, %v2129
      %v2131 = vpop.f32.mrb[0].mxu0
      %v2132 = vpop.f32.mrb[0].mxu0
      %v2133 = vadd.f32 %v1099, %v2132
      %v2134 = vpop.f32.mrb[0].mxu0
      %2135 = vmatprep.mubr.bf16.mxu0 0
      %2136 = vmatmul.mubr.bf16.gmra.mrb[0].mxu0 %v1980
      %v2137 = vpop.f32.mrb[0].mxu0
      %v2138 = vadd.f32 %v1104, %v2137
      %v2139 = vpop.f32.mrb[0].mxu0
      %v2140 = vpop.f32.mrb[0].mxu0
      %v2141 = vadd.f32 %v1107, %v2140
      %v2142 = vpop.f32.mrb[0].mxu0
      %2143 = vmatprep.mubr.bf16.mxu0 0
      %2144 = vmatmul.mubr.bf16.gmra.mrb[0].mxu0 %v1983
      %v2145 = vpop.f32.mrb[0].mxu0
      %v2146 = vadd.f32 %v1112, %v2145
      %v2147 = vpop.f32.mrb[0].mxu0
      %v2148 = vpop.f32.mrb[0].mxu0
      %v2149 = vadd.f32 %v1115, %v2148
      %v2150 = vpop.f32.mrb[0].mxu0
      %2151 = vmatprep.mubr.bf16.mxu0 0
      %2152 = vmatmul.mubr.bf16.gmra.mrb[0].mxu0 %v1986
      %v2153 = vpop.f32.mrb[0].mxu0
      %v2154 = vadd.f32 %v1120, %v2153
      %v2155 = vpop.f32.mrb[0].mxu0
      %v2156 = vpop.f32.mrb[0].mxu0
      %v2157 = vadd.f32 %v1123, %v2156
      %v2158 = vpop.f32.mrb[0].mxu0
      %2159 = vmatprep.mubr.bf16.mxu0 0
      %2160 = vmatmul.mubr.bf16.gmra.mrb[0].mxu0 %v1989
      %v2161 = vpop.f32.mrb[0].mxu0
      %v2162 = vadd.f32 %v1128, %v2161
      %v2163 = vpop.f32.mrb[0].mxu0
      %v2164 = vpop.f32.mrb[0].mxu0
      %v2165 = vadd.f32 %v1131, %v2164
      %v2166 = vpop.f32.mrb[0].mxu0
      %2167 = vmatprep.mubr.bf16.mxu0 0
      %2168 = vmatmul.mubr.bf16.gmra.mrb[0].mxu0 %v1992
      %v2169 = vpop.f32.mrb[0].mxu0
      %v2170 = vadd.f32 %v1136, %v2169
      %v2171 = vpop.f32.mrb[0].mxu0
      %v2172 = vpop.f32.mrb[0].mxu0
      %v2173 = vadd.f32 %v1139, %v2172
      %v2174 = vpop.f32.mrb[0].mxu0
      %2175 = vmatprep.mubr.bf16.mxu0 0
      %2176 = vmatmul.mubr.bf16.gmra.mrb[0].mxu0 %v1995
      %v2177 = vpop.f32.mrb[0].mxu0
      %v2178 = vadd.f32 %v1144, %v2177
      %v2179 = vpop.f32.mrb[0].mxu0
      %v2180 = vpop.f32.mrb[0].mxu0
      %v2181 = vadd.f32 %v1147, %v2180
      %v2182 = vpop.f32.mrb[0].mxu0
      %2183 = vmatprep.mubr.bf16.mxu0 0
      %2184 = vmatmul.mubr.bf16.gmra.mrb[0].mxu0 %v1998
      %v2185 = vpop.f32.mrb[0].mxu0
      %v2186 = vadd.f32 %v1152, %v2185
      %v2187 = vpop.f32.mrb[0].mxu0
      %v2188 = vpop.f32.mrb[0].mxu0
      %v2189 = vadd.f32 %v1155, %v2188
      %v2190 = vpop.f32.mrb[0].mxu0
      %2191 = vmatprep.mubr.bf16.mxu0 0
      %2192 = vmatmul.mubr.bf16.gmra.mrb[0].mxu0 %v2001
      %v2193 = vpop.f32.mrb[0].mxu0
      %v2194 = vadd.f32 %v1160, %v2193
      %v2195 = vpop.f32.mrb[0].mxu0
      %v2196 = vpop.f32.mrb[0].mxu0
      %v2197 = vadd.f32 %v1163, %v2196
      %v2198 = vpop.f32.mrb[0].mxu0
      %2199 = vmatprep.mubr.bf16.mxu0 0
      %2200 = vmatmul.mubr.bf16.gmra.mrb[0].mxu0 %v2004
      %v2201 = vpop.f32.mrb[0].mxu0
      %v2202 = vadd.f32 %v1168, %v2201
      %v2203 = vpop.f32.mrb[0].mxu0
      %v2204 = vpop.f32.mrb[0].mxu0
      %v2205 = vadd.f32 %v1171, %v2204
      %v2206 = vpop.f32.mrb[0].mxu0
      %2207 = vmatprep.mubr.bf16.mxu0 0
      %2208 = vmatmul.mubr.bf16.gmra.mrb[0].mxu0 %v2007
      %v2209 = vpop.f32.mrb[0].mxu0
      %v2210 = vadd.f32 %v1176, %v2209
      %v2211 = vpop.f32.mrb[0].mxu0
      %v2212 = vpop.f32.mrb[0].mxu0
      %v2213 = vadd.f32 %v1179, %v2212
      %v2214 = vpop.f32.mrb[0].mxu0
      %2215 = vmatprep.mubr.bf16.mxu0 0
      %2216 = vmatmul.mubr.bf16.gmra.mrb[0].mxu0 %v2010
      %v2217 = vpop.f32.mrb[0].mxu0
      %v2218 = vadd.f32 %v1184, %v2217
      %v2219 = vpop.f32.mrb[0].mxu0
      %v2220 = vpop.f32.mrb[0].mxu0
      %v2221 = vadd.f32 %v1187, %v2220
      %v2222 = vpop.f32.mrb[0].mxu0
      %2223 = vmatprep.mubr.bf16.mxu0 0
      %2224 = vmatmul.mubr.bf16.gmra.mrb[0].mxu0 %v2013
      %v2225 = vpop.f32.mrb[0].mxu0
      %v2226 = vadd.f32 %v1192, %v2225
      %v2227 = vpop.f32.mrb[0].mxu0
      %v2228 = vpop.f32.mrb[0].mxu0
      %v2229 = vadd.f32 %v1195, %v2228
      %v2230 = vpop.f32.mrb[0].mxu0
      %2231 = vmatprep.mubr.bf16.mxu0 0
      %2232 = vmatmul.mubr.bf16.gmra.mrb[0].mxu0 %v2016
      %v2233 = vpop.f32.mrb[0].mxu0
      %v2234 = vadd.f32 %v1200, %v2233
      %v2235 = vpop.f32.mrb[0].mxu0
      %v2236 = vpop.f32.mrb[0].mxu0
      %v2237 = vadd.f32 %v1203, %v2236
      %v2238 = vpop.f32.mrb[0].mxu0
      %2239 = vmatprep.mubr.bf16.mxu0 0
      %2240 = vmatmul.mubr.bf16.gmra.mrb[0].mxu0 %v2019
      %v2241 = vpop.f32.mrb[0].mxu0
      %v2242 = vadd.f32 %v1208, %v2241
      %v2243 = vpop.f32.mrb[0].mxu0
      %v2244 = vpop.f32.mrb[0].mxu0
      %v2245 = vadd.f32 %v1211, %v2244
      %v2246 = vpop.f32.mrb[0].mxu0
      %2247 = vmatprep.mubr.bf16.mxu0 0
      %2248 = vmatmul.mubr.bf16.gmra.mrb[0].mxu0 %v2022
      %v2249 = vpop.f32.mrb[0].mxu0
      %v2250 = vadd.f32 %v1216, %v2249
      %v2251 = vpop.f32.mrb[0].mxu0
      %v2252 = vpop.f32.mrb[0].mxu0
      %v2253 = vadd.f32 %v1219, %v2252
      %v2254 = vpop.f32.mrb[0].mxu0
      %2255 = vmatprep.mubr.bf16.mxu0 0
      %2256 = vmatmul.mubr.bf16.gmra.mrb[0].mxu0 %v2025
      %v2257 = vpop.f32.mrb[0].mxu0
      %v2258 = vadd.f32 %v1224, %v2257
      %v2259 = vpop.f32.mrb[0].mxu0
      %v2260 = vpop.f32.mrb[0].mxu0
      %v2261 = vadd.f32 %v1227, %v2260
      %v2262 = vpop.f32.mrb[0].mxu0
      %2263 = vmatprep.mubr.bf16.mxu0 0
      %2264 = vmatmul.mubr.bf16.gmra.mrb[0].mxu0 %v2028
      %v2265 = vpop.f32.mrb[0].mxu0
      %v2266 = vadd.f32 %v1232, %v2265
      %v2267 = vpop.f32.mrb[0].mxu0
      %v2268 = vpop.f32.mrb[0].mxu0
      %v2269 = vadd.f32 %v1235, %v2268
      %v2270 = vpop.f32.mrb[0].mxu0
      %2271 = vmatprep.mubr.bf16.mxu0 0
      %2272 = vmatmul.mubr.bf16.gmra.mrb[0].mxu0 %v2031
      %v2273 = vpop.f32.mrb[0].mxu0
      %v2274 = vadd.f32 %v1240, %v2273
      %v2275 = vpop.f32.mrb[0].mxu0
      %v2276 = vpop.f32.mrb[0].mxu0
      %v2277 = vadd.f32 %v1243, %v2276
      %v2278 = vpop.f32.mrb[0].mxu0
      %2279 = vmatprep.mubr.bf16.mxu0 0
      %2280 = vmatmul.mubr.bf16.gmra.mrb[0].mxu0 %v2034
      %v2281 = vpop.f32.mrb[0].mxu0
      %v2282 = vadd.f32 %v1248, %v2281
      %v2283 = vpop.f32.mrb[0].mxu0
      %v2284 = vpop.f32.mrb[0].mxu0
      %v2285 = vadd.f32 %v1251, %v2284
      %v2286 = vpop.f32.mrb[0].mxu0
      %2287 = vmatprep.mubr.bf16.mxu0 0
      %2288 = vmatmul.mubr.bf16.gmra.mrb[0].mxu0 %v2037
      %v2289 = vpop.f32.mrb[0].mxu0
      %v2290 = vadd.f32 %v1256, %v2289
      %v2291 = vpop.f32.mrb[0].mxu0
      %v2292 = vpop.f32.mrb[0].mxu0
      %v2293 = vadd.f32 %v1259, %v2292
      %v2294 = vpop.f32.mrb[0].mxu0
      %2295 = vmatprep.mubr.bf16.mxu0 0
      %2296 = vmatmul.mubr.bf16.gmra.mrb[0].mxu0 %v2040
      %v2297 = vpop.f32.mrb[0].mxu0
      %v2298 = vadd.f32 %v1264, %v2297
      %v2299 = vpop.f32.mrb[0].mxu0
      %v2300 = vpop.f32.mrb[0].mxu0
      %v2301 = vadd.f32 %v1267, %v2300
      %v2302 = vpop.f32.mrb[0].mxu0
      %2303 = vmatprep.mubr.bf16.mxu0 0
      %2304 = vmatmul.mubr.bf16.gmra.mrb[0].mxu0 %v2043
      %v2305 = vpop.f32.mrb[0].mxu0
      %v2306 = vadd.f32 %v1272, %v2305
      %v2307 = vpop.f32.mrb[0].mxu0
      %v2308 = vpop.f32.mrb[0].mxu0
      %v2309 = vadd.f32 %v1275, %v2308
      %v2310 = vpop.f32.mrb[0].mxu0
      %2311 = vmatprep.mubr.bf16.mxu0 0
      %2312 = vmatmul.mubr.bf16.gmra.mrb[0].mxu0 %v2046
      %v2313 = vpop.f32.mrb[0].mxu0
      %v2314 = vadd.f32 %v1280, %v2313
      %v2315 = vpop.f32.mrb[0].mxu0
      %v2316 = vpop.f32.mrb[0].mxu0
      %v2317 = vadd.f32 %v1283, %v2316
      %v2318 = vpop.f32.mrb[0].mxu0
      %2319 = vmatprep.mubr.bf16.mxu0 0
      %2320 = vmatmul.mubr.bf16.gmra.mrb[0].mxu0 %v2049
      %v2321 = vpop.f32.mrb[0].mxu0
      %v2322 = vadd.f32 %v1288, %v2321
      %v2323 = vpop.f32.mrb[0].mxu0
      %v2324 = vpop.f32.mrb[0].mxu0
      %v2325 = vadd.f32 %v1291, %v2324
      %v2326 = vpop.f32.mrb[0].mxu0
      %2327 = vmatprep.mubr.bf16.mxu0 0
      %2328 = vmatmul.mubr.bf16.gmra.mrb[0].mxu0 %v2052
      %v2329 = vpop.f32.mrb[0].mxu0
      %v2330 = vadd.f32 %v1296, %v2329
      %v2331 = vpop.f32.mrb[0].mxu0
      %v2332 = vpop.f32.mrb[0].mxu0
      %v2333 = vadd.f32 %v1299, %v2332
      %v2334 = vpop.f32.mrb[0].mxu0
      %2335 = vmatprep.mubr.bf16.mxu0 0
      %2336 = vmatmul.mubr.bf16.gmra.mrb[0].mxu0 %v2055
      %v2337 = vpop.f32.mrb[0].mxu0
      %v2338 = vadd.f32 %v1304, %v2337
      %v2339 = vpop.f32.mrb[0].mxu0
      %v2340 = vpop.f32.mrb[0].mxu0
      %v2341 = vadd.f32 %v1307, %v2340
      %v2342 = vpop.f32.mrb[0].mxu0
      %2343 = vmatprep.mubr.bf16.mxu0 0
      %2344 = vmatmul.mubr.bf16.gmra.mrb[0].mxu0 %v2058
      %v2345 = vpop.f32.mrb[0].mxu0
      %v2346 = vadd.f32 %v1312, %v2345
      %v2347 = vpop.f32.mrb[0].mxu0
      %v2348 = vpop.f32.mrb[0].mxu0
      %v2349 = vadd.f32 %v1315, %v2348
      %v2350 = vpop.f32.mrb[0].mxu0
      %2351 = vdwg.mxu0
      %v2352 = vpack.c.bf16 %v2101, %v2098
      %v2353 = vpack.c.bf16 %v2109, %v2106
      %v2354 = vpack.c.bf16 %v2117, %v2114
      %v2355 = vpack.c.bf16 %v2125, %v2122
      %v2356 = vpack.c.bf16 %v2133, %v2130
      %v2357 = vpack.c.bf16 %v2141, %v2138
      %v2358 = vpack.c.bf16 %v2149, %v2146
      %v2359 = vpack.c.bf16 %v2157, %v2154
      %v2360 = vpack.c.bf16 %v2165, %v2162
      %v2361 = vpack.c.bf16 %v2173, %v2170
      %v2362 = vpack.c.bf16 %v2181, %v2178
      %v2363 = vpack.c.bf16 %v2189, %v2186
      %v2364 = vpack.c.bf16 %v2197, %v2194
      %v2365 = vpack.c.bf16 %v2205, %v2202
      %v2366 = vpack.c.bf16 %v2213, %v2210
      %v2367 = vpack.c.bf16 %v2221, %v2218
      %v2368 = vpack.c.bf16 %v2229, %v2226
      %v2369 = vpack.c.bf16 %v2237, %v2234
      %v2370 = vpack.c.bf16 %v2245, %v2242
      %v2371 = vpack.c.bf16 %v2253, %v2250
      %v2372 = vpack.c.bf16 %v2261, %v2258
      %v2373 = vpack.c.bf16 %v2269, %v2266
      %v2374 = vpack.c.bf16 %v2277, %v2274
      %v2375 = vpack.c.bf16 %v2285, %v2282
      %v2376 = vpack.c.bf16 %v2293, %v2290
      %v2377 = vpack.c.bf16 %v2301, %v2298
      %v2378 = vpack.c.bf16 %v2309, %v2306
      %v2379 = vpack.c.bf16 %v2317, %v2314
      %v2380 = vpack.c.bf16 %v2325, %v2322
      %v2381 = vpack.c.bf16 %v2333, %v2330
      %v2382 = vpack.c.bf16 %v2341, %v2338
      %v2383 = vpack.c.bf16 %v2349, %v2346
      %v2416 = vunpack.c.l.b16 %v2352
      %v2417 = vunpack.c.h.b16 %v2352
      %v2418 = vunpack.c.l.b16 %v2353
      %v2419 = vunpack.c.h.b16 %v2353
      %v2420 = vunpack.c.l.b16 %v2354
      %v2421 = vunpack.c.h.b16 %v2354
      %v2422 = vunpack.c.l.b16 %v2355
      %v2423 = vunpack.c.h.b16 %v2355
      %v2424 = vunpack.c.l.b16 %v2356
      %v2425 = vunpack.c.h.b16 %v2356
      %v2426 = vunpack.c.l.b16 %v2357
      %v2427 = vunpack.c.h.b16 %v2357
      %v2428 = vunpack.c.l.b16 %v2358
      %v2429 = vunpack.c.h.b16 %v2358
      %v2430 = vunpack.c.l.b16 %v2359
      %v2431 = vunpack.c.h.b16 %v2359
      %v2432 = vunpack.c.l.b16 %v2360
      %v2433 = vunpack.c.h.b16 %v2360
      %v2434 = vunpack.c.l.b16 %v2361
      %v2435 = vunpack.c.h.b16 %v2361
      %v2436 = vunpack.c.l.b16 %v2362
      %v2437 = vunpack.c.h.b16 %v2362
      %v2438 = vunpack.c.l.b16 %v2363
      %v2439 = vunpack.c.h.b16 %v2363
      %v2440 = vunpack.c.l.b16 %v2364
      %v2441 = vunpack.c.h.b16 %v2364
      %v2442 = vunpack.c.l.b16 %v2365
      %v2443 = vunpack.c.h.b16 %v2365
      %v2444 = vunpack.c.l.b16 %v2366
      %v2445 = vunpack.c.h.b16 %v2366
      %v2446 = vunpack.c.l.b16 %v2367
      %v2447 = vunpack.c.h.b16 %v2367
      %v2448 = vunpack.c.l.b16 %v2368
      %v2449 = vunpack.c.h.b16 %v2368
      %v2450 = vunpack.c.l.b16 %v2369
      %v2451 = vunpack.c.h.b16 %v2369
      %v2452 = vunpack.c.l.b16 %v2370
      %v2453 = vunpack.c.h.b16 %v2370
      %v2454 = vunpack.c.l.b16 %v2371
      %v2455 = vunpack.c.h.b16 %v2371
      %v2456 = vunpack.c.l.b16 %v2372
      %v2457 = vunpack.c.h.b16 %v2372
      %v2458 = vunpack.c.l.b16 %v2373
      %v2459 = vunpack.c.h.b16 %v2373
      %v2460 = vunpack.c.l.b16 %v2374
      %v2461 = vunpack.c.h.b16 %v2374
      %v2462 = vunpack.c.l.b16 %v2375
      %v2463 = vunpack.c.h.b16 %v2375
      %v2464 = vunpack.c.l.b16 %v2376
      %v2465 = vunpack.c.h.b16 %v2376
      %v2466 = vunpack.c.l.b16 %v2377
      %v2467 = vunpack.c.h.b16 %v2377
      %v2468 = vunpack.c.l.b16 %v2378
      %v2469 = vunpack.c.h.b16 %v2378
      %v2470 = vunpack.c.l.b16 %v2379
      %v2471 = vunpack.c.h.b16 %v2379
      %v2472 = vunpack.c.l.b16 %v2380
      %v2473 = vunpack.c.h.b16 %v2380
      %v2474 = vunpack.c.l.b16 %v2381
      %v2475 = vunpack.c.h.b16 %v2381
      %v2476 = vunpack.c.l.b16 %v2382
      %v2477 = vunpack.c.h.b16 %v2382
      %v2478 = vunpack.c.l.b16 %v2383
      %v2479 = vunpack.c.h.b16 %v2383
      %v2480 = vpack.c.b16 %v2416, %v2416
      %v2481 = vpack.c.b16 %v2417, %v2417
      %v2482 = vpack.c.b16 %v2418, %v2418
      %v2483 = vpack.c.b16 %v2419, %v2419
      %v2484 = vpack.c.b16 %v2420, %v2420
      %v2485 = vpack.c.b16 %v2421, %v2421
      %v2486 = vpack.c.b16 %v2422, %v2422
      %v2487 = vpack.c.b16 %v2423, %v2423
      %v2488 = vpack.c.b16 %v2424, %v2424
      %v2489 = vpack.c.b16 %v2425, %v2425
      %v2490 = vpack.c.b16 %v2426, %v2426
      %v2491 = vpack.c.b16 %v2427, %v2427
      %v2492 = vpack.c.b16 %v2428, %v2428
      %v2493 = vpack.c.b16 %v2429, %v2429
      %v2494 = vpack.c.b16 %v2430, %v2430
      %v2495 = vpack.c.b16 %v2431, %v2431
      %v2496 = vpack.c.b16 %v2432, %v2432
      %v2497 = vpack.c.b16 %v2433, %v2433
      %v2498 = vpack.c.b16 %v2434, %v2434
      %v2499 = vpack.c.b16 %v2435, %v2435
      %v2500 = vpack.c.b16 %v2436, %v2436
      %v2501 = vpack.c.b16 %v2437, %v2437
      %v2502 = vpack.c.b16 %v2438, %v2438
      %v2503 = vpack.c.b16 %v2439, %v2439
      %v2504 = vpack.c.b16 %v2440, %v2440
      %v2505 = vpack.c.b16 %v2441, %v2441
      %v2506 = vpack.c.b16 %v2442, %v2442
      %v2507 = vpack.c.b16 %v2443, %v2443
      %v2508 = vpack.c.b16 %v2444, %v2444
      %v2509 = vpack.c.b16 %v2445, %v2445
      %v2510 = vpack.c.b16 %v2446, %v2446
      %v2511 = vpack.c.b16 %v2447, %v2447
      %v2512 = vpack.c.b16 %v2448, %v2448
      %v2513 = vpack.c.b16 %v2449, %v2449
      %v2514 = vpack.c.b16 %v2450, %v2450
      %v2515 = vpack.c.b16 %v2451, %v2451
      %v2516 = vpack.c.b16 %v2452, %v2452
      %v2517 = vpack.c.b16 %v2453, %v2453
      %v2518 = vpack.c.b16 %v2454, %v2454
      %v2519 = vpack.c.b16 %v2455, %v2455
      %v2520 = vpack.c.b16 %v2456, %v2456
      %v2521 = vpack.c.b16 %v2457, %v2457
      %v2522 = vpack.c.b16 %v2458, %v2458
      %v2523 = vpack.c.b16 %v2459, %v2459
      %v2524 = vpack.c.b16 %v2460, %v2460
      %v2525 = vpack.c.b16 %v2461, %v2461
      %v2526 = vpack.c.b16 %v2462, %v2462
      %v2527 = vpack.c.b16 %v2463, %v2463
      %v2528 = vpack.c.b16 %v2464, %v2464
      %v2529 = vpack.c.b16 %v2465, %v2465
      %v2530 = vpack.c.b16 %v2466, %v2466
      %v2531 = vpack.c.b16 %v2467, %v2467
      %v2532 = vpack.c.b16 %v2468, %v2468
      %v2533 = vpack.c.b16 %v2469, %v2469
      %v2534 = vpack.c.b16 %v2470, %v2470
      %v2535 = vpack.c.b16 %v2471, %v2471
      %v2536 = vpack.c.b16 %v2472, %v2472
      %v2537 = vpack.c.b16 %v2473, %v2473
      %v2538 = vpack.c.b16 %v2474, %v2474
      %v2539 = vpack.c.b16 %v2475, %v2475
      %v2540 = vpack.c.b16 %v2476, %v2476
      %v2541 = vpack.c.b16 %v2477, %v2477
      %v2542 = vpack.c.b16 %v2478, %v2478
      %v2543 = vpack.c.b16 %v2479, %v2479
      %vm2608 = vcmask 11264
      %2609 = vst.msk [vmem:[%s352] sm:$0xf] %vm2608, %v2480
      %2610 = vst.msk [vmem:[%s352 + $0x4] sm:$0xf] %vm2608, %v2481
      %2611 = vst.msk [vmem:[%s352 + $0x8] sm:$0xf] %vm2608, %v2482
      %2612 = vst.msk [vmem:[%s352 + $0xc] sm:$0xf] %vm2608, %v2483
      %2613 = vst.msk [vmem:[%s352 + $0x10] sm:$0xf] %vm2608, %v2484
      %2614 = vst.msk [vmem:[%s352 + $0x14] sm:$0xf] %vm2608, %v2485
      %2615 = vst.msk [vmem:[%s352 + $0x18] sm:$0xf] %vm2608, %v2486
      %2616 = vst.msk [vmem:[%s352 + $0x1c] sm:$0xf] %vm2608, %v2487
      %2617 = vst.msk [vmem:[%s352 + $0x20] sm:$0xf] %vm2608, %v2488
      %2618 = vst.msk [vmem:[%s352 + $0x24] sm:$0xf] %vm2608, %v2489
      %2619 = vst.msk [vmem:[%s352 + $0x28] sm:$0xf] %vm2608, %v2490
      %2620 = vst.msk [vmem:[%s352 + $0x2c] sm:$0xf] %vm2608, %v2491
      %2621 = vst.msk [vmem:[%s352 + $0x30] sm:$0xf] %vm2608, %v2492
      %2622 = vst.msk [vmem:[%s352 + $0x34] sm:$0xf] %vm2608, %v2493
      %2623 = vst.msk [vmem:[%s352 + $0x38] sm:$0xf] %vm2608, %v2494
      %2624 = vst.msk [vmem:[%s352 + $0x3c] sm:$0xf] %vm2608, %v2495
      %2625 = vst.msk [vmem:[%s352 + $0x40] sm:$0xf] %vm2608, %v2496
      %2626 = vst.msk [vmem:[%s352 + $0x44] sm:$0xf] %vm2608, %v2497
      %2627 = vst.msk [vmem:[%s352 + $0x48] sm:$0xf] %vm2608, %v2498
      %2628 = vst.msk [vmem:[%s352 + $0x4c] sm:$0xf] %vm2608, %v2499
      %2629 = vst.msk [vmem:[%s352 + $0x50] sm:$0xf] %vm2608, %v2500
      %2630 = vst.msk [vmem:[%s352 + $0x54] sm:$0xf] %vm2608, %v2501
      %2631 = vst.msk [vmem:[%s352 + $0x58] sm:$0xf] %vm2608, %v2502
      %2632 = vst.msk [vmem:[%s352 + $0x5c] sm:$0xf] %vm2608, %v2503
      %2633 = vst.msk [vmem:[%s352 + $0x60] sm:$0xf] %vm2608, %v2504
      %2634 = vst.msk [vmem:[%s352 + $0x64] sm:$0xf] %vm2608, %v2505
      %2635 = vst.msk [vmem:[%s352 + $0x68] sm:$0xf] %vm2608, %v2506
      %2636 = vst.msk [vmem:[%s352 + $0x6c] sm:$0xf] %vm2608, %v2507
      %2637 = vst.msk [vmem:[%s352 + $0x70] sm:$0xf] %vm2608, %v2508
      %2638 = vst.msk [vmem:[%s352 + $0x74] sm:$0xf] %vm2608, %v2509
      %2639 = vst.msk [vmem:[%s352 + $0x78] sm:$0xf] %vm2608, %v2510
      %2640 = vst.msk [vmem:[%s352 + $0x7c] sm:$0xf] %vm2608, %v2511
      %2641 = vst.msk [vmem:[%s352 + $0x80] sm:$0xf] %vm2608, %v2512
      %2642 = vst.msk [vmem:[%s352 + $0x84] sm:$0xf] %vm2608, %v2513
      %2643 = vst.msk [vmem:[%s352 + $0x88] sm:$0xf] %vm2608, %v2514
      %2644 = vst.msk [vmem:[%s352 + $0x8c] sm:$0xf] %vm2608, %v2515
      %2645 = vst.msk [vmem:[%s352 + $0x90] sm:$0xf] %vm2608, %v2516
      %2646 = vst.msk [vmem:[%s352 + $0x94] sm:$0xf] %vm2608, %v2517
      %2647 = vst.msk [vmem:[%s352 + $0x98] sm:$0xf] %vm2608, %v2518
      %2648 = vst.msk [vmem:[%s352 + $0x9c] sm:$0xf] %vm2608, %v2519
      %2649 = vst.msk [vmem:[%s352 + $0xa0] sm:$0xf] %vm2608, %v2520
      %2650 = vst.msk [vmem:[%s352 + $0xa4] sm:$0xf] %vm2608, %v2521
      %2651 = vst.msk [vmem:[%s352 + $0xa8] sm:$0xf] %vm2608, %v2522
      %2652 = vst.msk [vmem:[%s352 + $0xac] sm:$0xf] %vm2608, %v2523
      %2653 = vst.msk [vmem:[%s352 + $0xb0] sm:$0xf] %vm2608, %v2524
      %2654 = vst.msk [vmem:[%s352 + $0xb4] sm:$0xf] %vm2608, %v2525
      %2655 = vst.msk [vmem:[%s352 + $0xb8] sm:$0xf] %vm2608, %v2526
      %2656 = vst.msk [vmem:[%s352 + $0xbc] sm:$0xf] %vm2608, %v2527
      %2657 = vst.msk [vmem:[%s352 + $0xc0] sm:$0xf] %vm2608, %v2528
      %2658 = vst.msk [vmem:[%s352 + $0xc4] sm:$0xf] %vm2608, %v2529
      %2659 = vst.msk [vmem:[%s352 + $0xc8] sm:$0xf] %vm2608, %v2530
      %2660 = vst.msk [vmem:[%s352 + $0xcc] sm:$0xf] %vm2608, %v2531
      %2661 = vst.msk [vmem:[%s352 + $0xd0] sm:$0xf] %vm2608, %v2532
      %2662 = vst.msk [vmem:[%s352 + $0xd4] sm:$0xf] %vm2608, %v2533
      %2663 = vst.msk [vmem:[%s352 + $0xd8] sm:$0xf] %vm2608, %v2534
      %2664 = vst.msk [vmem:[%s352 + $0xdc] sm:$0xf] %vm2608, %v2535
      %2665 = vst.msk [vmem:[%s352 + $0xe0] sm:$0xf] %vm2608, %v2536
      %2666 = vst.msk [vmem:[%s352 + $0xe4] sm:$0xf] %vm2608, %v2537
      %2667 = vst.msk [vmem:[%s352 + $0xe8] sm:$0xf] %vm2608, %v2538
      %2668 = vst.msk [vmem:[%s352 + $0xec] sm:$0xf] %vm2608, %v2539
      %2669 = vst.msk [vmem:[%s352 + $0xf0] sm:$0xf] %vm2608, %v2540
      %2670 = vst.msk [vmem:[%s352 + $0xf4] sm:$0xf] %vm2608, %v2541
      %2671 = vst.msk [vmem:[%s352 + $0xf8] sm:$0xf] %vm2608, %v2542
      %2672 = vst.msk [vmem:[%s352 + $0xfc] sm:$0xf] %vm2608, %v2543
      %s2673 = smul.u32 64, %s23
      %p2674 = scmp.lt.s32.totalorder %s22, 1
      %s2675 = scalar_select %p2674, %s22, 1
      %p2676 = scmp.lt.s32.totalorder %s2673, 127
      %s2677 = scalar_select %p2676, %s2673, 127
      %s2678 = smul.addr %s2675, 128
      %s2679 = sadd.s32 %s2677, %s2678
      %s2680 = smul.addr %s2679, 4
      %s2681 = scalar_lea.vmem %s7, %s2680
      // Predicated region
      $region49: #{pan_forward.3} parent=47 // pred_check
        %p2682 = pneg %p211
      $region50: #{pan_forward.3} parent=47 // pred_check_branch
        %2684 = sbr.rel (%p2682) target = $region52
      $region51: #{pan_forward.3} parent=47 // pred_region
        %s2685 = smul.u32 64, %s23
      $region52: #{pan_forward.3} parent=47 // pred_fallthru
        _
    $region48: #{pan_forward.3} parent=5 // pred_fallthru
      _
    %p2686 = scmp.le.s32.totalorder 2, %s13
    // Predicated region
    $region53: #{pan_forward.3} parent=5 // pred_check
      %p2687 = pneg %p2686
    $region54: #{pan_forward.3} parent=5 // pred_check_branch
      %2689 = sbr.rel (%p2687) target = $region56
    $region55: #{pan_forward.3} parent=5 // pred_region
      %s2690 = ssub.s32 %s13, 2
      // Predicated region
      $region57: #{pan_forward.3} parent=55 // pred_check
        %p2691 = pneg %p217
      $region58: #{pan_forward.3} parent=55 // pred_check_branch
        %2693 = sbr.rel (%p2691) target = $region60
      $region59: #{pan_forward.3} parent=55 // pred_region
        %s2694 = smul.u32 64, %s25
        %p2695 = scmp.lt.s32.totalorder %s24, 1
        %s2696 = scalar_select %p2695, %s24, 1
        %p2697 = scmp.lt.s32.totalorder %s2694, 127
        %s2698 = scalar_select %p2697, %s2694, 127
        %s2699 = smul.addr %s2696, 128
        %s2700 = sadd.s32 %s2698, %s2699
        %s2701 = smul.addr %s2700, 4
        %s2702 = scalar_lea.vmem %s7, %s2701
      $region60: #{pan_forward.3} parent=55 // pred_fallthru
        _
    $region56: #{pan_forward.3} parent=5 // pred_fallthru
      _
  $region6: #{pan_forward.3} parent=0 // loop_footer
    %s17 = sadd.s32 1, %s13
  $region7: #{pan_forward.3} parent=0 // loop_footer_branch
    %12 = sbr.rel target = $region3
  $region8: #{pan_forward.3} parent=0 // loop_exit
    _

// kernel: pan_forward.4
$region0: #{pan_forward.4}
  #allocation0 [shape = 'u32[]', space=smem, size = 0x4, offset = 0x4, fixed_abs, tag = 'smem constant byte address 0x4 - core index']
  #allocation1 [shape = 'u32[144,128]{1,0:T(1,128)}', space=vmem, size = 0x12000, scoped, tag = 'internal scratch']
  %s0 = inlined_call_operand.vmem [shape: bf16[2,32,32,2], index: 0, kind: input, shape index: {}, may-alias: {0,1,2}]
  %s1 = inlined_call_operand.vmem [shape: bf16[2,32,32,2], index: 1, kind: input, shape index: {}, may-alias: {0,1,2}]
  %s2 = inlined_call_operand.vmem [shape: bf16[2,32,32,2], index: 2, kind: input, shape index: {}, may-alias: {0,1,2}]
  %s3 = inlined_call_operand.vmem [shape: bf16[3,3,2,4], index: 3, kind: input, shape index: {}]
  %s4 = inlined_call_operand.vmem [shape: bf16[4,2], index: 4, kind: input, shape index: {}]
  %s5 = inlined_call_operand.vmem [shape: bf16[2,1024,2], index: 5, kind: output, shape index: {}]
  %s6 = sld [smem:[#allocation0]]
  $region53: #{pan_forward.4} parent=0
    _
  %s8 = ssub.s32 1, %s6
  %s9 = scalar_select 0, %s8, %s6
  loop: start=0, step=1, limit=6
  $region2: #{pan_forward.4} parent=0 // loop_pre_header
    _
  $region3: #{pan_forward.4} parent=0 // loop_header
    %s11 = sphi 0, %s15
    %p12 = scmp.ge.s32.totalorder %s11, 6
    %s18 = sphi 0, %s30
    %s19 = sphi 0, %s26
    %s20 = sphi 0, %s18
    %s21 = sphi 0, %s19
    %s22 = sphi 0, %s20
    %s23 = sphi 0, %s21
    %s35 = sphi 0, %s37
    %s38 = sphi 0, %s35
    %s39 = sphi 0, %s38
    %s55 = sphi 0, %s39
    %s71 = sphi 0, %s73
    %s74 = sphi 0, %s71
    %s75 = sphi 0, %s74
    %s91 = sphi 0, %s75
    %s107 = sphi 0, %s109
    %s110 = sphi 0, %s107
    %s111 = sphi 0, %s110
    %s127 = sphi 0, %s111
    %s131 = sphi 0, %s131
    %s133 = sphi 0, %s131
    %s134 = sphi 0, %s133
    %s148 = sphi 0, %s134
    %s152 = sphi 0, %s152
    %s154 = sphi 0, %s152
    %s155 = sphi 0, %s154
    %s169 = sphi 0, %s155
    %s177 = sphi 0, %s179
    %s180 = sphi 0, %s177
    %s181 = sphi 0, %s180
    %s197 = sphi 0, %s181
  $region4: #{pan_forward.4} parent=0 // loop_header_branch
    %14 = sbr.rel (%p12) target = $region8
  $region5: #{pan_forward.4} parent=0 // loop_body
    %s16 = ssub.s32 %s11, 1
    %s17 = ssub.s32 %s11, 2
    %s24 = sadd.s32 1, %s19
    %p25 = scmp.ge.s32.totalorder %s24, 2
    %s26 = scalar_select %p25, 0, %s24
    %s27 = sadd.s32 1, %s18
    %s28 = scalar_select %p25, %s27, %s18
    %p29 = scmp.ge.s32.totalorder %s28, 2
    %s30 = scalar_select %p29, 0, %s28
    %s31 = ssub.s32 %s18, %s30
    %s32 = ssub.s32 %s19, %s26
    %s33 = sor.u32 %s31, %s32
    %p34 = scmp.eq.s32.totalorder %s33, 0
    %s36 = sadd.s32 %s35, 1
    %s37 = scalar_select %p34, %s35, %s36
    %p40 = pneg %p34
    %p41 = scmp.eq.s32.totalorder %s11, 3
    %p42 = por %p40, %p41
    %p43 = scmp.ne.s32.totalorder %s35, %s38
    %p44 = scmp.eq.s32.totalorder %s11, 0
    %p45 = por %p43, %p44
    %p46 = scmp.ne.s32.totalorder %s35, %s38
    %p47 = scmp.eq.s32.totalorder %s16, 3
    %p48 = por %p46, %p47
    %p49 = scmp.ne.s32.totalorder %s38, %s39
    %p50 = scmp.eq.s32.totalorder %s16, 0
    %p51 = por %p49, %p50
    %p52 = scmp.ne.s32.totalorder %s38, %s39
    %p53 = scmp.eq.s32.totalorder %s17, 3
    %p54 = por %p52, %p53
    %p56 = scmp.ne.s32.totalorder %s39, %s55
    %p57 = scmp.eq.s32.totalorder %s17, 0
    %p58 = por %p56, %p57
    %s59 = smul.u32 %s19, 16
    %s60 = ssub.s32 %s59, 1
    %p61 = scmp.gt.s32.totalorder %s60, 0
    %s62 = scalar_select %p61, %s60, 0
    %s63 = smul.u32 %s26, 16
    %s64 = ssub.s32 %s63, 1
    %p65 = scmp.gt.s32.totalorder %s64, 0
    %s66 = scalar_select %p65, %s64, 0
    %s67 = ssub.s32 %s18, %s30
    %s68 = ssub.s32 %s62, %s66
    %s69 = sor.u32 %s67, %s68
    %p70 = scmp.eq.s32.totalorder %s69, 0
    %s72 = sadd.s32 %s71, 1
    %s73 = scalar_select %p70, %s71, %s72
    %p76 = pneg %p70
    %p77 = scmp.eq.s32.totalorder %s11, 3
    %p78 = por %p76, %p77
    %p79 = scmp.ne.s32.totalorder %s71, %s74
    %p80 = scmp.eq.s32.totalorder %s11, 0
    %p81 = por %p79, %p80
    %p82 = scmp.ne.s32.totalorder %s71, %s74
    %p83 = scmp.eq.s32.totalorder %s16, 3
    %p84 = por %p82, %p83
    %p85 = scmp.ne.s32.totalorder %s74, %s75
    %p86 = scmp.eq.s32.totalorder %s16, 0
    %p87 = por %p85, %p86
    %p88 = scmp.ne.s32.totalorder %s74, %s75
    %p89 = scmp.eq.s32.totalorder %s17, 3
    %p90 = por %p88, %p89
    %p92 = scmp.ne.s32.totalorder %s75, %s91
    %p93 = scmp.eq.s32.totalorder %s17, 0
    %p94 = por %p92, %p93
    %s95 = smul.u32 %s19, 16
    %s96 = sadd.s32 %s95, 16
    %p97 = scmp.lt.s32.totalorder %s96, 31
    %s98 = scalar_select %p97, %s96, 31
    %s99 = smul.u32 %s26, 16
    %s100 = sadd.s32 %s99, 16
    %p101 = scmp.lt.s32.totalorder %s100, 31
    %s102 = scalar_select %p101, %s100, 31
    %s103 = ssub.s32 %s18, %s30
    %s104 = ssub.s32 %s98, %s102
    %s105 = sor.u32 %s103, %s104
    %p106 = scmp.eq.s32.totalorder %s105, 0
    %s108 = sadd.s32 %s107, 1
    %s109 = scalar_select %p106, %s107, %s108
    %p112 = pneg %p106
    %p113 = scmp.eq.s32.totalorder %s11, 3
    %p114 = por %p112, %p113
    %p115 = scmp.ne.s32.totalorder %s107, %s110
    %p116 = scmp.eq.s32.totalorder %s11, 0
    %p117 = por %p115, %p116
    %p118 = scmp.ne.s32.totalorder %s107, %s110
    %p119 = scmp.eq.s32.totalorder %s16, 3
    %p120 = por %p118, %p119
    %p121 = scmp.ne.s32.totalorder %s110, %s111
    %p122 = scmp.eq.s32.totalorder %s16, 0
    %p123 = por %p121, %p122
    %p124 = scmp.ne.s32.totalorder %s110, %s111
    %p125 = scmp.eq.s32.totalorder %s17, 3
    %p126 = por %p124, %p125
    %p128 = scmp.ne.s32.totalorder %s111, %s127
    %p129 = scmp.eq.s32.totalorder %s17, 0
    %p130 = por %p128, %p129
    %s132 = sadd.s32 %s131, 1
    %p135 = scmp.eq.s32.totalorder %s11, 3
    %p136 = scmp.ne.s32.totalorder %s131, %s133
    %p137 = scmp.eq.s32.totalorder %s11, 0
    %p138 = por %p136, %p137
    %p139 = scmp.ne.s32.totalorder %s131, %s133
    %p140 = scmp.eq.s32.totalorder %s16, 3
    %p141 = por %p139, %p140
    %p142 = scmp.ne.s32.totalorder %s133, %s134
    %p143 = scmp.eq.s32.totalorder %s16, 0
    %p144 = por %p142, %p143
    %p145 = scmp.ne.s32.totalorder %s133, %s134
    %p146 = scmp.eq.s32.totalorder %s17, 3
    %p147 = por %p145, %p146
    %p149 = scmp.ne.s32.totalorder %s134, %s148
    %p150 = scmp.eq.s32.totalorder %s17, 0
    %p151 = por %p149, %p150
    %s153 = sadd.s32 %s152, 1
    %p156 = scmp.eq.s32.totalorder %s11, 3
    %p157 = scmp.ne.s32.totalorder %s152, %s154
    %p158 = scmp.eq.s32.totalorder %s11, 0
    %p159 = por %p157, %p158
    %p160 = scmp.ne.s32.totalorder %s152, %s154
    %p161 = scmp.eq.s32.totalorder %s16, 3
    %p162 = por %p160, %p161
    %p163 = scmp.ne.s32.totalorder %s154, %s155
    %p164 = scmp.eq.s32.totalorder %s16, 0
    %p165 = por %p163, %p164
    %p166 = scmp.ne.s32.totalorder %s154, %s155
    %p167 = scmp.eq.s32.totalorder %s17, 3
    %p168 = por %p166, %p167
    %p170 = scmp.ne.s32.totalorder %s155, %s169
    %p171 = scmp.eq.s32.totalorder %s17, 0
    %p172 = por %p170, %p171
    %s173 = ssub.s32 %s18, %s30
    %s174 = ssub.s32 %s19, %s26
    %s175 = sor.u32 %s173, %s174
    %p176 = scmp.eq.s32.totalorder %s175, 0
    %s178 = sadd.s32 %s177, 1
    %s179 = scalar_select %p176, %s177, %s178
    %p182 = pneg %p176
    %p183 = scmp.eq.s32.totalorder %s11, 3
    %p184 = por %p182, %p183
    %p185 = scmp.ne.s32.totalorder %s177, %s180
    %p186 = scmp.eq.s32.totalorder %s11, 0
    %p187 = por %p185, %p186
    %p188 = scmp.ne.s32.totalorder %s177, %s180
    %p189 = scmp.eq.s32.totalorder %s16, 3
    %p190 = por %p188, %p189
    %p191 = scmp.ne.s32.totalorder %s180, %s181
    %p192 = scmp.eq.s32.totalorder %s16, 0
    %p193 = por %p191, %p192
    %p194 = scmp.ne.s32.totalorder %s180, %s181
    %p195 = scmp.eq.s32.totalorder %s17, 3
    %p196 = por %p194, %p195
    %p198 = scmp.ne.s32.totalorder %s181, %s197
    %p199 = scmp.eq.s32.totalorder %s17, 0
    %p200 = por %p198, %p199
    %p201 = scmp.le.s32.totalorder 1, %s11
    %p202 = scmp.lt.s32.totalorder %s11, 5
    %p203 = pnand %p201, %p202
    %p204 = pneg %p203
    // Predicated region
    $region9: #{pan_forward.4} parent=5 // pred_check
      _
    $region10: #{pan_forward.4} parent=5 // pred_check_branch
      %206 = sbr.rel (%p203) target = $region12
    $region11: #{pan_forward.4} parent=5 // pred_region
      %s207 = ssub.s32 %s11, 1
      // Predicated region
      $region13: #{pan_forward.4} parent=11 // pred_check
        %p208 = pneg %p144
      $region14: #{pan_forward.4} parent=11 // pred_check_branch
        %210 = sbr.rel (%p208) target = $region16
      $region15: #{pan_forward.4} parent=11 // pred_region
        _
      $region16: #{pan_forward.4} parent=11 // pred_fallthru
        _
      // Predicated region
      $region17: #{pan_forward.4} parent=11 // pred_check
        %p211 = pneg %p165
      $region18: #{pan_forward.4} parent=11 // pred_check_branch
        %213 = sbr.rel (%p211) target = $region20
      $region19: #{pan_forward.4} parent=11 // pred_region
        _
      $region20: #{pan_forward.4} parent=11 // pred_fallthru
        _
    $region12: #{pan_forward.4} parent=5 // pred_fallthru
      _
    %p214 = scmp.lt.s32.totalorder %s11, 4
    // Predicated region
    $region21: #{pan_forward.4} parent=5 // pred_check
      %p215 = pneg %p214
    $region22: #{pan_forward.4} parent=5 // pred_check_branch
      %217 = sbr.rel (%p215) target = $region24
    $region23: #{pan_forward.4} parent=5 // pred_region
      // Predicated region
      $region25: #{pan_forward.4} parent=23 // pred_check
        %p218 = pneg %p45
      $region26: #{pan_forward.4} parent=23 // pred_check_branch
        %220 = sbr.rel (%p218) target = $region28
      $region27: #{pan_forward.4} parent=23 // pred_region
        %s221 = smul.u32 16, %s19
        %p222 = scmp.lt.s32.totalorder %s18, 1
        %s223 = scalar_select %p222, %s18, 1
        %p224 = scmp.lt.s32.totalorder %s221, 31
        %s225 = scalar_select %p224, %s221, 31
        %s226 = smul.addr %s225, 4
        %s227 = smul.addr %s223, 128
        %s228 = sadd.s32 %s226, %s227
        %s229 = smul.addr %s228, 4
        %s230 = scalar_lea.vmem %s0, %s229
        %s231 = smul.u32 16, %s19
      $region28: #{pan_forward.4} parent=23 // pred_fallthru
        _
      // Predicated region
      $region29: #{pan_forward.4} parent=23 // pred_check
        %p232 = pneg %p81
      $region30: #{pan_forward.4} parent=23 // pred_check_branch
        %234 = sbr.rel (%p232) target = $region32
      $region31: #{pan_forward.4} parent=23 // pred_region
        %s235 = smul.u32 %s19, 16
        %s236 = ssub.s32 %s235, 1
        %p237 = scmp.gt.s32.totalorder %s236, 0
        %s238 = scalar_select %p237, %s236, 0
        %p239 = scmp.lt.s32.totalorder %s18, 1
        %s240 = scalar_select %p239, %s18, 1
        %p241 = scmp.lt.s32.totalorder %s238, 31
        %s242 = scalar_select %p241, %s238, 31
        %s243 = smul.addr %s242, 4
        %s244 = smul.addr %s240, 128
        %s245 = sadd.s32 %s243, %s244
        %s246 = smul.addr %s245, 4
        %s247 = scalar_lea.vmem %s1, %s246
        %s248 = smul.u32 %s19, 16
        %s249 = ssub.s32 %s248, 1
        %p250 = scmp.gt.s32.totalorder %s249, 0
        %s251 = scalar_select %p250, %s249, 0
      $region32: #{pan_forward.4} parent=23 // pred_fallthru
        _
      // Predicated region
      $region33: #{pan_forward.4} parent=23 // pred_check
        %p252 = pneg %p117
      $region34: #{pan_forward.4} parent=23 // pred_check_branch
        %254 = sbr.rel (%p252) target = $region36
      $region35: #{pan_forward.4} parent=23 // pred_region
        %s255 = smul.u32 %s19, 16
        %s256 = sadd.s32 %s255, 16
        %p257 = scmp.lt.s32.totalorder %s256, 31
        %s258 = scalar_select %p257, %s256, 31
        %p259 = scmp.lt.s32.totalorder %s18, 1
        %s260 = scalar_select %p259, %s18, 1
        %p261 = scmp.lt.s32.totalorder %s258, 31
        %s262 = scalar_select %p261, %s258, 31
        %s263 = smul.addr %s262, 4
        %s264 = smul.addr %s260, 128
        %s265 = sadd.s32 %s263, %s264
        %s266 = smul.addr %s265, 4
        %s267 = scalar_lea.vmem %s2, %s266
        %s268 = smul.u32 %s19, 16
        %s269 = sadd.s32 %s268, 16
        %p270 = scmp.lt.s32.totalorder %s269, 31
        %s271 = scalar_select %p270, %s269, 31
      $region36: #{pan_forward.4} parent=23 // pred_fallthru
        _
    $region24: #{pan_forward.4} parent=5 // pred_fallthru
      _
    %p272 = scmp.le.s32.totalorder 1, %s11
    %p273 = scmp.lt.s32.totalorder %s11, 5
    %p274 = pnand %p272, %p273
    %p275 = pneg %p274
    // Predicated region
    $region37: #{pan_forward.4} parent=5 // pred_check
      _
    $region38: #{pan_forward.4} parent=5 // pred_check_branch
      %277 = sbr.rel (%p274) target = $region40
    $region39: #{pan_forward.4} parent=5 // pred_region
      %s278 = ssub.s32 %s11, 1
      %s279 = smul.u32 16, %s21
      %p280 = scmp.lt.s32.totalorder %s20, 1
      %s281 = scalar_select %p280, %s20, 1
      %p282 = scmp.lt.s32.totalorder %s279, 31
      %s283 = scalar_select %p282, %s279, 31
      %s284 = smul.addr %s283, 4
      %s285 = smul.addr %s281, 128
      %s286 = sadd.s32 %s284, %s285
      %s287 = smul.addr %s286, 4
      %s288 = scalar_lea.vmem %s0, %s287
      %p289 = pneg %p51
      %p290 = pneg %p48
      %s291 = smul.u32 %s21, 16
      %s292 = ssub.s32 %s291, 1
      %p293 = scmp.gt.s32.totalorder %s292, 0
      %s294 = scalar_select %p293, %s292, 0
      %p295 = scmp.lt.s32.totalorder %s20, 1
      %s296 = scalar_select %p295, %s20, 1
      %p297 = scmp.lt.s32.totalorder %s294, 31
      %s298 = scalar_select %p297, %s294, 31
      %s299 = smul.addr %s298, 4
      %s300 = smul.addr %s296, 128
      %s301 = sadd.s32 %s299, %s300
      %s302 = smul.addr %s301, 4
      %s303 = scalar_lea.vmem %s1, %s302
      %p304 = pneg %p87
      %p305 = pneg %p84
      %s306 = smul.u32 %s21, 16
      %s307 = sadd.s32 %s306, 16
      %p308 = scmp.lt.s32.totalorder %s307, 31
      %s309 = scalar_select %p308, %s307, 31
      %p310 = scmp.lt.s32.totalorder %s20, 1
      %s311 = scalar_select %p310, %s20, 1
      %p312 = scmp.lt.s32.totalorder %s309, 31
      %s313 = scalar_select %p312, %s309, 31
      %s314 = smul.addr %s313, 4
      %s315 = smul.addr %s311, 128
      %s316 = sadd.s32 %s314, %s315
      %s317 = smul.addr %s316, 4
      %s318 = scalar_lea.vmem %s2, %s317
      %p319 = pneg %p123
      %p320 = pneg %p120
      %p321 = pneg %p144
      %p322 = pneg %p141
      %p323 = pneg %p165
      %p324 = pneg %p162
      %p325 = pneg %p193
      %p326 = pneg %p190
      %s327 = smul.u32 64, %s21
      %p328 = scmp.lt.s32.totalorder %s20, 1
      %s329 = scalar_select %p328, %s20, 1
      %p330 = scmp.lt.s32.totalorder %s327, 127
      %s331 = scalar_select %p330, %s327, 127
      %s332 = smul.addr %s329, 128
      %s333 = sadd.s32 %s331, %s332
      %s334 = smul.addr %s333, 4
      %s335 = scalar_lea.vmem %s5, %s334
      %s336 = smul.u32 16, %s21
      %p337 = scmp.lt.s32.totalorder %s20, 1
      %s338 = scalar_select %p337, %s20, 1
      %p339 = scmp.lt.s32.totalorder %s336, 31
      %s340 = scalar_select %p339, %s336, 31
      %s341 = smul.addr %s340, 4
      %s342 = smul.addr %s338, 128
      %s343 = sadd.s32 %s341, %s342
      %s344 = smul.addr %s343, 4
      %s345 = scalar_lea.vmem %s0, %s344
      %s346 = smul.u32 16, %s21
      %s347 = smul.u32 %s21, 16
      %s348 = ssub.s32 %s347, 1
      %p349 = scmp.gt.s32.totalorder %s348, 0
      %s350 = scalar_select %p349, %s348, 0
      %p351 = scmp.lt.s32.totalorder %s20, 1
      %s352 = scalar_select %p351, %s20, 1
      %p353 = scmp.lt.s32.totalorder %s350, 31
      %s354 = scalar_select %p353, %s350, 31
      %s355 = smul.addr %s354, 4
      %s356 = smul.addr %s352, 128
      %s357 = sadd.s32 %s355, %s356
      %s358 = smul.addr %s357, 4
      %s359 = scalar_lea.vmem %s1, %s358
      %s360 = smul.u32 %s21, 16
      %s361 = ssub.s32 %s360, 1
      %p362 = scmp.gt.s32.totalorder %s361, 0
      %s363 = scalar_select %p362, %s361, 0
      %s364 = smul.u32 %s21, 16
      %s365 = sadd.s32 %s364, 16
      %p366 = scmp.lt.s32.totalorder %s365, 31
      %s367 = scalar_select %p366, %s365, 31
      %p368 = scmp.lt.s32.totalorder %s20, 1
      %s369 = scalar_select %p368, %s20, 1
      %p370 = scmp.lt.s32.totalorder %s367, 31
      %s371 = scalar_select %p370, %s367, 31
      %s372 = smul.addr %s371, 4
      %s373 = smul.addr %s369, 128
      %s374 = sadd.s32 %s372, %s373
      %s375 = smul.addr %s374, 4
      %s376 = scalar_lea.vmem %s2, %s375
      %s377 = smul.u32 %s21, 16
      %s378 = sadd.s32 %s377, 16
      %p379 = scmp.lt.s32.totalorder %s378, 31
      %s380 = scalar_select %p379, %s378, 31
      %s381 = smul.u32 64, %s21
      %p382 = scmp.lt.s32.totalorder %s20, 1
      %s383 = scalar_select %p382, %s20, 1
      %p384 = scmp.lt.s32.totalorder %s381, 127
      %s385 = scalar_select %p384, %s381, 127
      %s386 = smul.addr %s383, 128
      %s387 = sadd.s32 %s385, %s386
      %s388 = smul.addr %s387, 4
      %s389 = scalar_lea.vmem %s5, %s388
      %s390 = smul.u32 64, %s21
      %p392 = scmp.gt.s32.totalorder %s21, 0
      %v393 = vld [vmem:[%s359] sm:$0xf]
      %v394 = vld [vmem:[%s359 + $0x4] sm:$0xf]
      %v395 = vld [vmem:[%s359 + $0x8] sm:$0xf]
      %v396 = vld [vmem:[%s359 + $0xc] sm:$0xf]
      %s397 = scalar_select %p392, 1, 0
      %v398 = vstv %s397
      %vm399 = vcmp.eq.s32.totalorder %v398, 1
      %v400 = vsel %vm399, %v393, 0
      %v401 = vsel %vm399, %v394, 0
      %v402 = vsel %vm399, %v395, 0
      %v403 = vsel %vm399, %v396, 0
      %p404 = scmp.lt.s32.totalorder %s21, 1
      %v405 = vld [vmem:[%s376] sm:$0xf]
      %v406 = vld [vmem:[%s376 + $0x4] sm:$0xf]
      %v407 = vld [vmem:[%s376 + $0x8] sm:$0xf]
      %v408 = vld [vmem:[%s376 + $0xc] sm:$0xf]
      %s409 = scalar_select %p404, 1, 0
      %v410 = vstv %s409
      %vm411 = vcmp.eq.s32.totalorder %v410, 1
      %v412 = vsel %vm411, %v405, 0
      %v413 = vsel %vm411, %v406, 0
      %v414 = vsel %vm411, %v407, 0
      %v415 = vsel %vm411, %v408, 0
      %v416 = vld [vmem:[%s345] sm:$0xf]
      %v417 = vld [vmem:[%s345 + $0x4] sm:$0xf]
      %v418 = vld [vmem:[%s345 + $0x8] sm:$0xf]
      %v419 = vld [vmem:[%s345 + $0xc] sm:$0xf]
      %v420 = vld [vmem:[%s345 + $0x10] sm:$0xf]
      %v421 = vld [vmem:[%s345 + $0x14] sm:$0xf]
      %v422 = vld [vmem:[%s345 + $0x18] sm:$0xf]
      %v423 = vld [vmem:[%s345 + $0x1c] sm:$0xf]
      %v424 = vld [vmem:[%s345 + $0x20] sm:$0xf]
      %v425 = vld [vmem:[%s345 + $0x24] sm:$0xf]
      %v426 = vld [vmem:[%s345 + $0x28] sm:$0xf]
      %v427 = vld [vmem:[%s345 + $0x2c] sm:$0xf]
      %v428 = vld [vmem:[%s345 + $0x30] sm:$0xf]
      %v429 = vld [vmem:[%s345 + $0x34] sm:$0xf]
      %v430 = vld [vmem:[%s345 + $0x38] sm:$0xf]
      %v431 = vld [vmem:[%s345 + $0x3c] sm:$0xf]
      %v432 = vld [vmem:[%s345 + $0x40] sm:$0xf]
      %v433 = vld [vmem:[%s345 + $0x44] sm:$0xf]
      %v434 = vld [vmem:[%s345 + $0x48] sm:$0xf]
      %v435 = vld [vmem:[%s345 + $0x4c] sm:$0xf]
      %v436 = vld [vmem:[%s345 + $0x50] sm:$0xf]
      %v437 = vld [vmem:[%s345 + $0x54] sm:$0xf]
      %v438 = vld [vmem:[%s345 + $0x58] sm:$0xf]
      %v439 = vld [vmem:[%s345 + $0x5c] sm:$0xf]
      %v440 = vld [vmem:[%s345 + $0x60] sm:$0xf]
      %v441 = vld [vmem:[%s345 + $0x64] sm:$0xf]
      %v442 = vld [vmem:[%s345 + $0x68] sm:$0xf]
      %v443 = vld [vmem:[%s345 + $0x6c] sm:$0xf]
      %v444 = vld [vmem:[%s345 + $0x70] sm:$0xf]
      %v445 = vld [vmem:[%s345 + $0x74] sm:$0xf]
      %v446 = vld [vmem:[%s345 + $0x78] sm:$0xf]
      %v447 = vld [vmem:[%s345 + $0x7c] sm:$0xf]
      %v448 = vld [vmem:[%s345 + $0x80] sm:$0xf]
      %v449 = vld [vmem:[%s345 + $0x84] sm:$0xf]
      %v450 = vld [vmem:[%s345 + $0x88] sm:$0xf]
      %v451 = vld [vmem:[%s345 + $0x8c] sm:$0xf]
      %v452 = vld [vmem:[%s345 + $0x90] sm:$0xf]
      %v453 = vld [vmem:[%s345 + $0x94] sm:$0xf]
      %v454 = vld [vmem:[%s345 + $0x98] sm:$0xf]
      %v455 = vld [vmem:[%s345 + $0x9c] sm:$0xf]
      %v456 = vld [vmem:[%s345 + $0xa0] sm:$0xf]
      %v457 = vld [vmem:[%s345 + $0xa4] sm:$0xf]
      %v458 = vld [vmem:[%s345 + $0xa8] sm:$0xf]
      %v459 = vld [vmem:[%s345 + $0xac] sm:$0xf]
      %v460 = vld [vmem:[%s345 + $0xb0] sm:$0xf]
      %v461 = vld [vmem:[%s345 + $0xb4] sm:$0xf]
      %v462 = vld [vmem:[%s345 + $0xb8] sm:$0xf]
      %v463 = vld [vmem:[%s345 + $0xbc] sm:$0xf]
      %v464 = vld [vmem:[%s345 + $0xc0] sm:$0xf]
      %v465 = vld [vmem:[%s345 + $0xc4] sm:$0xf]
      %v466 = vld [vmem:[%s345 + $0xc8] sm:$0xf]
      %v467 = vld [vmem:[%s345 + $0xcc] sm:$0xf]
      %v468 = vld [vmem:[%s345 + $0xd0] sm:$0xf]
      %v469 = vld [vmem:[%s345 + $0xd4] sm:$0xf]
      %v470 = vld [vmem:[%s345 + $0xd8] sm:$0xf]
      %v471 = vld [vmem:[%s345 + $0xdc] sm:$0xf]
      %v472 = vld [vmem:[%s345 + $0xe0] sm:$0xf]
      %v473 = vld [vmem:[%s345 + $0xe4] sm:$0xf]
      %v474 = vld [vmem:[%s345 + $0xe8] sm:$0xf]
      %v475 = vld [vmem:[%s345 + $0xec] sm:$0xf]
      %v476 = vld [vmem:[%s345 + $0xf0] sm:$0xf]
      %v477 = vld [vmem:[%s345 + $0xf4] sm:$0xf]
      %v478 = vld [vmem:[%s345 + $0xf8] sm:$0xf]
      %v479 = vld [vmem:[%s345 + $0xfc] sm:$0xf]
      %v480 = vld [vmem:[%s3] sm:$0x1]
      %s481 = scalar_lea.vmem %s3, 1
      %v482 = vld [vmem:[%s481] sm:$0x1]
      %s483 = scalar_lea.vmem %s3, 2
      %v484 = vld [vmem:[%s483] sm:$0x1]
      %s485 = scalar_lea.vmem %s3, 3
      %v486 = vld [vmem:[%s485] sm:$0x1]
      %v551 = vunpack.c.l.b16 %v416
      %v552 = vunpack.c.l.b16 %v417
      %v553 = vunpack.c.l.b16 %v418
      %v554 = vunpack.c.l.b16 %v419
      %v555 = vunpack.c.l.b16 %v420
      %v556 = vunpack.c.l.b16 %v421
      %v557 = vunpack.c.l.b16 %v422
      %v558 = vunpack.c.l.b16 %v423
      %v559 = vunpack.c.l.b16 %v424
      %v560 = vunpack.c.l.b16 %v425
      %v561 = vunpack.c.l.b16 %v426
      %v562 = vunpack.c.l.b16 %v427
      %v563 = vunpack.c.l.b16 %v428
      %v564 = vunpack.c.l.b16 %v429
      %v565 = vunpack.c.l.b16 %v430
      %v566 = vunpack.c.l.b16 %v431
      %v567 = vunpack.c.l.b16 %v432
      %v568 = vunpack.c.l.b16 %v433
      %v569 = vunpack.c.l.b16 %v434
      %v570 = vunpack.c.l.b16 %v435
      %v571 = vunpack.c.l.b16 %v436
      %v572 = vunpack.c.l.b16 %v437
      %v573 = vunpack.c.l.b16 %v438
      %v574 = vunpack.c.l.b16 %v439
      %v575 = vunpack.c.l.b16 %v440
      %v576 = vunpack.c.l.b16 %v441
      %v577 = vunpack.c.l.b16 %v442
      %v578 = vunpack.c.l.b16 %v443
      %v579 = vunpack.c.l.b16 %v444
      %v580 = vunpack.c.l.b16 %v445
      %v581 = vunpack.c.l.b16 %v446
      %v582 = vunpack.c.l.b16 %v447
      %v583 = vunpack.c.l.b16 %v448
      %v584 = vunpack.c.l.b16 %v449
      %v585 = vunpack.c.l.b16 %v450
      %v586 = vunpack.c.l.b16 %v451
      %v587 = vunpack.c.l.b16 %v452
      %v588 = vunpack.c.l.b16 %v453
      %v589 = vunpack.c.l.b16 %v454
      %v590 = vunpack.c.l.b16 %v455
      %v591 = vunpack.c.l.b16 %v456
      %v592 = vunpack.c.l.b16 %v457
      %v593 = vunpack.c.l.b16 %v458
      %v594 = vunpack.c.l.b16 %v459
      %v595 = vunpack.c.l.b16 %v460
      %v596 = vunpack.c.l.b16 %v461
      %v597 = vunpack.c.l.b16 %v462
      %v598 = vunpack.c.l.b16 %v463
      %v599 = vunpack.c.l.b16 %v464
      %v600 = vunpack.c.l.b16 %v465
      %v601 = vunpack.c.l.b16 %v466
      %v602 = vunpack.c.l.b16 %v467
      %v603 = vunpack.c.l.b16 %v468
      %v604 = vunpack.c.l.b16 %v469
      %v605 = vunpack.c.l.b16 %v470
      %v606 = vunpack.c.l.b16 %v471
      %v607 = vunpack.c.l.b16 %v472
      %v608 = vunpack.c.l.b16 %v473
      %v609 = vunpack.c.l.b16 %v474
      %v610 = vunpack.c.l.b16 %v475
      %v611 = vunpack.c.l.b16 %v476
      %v612 = vunpack.c.l.b16 %v477
      %v613 = vunpack.c.l.b16 %v478
      %v614 = vunpack.c.l.b16 %v479
      %v615 = vpack.c.b16 %v552, %v551
      %v616 = vpack.c.b16 %v554, %v553
      %v617 = vpack.c.b16 %v556, %v555
      %v618 = vpack.c.b16 %v558, %v557
      %v619 = vpack.c.b16 %v560, %v559
      %v620 = vpack.c.b16 %v562, %v561
      %v621 = vpack.c.b16 %v564, %v563
      %v622 = vpack.c.b16 %v566, %v565
      %v623 = vpack.c.b16 %v568, %v567
      %v624 = vpack.c.b16 %v570, %v569
      %v625 = vpack.c.b16 %v572, %v571
      %v626 = vpack.c.b16 %v574, %v573
      %v627 = vpack.c.b16 %v576, %v575
      %v628 = vpack.c.b16 %v578, %v577
      %v629 = vpack.c.b16 %v580, %v579
      %v630 = vpack.c.b16 %v582, %v581
      %v631 = vpack.c.b16 %v584, %v583
      %v632 = vpack.c.b16 %v586, %v585
      %v633 = vpack.c.b16 %v588, %v587
      %v634 = vpack.c.b16 %v590, %v589
      %v635 = vpack.c.b16 %v592, %v591
      %v636 = vpack.c.b16 %v594, %v593
      %v637 = vpack.c.b16 %v596, %v595
      %v638 = vpack.c.b16 %v598, %v597
      %v639 = vpack.c.b16 %v600, %v599
      %v640 = vpack.c.b16 %v602, %v601
      %v641 = vpack.c.b16 %v604, %v603
      %v642 = vpack.c.b16 %v606, %v605
      %v643 = vpack.c.b16 %v608, %v607
      %v644 = vpack.c.b16 %v610, %v609
      %v645 = vpack.c.b16 %v612, %v611
      %v646 = vpack.c.b16 %v614, %v613
      %vm647 = vcmask 15360
      %v649 = vsel %vm647, %v615, 0
      %v652 = vsel %vm647, %v616, 0
      %v655 = vsel %vm647, %v617, 0
      %v658 = vsel %vm647, %v618, 0
      %v661 = vsel %vm647, %v619, 0
      %v664 = vsel %vm647, %v620, 0
      %v667 = vsel %vm647, %v621, 0
      %v670 = vsel %vm647, %v622, 0
      %v673 = vsel %vm647, %v623, 0
      %v676 = vsel %vm647, %v624, 0
      %v679 = vsel %vm647, %v625, 0
      %v682 = vsel %vm647, %v626, 0
      %v685 = vsel %vm647, %v627, 0
      %v688 = vsel %vm647, %v628, 0
      %v691 = vsel %vm647, %v629, 0
      %v694 = vsel %vm647, %v630, 0
      %v697 = vsel %vm647, %v631, 0
      %v700 = vsel %vm647, %v632, 0
      %v703 = vsel %vm647, %v633, 0
      %v706 = vsel %vm647, %v634, 0
      %v709 = vsel %vm647, %v635, 0
      %v712 = vsel %vm647, %v636, 0
      %v715 = vsel %vm647, %v637, 0
      %v718 = vsel %vm647, %v638, 0
      %v721 = vsel %vm647, %v639, 0
      %v724 = vsel %vm647, %v640, 0
      %v727 = vsel %vm647, %v641, 0
      %v730 = vsel %vm647, %v642, 0
      %v733 = vsel %vm647, %v643, 0
      %v736 = vsel %vm647, %v644, 0
      %v739 = vsel %vm647, %v645, 0
      %v742 = vsel %vm647, %v646, 0
      %vm744 = vcmask 1040384
      %v746 = vsel %vm744, %v486, 0
      %748 = vmatprep.subr.bf16.mxu0 0
      %749 = vmatpush1.bf16.msra.mxu0 %v746
      %750 = vmatprep.subr.bf16.mxu0 0
      %751 = vmatpush1.bf16.msra.mxu0 0
      %752 = vmatprep.subr.bf16.mxu0 0
      %753 = vmatpush1.bf16.msra.mxu0 0
      %754 = vmatprep.subr.bf16.mxu0 0
      %755 = vmatpush1.bf16.msra.mxu0 0
      %756 = vmatprep.subr.bf16.mxu0 0
      %757 = vmatpush1.bf16.msra.mxu0 0
      %758 = vmatprep.subr.bf16.mxu0 0
      %759 = vmatpush1.bf16.msra.mxu0 0
      %760 = vmatprep.subr.bf16.mxu0 0
      %761 = vmatpush1.bf16.msra.mxu0 0
      %762 = vmatprep.subr.bf16.mxu0 0
      %763 = vmatpush1.bf16.msra.mxu0 0
      %764 = vmatprep.subr.bf16.mxu0 0
      %765 = vmatpush1.bf16.msra.mxu0 0
      %766 = vmatprep.subr.bf16.mxu0 0
      %767 = vmatpush1.bf16.msra.mxu0 0
      %768 = vmatprep.subr.bf16.mxu0 0
      %769 = vmatpush1.bf16.msra.mxu0 0
      %770 = vmatprep.subr.bf16.mxu0 0
      %771 = vmatpush1.bf16.msra.mxu0 0
      %772 = vmatprep.subr.bf16.mxu0 0
      %773 = vmatpush1.bf16.msra.mxu0 0
      %774 = vmatprep.subr.bf16.mxu0 0
      %775 = vmatpush1.bf16.msra.mxu0 0
      %776 = vmatprep.subr.bf16.mxu0 0
      %777 = vmatpush1.bf16.msra.mxu0 0
      %778 = vmatprep.subr.bf16.mxu0 0
      %779 = vmatpush1.bf16.msra.mxu0 0
      %780 = vmatprep.mubr.bf16.mxu0 0
      %781 = vmatmul.mubr.bf16.gmra.mrb[0].mxu0 %v649
      %v782 = vpop.f32.mrb[0].mxu0
      %v783 = vadd.f32 0.0, %v782
      %v784 = vpop.f32.mrb[0].mxu0
      %v785 = vpop.f32.mrb[0].mxu0
      %v786 = vadd.f32 0.0, %v785
      %v787 = vpop.f32.mrb[0].mxu0
      %788 = vmatprep.mubr.bf16.mxu0 0
      %789 = vmatmul.mubr.bf16.gmra.mrb[0].mxu0 %v652
      %v790 = vpop.f32.mrb[0].mxu0
      %v791 = vadd.f32 0.0, %v790
      %v792 = vpop.f32.mrb[0].mxu0
      %v793 = vpop.f32.mrb[0].mxu0
      %v794 = vadd.f32 0.0, %v793
      %v795 = vpop.f32.mrb[0].mxu0
      %796 = vmatprep.mubr.bf16.mxu0 0
      %797 = vmatmul.mubr.bf16.gmra.mrb[0].mxu0 %v655
      %v798 = vpop.f32.mrb[0].mxu0
      %v799 = vadd.f32 0.0, %v798
      %v800 = vpop.f32.mrb[0].mxu0
      %v801 = vpop.f32.mrb[0].mxu0
      %v802 = vadd.f32 0.0, %v801
      %v803 = vpop.f32.mrb[0].mxu0
      %804 = vmatprep.mubr.bf16.mxu0 0
      %805 = vmatmul.mubr.bf16.gmra.mrb[0].mxu0 %v658
      %v806 = vpop.f32.mrb[0].mxu0
      %v807 = vadd.f32 0.0, %v806
      %v808 = vpop.f32.mrb[0].mxu0
      %v809 = vpop.f32.mrb[0].mxu0
      %v810 = vadd.f32 0.0, %v809
      %v811 = vpop.f32.mrb[0].mxu0
      %812 = vmatprep.mubr.bf16.mxu0 0
      %813 = vmatmul.mubr.bf16.gmra.mrb[0].mxu0 %v661
      %v814 = vpop.f32.mrb[0].mxu0
      %v815 = vadd.f32 0.0, %v814
      %v816 = vpop.f32.mrb[0].mxu0
      %v817 = vpop.f32.mrb[0].mxu0
      %v818 = vadd.f32 0.0, %v817
      %v819 = vpop.f32.mrb[0].mxu0
      %820 = vmatprep.mubr.bf16.mxu0 0
      %821 = vmatmul.mubr.bf16.gmra.mrb[0].mxu0 %v664
      %v822 = vpop.f32.mrb[0].mxu0
      %v823 = vadd.f32 0.0, %v822
      %v824 = vpop.f32.mrb[0].mxu0
      %v825 = vpop.f32.mrb[0].mxu0
      %v826 = vadd.f32 0.0, %v825
      %v827 = vpop.f32.mrb[0].mxu0
      %828 = vmatprep.mubr.bf16.mxu0 0
      %829 = vmatmul.mubr.bf16.gmra.mrb[0].mxu0 %v667
      %v830 = vpop.f32.mrb[0].mxu0
      %v831 = vadd.f32 0.0, %v830
      %v832 = vpop.f32.mrb[0].mxu0
      %v833 = vpop.f32.mrb[0].mxu0
      %v834 = vadd.f32 0.0, %v833
      %v835 = vpop.f32.mrb[0].mxu0
      %836 = vmatprep.mubr.bf16.mxu0 0
      %837 = vmatmul.mubr.bf16.gmra.mrb[0].mxu0 %v670
      %v838 = vpop.f32.mrb[0].mxu0
      %v839 = vadd.f32 0.0, %v838
      %v840 = vpop.f32.mrb[0].mxu0
      %v841 = vpop.f32.mrb[0].mxu0
      %v842 = vadd.f32 0.0, %v841
      %v843 = vpop.f32.mrb[0].mxu0
      %844 = vmatprep.mubr.bf16.mxu0 0
      %845 = vmatmul.mubr.bf16.gmra.mrb[0].mxu0 %v673
      %v846 = vpop.f32.mrb[0].mxu0
      %v847 = vadd.f32 0.0, %v846
      %v848 = vpop.f32.mrb[0].mxu0
      %v849 = vpop.f32.mrb[0].mxu0
      %v850 = vadd.f32 0.0, %v849
      %v851 = vpop.f32.mrb[0].mxu0
      %852 = vmatprep.mubr.bf16.mxu0 0
      %853 = vmatmul.mubr.bf16.gmra.mrb[0].mxu0 %v676
      %v854 = vpop.f32.mrb[0].mxu0
      %v855 = vadd.f32 0.0, %v854
      %v856 = vpop.f32.mrb[0].mxu0
      %v857 = vpop.f32.mrb[0].mxu0
      %v858 = vadd.f32 0.0, %v857
      %v859 = vpop.f32.mrb[0].mxu0
      %860 = vmatprep.mubr.bf16.mxu0 0
      %861 = vmatmul.mubr.bf16.gmra.mrb[0].mxu0 %v679
      %v862 = vpop.f32.mrb[0].mxu0
      %v863 = vadd.f32 0.0, %v862
      %v864 = vpop.f32.mrb[0].mxu0
      %v865 = vpop.f32.mrb[0].mxu0
      %v866 = vadd.f32 0.0, %v865
      %v867 = vpop.f32.mrb[0].mxu0
      %868 = vmatprep.mubr.bf16.mxu0 0
      %869 = vmatmul.mubr.bf16.gmra.mrb[0].mxu0 %v682
      %v870 = vpop.f32.mrb[0].mxu0
      %v871 = vadd.f32 0.0, %v870
      %v872 = vpop.f32.mrb[0].mxu0
      %v873 = vpop.f32.mrb[0].mxu0
      %v874 = vadd.f32 0.0, %v873
      %v875 = vpop.f32.mrb[0].mxu0
      %876 = vmatprep.mubr.bf16.mxu0 0
      %877 = vmatmul.mubr.bf16.gmra.mrb[0].mxu0 %v685
      %v878 = vpop.f32.mrb[0].mxu0
      %v879 = vadd.f32 0.0, %v878
      %v880 = vpop.f32.mrb[0].mxu0
      %v881 = vpop.f32.mrb[0].mxu0
      %v882 = vadd.f32 0.0, %v881
      %v883 = vpop.f32.mrb[0].mxu0
      %884 = vmatprep.mubr.bf16.mxu0 0
      %885 = vmatmul.mubr.bf16.gmra.mrb[0].mxu0 %v688
      %v886 = vpop.f32.mrb[0].mxu0
      %v887 = vadd.f32 0.0, %v886
      %v888 = vpop.f32.mrb[0].mxu0
      %v889 = vpop.f32.mrb[0].mxu0
      %v890 = vadd.f32 0.0, %v889
      %v891 = vpop.f32.mrb[0].mxu0
      %892 = vmatprep.mubr.bf16.mxu0 0
      %893 = vmatmul.mubr.bf16.gmra.mrb[0].mxu0 %v691
      %v894 = vpop.f32.mrb[0].mxu0
      %v895 = vadd.f32 0.0, %v894
      %v896 = vpop.f32.mrb[0].mxu0
      %v897 = vpop.f32.mrb[0].mxu0
      %v898 = vadd.f32 0.0, %v897
      %v899 = vpop.f32.mrb[0].mxu0
      %900 = vmatprep.mubr.bf16.mxu0 0
      %901 = vmatmul.mubr.bf16.gmra.mrb[0].mxu0 %v694
      %v902 = vpop.f32.mrb[0].mxu0
      %v903 = vadd.f32 0.0, %v902
      %v904 = vpop.f32.mrb[0].mxu0
      %v905 = vpop.f32.mrb[0].mxu0
      %v906 = vadd.f32 0.0, %v905
      %v907 = vpop.f32.mrb[0].mxu0
      %908 = vmatprep.mubr.bf16.mxu0 0
      %909 = vmatmul.mubr.bf16.gmra.mrb[0].mxu0 %v697
      %v910 = vpop.f32.mrb[0].mxu0
      %v911 = vadd.f32 0.0, %v910
      %v912 = vpop.f32.mrb[0].mxu0
      %v913 = vpop.f32.mrb[0].mxu0
      %v914 = vadd.f32 0.0, %v913
      %v915 = vpop.f32.mrb[0].mxu0
      %916 = vmatprep.mubr.bf16.mxu0 0
      %917 = vmatmul.mubr.bf16.gmra.mrb[0].mxu0 %v700
      %v918 = vpop.f32.mrb[0].mxu0
      %v919 = vadd.f32 0.0, %v918
      %v920 = vpop.f32.mrb[0].mxu0
      %v921 = vpop.f32.mrb[0].mxu0
      %v922 = vadd.f32 0.0, %v921
      %v923 = vpop.f32.mrb[0].mxu0
      %924 = vmatprep.mubr.bf16.mxu0 0
      %925 = vmatmul.mubr.bf16.gmra.mrb[0].mxu0 %v703
      %v926 = vpop.f32.mrb[0].mxu0
      %v927 = vadd.f32 0.0, %v926
      %v928 = vpop.f32.mrb[0].mxu0
      %v929 = vpop.f32.mrb[0].mxu0
      %v930 = vadd.f32 0.0, %v929
      %v931 = vpop.f32.mrb[0].mxu0
      %932 = vmatprep.mubr.bf16.mxu0 0
      %933 = vmatmul.mubr.bf16.gmra.mrb[0].mxu0 %v706
      %v934 = vpop.f32.mrb[0].mxu0
      %v935 = vadd.f32 0.0, %v934
      %v936 = vpop.f32.mrb[0].mxu0
      %v937 = vpop.f32.mrb[0].mxu0
      %v938 = vadd.f32 0.0, %v937
      %v939 = vpop.f32.mrb[0].mxu0
      %940 = vmatprep.mubr.bf16.mxu0 0
      %941 = vmatmul.mubr.bf16.gmra.mrb[0].mxu0 %v709
      %v942 = vpop.f32.mrb[0].mxu0
      %v943 = vadd.f32 0.0, %v942
      %v944 = vpop.f32.mrb[0].mxu0
      %v945 = vpop.f32.mrb[0].mxu0
      %v946 = vadd.f32 0.0, %v945
      %v947 = vpop.f32.mrb[0].mxu0
      %948 = vmatprep.mubr.bf16.mxu0 0
      %949 = vmatmul.mubr.bf16.gmra.mrb[0].mxu0 %v712
      %v950 = vpop.f32.mrb[0].mxu0
      %v951 = vadd.f32 0.0, %v950
      %v952 = vpop.f32.mrb[0].mxu0
      %v953 = vpop.f32.mrb[0].mxu0
      %v954 = vadd.f32 0.0, %v953
      %v955 = vpop.f32.mrb[0].mxu0
      %956 = vmatprep.mubr.bf16.mxu0 0
      %957 = vmatmul.mubr.bf16.gmra.mrb[0].mxu0 %v715
      %v958 = vpop.f32.mrb[0].mxu0
      %v959 = vadd.f32 0.0, %v958
      %v960 = vpop.f32.mrb[0].mxu0
      %v961 = vpop.f32.mrb[0].mxu0
      %v962 = vadd.f32 0.0, %v961
      %v963 = vpop.f32.mrb[0].mxu0
      %964 = vmatprep.mubr.bf16.mxu0 0
      %965 = vmatmul.mubr.bf16.gmra.mrb[0].mxu0 %v718
      %v966 = vpop.f32.mrb[0].mxu0
      %v967 = vadd.f32 0.0, %v966
      %v968 = vpop.f32.mrb[0].mxu0
      %v969 = vpop.f32.mrb[0].mxu0
      %v970 = vadd.f32 0.0, %v969
      %v971 = vpop.f32.mrb[0].mxu0
      %972 = vmatprep.mubr.bf16.mxu0 0
      %973 = vmatmul.mubr.bf16.gmra.mrb[0].mxu0 %v721
      %v974 = vpop.f32.mrb[0].mxu0
      %v975 = vadd.f32 0.0, %v974
      %v976 = vpop.f32.mrb[0].mxu0
      %v977 = vpop.f32.mrb[0].mxu0
      %v978 = vadd.f32 0.0, %v977
      %v979 = vpop.f32.mrb[0].mxu0
      %980 = vmatprep.mubr.bf16.mxu0 0
      %981 = vmatmul.mubr.bf16.gmra.mrb[0].mxu0 %v724
      %v982 = vpop.f32.mrb[0].mxu0
      %v983 = vadd.f32 0.0, %v982
      %v984 = vpop.f32.mrb[0].mxu0
      %v985 = vpop.f32.mrb[0].mxu0
      %v986 = vadd.f32 0.0, %v985
      %v987 = vpop.f32.mrb[0].mxu0
      %988 = vmatprep.mubr.bf16.mxu0 0
      %989 = vmatmul.mubr.bf16.gmra.mrb[0].mxu0 %v727
      %v990 = vpop.f32.mrb[0].mxu0
      %v991 = vadd.f32 0.0, %v990
      %v992 = vpop.f32.mrb[0].mxu0
      %v993 = vpop.f32.mrb[0].mxu0
      %v994 = vadd.f32 0.0, %v993
      %v995 = vpop.f32.mrb[0].mxu0
      %996 = vmatprep.mubr.bf16.mxu0 0
      %997 = vmatmul.mubr.bf16.gmra.mrb[0].mxu0 %v730
      %v998 = vpop.f32.mrb[0].mxu0
      %v999 = vadd.f32 0.0, %v998
      %v1000 = vpop.f32.mrb[0].mxu0
      %v1001 = vpop.f32.mrb[0].mxu0
      %v1002 = vadd.f32 0.0, %v1001
      %v1003 = vpop.f32.mrb[0].mxu0
      %1004 = vmatprep.mubr.bf16.mxu0 0
      %1005 = vmatmul.mubr.bf16.gmra.mrb[0].mxu0 %v733
      %v1006 = vpop.f32.mrb[0].mxu0
      %v1007 = vadd.f32 0.0, %v1006
      %v1008 = vpop.f32.mrb[0].mxu0
      %v1009 = vpop.f32.mrb[0].mxu0
      %v1010 = vadd.f32 0.0, %v1009
      %v1011 = vpop.f32.mrb[0].mxu0
      %1012 = vmatprep.mubr.bf16.mxu0 0
      %1013 = vmatmul.mubr.bf16.gmra.mrb[0].mxu0 %v736
      %v1014 = vpop.f32.mrb[0].mxu0
      %v1015 = vadd.f32 0.0, %v1014
      %v1016 = vpop.f32.mrb[0].mxu0
      %v1017 = vpop.f32.mrb[0].mxu0
      %v1018 = vadd.f32 0.0, %v1017
      %v1019 = vpop.f32.mrb[0].mxu0
      %1020 = vmatprep.mubr.bf16.mxu0 0
      %1021 = vmatmul.mubr.bf16.gmra.mrb[0].mxu0 %v739
      %v1022 = vpop.f32.mrb[0].mxu0
      %v1023 = vadd.f32 0.0, %v1022
      %v1024 = vpop.f32.mrb[0].mxu0
      %v1025 = vpop.f32.mrb[0].mxu0
      %v1026 = vadd.f32 0.0, %v1025
      %v1027 = vpop.f32.mrb[0].mxu0
      %1028 = vmatprep.mubr.bf16.mxu0 0
      %1029 = vmatmul.mubr.bf16.gmra.mrb[0].mxu0 %v742
      %v1030 = vpop.f32.mrb[0].mxu0
      %v1031 = vadd.f32 0.0, %v1030
      %v1032 = vpop.f32.mrb[0].mxu0
      %v1033 = vpop.f32.mrb[0].mxu0
      %v1034 = vadd.f32 0.0, %v1033
      %v1035 = vpop.f32.mrb[0].mxu0
      %1036 = vdwg.mxu0
      %v1041 = vunpack.c.l.b16 %v400
      %v1042 = vunpack.c.l.b16 %v401
      %v1043 = vunpack.c.l.b16 %v402
      %v1044 = vunpack.c.l.b16 %v403
      %v1045 = vpack.c.b16 %v1042, %v1041
      %v1046 = vpack.c.b16 %v1044, %v1043
      %v1048 = vsel %vm647, %v1045, 0
      %v1051 = vsel %vm647, %v1046, 0
      %v1054 = vsel %vm744, %v480, 0
      %1056 = vmatprep.subr.bf16.mxu0 0
      %1057 = vmatpush1.bf16.msra.mxu0 %v1054
      %1058 = vmatprep.subr.bf16.mxu0 0
      %1059 = vmatpush1.bf16.msra.mxu0 0
      %1060 = vmatprep.subr.bf16.mxu0 0
      %1061 = vmatpush1.bf16.msra.mxu0 0
      %1062 = vmatprep.subr.bf16.mxu0 0
      %1063 = vmatpush1.bf16.msra.mxu0 0
      %1064 = vmatprep.subr.bf16.mxu0 0
      %1065 = vmatpush1.bf16.msra.mxu0 0
      %1066 = vmatprep.subr.bf16.mxu0 0
      %1067 = vmatpush1.bf16.msra.mxu0 0
      %1068 = vmatprep.subr.bf16.mxu0 0
      %1069 = vmatpush1.bf16.msra.mxu0 0
      %1070 = vmatprep.subr.bf16.mxu0 0
      %1071 = vmatpush1.bf16.msra.mxu0 0
      %1072 = vmatprep.subr.bf16.mxu0 0
      %1073 = vmatpush1.bf16.msra.mxu0 0
      %1074 = vmatprep.subr.bf16.mxu0 0
      %1075 = vmatpush1.bf16.msra.mxu0 0
      %1076 = vmatprep.subr.bf16.mxu0 0
      %1077 = vmatpush1.bf16.msra.mxu0 0
      %1078 = vmatprep.subr.bf16.mxu0 0
      %1079 = vmatpush1.bf16.msra.mxu0 0
      %1080 = vmatprep.subr.bf16.mxu0 0
      %1081 = vmatpush1.bf16.msra.mxu0 0
      %1082 = vmatprep.subr.bf16.mxu0 0
      %1083 = vmatpush1.bf16.msra.mxu0 0
      %1084 = vmatprep.subr.bf16.mxu0 0
      %1085 = vmatpush1.bf16.msra.mxu0 0
      %1086 = vmatprep.subr.bf16.mxu0 0
      %1087 = vmatpush1.bf16.msra.mxu0 0
      %1088 = vmatprep.mubr.bf16.mxu0 0
      %1089 = vmatmul.mubr.bf16.gmra.mrb[0].mxu0 %v1048
      %v1090 = vpop.f32.mrb[0].mxu0
      %v1091 = vadd.f32 %v783, %v1090
      %v1092 = vpop.f32.mrb[0].mxu0
      %v1093 = vpop.f32.mrb[0].mxu0
      %v1094 = vadd.f32 %v786, %v1093
      %v1095 = vpop.f32.mrb[0].mxu0
      %1096 = vmatprep.mubr.bf16.mxu0 0
      %1097 = vmatmul.mubr.bf16.gmra.mrb[0].mxu0 %v1051
      %v1098 = vpop.f32.mrb[0].mxu0
      %v1099 = vadd.f32 %v791, %v1098
      %v1100 = vpop.f32.mrb[0].mxu0
      %v1101 = vpop.f32.mrb[0].mxu0
      %v1102 = vadd.f32 %v794, %v1101
      %v1103 = vpop.f32.mrb[0].mxu0
      %1104 = vmatprep.mubr.bf16.mxu0 0
      %1105 = vmatmul.mubr.bf16.gmra.mrb[0].mxu0 %v649
      %v1106 = vpop.f32.mrb[0].mxu0
      %v1107 = vadd.f32 %v799, %v1106
      %v1108 = vpop.f32.mrb[0].mxu0
      %v1109 = vpop.f32.mrb[0].mxu0
      %v1110 = vadd.f32 %v802, %v1109
      %v1111 = vpop.f32.mrb[0].mxu0
      %1112 = vmatprep.mubr.bf16.mxu0 0
      %1113 = vmatmul.mubr.bf16.gmra.mrb[0].mxu0 %v652
      %v1114 = vpop.f32.mrb[0].mxu0
      %v1115 = vadd.f32 %v807, %v1114
      %v1116 = vpop.f32.mrb[0].mxu0
      %v1117 = vpop.f32.mrb[0].mxu0
      %v1118 = vadd.f32 %v810, %v1117
      %v1119 = vpop.f32.mrb[0].mxu0
      %1120 = vmatprep.mubr.bf16.mxu0 0
      %1121 = vmatmul.mubr.bf16.gmra.mrb[0].mxu0 %v655
      %v1122 = vpop.f32.mrb[0].mxu0
      %v1123 = vadd.f32 %v815, %v1122
      %v1124 = vpop.f32.mrb[0].mxu0
      %v1125 = vpop.f32.mrb[0].mxu0
      %v1126 = vadd.f32 %v818, %v1125
      %v1127 = vpop.f32.mrb[0].mxu0
      %1128 = vmatprep.mubr.bf16.mxu0 0
      %1129 = vmatmul.mubr.bf16.gmra.mrb[0].mxu0 %v658
      %v1130 = vpop.f32.mrb[0].mxu0
      %v1131 = vadd.f32 %v823, %v1130
      %v1132 = vpop.f32.mrb[0].mxu0
      %v1133 = vpop.f32.mrb[0].mxu0
      %v1134 = vadd.f32 %v826, %v1133
      %v1135 = vpop.f32.mrb[0].mxu0
      %1136 = vmatprep.mubr.bf16.mxu0 0
      %1137 = vmatmul.mubr.bf16.gmra.mrb[0].mxu0 %v661
      %v1138 = vpop.f32.mrb[0].mxu0
      %v1139 = vadd.f32 %v831, %v1138
      %v1140 = vpop.f32.mrb[0].mxu0
      %v1141 = vpop.f32.mrb[0].mxu0
      %v1142 = vadd.f32 %v834, %v1141
      %v1143 = vpop.f32.mrb[0].mxu0
      %1144 = vmatprep.mubr.bf16.mxu0 0
      %1145 = vmatmul.mubr.bf16.gmra.mrb[0].mxu0 %v664
      %v1146 = vpop.f32.mrb[0].mxu0
      %v1147 = vadd.f32 %v839, %v1146
      %v1148 = vpop.f32.mrb[0].mxu0
      %v1149 = vpop.f32.mrb[0].mxu0
      %v1150 = vadd.f32 %v842, %v1149
      %v1151 = vpop.f32.mrb[0].mxu0
      %1152 = vmatprep.mubr.bf16.mxu0 0
      %1153 = vmatmul.mubr.bf16.gmra.mrb[0].mxu0 %v667
      %v1154 = vpop.f32.mrb[0].mxu0
      %v1155 = vadd.f32 %v847, %v1154
      %v1156 = vpop.f32.mrb[0].mxu0
      %v1157 = vpop.f32.mrb[0].mxu0
      %v1158 = vadd.f32 %v850, %v1157
      %v1159 = vpop.f32.mrb[0].mxu0
      %1160 = vmatprep.mubr.bf16.mxu0 0
      %1161 = vmatmul.mubr.bf16.gmra.mrb[0].mxu0 %v670
      %v1162 = vpop.f32.mrb[0].mxu0
      %v1163 = vadd.f32 %v855, %v1162
      %v1164 = vpop.f32.mrb[0].mxu0
      %v1165 = vpop.f32.mrb[0].mxu0
      %v1166 = vadd.f32 %v858, %v1165
      %v1167 = vpop.f32.mrb[0].mxu0
      %1168 = vmatprep.mubr.bf16.mxu0 0
      %1169 = vmatmul.mubr.bf16.gmra.mrb[0].mxu0 %v673
      %v1170 = vpop.f32.mrb[0].mxu0
      %v1171 = vadd.f32 %v863, %v1170
      %v1172 = vpop.f32.mrb[0].mxu0
      %v1173 = vpop.f32.mrb[0].mxu0
      %v1174 = vadd.f32 %v866, %v1173
      %v1175 = vpop.f32.mrb[0].mxu0
      %1176 = vmatprep.mubr.bf16.mxu0 0
      %1177 = vmatmul.mubr.bf16.gmra.mrb[0].mxu0 %v676
      %v1178 = vpop.f32.mrb[0].mxu0
      %v1179 = vadd.f32 %v871, %v1178
      %v1180 = vpop.f32.mrb[0].mxu0
      %v1181 = vpop.f32.mrb[0].mxu0
      %v1182 = vadd.f32 %v874, %v1181
      %v1183 = vpop.f32.mrb[0].mxu0
      %1184 = vmatprep.mubr.bf16.mxu0 0
      %1185 = vmatmul.mubr.bf16.gmra.mrb[0].mxu0 %v679
      %v1186 = vpop.f32.mrb[0].mxu0
      %v1187 = vadd.f32 %v879, %v1186
      %v1188 = vpop.f32.mrb[0].mxu0
      %v1189 = vpop.f32.mrb[0].mxu0
      %v1190 = vadd.f32 %v882, %v1189
      %v1191 = vpop.f32.mrb[0].mxu0
      %1192 = vmatprep.mubr.bf16.mxu0 0
      %1193 = vmatmul.mubr.bf16.gmra.mrb[0].mxu0 %v682
      %v1194 = vpop.f32.mrb[0].mxu0
      %v1195 = vadd.f32 %v887, %v1194
      %v1196 = vpop.f32.mrb[0].mxu0
      %v1197 = vpop.f32.mrb[0].mxu0
      %v1198 = vadd.f32 %v890, %v1197
      %v1199 = vpop.f32.mrb[0].mxu0
      %1200 = vmatprep.mubr.bf16.mxu0 0
      %1201 = vmatmul.mubr.bf16.gmra.mrb[0].mxu0 %v685
      %v1202 = vpop.f32.mrb[0].mxu0
      %v1203 = vadd.f32 %v895, %v1202
      %v1204 = vpop.f32.mrb[0].mxu0
      %v1205 = vpop.f32.mrb[0].mxu0
      %v1206 = vadd.f32 %v898, %v1205
      %v1207 = vpop.f32.mrb[0].mxu0
      %1208 = vmatprep.mubr.bf16.mxu0 0
      %1209 = vmatmul.mubr.bf16.gmra.mrb[0].mxu0 %v688
      %v1210 = vpop.f32.mrb[0].mxu0
      %v1211 = vadd.f32 %v903, %v1210
      %v1212 = vpop.f32.mrb[0].mxu0
      %v1213 = vpop.f32.mrb[0].mxu0
      %v1214 = vadd.f32 %v906, %v1213
      %v1215 = vpop.f32.mrb[0].mxu0
      %1216 = vmatprep.mubr.bf16.mxu0 0
      %1217 = vmatmul.mubr.bf16.gmra.mrb[0].mxu0 %v691
      %v1218 = vpop.f32.mrb[0].mxu0
      %v1219 = vadd.f32 %v911, %v1218
      %v1220 = vpop.f32.mrb[0].mxu0
      %v1221 = vpop.f32.mrb[0].mxu0
      %v1222 = vadd.f32 %v914, %v1221
      %v1223 = vpop.f32.mrb[0].mxu0
      %1224 = vmatprep.mubr.bf16.mxu0 0
      %1225 = vmatmul.mubr.bf16.gmra.mrb[0].mxu0 %v694
      %v1226 = vpop.f32.mrb[0].mxu0
      %v1227 = vadd.f32 %v919, %v1226
      %v1228 = vpop.f32.mrb[0].mxu0
      %v1229 = vpop.f32.mrb[0].mxu0
      %v1230 = vadd.f32 %v922, %v1229
      %v1231 = vpop.f32.mrb[0].mxu0
      %1232 = vmatprep.mubr.bf16.mxu0 0
      %1233 = vmatmul.mubr.bf16.gmra.mrb[0].mxu0 %v697
      %v1234 = vpop.f32.mrb[0].mxu0
      %v1235 = vadd.f32 %v927, %v1234
      %v1236 = vpop.f32.mrb[0].mxu0
      %v1237 = vpop.f32.mrb[0].mxu0
      %v1238 = vadd.f32 %v930, %v1237
      %v1239 = vpop.f32.mrb[0].mxu0
      %1240 = vmatprep.mubr.bf16.mxu0 0
      %1241 = vmatmul.mubr.bf16.gmra.mrb[0].mxu0 %v700
      %v1242 = vpop.f32.mrb[0].mxu0
      %v1243 = vadd.f32 %v935, %v1242
      %v1244 = vpop.f32.mrb[0].mxu0
      %v1245 = vpop.f32.mrb[0].mxu0
      %v1246 = vadd.f32 %v938, %v1245
      %v1247 = vpop.f32.mrb[0].mxu0
      %1248 = vmatprep.mubr.bf16.mxu0 0
      %1249 = vmatmul.mubr.bf16.gmra.mrb[0].mxu0 %v703
      %v1250 = vpop.f32.mrb[0].mxu0
      %v1251 = vadd.f32 %v943, %v1250
      %v1252 = vpop.f32.mrb[0].mxu0
      %v1253 = vpop.f32.mrb[0].mxu0
      %v1254 = vadd.f32 %v946, %v1253
      %v1255 = vpop.f32.mrb[0].mxu0
      %1256 = vmatprep.mubr.bf16.mxu0 0
      %1257 = vmatmul.mubr.bf16.gmra.mrb[0].mxu0 %v706
      %v1258 = vpop.f32.mrb[0].mxu0
      %v1259 = vadd.f32 %v951, %v1258
      %v1260 = vpop.f32.mrb[0].mxu0
      %v1261 = vpop.f32.mrb[0].mxu0
      %v1262 = vadd.f32 %v954, %v1261
      %v1263 = vpop.f32.mrb[0].mxu0
      %1264 = vmatprep.mubr.bf16.mxu0 0
      %1265 = vmatmul.mubr.bf16.gmra.mrb[0].mxu0 %v709
      %v1266 = vpop.f32.mrb[0].mxu0
      %v1267 = vadd.f32 %v959, %v1266
      %v1268 = vpop.f32.mrb[0].mxu0
      %v1269 = vpop.f32.mrb[0].mxu0
      %v1270 = vadd.f32 %v962, %v1269
      %v1271 = vpop.f32.mrb[0].mxu0
      %1272 = vmatprep.mubr.bf16.mxu0 0
      %1273 = vmatmul.mubr.bf16.gmra.mrb[0].mxu0 %v712
      %v1274 = vpop.f32.mrb[0].mxu0
      %v1275 = vadd.f32 %v967, %v1274
      %v1276 = vpop.f32.mrb[0].mxu0
      %v1277 = vpop.f32.mrb[0].mxu0
      %v1278 = vadd.f32 %v970, %v1277
      %v1279 = vpop.f32.mrb[0].mxu0
      %1280 = vmatprep.mubr.bf16.mxu0 0
      %1281 = vmatmul.mubr.bf16.gmra.mrb[0].mxu0 %v715
      %v1282 = vpop.f32.mrb[0].mxu0
      %v1283 = vadd.f32 %v975, %v1282
      %v1284 = vpop.f32.mrb[0].mxu0
      %v1285 = vpop.f32.mrb[0].mxu0
      %v1286 = vadd.f32 %v978, %v1285
      %v1287 = vpop.f32.mrb[0].mxu0
      %1288 = vmatprep.mubr.bf16.mxu0 0
      %1289 = vmatmul.mubr.bf16.gmra.mrb[0].mxu0 %v718
      %v1290 = vpop.f32.mrb[0].mxu0
      %v1291 = vadd.f32 %v983, %v1290
      %v1292 = vpop.f32.mrb[0].mxu0
      %v1293 = vpop.f32.mrb[0].mxu0
      %v1294 = vadd.f32 %v986, %v1293
      %v1295 = vpop.f32.mrb[0].mxu0
      %1296 = vmatprep.mubr.bf16.mxu0 0
      %1297 = vmatmul.mubr.bf16.gmra.mrb[0].mxu0 %v721
      %v1298 = vpop.f32.mrb[0].mxu0
      %v1299 = vadd.f32 %v991, %v1298
      %v1300 = vpop.f32.mrb[0].mxu0
      %v1301 = vpop.f32.mrb[0].mxu0
      %v1302 = vadd.f32 %v994, %v1301
      %v1303 = vpop.f32.mrb[0].mxu0
      %1304 = vmatprep.mubr.bf16.mxu0 0
      %1305 = vmatmul.mubr.bf16.gmra.mrb[0].mxu0 %v724
      %v1306 = vpop.f32.mrb[0].mxu0
      %v1307 = vadd.f32 %v999, %v1306
      %v1308 = vpop.f32.mrb[0].mxu0
      %v1309 = vpop.f32.mrb[0].mxu0
      %v1310 = vadd.f32 %v1002, %v1309
      %v1311 = vpop.f32.mrb[0].mxu0
      %1312 = vmatprep.mubr.bf16.mxu0 0
      %1313 = vmatmul.mubr.bf16.gmra.mrb[0].mxu0 %v727
      %v1314 = vpop.f32.mrb[0].mxu0
      %v1315 = vadd.f32 %v1007, %v1314
      %v1316 = vpop.f32.mrb[0].mxu0
      %v1317 = vpop.f32.mrb[0].mxu0
      %v1318 = vadd.f32 %v1010, %v1317
      %v1319 = vpop.f32.mrb[0].mxu0
      %1320 = vmatprep.mubr.bf16.mxu0 0
      %1321 = vmatmul.mubr.bf16.gmra.mrb[0].mxu0 %v730
      %v1322 = vpop.f32.mrb[0].mxu0
      %v1323 = vadd.f32 %v1015, %v1322
      %v1324 = vpop.f32.mrb[0].mxu0
      %v1325 = vpop.f32.mrb[0].mxu0
      %v1326 = vadd.f32 %v1018, %v1325
      %v1327 = vpop.f32.mrb[0].mxu0
      %1328 = vmatprep.mubr.bf16.mxu0 0
      %1329 = vmatmul.mubr.bf16.gmra.mrb[0].mxu0 %v733
      %v1330 = vpop.f32.mrb[0].mxu0
      %v1331 = vadd.f32 %v1023, %v1330
      %v1332 = vpop.f32.mrb[0].mxu0
      %v1333 = vpop.f32.mrb[0].mxu0
      %v1334 = vadd.f32 %v1026, %v1333
      %v1335 = vpop.f32.mrb[0].mxu0
      %1336 = vmatprep.mubr.bf16.mxu0 0
      %1337 = vmatmul.mubr.bf16.gmra.mrb[0].mxu0 %v736
      %v1338 = vpop.f32.mrb[0].mxu0
      %v1339 = vadd.f32 %v1031, %v1338
      %v1340 = vpop.f32.mrb[0].mxu0
      %v1341 = vpop.f32.mrb[0].mxu0
      %v1342 = vadd.f32 %v1034, %v1341
      %v1343 = vpop.f32.mrb[0].mxu0
      %1344 = vdwg.mxu0
      %s1345 = scalar_lea.vmem %s3, 4
      %v1346 = vld [vmem:[%s1345] sm:$0x1]
      %v1348 = vsel %vm744, %v1346, 0
      %1350 = vmatprep.subr.bf16.mxu0 0
      %1351 = vmatpush1.bf16.msra.mxu0 %v1348
      %1352 = vmatprep.subr.bf16.mxu0 0
      %1353 = vmatpush1.bf16.msra.mxu0 0
      %1354 = vmatprep.subr.bf16.mxu0 0
      %1355 = vmatpush1.bf16.msra.mxu0 0
      %1356 = vmatprep.subr.bf16.mxu0 0
      %1357 = vmatpush1.bf16.msra.mxu0 0
      %1358 = vmatprep.subr.bf16.mxu0 0
      %1359 = vmatpush1.bf16.msra.mxu0 0
      %1360 = vmatprep.subr.bf16.mxu0 0
      %1361 = vmatpush1.bf16.msra.mxu0 0
      %1362 = vmatprep.subr.bf16.mxu0 0
      %1363 = vmatpush1.bf16.msra.mxu0 0
      %1364 = vmatprep.subr.bf16.mxu0 0
      %1365 = vmatpush1.bf16.msra.mxu0 0
      %1366 = vmatprep.subr.bf16.mxu0 0
      %1367 = vmatpush1.bf16.msra.mxu0 0
      %1368 = vmatprep.subr.bf16.mxu0 0
      %1369 = vmatpush1.bf16.msra.mxu0 0
      %1370 = vmatprep.subr.bf16.mxu0 0
      %1371 = vmatpush1.bf16.msra.mxu0 0
      %1372 = vmatprep.subr.bf16.mxu0 0
      %1373 = vmatpush1.bf16.msra.mxu0 0
      %1374 = vmatprep.subr.bf16.mxu0 0
      %1375 = vmatpush1.bf16.msra.mxu0 0
      %1376 = vmatprep.subr.bf16.mxu0 0
      %1377 = vmatpush1.bf16.msra.mxu0 0
      %1378 = vmatprep.subr.bf16.mxu0 0
      %1379 = vmatpush1.bf16.msra.mxu0 0
      %1380 = vmatprep.subr.bf16.mxu0 0
      %1381 = vmatpush1.bf16.msra.mxu0 0
      %1382 = vmatprep.mubr.bf16.mxu0 0
      %1383 = vmatmul.mubr.bf16.gmra.mrb[0].mxu0 %v649
      %v1384 = vpop.f32.mrb[0].mxu0
      %v1385 = vadd.f32 0.0, %v1384
      %v1386 = vpop.f32.mrb[0].mxu0
      %v1387 = vpop.f32.mrb[0].mxu0
      %v1388 = vadd.f32 0.0, %v1387
      %v1389 = vpop.f32.mrb[0].mxu0
      %1390 = vmatprep.mubr.bf16.mxu0 0
      %1391 = vmatmul.mubr.bf16.gmra.mrb[0].mxu0 %v652
      %v1392 = vpop.f32.mrb[0].mxu0
      %v1393 = vadd.f32 0.0, %v1392
      %v1394 = vpop.f32.mrb[0].mxu0
      %v1395 = vpop.f32.mrb[0].mxu0
      %v1396 = vadd.f32 0.0, %v1395
      %v1397 = vpop.f32.mrb[0].mxu0
      %1398 = vmatprep.mubr.bf16.mxu0 0
      %1399 = vmatmul.mubr.bf16.gmra.mrb[0].mxu0 %v655
      %v1400 = vpop.f32.mrb[0].mxu0
      %v1401 = vadd.f32 0.0, %v1400
      %v1402 = vpop.f32.mrb[0].mxu0
      %v1403 = vpop.f32.mrb[0].mxu0
      %v1404 = vadd.f32 0.0, %v1403
      %v1405 = vpop.f32.mrb[0].mxu0
      %1406 = vmatprep.mubr.bf16.mxu0 0
      %1407 = vmatmul.mubr.bf16.gmra.mrb[0].mxu0 %v658
      %v1408 = vpop.f32.mrb[0].mxu0
      %v1409 = vadd.f32 0.0, %v1408
      %v1410 = vpop.f32.mrb[0].mxu0
      %v1411 = vpop.f32.mrb[0].mxu0
      %v1412 = vadd.f32 0.0, %v1411
      %v1413 = vpop.f32.mrb[0].mxu0
      %1414 = vmatprep.mubr.bf16.mxu0 0
      %1415 = vmatmul.mubr.bf16.gmra.mrb[0].mxu0 %v661
      %v1416 = vpop.f32.mrb[0].mxu0
      %v1417 = vadd.f32 0.0, %v1416
      %v1418 = vpop.f32.mrb[0].mxu0
      %v1419 = vpop.f32.mrb[0].mxu0
      %v1420 = vadd.f32 0.0, %v1419
      %v1421 = vpop.f32.mrb[0].mxu0
      %1422 = vmatprep.mubr.bf16.mxu0 0
      %1423 = vmatmul.mubr.bf16.gmra.mrb[0].mxu0 %v664
      %v1424 = vpop.f32.mrb[0].mxu0
      %v1425 = vadd.f32 0.0, %v1424
      %v1426 = vpop.f32.mrb[0].mxu0
      %v1427 = vpop.f32.mrb[0].mxu0
      %v1428 = vadd.f32 0.0, %v1427
      %v1429 = vpop.f32.mrb[0].mxu0
      %1430 = vmatprep.mubr.bf16.mxu0 0
      %1431 = vmatmul.mubr.bf16.gmra.mrb[0].mxu0 %v667
      %v1432 = vpop.f32.mrb[0].mxu0
      %v1433 = vadd.f32 0.0, %v1432
      %v1434 = vpop.f32.mrb[0].mxu0
      %v1435 = vpop.f32.mrb[0].mxu0
      %v1436 = vadd.f32 0.0, %v1435
      %v1437 = vpop.f32.mrb[0].mxu0
      %1438 = vmatprep.mubr.bf16.mxu0 0
      %1439 = vmatmul.mubr.bf16.gmra.mrb[0].mxu0 %v670
      %v1440 = vpop.f32.mrb[0].mxu0
      %v1441 = vadd.f32 0.0, %v1440
      %v1442 = vpop.f32.mrb[0].mxu0
      %v1443 = vpop.f32.mrb[0].mxu0
      %v1444 = vadd.f32 0.0, %v1443
      %v1445 = vpop.f32.mrb[0].mxu0
      %1446 = vmatprep.mubr.bf16.mxu0 0
      %1447 = vmatmul.mubr.bf16.gmra.mrb[0].mxu0 %v673
      %v1448 = vpop.f32.mrb[0].mxu0
      %v1449 = vadd.f32 0.0, %v1448
      %v1450 = vpop.f32.mrb[0].mxu0
      %v1451 = vpop.f32.mrb[0].mxu0
      %v1452 = vadd.f32 0.0, %v1451
      %v1453 = vpop.f32.mrb[0].mxu0
      %1454 = vmatprep.mubr.bf16.mxu0 0
      %1455 = vmatmul.mubr.bf16.gmra.mrb[0].mxu0 %v676
      %v1456 = vpop.f32.mrb[0].mxu0
      %v1457 = vadd.f32 0.0, %v1456
      %v1458 = vpop.f32.mrb[0].mxu0
      %v1459 = vpop.f32.mrb[0].mxu0
      %v1460 = vadd.f32 0.0, %v1459
      %v1461 = vpop.f32.mrb[0].mxu0
      %1462 = vmatprep.mubr.bf16.mxu0 0
      %1463 = vmatmul.mubr.bf16.gmra.mrb[0].mxu0 %v679
      %v1464 = vpop.f32.mrb[0].mxu0
      %v1465 = vadd.f32 0.0, %v1464
      %v1466 = vpop.f32.mrb[0].mxu0
      %v1467 = vpop.f32.mrb[0].mxu0
      %v1468 = vadd.f32 0.0, %v1467
      %v1469 = vpop.f32.mrb[0].mxu0
      %1470 = vmatprep.mubr.bf16.mxu0 0
      %1471 = vmatmul.mubr.bf16.gmra.mrb[0].mxu0 %v682
      %v1472 = vpop.f32.mrb[0].mxu0
      %v1473 = vadd.f32 0.0, %v1472
      %v1474 = vpop.f32.mrb[0].mxu0
      %v1475 = vpop.f32.mrb[0].mxu0
      %v1476 = vadd.f32 0.0, %v1475
      %v1477 = vpop.f32.mrb[0].mxu0
      %1478 = vmatprep.mubr.bf16.mxu0 0
      %1479 = vmatmul.mubr.bf16.gmra.mrb[0].mxu0 %v685
      %v1480 = vpop.f32.mrb[0].mxu0
      %v1481 = vadd.f32 0.0, %v1480
      %v1482 = vpop.f32.mrb[0].mxu0
      %v1483 = vpop.f32.mrb[0].mxu0
      %v1484 = vadd.f32 0.0, %v1483
      %v1485 = vpop.f32.mrb[0].mxu0
      %1486 = vmatprep.mubr.bf16.mxu0 0
      %1487 = vmatmul.mubr.bf16.gmra.mrb[0].mxu0 %v688
      %v1488 = vpop.f32.mrb[0].mxu0
      %v1489 = vadd.f32 0.0, %v1488
      %v1490 = vpop.f32.mrb[0].mxu0
      %v1491 = vpop.f32.mrb[0].mxu0
      %v1492 = vadd.f32 0.0, %v1491
      %v1493 = vpop.f32.mrb[0].mxu0
      %1494 = vmatprep.mubr.bf16.mxu0 0
      %1495 = vmatmul.mubr.bf16.gmra.mrb[0].mxu0 %v691
      %v1496 = vpop.f32.mrb[0].mxu0
      %v1497 = vadd.f32 0.0, %v1496
      %v1498 = vpop.f32.mrb[0].mxu0
      %v1499 = vpop.f32.mrb[0].mxu0
      %v1500 = vadd.f32 0.0, %v1499
      %v1501 = vpop.f32.mrb[0].mxu0
      %1502 = vmatprep.mubr.bf16.mxu0 0
      %1503 = vmatmul.mubr.bf16.gmra.mrb[0].mxu0 %v694
      %v1504 = vpop.f32.mrb[0].mxu0
      %v1505 = vadd.f32 0.0, %v1504
      %v1506 = vpop.f32.mrb[0].mxu0
      %v1507 = vpop.f32.mrb[0].mxu0
      %v1508 = vadd.f32 0.0, %v1507
      %v1509 = vpop.f32.mrb[0].mxu0
      %1510 = vmatprep.mubr.bf16.mxu0 0
      %1511 = vmatmul.mubr.bf16.gmra.mrb[0].mxu0 %v697
      %v1512 = vpop.f32.mrb[0].mxu0
      %v1513 = vadd.f32 0.0, %v1512
      %v1514 = vpop.f32.mrb[0].mxu0
      %v1515 = vpop.f32.mrb[0].mxu0
      %v1516 = vadd.f32 0.0, %v1515
      %v1517 = vpop.f32.mrb[0].mxu0
      %1518 = vmatprep.mubr.bf16.mxu0 0
      %1519 = vmatmul.mubr.bf16.gmra.mrb[0].mxu0 %v700
      %v1520 = vpop.f32.mrb[0].mxu0
      %v1521 = vadd.f32 0.0, %v1520
      %v1522 = vpop.f32.mrb[0].mxu0
      %v1523 = vpop.f32.mrb[0].mxu0
      %v1524 = vadd.f32 0.0, %v1523
      %v1525 = vpop.f32.mrb[0].mxu0
      %1526 = vmatprep.mubr.bf16.mxu0 0
      %1527 = vmatmul.mubr.bf16.gmra.mrb[0].mxu0 %v703
      %v1528 = vpop.f32.mrb[0].mxu0
      %v1529 = vadd.f32 0.0, %v1528
      %v1530 = vpop.f32.mrb[0].mxu0
      %v1531 = vpop.f32.mrb[0].mxu0
      %v1532 = vadd.f32 0.0, %v1531
      %v1533 = vpop.f32.mrb[0].mxu0
      %1534 = vmatprep.mubr.bf16.mxu0 0
      %1535 = vmatmul.mubr.bf16.gmra.mrb[0].mxu0 %v706
      %v1536 = vpop.f32.mrb[0].mxu0
      %v1537 = vadd.f32 0.0, %v1536
      %v1538 = vpop.f32.mrb[0].mxu0
      %v1539 = vpop.f32.mrb[0].mxu0
      %v1540 = vadd.f32 0.0, %v1539
      %v1541 = vpop.f32.mrb[0].mxu0
      %1542 = vmatprep.mubr.bf16.mxu0 0
      %1543 = vmatmul.mubr.bf16.gmra.mrb[0].mxu0 %v709
      %v1544 = vpop.f32.mrb[0].mxu0
      %v1545 = vadd.f32 0.0, %v1544
      %v1546 = vpop.f32.mrb[0].mxu0
      %v1547 = vpop.f32.mrb[0].mxu0
      %v1548 = vadd.f32 0.0, %v1547
      %v1549 = vpop.f32.mrb[0].mxu0
      %1550 = vmatprep.mubr.bf16.mxu0 0
      %1551 = vmatmul.mubr.bf16.gmra.mrb[0].mxu0 %v712
      %v1552 = vpop.f32.mrb[0].mxu0
      %v1553 = vadd.f32 0.0, %v1552
      %v1554 = vpop.f32.mrb[0].mxu0
      %v1555 = vpop.f32.mrb[0].mxu0
      %v1556 = vadd.f32 0.0, %v1555
      %v1557 = vpop.f32.mrb[0].mxu0
      %1558 = vmatprep.mubr.bf16.mxu0 0
      %1559 = vmatmul.mubr.bf16.gmra.mrb[0].mxu0 %v715
      %v1560 = vpop.f32.mrb[0].mxu0
      %v1561 = vadd.f32 0.0, %v1560
      %v1562 = vpop.f32.mrb[0].mxu0
      %v1563 = vpop.f32.mrb[0].mxu0
      %v1564 = vadd.f32 0.0, %v1563
      %v1565 = vpop.f32.mrb[0].mxu0
      %1566 = vmatprep.mubr.bf16.mxu0 0
      %1567 = vmatmul.mubr.bf16.gmra.mrb[0].mxu0 %v718
      %v1568 = vpop.f32.mrb[0].mxu0
      %v1569 = vadd.f32 0.0, %v1568
      %v1570 = vpop.f32.mrb[0].mxu0
      %v1571 = vpop.f32.mrb[0].mxu0
      %v1572 = vadd.f32 0.0, %v1571
      %v1573 = vpop.f32.mrb[0].mxu0
      %1574 = vmatprep.mubr.bf16.mxu0 0
      %1575 = vmatmul.mubr.bf16.gmra.mrb[0].mxu0 %v721
      %v1576 = vpop.f32.mrb[0].mxu0
      %v1577 = vadd.f32 0.0, %v1576
      %v1578 = vpop.f32.mrb[0].mxu0
      %v1579 = vpop.f32.mrb[0].mxu0
      %v1580 = vadd.f32 0.0, %v1579
      %v1581 = vpop.f32.mrb[0].mxu0
      %1582 = vmatprep.mubr.bf16.mxu0 0
      %1583 = vmatmul.mubr.bf16.gmra.mrb[0].mxu0 %v724
      %v1584 = vpop.f32.mrb[0].mxu0
      %v1585 = vadd.f32 0.0, %v1584
      %v1586 = vpop.f32.mrb[0].mxu0
      %v1587 = vpop.f32.mrb[0].mxu0
      %v1588 = vadd.f32 0.0, %v1587
      %v1589 = vpop.f32.mrb[0].mxu0
      %1590 = vmatprep.mubr.bf16.mxu0 0
      %1591 = vmatmul.mubr.bf16.gmra.mrb[0].mxu0 %v727
      %v1592 = vpop.f32.mrb[0].mxu0
      %v1593 = vadd.f32 0.0, %v1592
      %v1594 = vpop.f32.mrb[0].mxu0
      %v1595 = vpop.f32.mrb[0].mxu0
      %v1596 = vadd.f32 0.0, %v1595
      %v1597 = vpop.f32.mrb[0].mxu0
      %1598 = vmatprep.mubr.bf16.mxu0 0
      %1599 = vmatmul.mubr.bf16.gmra.mrb[0].mxu0 %v730
      %v1600 = vpop.f32.mrb[0].mxu0
      %v1601 = vadd.f32 0.0, %v1600
      %v1602 = vpop.f32.mrb[0].mxu0
      %v1603 = vpop.f32.mrb[0].mxu0
      %v1604 = vadd.f32 0.0, %v1603
      %v1605 = vpop.f32.mrb[0].mxu0
      %1606 = vmatprep.mubr.bf16.mxu0 0
      %1607 = vmatmul.mubr.bf16.gmra.mrb[0].mxu0 %v733
      %v1608 = vpop.f32.mrb[0].mxu0
      %v1609 = vadd.f32 0.0, %v1608
      %v1610 = vpop.f32.mrb[0].mxu0
      %v1611 = vpop.f32.mrb[0].mxu0
      %v1612 = vadd.f32 0.0, %v1611
      %v1613 = vpop.f32.mrb[0].mxu0
      %1614 = vmatprep.mubr.bf16.mxu0 0
      %1615 = vmatmul.mubr.bf16.gmra.mrb[0].mxu0 %v736
      %v1616 = vpop.f32.mrb[0].mxu0
      %v1617 = vadd.f32 0.0, %v1616
      %v1618 = vpop.f32.mrb[0].mxu0
      %v1619 = vpop.f32.mrb[0].mxu0
      %v1620 = vadd.f32 0.0, %v1619
      %v1621 = vpop.f32.mrb[0].mxu0
      %1622 = vmatprep.mubr.bf16.mxu0 0
      %1623 = vmatmul.mubr.bf16.gmra.mrb[0].mxu0 %v739
      %v1624 = vpop.f32.mrb[0].mxu0
      %v1625 = vadd.f32 0.0, %v1624
      %v1626 = vpop.f32.mrb[0].mxu0
      %v1627 = vpop.f32.mrb[0].mxu0
      %v1628 = vadd.f32 0.0, %v1627
      %v1629 = vpop.f32.mrb[0].mxu0
      %1630 = vmatprep.mubr.bf16.mxu0 0
      %1631 = vmatmul.mubr.bf16.gmra.mrb[0].mxu0 %v742
      %v1632 = vpop.f32.mrb[0].mxu0
      %v1633 = vadd.f32 0.0, %v1632
      %v1634 = vpop.f32.mrb[0].mxu0
      %v1635 = vpop.f32.mrb[0].mxu0
      %v1636 = vadd.f32 0.0, %v1635
      %v1637 = vpop.f32.mrb[0].mxu0
      %1638 = vdwg.mxu0
      %v1640 = vsel %vm744, %v482, 0
      %1642 = vmatprep.subr.bf16.mxu0 0
      %1643 = vmatpush1.bf16.msra.mxu0 %v1640
      %1644 = vmatprep.subr.bf16.mxu0 0
      %1645 = vmatpush1.bf16.msra.mxu0 0
      %1646 = vmatprep.subr.bf16.mxu0 0
      %1647 = vmatpush1.bf16.msra.mxu0 0
      %1648 = vmatprep.subr.bf16.mxu0 0
      %1649 = vmatpush1.bf16.msra.mxu0 0
      %1650 = vmatprep.subr.bf16.mxu0 0
      %1651 = vmatpush1.bf16.msra.mxu0 0
      %1652 = vmatprep.subr.bf16.mxu0 0
      %1653 = vmatpush1.bf16.msra.mxu0 0
      %1654 = vmatprep.subr.bf16.mxu0 0
      %1655 = vmatpush1.bf16.msra.mxu0 0
      %1656 = vmatprep.subr.bf16.mxu0 0
      %1657 = vmatpush1.bf16.msra.mxu0 0
      %1658 = vmatprep.subr.bf16.mxu0 0
      %1659 = vmatpush1.bf16.msra.mxu0 0
      %1660 = vmatprep.subr.bf16.mxu0 0
      %1661 = vmatpush1.bf16.msra.mxu0 0
      %1662 = vmatprep.subr.bf16.mxu0 0
      %1663 = vmatpush1.bf16.msra.mxu0 0
      %1664 = vmatprep.subr.bf16.mxu0 0
      %1665 = vmatpush1.bf16.msra.mxu0 0
      %1666 = vmatprep.subr.bf16.mxu0 0
      %1667 = vmatpush1.bf16.msra.mxu0 0
      %1668 = vmatprep.subr.bf16.mxu0 0
      %1669 = vmatpush1.bf16.msra.mxu0 0
      %1670 = vmatprep.subr.bf16.mxu0 0
      %1671 = vmatpush1.bf16.msra.mxu0 0
      %1672 = vmatprep.subr.bf16.mxu0 0
      %1673 = vmatpush1.bf16.msra.mxu0 0
      %1674 = vmatprep.mubr.bf16.mxu0 0
      %1675 = vmatmul.mubr.bf16.gmra.mrb[0].mxu0 %v1048
      %v1676 = vpop.f32.mrb[0].mxu0
      %v1677 = vadd.f32 %v1385, %v1676
      %v1678 = vpop.f32.mrb[0].mxu0
      %v1679 = vpop.f32.mrb[0].mxu0
      %v1680 = vadd.f32 %v1388, %v1679
      %v1681 = vpop.f32.mrb[0].mxu0
      %1682 = vmatprep.mubr.bf16.mxu0 0
      %1683 = vmatmul.mubr.bf16.gmra.mrb[0].mxu0 %v1051
      %v1684 = vpop.f32.mrb[0].mxu0
      %v1685 = vadd.f32 %v1393, %v1684
      %v1686 = vpop.f32.mrb[0].mxu0
      %v1687 = vpop.f32.mrb[0].mxu0
      %v1688 = vadd.f32 %v1396, %v1687
      %v1689 = vpop.f32.mrb[0].mxu0
      %1690 = vmatprep.mubr.bf16.mxu0 0
      %1691 = vmatmul.mubr.bf16.gmra.mrb[0].mxu0 %v649
      %v1692 = vpop.f32.mrb[0].mxu0
      %v1693 = vadd.f32 %v1401, %v1692
      %v1694 = vpop.f32.mrb[0].mxu0
      %v1695 = vpop.f32.mrb[0].mxu0
      %v1696 = vadd.f32 %v1404, %v1695
      %v1697 = vpop.f32.mrb[0].mxu0
      %1698 = vmatprep.mubr.bf16.mxu0 0
      %1699 = vmatmul.mubr.bf16.gmra.mrb[0].mxu0 %v652
      %v1700 = vpop.f32.mrb[0].mxu0
      %v1701 = vadd.f32 %v1409, %v1700
      %v1702 = vpop.f32.mrb[0].mxu0
      %v1703 = vpop.f32.mrb[0].mxu0
      %v1704 = vadd.f32 %v1412, %v1703
      %v1705 = vpop.f32.mrb[0].mxu0
      %1706 = vmatprep.mubr.bf16.mxu0 0
      %1707 = vmatmul.mubr.bf16.gmra.mrb[0].mxu0 %v655
      %v1708 = vpop.f32.mrb[0].mxu0
      %v1709 = vadd.f32 %v1417, %v1708
      %v1710 = vpop.f32.mrb[0].mxu0
      %v1711 = vpop.f32.mrb[0].mxu0
      %v1712 = vadd.f32 %v1420, %v1711
      %v1713 = vpop.f32.mrb[0].mxu0
      %1714 = vmatprep.mubr.bf16.mxu0 0
      %1715 = vmatmul.mubr.bf16.gmra.mrb[0].mxu0 %v658
      %v1716 = vpop.f32.mrb[0].mxu0
      %v1717 = vadd.f32 %v1425, %v1716
      %v1718 = vpop.f32.mrb[0].mxu0
      %v1719 = vpop.f32.mrb[0].mxu0
      %v1720 = vadd.f32 %v1428, %v1719
      %v1721 = vpop.f32.mrb[0].mxu0
      %1722 = vmatprep.mubr.bf16.mxu0 0
      %1723 = vmatmul.mubr.bf16.gmra.mrb[0].mxu0 %v661
      %v1724 = vpop.f32.mrb[0].mxu0
      %v1725 = vadd.f32 %v1433, %v1724
      %v1726 = vpop.f32.mrb[0].mxu0
      %v1727 = vpop.f32.mrb[0].mxu0
      %v1728 = vadd.f32 %v1436, %v1727
      %v1729 = vpop.f32.mrb[0].mxu0
      %1730 = vmatprep.mubr.bf16.mxu0 0
      %1731 = vmatmul.mubr.bf16.gmra.mrb[0].mxu0 %v664
      %v1732 = vpop.f32.mrb[0].mxu0
      %v1733 = vadd.f32 %v1441, %v1732
      %v1734 = vpop.f32.mrb[0].mxu0
      %v1735 = vpop.f32.mrb[0].mxu0
      %v1736 = vadd.f32 %v1444, %v1735
      %v1737 = vpop.f32.mrb[0].mxu0
      %1738 = vmatprep.mubr.bf16.mxu0 0
      %1739 = vmatmul.mubr.bf16.gmra.mrb[0].mxu0 %v667
      %v1740 = vpop.f32.mrb[0].mxu0
      %v1741 = vadd.f32 %v1449, %v1740
      %v1742 = vpop.f32.mrb[0].mxu0
      %v1743 = vpop.f32.mrb[0].mxu0
      %v1744 = vadd.f32 %v1452, %v1743
      %v1745 = vpop.f32.mrb[0].mxu0
      %1746 = vmatprep.mubr.bf16.mxu0 0
      %1747 = vmatmul.mubr.bf16.gmra.mrb[0].mxu0 %v670
      %v1748 = vpop.f32.mrb[0].mxu0
      %v1749 = vadd.f32 %v1457, %v1748
      %v1750 = vpop.f32.mrb[0].mxu0
      %v1751 = vpop.f32.mrb[0].mxu0
      %v1752 = vadd.f32 %v1460, %v1751
      %v1753 = vpop.f32.mrb[0].mxu0
      %1754 = vmatprep.mubr.bf16.mxu0 0
      %1755 = vmatmul.mubr.bf16.gmra.mrb[0].mxu0 %v673
      %v1756 = vpop.f32.mrb[0].mxu0
      %v1757 = vadd.f32 %v1465, %v1756
      %v1758 = vpop.f32.mrb[0].mxu0
      %v1759 = vpop.f32.mrb[0].mxu0
      %v1760 = vadd.f32 %v1468, %v1759
      %v1761 = vpop.f32.mrb[0].mxu0
      %1762 = vmatprep.mubr.bf16.mxu0 0
      %1763 = vmatmul.mubr.bf16.gmra.mrb[0].mxu0 %v676
      %v1764 = vpop.f32.mrb[0].mxu0
      %v1765 = vadd.f32 %v1473, %v1764
      %v1766 = vpop.f32.mrb[0].mxu0
      %v1767 = vpop.f32.mrb[0].mxu0
      %v1768 = vadd.f32 %v1476, %v1767
      %v1769 = vpop.f32.mrb[0].mxu0
      %1770 = vmatprep.mubr.bf16.mxu0 0
      %1771 = vmatmul.mubr.bf16.gmra.mrb[0].mxu0 %v679
      %v1772 = vpop.f32.mrb[0].mxu0
      %v1773 = vadd.f32 %v1481, %v1772
      %v1774 = vpop.f32.mrb[0].mxu0
      %v1775 = vpop.f32.mrb[0].mxu0
      %v1776 = vadd.f32 %v1484, %v1775
      %v1777 = vpop.f32.mrb[0].mxu0
      %1778 = vmatprep.mubr.bf16.mxu0 0
      %1779 = vmatmul.mubr.bf16.gmra.mrb[0].mxu0 %v682
      %v1780 = vpop.f32.mrb[0].mxu0
      %v1781 = vadd.f32 %v1489, %v1780
      %v1782 = vpop.f32.mrb[0].mxu0
      %v1783 = vpop.f32.mrb[0].mxu0
      %v1784 = vadd.f32 %v1492, %v1783
      %v1785 = vpop.f32.mrb[0].mxu0
      %1786 = vmatprep.mubr.bf16.mxu0 0
      %1787 = vmatmul.mubr.bf16.gmra.mrb[0].mxu0 %v685
      %v1788 = vpop.f32.mrb[0].mxu0
      %v1789 = vadd.f32 %v1497, %v1788
      %v1790 = vpop.f32.mrb[0].mxu0
      %v1791 = vpop.f32.mrb[0].mxu0
      %v1792 = vadd.f32 %v1500, %v1791
      %v1793 = vpop.f32.mrb[0].mxu0
      %1794 = vmatprep.mubr.bf16.mxu0 0
      %1795 = vmatmul.mubr.bf16.gmra.mrb[0].mxu0 %v688
      %v1796 = vpop.f32.mrb[0].mxu0
      %v1797 = vadd.f32 %v1505, %v1796
      %v1798 = vpop.f32.mrb[0].mxu0
      %v1799 = vpop.f32.mrb[0].mxu0
      %v1800 = vadd.f32 %v1508, %v1799
      %v1801 = vpop.f32.mrb[0].mxu0
      %1802 = vmatprep.mubr.bf16.mxu0 0
      %1803 = vmatmul.mubr.bf16.gmra.mrb[0].mxu0 %v691
      %v1804 = vpop.f32.mrb[0].mxu0
      %v1805 = vadd.f32 %v1513, %v1804
      %v1806 = vpop.f32.mrb[0].mxu0
      %v1807 = vpop.f32.mrb[0].mxu0
      %v1808 = vadd.f32 %v1516, %v1807
      %v1809 = vpop.f32.mrb[0].mxu0
      %1810 = vmatprep.mubr.bf16.mxu0 0
      %1811 = vmatmul.mubr.bf16.gmra.mrb[0].mxu0 %v694
      %v1812 = vpop.f32.mrb[0].mxu0
      %v1813 = vadd.f32 %v1521, %v1812
      %v1814 = vpop.f32.mrb[0].mxu0
      %v1815 = vpop.f32.mrb[0].mxu0
      %v1816 = vadd.f32 %v1524, %v1815
      %v1817 = vpop.f32.mrb[0].mxu0
      %1818 = vmatprep.mubr.bf16.mxu0 0
      %1819 = vmatmul.mubr.bf16.gmra.mrb[0].mxu0 %v697
      %v1820 = vpop.f32.mrb[0].mxu0
      %v1821 = vadd.f32 %v1529, %v1820
      %v1822 = vpop.f32.mrb[0].mxu0
      %v1823 = vpop.f32.mrb[0].mxu0
      %v1824 = vadd.f32 %v1532, %v1823
      %v1825 = vpop.f32.mrb[0].mxu0
      %1826 = vmatprep.mubr.bf16.mxu0 0
      %1827 = vmatmul.mubr.bf16.gmra.mrb[0].mxu0 %v700
      %v1828 = vpop.f32.mrb[0].mxu0
      %v1829 = vadd.f32 %v1537, %v1828
      %v1830 = vpop.f32.mrb[0].mxu0
      %v1831 = vpop.f32.mrb[0].mxu0
      %v1832 = vadd.f32 %v1540, %v1831
      %v1833 = vpop.f32.mrb[0].mxu0
      %1834 = vmatprep.mubr.bf16.mxu0 0
      %1835 = vmatmul.mubr.bf16.gmra.mrb[0].mxu0 %v703
      %v1836 = vpop.f32.mrb[0].mxu0
      %v1837 = vadd.f32 %v1545, %v1836
      %v1838 = vpop.f32.mrb[0].mxu0
      %v1839 = vpop.f32.mrb[0].mxu0
      %v1840 = vadd.f32 %v1548, %v1839
      %v1841 = vpop.f32.mrb[0].mxu0
      %1842 = vmatprep.mubr.bf16.mxu0 0
      %1843 = vmatmul.mubr.bf16.gmra.mrb[0].mxu0 %v706
      %v1844 = vpop.f32.mrb[0].mxu0
      %v1845 = vadd.f32 %v1553, %v1844
      %v1846 = vpop.f32.mrb[0].mxu0
      %v1847 = vpop.f32.mrb[0].mxu0
      %v1848 = vadd.f32 %v1556, %v1847
      %v1849 = vpop.f32.mrb[0].mxu0
      %1850 = vmatprep.mubr.bf16.mxu0 0
      %1851 = vmatmul.mubr.bf16.gmra.mrb[0].mxu0 %v709
      %v1852 = vpop.f32.mrb[0].mxu0
      %v1853 = vadd.f32 %v1561, %v1852
      %v1854 = vpop.f32.mrb[0].mxu0
      %v1855 = vpop.f32.mrb[0].mxu0
      %v1856 = vadd.f32 %v1564, %v1855
      %v1857 = vpop.f32.mrb[0].mxu0
      %1858 = vmatprep.mubr.bf16.mxu0 0
      %1859 = vmatmul.mubr.bf16.gmra.mrb[0].mxu0 %v712
      %v1860 = vpop.f32.mrb[0].mxu0
      %v1861 = vadd.f32 %v1569, %v1860
      %v1862 = vpop.f32.mrb[0].mxu0
      %v1863 = vpop.f32.mrb[0].mxu0
      %v1864 = vadd.f32 %v1572, %v1863
      %v1865 = vpop.f32.mrb[0].mxu0
      %1866 = vmatprep.mubr.bf16.mxu0 0
      %1867 = vmatmul.mubr.bf16.gmra.mrb[0].mxu0 %v715
      %v1868 = vpop.f32.mrb[0].mxu0
      %v1869 = vadd.f32 %v1577, %v1868
      %v1870 = vpop.f32.mrb[0].mxu0
      %v1871 = vpop.f32.mrb[0].mxu0
      %v1872 = vadd.f32 %v1580, %v1871
      %v1873 = vpop.f32.mrb[0].mxu0
      %1874 = vmatprep.mubr.bf16.mxu0 0
      %1875 = vmatmul.mubr.bf16.gmra.mrb[0].mxu0 %v718
      %v1876 = vpop.f32.mrb[0].mxu0
      %v1877 = vadd.f32 %v1585, %v1876
      %v1878 = vpop.f32.mrb[0].mxu0
      %v1879 = vpop.f32.mrb[0].mxu0
      %v1880 = vadd.f32 %v1588, %v1879
      %v1881 = vpop.f32.mrb[0].mxu0
      %1882 = vmatprep.mubr.bf16.mxu0 0
      %1883 = vmatmul.mubr.bf16.gmra.mrb[0].mxu0 %v721
      %v1884 = vpop.f32.mrb[0].mxu0
      %v1885 = vadd.f32 %v1593, %v1884
      %v1886 = vpop.f32.mrb[0].mxu0
      %v1887 = vpop.f32.mrb[0].mxu0
      %v1888 = vadd.f32 %v1596, %v1887
      %v1889 = vpop.f32.mrb[0].mxu0
      %1890 = vmatprep.mubr.bf16.mxu0 0
      %1891 = vmatmul.mubr.bf16.gmra.mrb[0].mxu0 %v724
      %v1892 = vpop.f32.mrb[0].mxu0
      %v1893 = vadd.f32 %v1601, %v1892
      %v1894 = vpop.f32.mrb[0].mxu0
      %v1895 = vpop.f32.mrb[0].mxu0
      %v1896 = vadd.f32 %v1604, %v1895
      %v1897 = vpop.f32.mrb[0].mxu0
      %1898 = vmatprep.mubr.bf16.mxu0 0
      %1899 = vmatmul.mubr.bf16.gmra.mrb[0].mxu0 %v727
      %v1900 = vpop.f32.mrb[0].mxu0
      %v1901 = vadd.f32 %v1609, %v1900
      %v1902 = vpop.f32.mrb[0].mxu0
      %v1903 = vpop.f32.mrb[0].mxu0
      %v1904 = vadd.f32 %v1612, %v1903
      %v1905 = vpop.f32.mrb[0].mxu0
      %1906 = vmatprep.mubr.bf16.mxu0 0
      %1907 = vmatmul.mubr.bf16.gmra.mrb[0].mxu0 %v730
      %v1908 = vpop.f32.mrb[0].mxu0
      %v1909 = vadd.f32 %v1617, %v1908
      %v1910 = vpop.f32.mrb[0].mxu0
      %v1911 = vpop.f32.mrb[0].mxu0
      %v1912 = vadd.f32 %v1620, %v1911
      %v1913 = vpop.f32.mrb[0].mxu0
      %1914 = vmatprep.mubr.bf16.mxu0 0
      %1915 = vmatmul.mubr.bf16.gmra.mrb[0].mxu0 %v733
      %v1916 = vpop.f32.mrb[0].mxu0
      %v1917 = vadd.f32 %v1625, %v1916
      %v1918 = vpop.f32.mrb[0].mxu0
      %v1919 = vpop.f32.mrb[0].mxu0
      %v1920 = vadd.f32 %v1628, %v1919
      %v1921 = vpop.f32.mrb[0].mxu0
      %1922 = vmatprep.mubr.bf16.mxu0 0
      %1923 = vmatmul.mubr.bf16.gmra.mrb[0].mxu0 %v736
      %v1924 = vpop.f32.mrb[0].mxu0
      %v1925 = vadd.f32 %v1633, %v1924
      %v1926 = vpop.f32.mrb[0].mxu0
      %v1927 = vpop.f32.mrb[0].mxu0
      %v1928 = vadd.f32 %v1636, %v1927
      %v1929 = vpop.f32.mrb[0].mxu0
      %1930 = vdwg.mxu0
      %s1931 = scalar_lea.vmem %s3, 5
      %v1932 = vld [vmem:[%s1931] sm:$0x1]
      %v1934 = vsel %vm744, %v1932, 0
      %1936 = vmatprep.subr.bf16.mxu0 0
      %1937 = vmatpush1.bf16.msra.mxu0 %v1934
      %1938 = vmatprep.subr.bf16.mxu0 0
      %1939 = vmatpush1.bf16.msra.mxu0 0
      %1940 = vmatprep.subr.bf16.mxu0 0
      %1941 = vmatpush1.bf16.msra.mxu0 0
      %1942 = vmatprep.subr.bf16.mxu0 0
      %1943 = vmatpush1.bf16.msra.mxu0 0
      %1944 = vmatprep.subr.bf16.mxu0 0
      %1945 = vmatpush1.bf16.msra.mxu0 0
      %1946 = vmatprep.subr.bf16.mxu0 0
      %1947 = vmatpush1.bf16.msra.mxu0 0
      %1948 = vmatprep.subr.bf16.mxu0 0
      %1949 = vmatpush1.bf16.msra.mxu0 0
      %1950 = vmatprep.subr.bf16.mxu0 0
      %1951 = vmatpush1.bf16.msra.mxu0 0
      %1952 = vmatprep.subr.bf16.mxu0 0
      %1953 = vmatpush1.bf16.msra.mxu0 0
      %1954 = vmatprep.subr.bf16.mxu0 0
      %1955 = vmatpush1.bf16.msra.mxu0 0
      %1956 = vmatprep.subr.bf16.mxu0 0
      %1957 = vmatpush1.bf16.msra.mxu0 0
      %1958 = vmatprep.subr.bf16.mxu0 0
      %1959 = vmatpush1.bf16.msra.mxu0 0
      %1960 = vmatprep.subr.bf16.mxu0 0
      %1961 = vmatpush1.bf16.msra.mxu0 0
      %1962 = vmatprep.subr.bf16.mxu0 0
      %1963 = vmatpush1.bf16.msra.mxu0 0
      %1964 = vmatprep.subr.bf16.mxu0 0
      %1965 = vmatpush1.bf16.msra.mxu0 0
      %1966 = vmatprep.subr.bf16.mxu0 0
      %1967 = vmatpush1.bf16.msra.mxu0 0
      %1968 = vmatprep.mubr.bf16.mxu0 0
      %1969 = vmatmul.mubr.bf16.gmra.mrb[0].mxu0 %v649
      %v1970 = vpop.f32.mrb[0].mxu0
      %v1971 = vadd.f32 0.0, %v1970
      %v1972 = vpop.f32.mrb[0].mxu0
      %v1973 = vpop.f32.mrb[0].mxu0
      %v1974 = vadd.f32 0.0, %v1973
      %v1975 = vpop.f32.mrb[0].mxu0
      %1976 = vmatprep.mubr.bf16.mxu0 0
      %1977 = vmatmul.mubr.bf16.gmra.mrb[0].mxu0 %v652
      %v1978 = vpop.f32.mrb[0].mxu0
      %v1979 = vadd.f32 0.0, %v1978
      %v1980 = vpop.f32.mrb[0].mxu0
      %v1981 = vpop.f32.mrb[0].mxu0
      %v1982 = vadd.f32 0.0, %v1981
      %v1983 = vpop.f32.mrb[0].mxu0
      %1984 = vmatprep.mubr.bf16.mxu0 0
      %1985 = vmatmul.mubr.bf16.gmra.mrb[0].mxu0 %v655
      %v1986 = vpop.f32.mrb[0].mxu0
      %v1987 = vadd.f32 0.0, %v1986
      %v1988 = vpop.f32.mrb[0].mxu0
      %v1989 = vpop.f32.mrb[0].mxu0
      %v1990 = vadd.f32 0.0, %v1989
      %v1991 = vpop.f32.mrb[0].mxu0
      %1992 = vmatprep.mubr.bf16.mxu0 0
      %1993 = vmatmul.mubr.bf16.gmra.mrb[0].mxu0 %v658
      %v1994 = vpop.f32.mrb[0].mxu0
      %v1995 = vadd.f32 0.0, %v1994
      %v1996 = vpop.f32.mrb[0].mxu0
      %v1997 = vpop.f32.mrb[0].mxu0
      %v1998 = vadd.f32 0.0, %v1997
      %v1999 = vpop.f32.mrb[0].mxu0
      %2000 = vmatprep.mubr.bf16.mxu0 0
      %2001 = vmatmul.mubr.bf16.gmra.mrb[0].mxu0 %v661
      %v2002 = vpop.f32.mrb[0].mxu0
      %v2003 = vadd.f32 0.0, %v2002
      %v2004 = vpop.f32.mrb[0].mxu0
      %v2005 = vpop.f32.mrb[0].mxu0
      %v2006 = vadd.f32 0.0, %v2005
      %v2007 = vpop.f32.mrb[0].mxu0
      %2008 = vmatprep.mubr.bf16.mxu0 0
      %2009 = vmatmul.mubr.bf16.gmra.mrb[0].mxu0 %v664
      %v2010 = vpop.f32.mrb[0].mxu0
      %v2011 = vadd.f32 0.0, %v2010
      %v2012 = vpop.f32.mrb[0].mxu0
      %v2013 = vpop.f32.mrb[0].mxu0
      %v2014 = vadd.f32 0.0, %v2013
      %v2015 = vpop.f32.mrb[0].mxu0
      %2016 = vmatprep.mubr.bf16.mxu0 0
      %2017 = vmatmul.mubr.bf16.gmra.mrb[0].mxu0 %v667
      %v2018 = vpop.f32.mrb[0].mxu0
      %v2019 = vadd.f32 0.0, %v2018
      %v2020 = vpop.f32.mrb[0].mxu0
      %v2021 = vpop.f32.mrb[0].mxu0
      %v2022 = vadd.f32 0.0, %v2021
      %v2023 = vpop.f32.mrb[0].mxu0
      %2024 = vmatprep.mubr.bf16.mxu0 0
      %2025 = vmatmul.mubr.bf16.gmra.mrb[0].mxu0 %v670
      %v2026 = vpop.f32.mrb[0].mxu0
      %v2027 = vadd.f32 0.0, %v2026
      %v2028 = vpop.f32.mrb[0].mxu0
      %v2029 = vpop.f32.mrb[0].mxu0
      %v2030 = vadd.f32 0.0, %v2029
      %v2031 = vpop.f32.mrb[0].mxu0
      %2032 = vmatprep.mubr.bf16.mxu0 0
      %2033 = vmatmul.mubr.bf16.gmra.mrb[0].mxu0 %v673
      %v2034 = vpop.f32.mrb[0].mxu0
      %v2035 = vadd.f32 0.0, %v2034
      %v2036 = vpop.f32.mrb[0].mxu0
      %v2037 = vpop.f32.mrb[0].mxu0
      %v2038 = vadd.f32 0.0, %v2037
      %v2039 = vpop.f32.mrb[0].mxu0
      %2040 = vmatprep.mubr.bf16.mxu0 0
      %2041 = vmatmul.mubr.bf16.gmra.mrb[0].mxu0 %v676
      %v2042 = vpop.f32.mrb[0].mxu0
      %v2043 = vadd.f32 0.0, %v2042
      %v2044 = vpop.f32.mrb[0].mxu0
      %v2045 = vpop.f32.mrb[0].mxu0
      %v2046 = vadd.f32 0.0, %v2045
      %v2047 = vpop.f32.mrb[0].mxu0
      %2048 = vmatprep.mubr.bf16.mxu0 0
      %2049 = vmatmul.mubr.bf16.gmra.mrb[0].mxu0 %v679
      %v2050 = vpop.f32.mrb[0].mxu0
      %v2051 = vadd.f32 0.0, %v2050
      %v2052 = vpop.f32.mrb[0].mxu0
      %v2053 = vpop.f32.mrb[0].mxu0
      %v2054 = vadd.f32 0.0, %v2053
      %v2055 = vpop.f32.mrb[0].mxu0
      %2056 = vmatprep.mubr.bf16.mxu0 0
      %2057 = vmatmul.mubr.bf16.gmra.mrb[0].mxu0 %v682
      %v2058 = vpop.f32.mrb[0].mxu0
      %v2059 = vadd.f32 0.0, %v2058
      %v2060 = vpop.f32.mrb[0].mxu0
      %v2061 = vpop.f32.mrb[0].mxu0
      %v2062 = vadd.f32 0.0, %v2061
      %v2063 = vpop.f32.mrb[0].mxu0
      %2064 = vmatprep.mubr.bf16.mxu0 0
      %2065 = vmatmul.mubr.bf16.gmra.mrb[0].mxu0 %v685
      %v2066 = vpop.f32.mrb[0].mxu0
      %v2067 = vadd.f32 0.0, %v2066
      %v2068 = vpop.f32.mrb[0].mxu0
      %v2069 = vpop.f32.mrb[0].mxu0
      %v2070 = vadd.f32 0.0, %v2069
      %v2071 = vpop.f32.mrb[0].mxu0
      %2072 = vmatprep.mubr.bf16.mxu0 0
      %2073 = vmatmul.mubr.bf16.gmra.mrb[0].mxu0 %v688
      %v2074 = vpop.f32.mrb[0].mxu0
      %v2075 = vadd.f32 0.0, %v2074
      %v2076 = vpop.f32.mrb[0].mxu0
      %v2077 = vpop.f32.mrb[0].mxu0
      %v2078 = vadd.f32 0.0, %v2077
      %v2079 = vpop.f32.mrb[0].mxu0
      %2080 = vmatprep.mubr.bf16.mxu0 0
      %2081 = vmatmul.mubr.bf16.gmra.mrb[0].mxu0 %v691
      %v2082 = vpop.f32.mrb[0].mxu0
      %v2083 = vadd.f32 0.0, %v2082
      %v2084 = vpop.f32.mrb[0].mxu0
      %v2085 = vpop.f32.mrb[0].mxu0
      %v2086 = vadd.f32 0.0, %v2085
      %v2087 = vpop.f32.mrb[0].mxu0
      %2088 = vmatprep.mubr.bf16.mxu0 0
      %2089 = vmatmul.mubr.bf16.gmra.mrb[0].mxu0 %v694
      %v2090 = vpop.f32.mrb[0].mxu0
      %v2091 = vadd.f32 0.0, %v2090
      %v2092 = vpop.f32.mrb[0].mxu0
      %v2093 = vpop.f32.mrb[0].mxu0
      %v2094 = vadd.f32 0.0, %v2093
      %v2095 = vpop.f32.mrb[0].mxu0
      %2096 = vmatprep.mubr.bf16.mxu0 0
      %2097 = vmatmul.mubr.bf16.gmra.mrb[0].mxu0 %v697
      %v2098 = vpop.f32.mrb[0].mxu0
      %v2099 = vadd.f32 0.0, %v2098
      %v2100 = vpop.f32.mrb[0].mxu0
      %v2101 = vpop.f32.mrb[0].mxu0
      %v2102 = vadd.f32 0.0, %v2101
      %v2103 = vpop.f32.mrb[0].mxu0
      %2104 = vmatprep.mubr.bf16.mxu0 0
      %2105 = vmatmul.mubr.bf16.gmra.mrb[0].mxu0 %v700
      %v2106 = vpop.f32.mrb[0].mxu0
      %v2107 = vadd.f32 0.0, %v2106
      %v2108 = vpop.f32.mrb[0].mxu0
      %v2109 = vpop.f32.mrb[0].mxu0
      %v2110 = vadd.f32 0.0, %v2109
      %v2111 = vpop.f32.mrb[0].mxu0
      %2112 = vmatprep.mubr.bf16.mxu0 0
      %2113 = vmatmul.mubr.bf16.gmra.mrb[0].mxu0 %v703
      %v2114 = vpop.f32.mrb[0].mxu0
      %v2115 = vadd.f32 0.0, %v2114
      %v2116 = vpop.f32.mrb[0].mxu0
      %v2117 = vpop.f32.mrb[0].mxu0
      %v2118 = vadd.f32 0.0, %v2117
      %v2119 = vpop.f32.mrb[0].mxu0
      %2120 = vmatprep.mubr.bf16.mxu0 0
      %2121 = vmatmul.mubr.bf16.gmra.mrb[0].mxu0 %v706
      %v2122 = vpop.f32.mrb[0].mxu0
      %v2123 = vadd.f32 0.0, %v2122
      %v2124 = vpop.f32.mrb[0].mxu0
      %v2125 = vpop.f32.mrb[0].mxu0
      %v2126 = vadd.f32 0.0, %v2125
      %v2127 = vpop.f32.mrb[0].mxu0
      %2128 = vmatprep.mubr.bf16.mxu0 0
      %2129 = vmatmul.mubr.bf16.gmra.mrb[0].mxu0 %v709
      %v2130 = vpop.f32.mrb[0].mxu0
      %v2131 = vadd.f32 0.0, %v2130
      %v2132 = vpop.f32.mrb[0].mxu0
      %v2133 = vpop.f32.mrb[0].mxu0
      %v2134 = vadd.f32 0.0, %v2133
      %v2135 = vpop.f32.mrb[0].mxu0
      %2136 = vmatprep.mubr.bf16.mxu0 0
      %2137 = vmatmul.mubr.bf16.gmra.mrb[0].mxu0 %v712
      %v2138 = vpop.f32.mrb[0].mxu0
      %v2139 = vadd.f32 0.0, %v2138
      %v2140 = vpop.f32.mrb[0].mxu0
      %v2141 = vpop.f32.mrb[0].mxu0
      %v2142 = vadd.f32 0.0, %v2141
      %v2143 = vpop.f32.mrb[0].mxu0
      %2144 = vmatprep.mubr.bf16.mxu0 0
      %2145 = vmatmul.mubr.bf16.gmra.mrb[0].mxu0 %v715
      %v2146 = vpop.f32.mrb[0].mxu0
      %v2147 = vadd.f32 0.0, %v2146
      %v2148 = vpop.f32.mrb[0].mxu0
      %v2149 = vpop.f32.mrb[0].mxu0
      %v2150 = vadd.f32 0.0, %v2149
      %v2151 = vpop.f32.mrb[0].mxu0
      %2152 = vmatprep.mubr.bf16.mxu0 0
      %2153 = vmatmul.mubr.bf16.gmra.mrb[0].mxu0 %v718
      %v2154 = vpop.f32.mrb[0].mxu0
      %v2155 = vadd.f32 0.0, %v2154
      %v2156 = vpop.f32.mrb[0].mxu0
      %v2157 = vpop.f32.mrb[0].mxu0
      %v2158 = vadd.f32 0.0, %v2157
      %v2159 = vpop.f32.mrb[0].mxu0
      %2160 = vmatprep.mubr.bf16.mxu0 0
      %2161 = vmatmul.mubr.bf16.gmra.mrb[0].mxu0 %v721
      %v2162 = vpop.f32.mrb[0].mxu0
      %v2163 = vadd.f32 0.0, %v2162
      %v2164 = vpop.f32.mrb[0].mxu0
      %v2165 = vpop.f32.mrb[0].mxu0
      %v2166 = vadd.f32 0.0, %v2165
      %v2167 = vpop.f32.mrb[0].mxu0
      %2168 = vmatprep.mubr.bf16.mxu0 0
      %2169 = vmatmul.mubr.bf16.gmra.mrb[0].mxu0 %v724
      %v2170 = vpop.f32.mrb[0].mxu0
      %v2171 = vadd.f32 0.0, %v2170
      %v2172 = vpop.f32.mrb[0].mxu0
      %v2173 = vpop.f32.mrb[0].mxu0
      %v2174 = vadd.f32 0.0, %v2173
      %v2175 = vpop.f32.mrb[0].mxu0
      %2176 = vmatprep.mubr.bf16.mxu0 0
      %2177 = vmatmul.mubr.bf16.gmra.mrb[0].mxu0 %v727
      %v2178 = vpop.f32.mrb[0].mxu0
      %v2179 = vadd.f32 0.0, %v2178
      %v2180 = vpop.f32.mrb[0].mxu0
      %v2181 = vpop.f32.mrb[0].mxu0
      %v2182 = vadd.f32 0.0, %v2181
      %v2183 = vpop.f32.mrb[0].mxu0
      %2184 = vmatprep.mubr.bf16.mxu0 0
      %2185 = vmatmul.mubr.bf16.gmra.mrb[0].mxu0 %v730
      %v2186 = vpop.f32.mrb[0].mxu0
      %v2187 = vadd.f32 0.0, %v2186
      %v2188 = vpop.f32.mrb[0].mxu0
      %v2189 = vpop.f32.mrb[0].mxu0
      %v2190 = vadd.f32 0.0, %v2189
      %v2191 = vpop.f32.mrb[0].mxu0
      %2192 = vmatprep.mubr.bf16.mxu0 0
      %2193 = vmatmul.mubr.bf16.gmra.mrb[0].mxu0 %v733
      %v2194 = vpop.f32.mrb[0].mxu0
      %v2195 = vadd.f32 0.0, %v2194
      %v2196 = vpop.f32.mrb[0].mxu0
      %v2197 = vpop.f32.mrb[0].mxu0
      %v2198 = vadd.f32 0.0, %v2197
      %v2199 = vpop.f32.mrb[0].mxu0
      %2200 = vmatprep.mubr.bf16.mxu0 0
      %2201 = vmatmul.mubr.bf16.gmra.mrb[0].mxu0 %v736
      %v2202 = vpop.f32.mrb[0].mxu0
      %v2203 = vadd.f32 0.0, %v2202
      %v2204 = vpop.f32.mrb[0].mxu0
      %v2205 = vpop.f32.mrb[0].mxu0
      %v2206 = vadd.f32 0.0, %v2205
      %v2207 = vpop.f32.mrb[0].mxu0
      %2208 = vmatprep.mubr.bf16.mxu0 0
      %2209 = vmatmul.mubr.bf16.gmra.mrb[0].mxu0 %v739
      %v2210 = vpop.f32.mrb[0].mxu0
      %v2211 = vadd.f32 0.0, %v2210
      %v2212 = vpop.f32.mrb[0].mxu0
      %v2213 = vpop.f32.mrb[0].mxu0
      %v2214 = vadd.f32 0.0, %v2213
      %v2215 = vpop.f32.mrb[0].mxu0
      %2216 = vmatprep.mubr.bf16.mxu0 0
      %2217 = vmatmul.mubr.bf16.gmra.mrb[0].mxu0 %v742
      %v2218 = vpop.f32.mrb[0].mxu0
      %v2219 = vadd.f32 0.0, %v2218
      %v2220 = vpop.f32.mrb[0].mxu0
      %v2221 = vpop.f32.mrb[0].mxu0
      %v2222 = vadd.f32 0.0, %v2221
      %v2223 = vpop.f32.mrb[0].mxu0
      %2224 = vdwg.mxu0
      %v2226 = vsel %vm744, %v484, 0
      %2228 = vmatprep.subr.bf16.mxu0 0
      %2229 = vmatpush1.bf16.msra.mxu0 %v2226
      %2230 = vmatprep.subr.bf16.mxu0 0
      %2231 = vmatpush1.bf16.msra.mxu0 0
      %2232 = vmatprep.subr.bf16.mxu0 0
      %2233 = vmatpush1.bf16.msra.mxu0 0
      %2234 = vmatprep.subr.bf16.mxu0 0
      %2235 = vmatpush1.bf16.msra.mxu0 0
      %2236 = vmatprep.subr.bf16.mxu0 0
      %2237 = vmatpush1.bf16.msra.mxu0 0
      %2238 = vmatprep.subr.bf16.mxu0 0
      %2239 = vmatpush1.bf16.msra.mxu0 0
      %2240 = vmatprep.subr.bf16.mxu0 0
      %2241 = vmatpush1.bf16.msra.mxu0 0
      %2242 = vmatprep.subr.bf16.mxu0 0
      %2243 = vmatpush1.bf16.msra.mxu0 0
      %2244 = vmatprep.subr.bf16.mxu0 0
      %2245 = vmatpush1.bf16.msra.mxu0 0
      %2246 = vmatprep.subr.bf16.mxu0 0
      %2247 = vmatpush1.bf16.msra.mxu0 0
      %2248 = vmatprep.subr.bf16.mxu0 0
      %2249 = vmatpush1.bf16.msra.mxu0 0
      %2250 = vmatprep.subr.bf16.mxu0 0
      %2251 = vmatpush1.bf16.msra.mxu0 0
      %2252 = vmatprep.subr.bf16.mxu0 0
      %2253 = vmatpush1.bf16.msra.mxu0 0
      %2254 = vmatprep.subr.bf16.mxu0 0
      %2255 = vmatpush1.bf16.msra.mxu0 0
      %2256 = vmatprep.subr.bf16.mxu0 0
      %2257 = vmatpush1.bf16.msra.mxu0 0
      %2258 = vmatprep.subr.bf16.mxu0 0
      %2259 = vmatpush1.bf16.msra.mxu0 0
      %2260 = vmatprep.mubr.bf16.mxu0 0
      %2261 = vmatmul.mubr.bf16.gmra.mrb[0].mxu0 %v1048
      %v2262 = vpop.f32.mrb[0].mxu0
      %v2263 = vadd.f32 %v1971, %v2262
      %v2264 = vpop.f32.mrb[0].mxu0
      %v2265 = vpop.f32.mrb[0].mxu0
      %v2266 = vadd.f32 %v1974, %v2265
      %v2267 = vpop.f32.mrb[0].mxu0
      %2268 = vmatprep.mubr.bf16.mxu0 0
      %2269 = vmatmul.mubr.bf16.gmra.mrb[0].mxu0 %v1051
      %v2270 = vpop.f32.mrb[0].mxu0
      %v2271 = vadd.f32 %v1979, %v2270
      %v2272 = vpop.f32.mrb[0].mxu0
      %v2273 = vpop.f32.mrb[0].mxu0
      %v2274 = vadd.f32 %v1982, %v2273
      %v2275 = vpop.f32.mrb[0].mxu0
      %2276 = vmatprep.mubr.bf16.mxu0 0
      %2277 = vmatmul.mubr.bf16.gmra.mrb[0].mxu0 %v649
      %v2278 = vpop.f32.mrb[0].mxu0
      %v2279 = vadd.f32 %v1987, %v2278
      %v2280 = vpop.f32.mrb[0].mxu0
      %v2281 = vpop.f32.mrb[0].mxu0
      %v2282 = vadd.f32 %v1990, %v2281
      %v2283 = vpop.f32.mrb[0].mxu0
      %2284 = vmatprep.mubr.bf16.mxu0 0
      %2285 = vmatmul.mubr.bf16.gmra.mrb[0].mxu0 %v652
      %v2286 = vpop.f32.mrb[0].mxu0
      %v2287 = vadd.f32 %v1995, %v2286
      %v2288 = vpop.f32.mrb[0].mxu0
      %v2289 = vpop.f32.mrb[0].mxu0
      %v2290 = vadd.f32 %v1998, %v2289
      %v2291 = vpop.f32.mrb[0].mxu0
      %2292 = vmatprep.mubr.bf16.mxu0 0
      %2293 = vmatmul.mubr.bf16.gmra.mrb[0].mxu0 %v655
      %v2294 = vpop.f32.mrb[0].mxu0
      %v2295 = vadd.f32 %v2003, %v2294
      %v2296 = vpop.f32.mrb[0].mxu0
      %v2297 = vpop.f32.mrb[0].mxu0
      %v2298 = vadd.f32 %v2006, %v2297
      %v2299 = vpop.f32.mrb[0].mxu0
      %2300 = vmatprep.mubr.bf16.mxu0 0
      %2301 = vmatmul.mubr.bf16.gmra.mrb[0].mxu0 %v658
      %v2302 = vpop.f32.mrb[0].mxu0
      %v2303 = vadd.f32 %v2011, %v2302
      %v2304 = vpop.f32.mrb[0].mxu0
      %v2305 = vpop.f32.mrb[0].mxu0
      %v2306 = vadd.f32 %v2014, %v2305
      %v2307 = vpop.f32.mrb[0].mxu0
      %2308 = vmatprep.mubr.bf16.mxu0 0
      %2309 = vmatmul.mubr.bf16.gmra.mrb[0].mxu0 %v661
      %v2310 = vpop.f32.mrb[0].mxu0
      %v2311 = vadd.f32 %v2019, %v2310
      %v2312 = vpop.f32.mrb[0].mxu0
      %v2313 = vpop.f32.mrb[0].mxu0
      %v2314 = vadd.f32 %v2022, %v2313
      %v2315 = vpop.f32.mrb[0].mxu0
      %2316 = vmatprep.mubr.bf16.mxu0 0
      %2317 = vmatmul.mubr.bf16.gmra.mrb[0].mxu0 %v664
      %v2318 = vpop.f32.mrb[0].mxu0
      %v2319 = vadd.f32 %v2027, %v2318
      %v2320 = vpop.f32.mrb[0].mxu0
      %v2321 = vpop.f32.mrb[0].mxu0
      %v2322 = vadd.f32 %v2030, %v2321
      %v2323 = vpop.f32.mrb[0].mxu0
      %2324 = vmatprep.mubr.bf16.mxu0 0
      %2325 = vmatmul.mubr.bf16.gmra.mrb[0].mxu0 %v667
      %v2326 = vpop.f32.mrb[0].mxu0
      %v2327 = vadd.f32 %v2035, %v2326
      %v2328 = vpop.f32.mrb[0].mxu0
      %v2329 = vpop.f32.mrb[0].mxu0
      %v2330 = vadd.f32 %v2038, %v2329
      %v2331 = vpop.f32.mrb[0].mxu0
      %2332 = vmatprep.mubr.bf16.mxu0 0
      %2333 = vmatmul.mubr.bf16.gmra.mrb[0].mxu0 %v670
      %v2334 = vpop.f32.mrb[0].mxu0
      %v2335 = vadd.f32 %v2043, %v2334
      %v2336 = vpop.f32.mrb[0].mxu0
      %v2337 = vpop.f32.mrb[0].mxu0
      %v2338 = vadd.f32 %v2046, %v2337
      %v2339 = vpop.f32.mrb[0].mxu0
      %2340 = vmatprep.mubr.bf16.mxu0 0
      %2341 = vmatmul.mubr.bf16.gmra.mrb[0].mxu0 %v673
      %v2342 = vpop.f32.mrb[0].mxu0
      %v2343 = vadd.f32 %v2051, %v2342
      %v2344 = vpop.f32.mrb[0].mxu0
      %v2345 = vpop.f32.mrb[0].mxu0
      %v2346 = vadd.f32 %v2054, %v2345
      %v2347 = vpop.f32.mrb[0].mxu0
      %2348 = vmatprep.mubr.bf16.mxu0 0
      %2349 = vmatmul.mubr.bf16.gmra.mrb[0].mxu0 %v676
      %v2350 = vpop.f32.mrb[0].mxu0
      %v2351 = vadd.f32 %v2059, %v2350
      %v2352 = vpop.f32.mrb[0].mxu0
      %v2353 = vpop.f32.mrb[0].mxu0
      %v2354 = vadd.f32 %v2062, %v2353
      %v2355 = vpop.f32.mrb[0].mxu0
      %2356 = vmatprep.mubr.bf16.mxu0 0
      %2357 = vmatmul.mubr.bf16.gmra.mrb[0].mxu0 %v679
      %v2358 = vpop.f32.mrb[0].mxu0
      %v2359 = vadd.f32 %v2067, %v2358
      %v2360 = vpop.f32.mrb[0].mxu0
      %v2361 = vpop.f32.mrb[0].mxu0
      %v2362 = vadd.f32 %v2070, %v2361
      %v2363 = vpop.f32.mrb[0].mxu0
      %2364 = vmatprep.mubr.bf16.mxu0 0
      %2365 = vmatmul.mubr.bf16.gmra.mrb[0].mxu0 %v682
      %v2366 = vpop.f32.mrb[0].mxu0
      %v2367 = vadd.f32 %v2075, %v2366
      %v2368 = vpop.f32.mrb[0].mxu0
      %v2369 = vpop.f32.mrb[0].mxu0
      %v2370 = vadd.f32 %v2078, %v2369
      %v2371 = vpop.f32.mrb[0].mxu0
      %2372 = vmatprep.mubr.bf16.mxu0 0
      %2373 = vmatmul.mubr.bf16.gmra.mrb[0].mxu0 %v685
      %v2374 = vpop.f32.mrb[0].mxu0
      %v2375 = vadd.f32 %v2083, %v2374
      %v2376 = vpop.f32.mrb[0].mxu0
      %v2377 = vpop.f32.mrb[0].mxu0
      %v2378 = vadd.f32 %v2086, %v2377
      %v2379 = vpop.f32.mrb[0].mxu0
      %2380 = vmatprep.mubr.bf16.mxu0 0
      %2381 = vmatmul.mubr.bf16.gmra.mrb[0].mxu0 %v688
      %v2382 = vpop.f32.mrb[0].mxu0
      %v2383 = vadd.f32 %v2091, %v2382
      %v2384 = vpop.f32.mrb[0].mxu0
      %v2385 = vpop.f32.mrb[0].mxu0
      %v2386 = vadd.f32 %v2094, %v2385
      %v2387 = vpop.f32.mrb[0].mxu0
      %2388 = vmatprep.mubr.bf16.mxu0 0
      %2389 = vmatmul.mubr.bf16.gmra.mrb[0].mxu0 %v691
      %v2390 = vpop.f32.mrb[0].mxu0
      %v2391 = vadd.f32 %v2099, %v2390
      %v2392 = vpop.f32.mrb[0].mxu0
      %v2393 = vpop.f32.mrb[0].mxu0
      %v2394 = vadd.f32 %v2102, %v2393
      %v2395 = vpop.f32.mrb[0].mxu0
      %2396 = vmatprep.mubr.bf16.mxu0 0
      %2397 = vmatmul.mubr.bf16.gmra.mrb[0].mxu0 %v694
      %v2398 = vpop.f32.mrb[0].mxu0
      %v2399 = vadd.f32 %v2107, %v2398
      %v2400 = vpop.f32.mrb[0].mxu0
      %v2401 = vpop.f32.mrb[0].mxu0
      %v2402 = vadd.f32 %v2110, %v2401
      %v2403 = vpop.f32.mrb[0].mxu0
      %2404 = vmatprep.mubr.bf16.mxu0 0
      %2405 = vmatmul.mubr.bf16.gmra.mrb[0].mxu0 %v697
      %v2406 = vpop.f32.mrb[0].mxu0
      %v2407 = vadd.f32 %v2115, %v2406
      %v2408 = vpop.f32.mrb[0].mxu0
      %v2409 = vpop.f32.mrb[0].mxu0
      %v2410 = vadd.f32 %v2118, %v2409
      %v2411 = vpop.f32.mrb[0].mxu0
      %2412 = vmatprep.mubr.bf16.mxu0 0
      %2413 = vmatmul.mubr.bf16.gmra.mrb[0].mxu0 %v700
      %v2414 = vpop.f32.mrb[0].mxu0
      %v2415 = vadd.f32 %v2123, %v2414
      %v2416 = vpop.f32.mrb[0].mxu0
      %v2417 = vpop.f32.mrb[0].mxu0
      %v2418 = vadd.f32 %v2126, %v2417
      %v2419 = vpop.f32.mrb[0].mxu0
      %2420 = vmatprep.mubr.bf16.mxu0 0
      %2421 = vmatmul.mubr.bf16.gmra.mrb[0].mxu0 %v703
      %v2422 = vpop.f32.mrb[0].mxu0
      %v2423 = vadd.f32 %v2131, %v2422
      %v2424 = vpop.f32.mrb[0].mxu0
      %v2425 = vpop.f32.mrb[0].mxu0
      %v2426 = vadd.f32 %v2134, %v2425
      %v2427 = vpop.f32.mrb[0].mxu0
      %2428 = vmatprep.mubr.bf16.mxu0 0
      %2429 = vmatmul.mubr.bf16.gmra.mrb[0].mxu0 %v706
      %v2430 = vpop.f32.mrb[0].mxu0
      %v2431 = vadd.f32 %v2139, %v2430
      %v2432 = vpop.f32.mrb[0].mxu0
      %v2433 = vpop.f32.mrb[0].mxu0
      %v2434 = vadd.f32 %v2142, %v2433
      %v2435 = vpop.f32.mrb[0].mxu0
      %2436 = vmatprep.mubr.bf16.mxu0 0
      %2437 = vmatmul.mubr.bf16.gmra.mrb[0].mxu0 %v709
      %v2438 = vpop.f32.mrb[0].mxu0
      %v2439 = vadd.f32 %v2147, %v2438
      %v2440 = vpop.f32.mrb[0].mxu0
      %v2441 = vpop.f32.mrb[0].mxu0
      %v2442 = vadd.f32 %v2150, %v2441
      %v2443 = vpop.f32.mrb[0].mxu0
      %2444 = vmatprep.mubr.bf16.mxu0 0
      %2445 = vmatmul.mubr.bf16.gmra.mrb[0].mxu0 %v712
      %v2446 = vpop.f32.mrb[0].mxu0
      %v2447 = vadd.f32 %v2155, %v2446
      %v2448 = vpop.f32.mrb[0].mxu0
      %v2449 = vpop.f32.mrb[0].mxu0
      %v2450 = vadd.f32 %v2158, %v2449
      %v2451 = vpop.f32.mrb[0].mxu0
      %2452 = vmatprep.mubr.bf16.mxu0 0
      %2453 = vmatmul.mubr.bf16.gmra.mrb[0].mxu0 %v715
      %v2454 = vpop.f32.mrb[0].mxu0
      %v2455 = vadd.f32 %v2163, %v2454
      %v2456 = vpop.f32.mrb[0].mxu0
      %v2457 = vpop.f32.mrb[0].mxu0
      %v2458 = vadd.f32 %v2166, %v2457
      %v2459 = vpop.f32.mrb[0].mxu0
      %2460 = vmatprep.mubr.bf16.mxu0 0
      %2461 = vmatmul.mubr.bf16.gmra.mrb[0].mxu0 %v718
      %v2462 = vpop.f32.mrb[0].mxu0
      %v2463 = vadd.f32 %v2171, %v2462
      %v2464 = vpop.f32.mrb[0].mxu0
      %v2465 = vpop.f32.mrb[0].mxu0
      %v2466 = vadd.f32 %v2174, %v2465
      %v2467 = vpop.f32.mrb[0].mxu0
      %2468 = vmatprep.mubr.bf16.mxu0 0
      %2469 = vmatmul.mubr.bf16.gmra.mrb[0].mxu0 %v721
      %v2470 = vpop.f32.mrb[0].mxu0
      %v2471 = vadd.f32 %v2179, %v2470
      %v2472 = vpop.f32.mrb[0].mxu0
      %v2473 = vpop.f32.mrb[0].mxu0
      %v2474 = vadd.f32 %v2182, %v2473
      %v2475 = vpop.f32.mrb[0].mxu0
      %2476 = vmatprep.mubr.bf16.mxu0 0
      %2477 = vmatmul.mubr.bf16.gmra.mrb[0].mxu0 %v724
      %v2478 = vpop.f32.mrb[0].mxu0
      %v2479 = vadd.f32 %v2187, %v2478
      %v2480 = vpop.f32.mrb[0].mxu0
      %v2481 = vpop.f32.mrb[0].mxu0
      %v2482 = vadd.f32 %v2190, %v2481
      %v2483 = vpop.f32.mrb[0].mxu0
      %2484 = vmatprep.mubr.bf16.mxu0 0
      %2485 = vmatmul.mubr.bf16.gmra.mrb[0].mxu0 %v727
      %v2486 = vpop.f32.mrb[0].mxu0
      %v2487 = vadd.f32 %v2195, %v2486
      %v2488 = vpop.f32.mrb[0].mxu0
      %v2489 = vpop.f32.mrb[0].mxu0
      %v2490 = vadd.f32 %v2198, %v2489
      %v2491 = vpop.f32.mrb[0].mxu0
      %2492 = vmatprep.mubr.bf16.mxu0 0
      %2493 = vmatmul.mubr.bf16.gmra.mrb[0].mxu0 %v730
      %v2494 = vpop.f32.mrb[0].mxu0
      %v2495 = vadd.f32 %v2203, %v2494
      %v2496 = vpop.f32.mrb[0].mxu0
      %v2497 = vpop.f32.mrb[0].mxu0
      %v2498 = vadd.f32 %v2206, %v2497
      %v2499 = vpop.f32.mrb[0].mxu0
      %2500 = vmatprep.mubr.bf16.mxu0 0
      %2501 = vmatmul.mubr.bf16.gmra.mrb[0].mxu0 %v733
      %v2502 = vpop.f32.mrb[0].mxu0
      %v2503 = vadd.f32 %v2211, %v2502
      %v2504 = vpop.f32.mrb[0].mxu0
      %v2505 = vpop.f32.mrb[0].mxu0
      %v2506 = vadd.f32 %v2214, %v2505
      %v2507 = vpop.f32.mrb[0].mxu0
      %2508 = vmatprep.mubr.bf16.mxu0 0
      %2509 = vmatmul.mubr.bf16.gmra.mrb[0].mxu0 %v736
      %v2510 = vpop.f32.mrb[0].mxu0
      %v2511 = vadd.f32 %v2219, %v2510
      %v2512 = vpop.f32.mrb[0].mxu0
      %v2513 = vpop.f32.mrb[0].mxu0
      %v2514 = vadd.f32 %v2222, %v2513
      %v2515 = vpop.f32.mrb[0].mxu0
      %2516 = vdwg.mxu0
      %s2517 = scalar_lea.vmem %s3, 6
      %v2518 = vld [vmem:[%s2517] sm:$0x1]
      %v2523 = vunpack.c.l.b16 %v412
      %v2524 = vunpack.c.l.b16 %v413
      %v2525 = vunpack.c.l.b16 %v414
      %v2526 = vunpack.c.l.b16 %v415
      %v2527 = vpack.c.b16 %v2524, %v2523
      %v2528 = vpack.c.b16 %v2526, %v2525
      %v2530 = vsel %vm647, %v2527, 0
      %v2533 = vsel %vm647, %v2528, 0
      %v2536 = vsel %vm744, %v2518, 0
      %2538 = vmatprep.subr.bf16.mxu0 0
      %2539 = vmatpush1.bf16.msra.mxu0 %v2536
      %2540 = vmatprep.subr.bf16.mxu0 0
      %2541 = vmatpush1.bf16.msra.mxu0 0
      %2542 = vmatprep.subr.bf16.mxu0 0
      %2543 = vmatpush1.bf16.msra.mxu0 0
      %2544 = vmatprep.subr.bf16.mxu0 0
      %2545 = vmatpush1.bf16.msra.mxu0 0
      %2546 = vmatprep.subr.bf16.mxu0 0
      %2547 = vmatpush1.bf16.msra.mxu0 0
      %2548 = vmatprep.subr.bf16.mxu0 0
      %2549 = vmatpush1.bf16.msra.mxu0 0
      %2550 = vmatprep.subr.bf16.mxu0 0
      %2551 = vmatpush1.bf16.msra.mxu0 0
      %2552 = vmatprep.subr.bf16.mxu0 0
      %2553 = vmatpush1.bf16.msra.mxu0 0
      %2554 = vmatprep.subr.bf16.mxu0 0
      %2555 = vmatpush1.bf16.msra.mxu0 0
      %2556 = vmatprep.subr.bf16.mxu0 0
      %2557 = vmatpush1.bf16.msra.mxu0 0
      %2558 = vmatprep.subr.bf16.mxu0 0
      %2559 = vmatpush1.bf16.msra.mxu0 0
      %2560 = vmatprep.subr.bf16.mxu0 0
      %2561 = vmatpush1.bf16.msra.mxu0 0
      %2562 = vmatprep.subr.bf16.mxu0 0
      %2563 = vmatpush1.bf16.msra.mxu0 0
      %2564 = vmatprep.subr.bf16.mxu0 0
      %2565 = vmatpush1.bf16.msra.mxu0 0
      %2566 = vmatprep.subr.bf16.mxu0 0
      %2567 = vmatpush1.bf16.msra.mxu0 0
      %2568 = vmatprep.subr.bf16.mxu0 0
      %2569 = vmatpush1.bf16.msra.mxu0 0
      %2570 = vmatprep.mubr.bf16.mxu0 0
      %2571 = vmatmul.mubr.bf16.gmra.mrb[0].mxu0 %v655
      %v2572 = vpop.f32.mrb[0].mxu0
      %v2573 = vadd.f32 0.0, %v2572
      %v2574 = vpop.f32.mrb[0].mxu0
      %v2575 = vpop.f32.mrb[0].mxu0
      %v2576 = vadd.f32 0.0, %v2575
      %v2577 = vpop.f32.mrb[0].mxu0
      %2578 = vmatprep.mubr.bf16.mxu0 0
      %2579 = vmatmul.mubr.bf16.gmra.mrb[0].mxu0 %v658
      %v2580 = vpop.f32.mrb[0].mxu0
      %v2581 = vadd.f32 0.0, %v2580
      %v2582 = vpop.f32.mrb[0].mxu0
      %v2583 = vpop.f32.mrb[0].mxu0
      %v2584 = vadd.f32 0.0, %v2583
      %v2585 = vpop.f32.mrb[0].mxu0
      %2586 = vmatprep.mubr.bf16.mxu0 0
      %2587 = vmatmul.mubr.bf16.gmra.mrb[0].mxu0 %v661
      %v2588 = vpop.f32.mrb[0].mxu0
      %v2589 = vadd.f32 0.0, %v2588
      %v2590 = vpop.f32.mrb[0].mxu0
      %v2591 = vpop.f32.mrb[0].mxu0
      %v2592 = vadd.f32 0.0, %v2591
      %v2593 = vpop.f32.mrb[0].mxu0
      %2594 = vmatprep.mubr.bf16.mxu0 0
      %2595 = vmatmul.mubr.bf16.gmra.mrb[0].mxu0 %v664
      %v2596 = vpop.f32.mrb[0].mxu0
      %v2597 = vadd.f32 0.0, %v2596
      %v2598 = vpop.f32.mrb[0].mxu0
      %v2599 = vpop.f32.mrb[0].mxu0
      %v2600 = vadd.f32 0.0, %v2599
      %v2601 = vpop.f32.mrb[0].mxu0
      %2602 = vmatprep.mubr.bf16.mxu0 0
      %2603 = vmatmul.mubr.bf16.gmra.mrb[0].mxu0 %v667
      %v2604 = vpop.f32.mrb[0].mxu0
      %v2605 = vadd.f32 0.0, %v2604
      %v2606 = vpop.f32.mrb[0].mxu0
      %v2607 = vpop.f32.mrb[0].mxu0
      %v2608 = vadd.f32 0.0, %v2607
      %v2609 = vpop.f32.mrb[0].mxu0
      %2610 = vmatprep.mubr.bf16.mxu0 0
      %2611 = vmatmul.mubr.bf16.gmra.mrb[0].mxu0 %v670
      %v2612 = vpop.f32.mrb[0].mxu0
      %v2613 = vadd.f32 0.0, %v2612
      %v2614 = vpop.f32.mrb[0].mxu0
      %v2615 = vpop.f32.mrb[0].mxu0
      %v2616 = vadd.f32 0.0, %v2615
      %v2617 = vpop.f32.mrb[0].mxu0
      %2618 = vmatprep.mubr.bf16.mxu0 0
      %2619 = vmatmul.mubr.bf16.gmra.mrb[0].mxu0 %v673
      %v2620 = vpop.f32.mrb[0].mxu0
      %v2621 = vadd.f32 0.0, %v2620
      %v2622 = vpop.f32.mrb[0].mxu0
      %v2623 = vpop.f32.mrb[0].mxu0
      %v2624 = vadd.f32 0.0, %v2623
      %v2625 = vpop.f32.mrb[0].mxu0
      %2626 = vmatprep.mubr.bf16.mxu0 0
      %2627 = vmatmul.mubr.bf16.gmra.mrb[0].mxu0 %v676
      %v2628 = vpop.f32.mrb[0].mxu0
      %v2629 = vadd.f32 0.0, %v2628
      %v2630 = vpop.f32.mrb[0].mxu0
      %v2631 = vpop.f32.mrb[0].mxu0
      %v2632 = vadd.f32 0.0, %v2631
      %v2633 = vpop.f32.mrb[0].mxu0
      %2634 = vmatprep.mubr.bf16.mxu0 0
      %2635 = vmatmul.mubr.bf16.gmra.mrb[0].mxu0 %v679
      %v2636 = vpop.f32.mrb[0].mxu0
      %v2637 = vadd.f32 0.0, %v2636
      %v2638 = vpop.f32.mrb[0].mxu0
      %v2639 = vpop.f32.mrb[0].mxu0
      %v2640 = vadd.f32 0.0, %v2639
      %v2641 = vpop.f32.mrb[0].mxu0
      %2642 = vmatprep.mubr.bf16.mxu0 0
      %2643 = vmatmul.mubr.bf16.gmra.mrb[0].mxu0 %v682
      %v2644 = vpop.f32.mrb[0].mxu0
      %v2645 = vadd.f32 0.0, %v2644
      %v2646 = vpop.f32.mrb[0].mxu0
      %v2647 = vpop.f32.mrb[0].mxu0
      %v2648 = vadd.f32 0.0, %v2647
      %v2649 = vpop.f32.mrb[0].mxu0
      %2650 = vmatprep.mubr.bf16.mxu0 0
      %2651 = vmatmul.mubr.bf16.gmra.mrb[0].mxu0 %v685
      %v2652 = vpop.f32.mrb[0].mxu0
      %v2653 = vadd.f32 0.0, %v2652
      %v2654 = vpop.f32.mrb[0].mxu0
      %v2655 = vpop.f32.mrb[0].mxu0
      %v2656 = vadd.f32 0.0, %v2655
      %v2657 = vpop.f32.mrb[0].mxu0
      %2658 = vmatprep.mubr.bf16.mxu0 0
      %2659 = vmatmul.mubr.bf16.gmra.mrb[0].mxu0 %v688
      %v2660 = vpop.f32.mrb[0].mxu0
      %v2661 = vadd.f32 0.0, %v2660
      %v2662 = vpop.f32.mrb[0].mxu0
      %v2663 = vpop.f32.mrb[0].mxu0
      %v2664 = vadd.f32 0.0, %v2663
      %v2665 = vpop.f32.mrb[0].mxu0
      %2666 = vmatprep.mubr.bf16.mxu0 0
      %2667 = vmatmul.mubr.bf16.gmra.mrb[0].mxu0 %v691
      %v2668 = vpop.f32.mrb[0].mxu0
      %v2669 = vadd.f32 0.0, %v2668
      %v2670 = vpop.f32.mrb[0].mxu0
      %v2671 = vpop.f32.mrb[0].mxu0
      %v2672 = vadd.f32 0.0, %v2671
      %v2673 = vpop.f32.mrb[0].mxu0
      %2674 = vmatprep.mubr.bf16.mxu0 0
      %2675 = vmatmul.mubr.bf16.gmra.mrb[0].mxu0 %v694
      %v2676 = vpop.f32.mrb[0].mxu0
      %v2677 = vadd.f32 0.0, %v2676
      %v2678 = vpop.f32.mrb[0].mxu0
      %v2679 = vpop.f32.mrb[0].mxu0
      %v2680 = vadd.f32 0.0, %v2679
      %v2681 = vpop.f32.mrb[0].mxu0
      %2682 = vmatprep.mubr.bf16.mxu0 0
      %2683 = vmatmul.mubr.bf16.gmra.mrb[0].mxu0 %v697
      %v2684 = vpop.f32.mrb[0].mxu0
      %v2685 = vadd.f32 0.0, %v2684
      %v2686 = vpop.f32.mrb[0].mxu0
      %v2687 = vpop.f32.mrb[0].mxu0
      %v2688 = vadd.f32 0.0, %v2687
      %v2689 = vpop.f32.mrb[0].mxu0
      %2690 = vmatprep.mubr.bf16.mxu0 0
      %2691 = vmatmul.mubr.bf16.gmra.mrb[0].mxu0 %v700
      %v2692 = vpop.f32.mrb[0].mxu0
      %v2693 = vadd.f32 0.0, %v2692
      %v2694 = vpop.f32.mrb[0].mxu0
      %v2695 = vpop.f32.mrb[0].mxu0
      %v2696 = vadd.f32 0.0, %v2695
      %v2697 = vpop.f32.mrb[0].mxu0
      %2698 = vmatprep.mubr.bf16.mxu0 0
      %2699 = vmatmul.mubr.bf16.gmra.mrb[0].mxu0 %v703
      %v2700 = vpop.f32.mrb[0].mxu0
      %v2701 = vadd.f32 0.0, %v2700
      %v2702 = vpop.f32.mrb[0].mxu0
      %v2703 = vpop.f32.mrb[0].mxu0
      %v2704 = vadd.f32 0.0, %v2703
      %v2705 = vpop.f32.mrb[0].mxu0
      %2706 = vmatprep.mubr.bf16.mxu0 0
      %2707 = vmatmul.mubr.bf16.gmra.mrb[0].mxu0 %v706
      %v2708 = vpop.f32.mrb[0].mxu0
      %v2709 = vadd.f32 0.0, %v2708
      %v2710 = vpop.f32.mrb[0].mxu0
      %v2711 = vpop.f32.mrb[0].mxu0
      %v2712 = vadd.f32 0.0, %v2711
      %v2713 = vpop.f32.mrb[0].mxu0
      %2714 = vmatprep.mubr.bf16.mxu0 0
      %2715 = vmatmul.mubr.bf16.gmra.mrb[0].mxu0 %v709
      %v2716 = vpop.f32.mrb[0].mxu0
      %v2717 = vadd.f32 0.0, %v2716
      %v2718 = vpop.f32.mrb[0].mxu0
      %v2719 = vpop.f32.mrb[0].mxu0
      %v2720 = vadd.f32 0.0, %v2719
      %v2721 = vpop.f32.mrb[0].mxu0
      %2722 = vmatprep.mubr.bf16.mxu0 0
      %2723 = vmatmul.mubr.bf16.gmra.mrb[0].mxu0 %v712
      %v2724 = vpop.f32.mrb[0].mxu0
      %v2725 = vadd.f32 0.0, %v2724
      %v2726 = vpop.f32.mrb[0].mxu0
      %v2727 = vpop.f32.mrb[0].mxu0
      %v2728 = vadd.f32 0.0, %v2727
      %v2729 = vpop.f32.mrb[0].mxu0
      %2730 = vmatprep.mubr.bf16.mxu0 0
      %2731 = vmatmul.mubr.bf16.gmra.mrb[0].mxu0 %v715
      %v2732 = vpop.f32.mrb[0].mxu0
      %v2733 = vadd.f32 0.0, %v2732
      %v2734 = vpop.f32.mrb[0].mxu0
      %v2735 = vpop.f32.mrb[0].mxu0
      %v2736 = vadd.f32 0.0, %v2735
      %v2737 = vpop.f32.mrb[0].mxu0
      %2738 = vmatprep.mubr.bf16.mxu0 0
      %2739 = vmatmul.mubr.bf16.gmra.mrb[0].mxu0 %v718
      %v2740 = vpop.f32.mrb[0].mxu0
      %v2741 = vadd.f32 0.0, %v2740
      %v2742 = vpop.f32.mrb[0].mxu0
      %v2743 = vpop.f32.mrb[0].mxu0
      %v2744 = vadd.f32 0.0, %v2743
      %v2745 = vpop.f32.mrb[0].mxu0
      %2746 = vmatprep.mubr.bf16.mxu0 0
      %2747 = vmatmul.mubr.bf16.gmra.mrb[0].mxu0 %v721
      %v2748 = vpop.f32.mrb[0].mxu0
      %v2749 = vadd.f32 0.0, %v2748
      %v2750 = vpop.f32.mrb[0].mxu0
      %v2751 = vpop.f32.mrb[0].mxu0
      %v2752 = vadd.f32 0.0, %v2751
      %v2753 = vpop.f32.mrb[0].mxu0
      %2754 = vmatprep.mubr.bf16.mxu0 0
      %2755 = vmatmul.mubr.bf16.gmra.mrb[0].mxu0 %v724
      %v2756 = vpop.f32.mrb[0].mxu0
      %v2757 = vadd.f32 0.0, %v2756
      %v2758 = vpop.f32.mrb[0].mxu0
      %v2759 = vpop.f32.mrb[0].mxu0
      %v2760 = vadd.f32 0.0, %v2759
      %v2761 = vpop.f32.mrb[0].mxu0
      %2762 = vmatprep.mubr.bf16.mxu0 0
      %2763 = vmatmul.mubr.bf16.gmra.mrb[0].mxu0 %v727
      %v2764 = vpop.f32.mrb[0].mxu0
      %v2765 = vadd.f32 0.0, %v2764
      %v2766 = vpop.f32.mrb[0].mxu0
      %v2767 = vpop.f32.mrb[0].mxu0
      %v2768 = vadd.f32 0.0, %v2767
      %v2769 = vpop.f32.mrb[0].mxu0
      %2770 = vmatprep.mubr.bf16.mxu0 0
      %2771 = vmatmul.mubr.bf16.gmra.mrb[0].mxu0 %v730
      %v2772 = vpop.f32.mrb[0].mxu0
      %v2773 = vadd.f32 0.0, %v2772
      %v2774 = vpop.f32.mrb[0].mxu0
      %v2775 = vpop.f32.mrb[0].mxu0
      %v2776 = vadd.f32 0.0, %v2775
      %v2777 = vpop.f32.mrb[0].mxu0
      %2778 = vmatprep.mubr.bf16.mxu0 0
      %2779 = vmatmul.mubr.bf16.gmra.mrb[0].mxu0 %v733
      %v2780 = vpop.f32.mrb[0].mxu0
      %v2781 = vadd.f32 0.0, %v2780
      %v2782 = vpop.f32.mrb[0].mxu0
      %v2783 = vpop.f32.mrb[0].mxu0
      %v2784 = vadd.f32 0.0, %v2783
      %v2785 = vpop.f32.mrb[0].mxu0
      %2786 = vmatprep.mubr.bf16.mxu0 0
      %2787 = vmatmul.mubr.bf16.gmra.mrb[0].mxu0 %v736
      %v2788 = vpop.f32.mrb[0].mxu0
      %v2789 = vadd.f32 0.0, %v2788
      %v2790 = vpop.f32.mrb[0].mxu0
      %v2791 = vpop.f32.mrb[0].mxu0
      %v2792 = vadd.f32 0.0, %v2791
      %v2793 = vpop.f32.mrb[0].mxu0
      %2794 = vmatprep.mubr.bf16.mxu0 0
      %2795 = vmatmul.mubr.bf16.gmra.mrb[0].mxu0 %v739
      %v2796 = vpop.f32.mrb[0].mxu0
      %v2797 = vadd.f32 0.0, %v2796
      %v2798 = vpop.f32.mrb[0].mxu0
      %v2799 = vpop.f32.mrb[0].mxu0
      %v2800 = vadd.f32 0.0, %v2799
      %v2801 = vpop.f32.mrb[0].mxu0
      %2802 = vmatprep.mubr.bf16.mxu0 0
      %2803 = vmatmul.mubr.bf16.gmra.mrb[0].mxu0 %v742
      %v2804 = vpop.f32.mrb[0].mxu0
      %v2805 = vadd.f32 0.0, %v2804
      %v2806 = vpop.f32.mrb[0].mxu0
      %v2807 = vpop.f32.mrb[0].mxu0
      %v2808 = vadd.f32 0.0, %v2807
      %v2809 = vpop.f32.mrb[0].mxu0
      %2810 = vmatprep.mubr.bf16.mxu0 0
      %2811 = vmatmul.mubr.bf16.gmra.mrb[0].mxu0 %v2530
      %v2812 = vpop.f32.mrb[0].mxu0
      %v2813 = vadd.f32 0.0, %v2812
      %v2814 = vpop.f32.mrb[0].mxu0
      %v2815 = vpop.f32.mrb[0].mxu0
      %v2816 = vadd.f32 0.0, %v2815
      %v2817 = vpop.f32.mrb[0].mxu0
      %2818 = vmatprep.mubr.bf16.mxu0 0
      %2819 = vmatmul.mubr.bf16.gmra.mrb[0].mxu0 %v2533
      %v2820 = vpop.f32.mrb[0].mxu0
      %v2821 = vadd.f32 0.0, %v2820
      %v2822 = vpop.f32.mrb[0].mxu0
      %v2823 = vpop.f32.mrb[0].mxu0
      %v2824 = vadd.f32 0.0, %v2823
      %v2825 = vpop.f32.mrb[0].mxu0
      %2826 = vdwg.mxu0
      %v2827 = vadd.f32 %v1091, %v2573
      %v2828 = vadd.f32 %v1094, %v2576
      %v2829 = vadd.f32 %v1099, %v2581
      %v2830 = vadd.f32 %v1102, %v2584
      %v2831 = vadd.f32 %v1107, %v2589
      %v2832 = vadd.f32 %v1110, %v2592
      %v2833 = vadd.f32 %v1115, %v2597
      %v2834 = vadd.f32 %v1118, %v2600
      %v2835 = vadd.f32 %v1123, %v2605
      %v2836 = vadd.f32 %v1126, %v2608
      %v2837 = vadd.f32 %v1131, %v2613
      %v2838 = vadd.f32 %v1134, %v2616
      %v2839 = vadd.f32 %v1139, %v2621
      %v2840 = vadd.f32 %v1142, %v2624
      %v2841 = vadd.f32 %v1147, %v2629
      %v2842 = vadd.f32 %v1150, %v2632
      %v2843 = vadd.f32 %v1155, %v2637
      %v2844 = vadd.f32 %v1158, %v2640
      %v2845 = vadd.f32 %v1163, %v2645
      %v2846 = vadd.f32 %v1166, %v2648
      %v2847 = vadd.f32 %v1171, %v2653
      %v2848 = vadd.f32 %v1174, %v2656
      %v2849 = vadd.f32 %v1179, %v2661
      %v2850 = vadd.f32 %v1182, %v2664
      %v2851 = vadd.f32 %v1187, %v2669
      %v2852 = vadd.f32 %v1190, %v2672
      %v2853 = vadd.f32 %v1195, %v2677
      %v2854 = vadd.f32 %v1198, %v2680
      %v2855 = vadd.f32 %v1203, %v2685
      %v2856 = vadd.f32 %v1206, %v2688
      %v2857 = vadd.f32 %v1211, %v2693
      %v2858 = vadd.f32 %v1214, %v2696
      %v2859 = vadd.f32 %v1219, %v2701
      %v2860 = vadd.f32 %v1222, %v2704
      %v2861 = vadd.f32 %v1227, %v2709
      %v2862 = vadd.f32 %v1230, %v2712
      %v2863 = vadd.f32 %v1235, %v2717
      %v2864 = vadd.f32 %v1238, %v2720
      %v2865 = vadd.f32 %v1243, %v2725
      %v2866 = vadd.f32 %v1246, %v2728
      %v2867 = vadd.f32 %v1251, %v2733
      %v2868 = vadd.f32 %v1254, %v2736
      %v2869 = vadd.f32 %v1259, %v2741
      %v2870 = vadd.f32 %v1262, %v2744
      %v2871 = vadd.f32 %v1267, %v2749
      %v2872 = vadd.f32 %v1270, %v2752
      %v2873 = vadd.f32 %v1275, %v2757
      %v2874 = vadd.f32 %v1278, %v2760
      %v2875 = vadd.f32 %v1283, %v2765
      %v2876 = vadd.f32 %v1286, %v2768
      %v2877 = vadd.f32 %v1291, %v2773
      %v2878 = vadd.f32 %v1294, %v2776
      %v2879 = vadd.f32 %v1299, %v2781
      %v2880 = vadd.f32 %v1302, %v2784
      %v2881 = vadd.f32 %v1307, %v2789
      %v2882 = vadd.f32 %v1310, %v2792
      %v2883 = vadd.f32 %v1315, %v2797
      %v2884 = vadd.f32 %v1318, %v2800
      %v2885 = vadd.f32 %v1323, %v2805
      %v2886 = vadd.f32 %v1326, %v2808
      %v2887 = vadd.f32 %v1331, %v2813
      %v2888 = vadd.f32 %v1334, %v2816
      %v2889 = vadd.f32 %v1339, %v2821
      %v2890 = vadd.f32 %v1342, %v2824
      %s2891 = scalar_lea.vmem %s3, 7
      %v2892 = vld [vmem:[%s2891] sm:$0x1]
      %v2894 = vsel %vm744, %v2892, 0
      %2896 = vmatprep.subr.bf16.mxu0 0
      %2897 = vmatpush1.bf16.msra.mxu0 %v2894
      %2898 = vmatprep.subr.bf16.mxu0 0
      %2899 = vmatpush1.bf16.msra.mxu0 0
      %2900 = vmatprep.subr.bf16.mxu0 0
      %2901 = vmatpush1.bf16.msra.mxu0 0
      %2902 = vmatprep.subr.bf16.mxu0 0
      %2903 = vmatpush1.bf16.msra.mxu0 0
      %2904 = vmatprep.subr.bf16.mxu0 0
      %2905 = vmatpush1.bf16.msra.mxu0 0
      %2906 = vmatprep.subr.bf16.mxu0 0
      %2907 = vmatpush1.bf16.msra.mxu0 0
      %2908 = vmatprep.subr.bf16.mxu0 0
      %2909 = vmatpush1.bf16.msra.mxu0 0
      %2910 = vmatprep.subr.bf16.mxu0 0
      %2911 = vmatpush1.bf16.msra.mxu0 0
      %2912 = vmatprep.subr.bf16.mxu0 0
      %2913 = vmatpush1.bf16.msra.mxu0 0
      %2914 = vmatprep.subr.bf16.mxu0 0
      %2915 = vmatpush1.bf16.msra.mxu0 0
      %2916 = vmatprep.subr.bf16.mxu0 0
      %2917 = vmatpush1.bf16.msra.mxu0 0
      %2918 = vmatprep.subr.bf16.mxu0 0
      %2919 = vmatpush1.bf16.msra.mxu0 0
      %2920 = vmatprep.subr.bf16.mxu0 0
      %2921 = vmatpush1.bf16.msra.mxu0 0
      %2922 = vmatprep.subr.bf16.mxu0 0
      %2923 = vmatpush1.bf16.msra.mxu0 0
      %2924 = vmatprep.subr.bf16.mxu0 0
      %2925 = vmatpush1.bf16.msra.mxu0 0
      %2926 = vmatprep.subr.bf16.mxu0 0
      %2927 = vmatpush1.bf16.msra.mxu0 0
      %2928 = vmatprep.mubr.bf16.mxu0 0
      %2929 = vmatmul.mubr.bf16.gmra.mrb[0].mxu0 %v655
      %v2930 = vpop.f32.mrb[0].mxu0
      %v2931 = vadd.f32 0.0, %v2930
      %v2932 = vpop.f32.mrb[0].mxu0
      %v2933 = vpop.f32.mrb[0].mxu0
      %v2934 = vadd.f32 0.0, %v2933
      %v2935 = vpop.f32.mrb[0].mxu0
      %2936 = vmatprep.mubr.bf16.mxu0 0
      %2937 = vmatmul.mubr.bf16.gmra.mrb[0].mxu0 %v658
      %v2938 = vpop.f32.mrb[0].mxu0
      %v2939 = vadd.f32 0.0, %v2938
      %v2940 = vpop.f32.mrb[0].mxu0
      %v2941 = vpop.f32.mrb[0].mxu0
      %v2942 = vadd.f32 0.0, %v2941
      %v2943 = vpop.f32.mrb[0].mxu0
      %2944 = vmatprep.mubr.bf16.mxu0 0
      %2945 = vmatmul.mubr.bf16.gmra.mrb[0].mxu0 %v661
      %v2946 = vpop.f32.mrb[0].mxu0
      %v2947 = vadd.f32 0.0, %v2946
      %v2948 = vpop.f32.mrb[0].mxu0
      %v2949 = vpop.f32.mrb[0].mxu0
      %v2950 = vadd.f32 0.0, %v2949
      %v2951 = vpop.f32.mrb[0].mxu0
      %2952 = vmatprep.mubr.bf16.mxu0 0
      %2953 = vmatmul.mubr.bf16.gmra.mrb[0].mxu0 %v664
      %v2954 = vpop.f32.mrb[0].mxu0
      %v2955 = vadd.f32 0.0, %v2954
      %v2956 = vpop.f32.mrb[0].mxu0
      %v2957 = vpop.f32.mrb[0].mxu0
      %v2958 = vadd.f32 0.0, %v2957
      %v2959 = vpop.f32.mrb[0].mxu0
      %2960 = vmatprep.mubr.bf16.mxu0 0
      %2961 = vmatmul.mubr.bf16.gmra.mrb[0].mxu0 %v667
      %v2962 = vpop.f32.mrb[0].mxu0
      %v2963 = vadd.f32 0.0, %v2962
      %v2964 = vpop.f32.mrb[0].mxu0
      %v2965 = vpop.f32.mrb[0].mxu0
      %v2966 = vadd.f32 0.0, %v2965
      %v2967 = vpop.f32.mrb[0].mxu0
      %2968 = vmatprep.mubr.bf16.mxu0 0
      %2969 = vmatmul.mubr.bf16.gmra.mrb[0].mxu0 %v670
      %v2970 = vpop.f32.mrb[0].mxu0
      %v2971 = vadd.f32 0.0, %v2970
      %v2972 = vpop.f32.mrb[0].mxu0
      %v2973 = vpop.f32.mrb[0].mxu0
      %v2974 = vadd.f32 0.0, %v2973
      %v2975 = vpop.f32.mrb[0].mxu0
      %2976 = vmatprep.mubr.bf16.mxu0 0
      %2977 = vmatmul.mubr.bf16.gmra.mrb[0].mxu0 %v673
      %v2978 = vpop.f32.mrb[0].mxu0
      %v2979 = vadd.f32 0.0, %v2978
      %v2980 = vpop.f32.mrb[0].mxu0
      %v2981 = vpop.f32.mrb[0].mxu0
      %v2982 = vadd.f32 0.0, %v2981
      %v2983 = vpop.f32.mrb[0].mxu0
      %2984 = vmatprep.mubr.bf16.mxu0 0
      %2985 = vmatmul.mubr.bf16.gmra.mrb[0].mxu0 %v676
      %v2986 = vpop.f32.mrb[0].mxu0
      %v2987 = vadd.f32 0.0, %v2986
      %v2988 = vpop.f32.mrb[0].mxu0
      %v2989 = vpop.f32.mrb[0].mxu0
      %v2990 = vadd.f32 0.0, %v2989
      %v2991 = vpop.f32.mrb[0].mxu0
      %2992 = vmatprep.mubr.bf16.mxu0 0
      %2993 = vmatmul.mubr.bf16.gmra.mrb[0].mxu0 %v679
      %v2994 = vpop.f32.mrb[0].mxu0
      %v2995 = vadd.f32 0.0, %v2994
      %v2996 = vpop.f32.mrb[0].mxu0
      %v2997 = vpop.f32.mrb[0].mxu0
      %v2998 = vadd.f32 0.0, %v2997
      %v2999 = vpop.f32.mrb[0].mxu0
      %3000 = vmatprep.mubr.bf16.mxu0 0
      %3001 = vmatmul.mubr.bf16.gmra.mrb[0].mxu0 %v682
      %v3002 = vpop.f32.mrb[0].mxu0
      %v3003 = vadd.f32 0.0, %v3002
      %v3004 = vpop.f32.mrb[0].mxu0
      %v3005 = vpop.f32.mrb[0].mxu0
      %v3006 = vadd.f32 0.0, %v3005
      %v3007 = vpop.f32.mrb[0].mxu0
      %3008 = vmatprep.mubr.bf16.mxu0 0
      %3009 = vmatmul.mubr.bf16.gmra.mrb[0].mxu0 %v685
      %v3010 = vpop.f32.mrb[0].mxu0
      %v3011 = vadd.f32 0.0, %v3010
      %v3012 = vpop.f32.mrb[0].mxu0
      %v3013 = vpop.f32.mrb[0].mxu0
      %v3014 = vadd.f32 0.0, %v3013
      %v3015 = vpop.f32.mrb[0].mxu0
      %3016 = vmatprep.mubr.bf16.mxu0 0
      %3017 = vmatmul.mubr.bf16.gmra.mrb[0].mxu0 %v688
      %v3018 = vpop.f32.mrb[0].mxu0
      %v3019 = vadd.f32 0.0, %v3018
      %v3020 = vpop.f32.mrb[0].mxu0
      %v3021 = vpop.f32.mrb[0].mxu0
      %v3022 = vadd.f32 0.0, %v3021
      %v3023 = vpop.f32.mrb[0].mxu0
      %3024 = vmatprep.mubr.bf16.mxu0 0
      %3025 = vmatmul.mubr.bf16.gmra.mrb[0].mxu0 %v691
      %v3026 = vpop.f32.mrb[0].mxu0
      %v3027 = vadd.f32 0.0, %v3026
      %v3028 = vpop.f32.mrb[0].mxu0
      %v3029 = vpop.f32.mrb[0].mxu0
      %v3030 = vadd.f32 0.0, %v3029
      %v3031 = vpop.f32.mrb[0].mxu0
      %3032 = vmatprep.mubr.bf16.mxu0 0
      %3033 = vmatmul.mubr.bf16.gmra.mrb[0].mxu0 %v694
      %v3034 = vpop.f32.mrb[0].mxu0
      %v3035 = vadd.f32 0.0, %v3034
      %v3036 = vpop.f32.mrb[0].mxu0
      %v3037 = vpop.f32.mrb[0].mxu0
      %v3038 = vadd.f32 0.0, %v3037
      %v3039 = vpop.f32.mrb[0].mxu0
      %3040 = vmatprep.mubr.bf16.mxu0 0
      %3041 = vmatmul.mubr.bf16.gmra.mrb[0].mxu0 %v697
      %v3042 = vpop.f32.mrb[0].mxu0
      %v3043 = vadd.f32 0.0, %v3042
      %v3044 = vpop.f32.mrb[0].mxu0
      %v3045 = vpop.f32.mrb[0].mxu0
      %v3046 = vadd.f32 0.0, %v3045
      %v3047 = vpop.f32.mrb[0].mxu0
      %3048 = vmatprep.mubr.bf16.mxu0 0
      %3049 = vmatmul.mubr.bf16.gmra.mrb[0].mxu0 %v700
      %v3050 = vpop.f32.mrb[0].mxu0
      %v3051 = vadd.f32 0.0, %v3050
      %v3052 = vpop.f32.mrb[0].mxu0
      %v3053 = vpop.f32.mrb[0].mxu0
      %v3054 = vadd.f32 0.0, %v3053
      %v3055 = vpop.f32.mrb[0].mxu0
      %3056 = vmatprep.mubr.bf16.mxu0 0
      %3057 = vmatmul.mubr.bf16.gmra.mrb[0].mxu0 %v703
      %v3058 = vpop.f32.mrb[0].mxu0
      %v3059 = vadd.f32 0.0, %v3058
      %v3060 = vpop.f32.mrb[0].mxu0
      %v3061 = vpop.f32.mrb[0].mxu0
      %v3062 = vadd.f32 0.0, %v3061
      %v3063 = vpop.f32.mrb[0].mxu0
      %3064 = vmatprep.mubr.bf16.mxu0 0
      %3065 = vmatmul.mubr.bf16.gmra.mrb[0].mxu0 %v706
      %v3066 = vpop.f32.mrb[0].mxu0
      %v3067 = vadd.f32 0.0, %v3066
      %v3068 = vpop.f32.mrb[0].mxu0
      %v3069 = vpop.f32.mrb[0].mxu0
      %v3070 = vadd.f32 0.0, %v3069
      %v3071 = vpop.f32.mrb[0].mxu0
      %3072 = vmatprep.mubr.bf16.mxu0 0
      %3073 = vmatmul.mubr.bf16.gmra.mrb[0].mxu0 %v709
      %v3074 = vpop.f32.mrb[0].mxu0
      %v3075 = vadd.f32 0.0, %v3074
      %v3076 = vpop.f32.mrb[0].mxu0
      %v3077 = vpop.f32.mrb[0].mxu0
      %v3078 = vadd.f32 0.0, %v3077
      %v3079 = vpop.f32.mrb[0].mxu0
      %3080 = vmatprep.mubr.bf16.mxu0 0
      %3081 = vmatmul.mubr.bf16.gmra.mrb[0].mxu0 %v712
      %v3082 = vpop.f32.mrb[0].mxu0
      %v3083 = vadd.f32 0.0, %v3082
      %v3084 = vpop.f32.mrb[0].mxu0
      %v3085 = vpop.f32.mrb[0].mxu0
      %v3086 = vadd.f32 0.0, %v3085
      %v3087 = vpop.f32.mrb[0].mxu0
      %3088 = vmatprep.mubr.bf16.mxu0 0
      %3089 = vmatmul.mubr.bf16.gmra.mrb[0].mxu0 %v715
      %v3090 = vpop.f32.mrb[0].mxu0
      %v3091 = vadd.f32 0.0, %v3090
      %v3092 = vpop.f32.mrb[0].mxu0
      %v3093 = vpop.f32.mrb[0].mxu0
      %v3094 = vadd.f32 0.0, %v3093
      %v3095 = vpop.f32.mrb[0].mxu0
      %3096 = vmatprep.mubr.bf16.mxu0 0
      %3097 = vmatmul.mubr.bf16.gmra.mrb[0].mxu0 %v718
      %v3098 = vpop.f32.mrb[0].mxu0
      %v3099 = vadd.f32 0.0, %v3098
      %v3100 = vpop.f32.mrb[0].mxu0
      %v3101 = vpop.f32.mrb[0].mxu0
      %v3102 = vadd.f32 0.0, %v3101
      %v3103 = vpop.f32.mrb[0].mxu0
      %3104 = vmatprep.mubr.bf16.mxu0 0
      %3105 = vmatmul.mubr.bf16.gmra.mrb[0].mxu0 %v721
      %v3106 = vpop.f32.mrb[0].mxu0
      %v3107 = vadd.f32 0.0, %v3106
      %v3108 = vpop.f32.mrb[0].mxu0
      %v3109 = vpop.f32.mrb[0].mxu0
      %v3110 = vadd.f32 0.0, %v3109
      %v3111 = vpop.f32.mrb[0].mxu0
      %3112 = vmatprep.mubr.bf16.mxu0 0
      %3113 = vmatmul.mubr.bf16.gmra.mrb[0].mxu0 %v724
      %v3114 = vpop.f32.mrb[0].mxu0
      %v3115 = vadd.f32 0.0, %v3114
      %v3116 = vpop.f32.mrb[0].mxu0
      %v3117 = vpop.f32.mrb[0].mxu0
      %v3118 = vadd.f32 0.0, %v3117
      %v3119 = vpop.f32.mrb[0].mxu0
      %3120 = vmatprep.mubr.bf16.mxu0 0
      %3121 = vmatmul.mubr.bf16.gmra.mrb[0].mxu0 %v727
      %v3122 = vpop.f32.mrb[0].mxu0
      %v3123 = vadd.f32 0.0, %v3122
      %v3124 = vpop.f32.mrb[0].mxu0
      %v3125 = vpop.f32.mrb[0].mxu0
      %v3126 = vadd.f32 0.0, %v3125
      %v3127 = vpop.f32.mrb[0].mxu0
      %3128 = vmatprep.mubr.bf16.mxu0 0
      %3129 = vmatmul.mubr.bf16.gmra.mrb[0].mxu0 %v730
      %v3130 = vpop.f32.mrb[0].mxu0
      %v3131 = vadd.f32 0.0, %v3130
      %v3132 = vpop.f32.mrb[0].mxu0
      %v3133 = vpop.f32.mrb[0].mxu0
      %v3134 = vadd.f32 0.0, %v3133
      %v3135 = vpop.f32.mrb[0].mxu0
      %3136 = vmatprep.mubr.bf16.mxu0 0
      %3137 = vmatmul.mubr.bf16.gmra.mrb[0].mxu0 %v733
      %v3138 = vpop.f32.mrb[0].mxu0
      %v3139 = vadd.f32 0.0, %v3138
      %v3140 = vpop.f32.mrb[0].mxu0
      %v3141 = vpop.f32.mrb[0].mxu0
      %v3142 = vadd.f32 0.0, %v3141
      %v3143 = vpop.f32.mrb[0].mxu0
      %3144 = vmatprep.mubr.bf16.mxu0 0
      %3145 = vmatmul.mubr.bf16.gmra.mrb[0].mxu0 %v736
      %v3146 = vpop.f32.mrb[0].mxu0
      %v3147 = vadd.f32 0.0, %v3146
      %v3148 = vpop.f32.mrb[0].mxu0
      %v3149 = vpop.f32.mrb[0].mxu0
      %v3150 = vadd.f32 0.0, %v3149
      %v3151 = vpop.f32.mrb[0].mxu0
      %3152 = vmatprep.mubr.bf16.mxu0 0
      %3153 = vmatmul.mubr.bf16.gmra.mrb[0].mxu0 %v739
      %v3154 = vpop.f32.mrb[0].mxu0
      %v3155 = vadd.f32 0.0, %v3154
      %v3156 = vpop.f32.mrb[0].mxu0
      %v3157 = vpop.f32.mrb[0].mxu0
      %v3158 = vadd.f32 0.0, %v3157
      %v3159 = vpop.f32.mrb[0].mxu0
      %3160 = vmatprep.mubr.bf16.mxu0 0
      %3161 = vmatmul.mubr.bf16.gmra.mrb[0].mxu0 %v742
      %v3162 = vpop.f32.mrb[0].mxu0
      %v3163 = vadd.f32 0.0, %v3162
      %v3164 = vpop.f32.mrb[0].mxu0
      %v3165 = vpop.f32.mrb[0].mxu0
      %v3166 = vadd.f32 0.0, %v3165
      %v3167 = vpop.f32.mrb[0].mxu0
      %3168 = vmatprep.mubr.bf16.mxu0 0
      %3169 = vmatmul.mubr.bf16.gmra.mrb[0].mxu0 %v2530
      %v3170 = vpop.f32.mrb[0].mxu0
      %v3171 = vadd.f32 0.0, %v3170
      %v3172 = vpop.f32.mrb[0].mxu0
      %v3173 = vpop.f32.mrb[0].mxu0
      %v3174 = vadd.f32 0.0, %v3173
      %v3175 = vpop.f32.mrb[0].mxu0
      %3176 = vmatprep.mubr.bf16.mxu0 0
      %3177 = vmatmul.mubr.bf16.gmra.mrb[0].mxu0 %v2533
      %v3178 = vpop.f32.mrb[0].mxu0
      %v3179 = vadd.f32 0.0, %v3178
      %v3180 = vpop.f32.mrb[0].mxu0
      %v3181 = vpop.f32.mrb[0].mxu0
      %v3182 = vadd.f32 0.0, %v3181
      %v3183 = vpop.f32.mrb[0].mxu0
      %3184 = vdwg.mxu0
      %v3185 = vadd.f32 %v1677, %v2931
      %v3186 = vadd.f32 %v1680, %v2934
      %v3187 = vadd.f32 %v1685, %v2939
      %v3188 = vadd.f32 %v1688, %v2942
      %v3189 = vadd.f32 %v1693, %v2947
      %v3190 = vadd.f32 %v1696, %v2950
      %v3191 = vadd.f32 %v1701, %v2955
      %v3192 = vadd.f32 %v1704, %v2958
      %v3193 = vadd.f32 %v1709, %v2963
      %v3194 = vadd.f32 %v1712, %v2966
      %v3195 = vadd.f32 %v1717, %v2971
      %v3196 = vadd.f32 %v1720, %v2974
      %v3197 = vadd.f32 %v1725, %v2979
      %v3198 = vadd.f32 %v1728, %v2982
      %v3199 = vadd.f32 %v1733, %v2987
      %v3200 = vadd.f32 %v1736, %v2990
      %v3201 = vadd.f32 %v1741, %v2995
      %v3202 = vadd.f32 %v1744, %v2998
      %v3203 = vadd.f32 %v1749, %v3003
      %v3204 = vadd.f32 %v1752, %v3006
      %v3205 = vadd.f32 %v1757, %v3011
      %v3206 = vadd.f32 %v1760, %v3014
      %v3207 = vadd.f32 %v1765, %v3019
      %v3208 = vadd.f32 %v1768, %v3022
      %v3209 = vadd.f32 %v1773, %v3027
      %v3210 = vadd.f32 %v1776, %v3030
      %v3211 = vadd.f32 %v1781, %v3035
      %v3212 = vadd.f32 %v1784, %v3038
      %v3213 = vadd.f32 %v1789, %v3043
      %v3214 = vadd.f32 %v1792, %v3046
      %v3215 = vadd.f32 %v1797, %v3051
      %v3216 = vadd.f32 %v1800, %v3054
      %v3217 = vadd.f32 %v1805, %v3059
      %v3218 = vadd.f32 %v1808, %v3062
      %v3219 = vadd.f32 %v1813, %v3067
      %v3220 = vadd.f32 %v1816, %v3070
      %v3221 = vadd.f32 %v1821, %v3075
      %v3222 = vadd.f32 %v1824, %v3078
      %v3223 = vadd.f32 %v1829, %v3083
      %v3224 = vadd.f32 %v1832, %v3086
      %v3225 = vadd.f32 %v1837, %v3091
      %v3226 = vadd.f32 %v1840, %v3094
      %v3227 = vadd.f32 %v1845, %v3099
      %v3228 = vadd.f32 %v1848, %v3102
      %v3229 = vadd.f32 %v1853, %v3107
      %v3230 = vadd.f32 %v1856, %v3110
      %v3231 = vadd.f32 %v1861, %v3115
      %v3232 = vadd.f32 %v1864, %v3118
      %v3233 = vadd.f32 %v1869, %v3123
      %v3234 = vadd.f32 %v1872, %v3126
      %v3235 = vadd.f32 %v1877, %v3131
      %v3236 = vadd.f32 %v1880, %v3134
      %v3237 = vadd.f32 %v1885, %v3139
      %v3238 = vadd.f32 %v1888, %v3142
      %v3239 = vadd.f32 %v1893, %v3147
      %v3240 = vadd.f32 %v1896, %v3150
      %v3241 = vadd.f32 %v1901, %v3155
      %v3242 = vadd.f32 %v1904, %v3158
      %v3243 = vadd.f32 %v1909, %v3163
      %v3244 = vadd.f32 %v1912, %v3166
      %v3245 = vadd.f32 %v1917, %v3171
      %v3246 = vadd.f32 %v1920, %v3174
      %v3247 = vadd.f32 %v1925, %v3179
      %v3248 = vadd.f32 %v1928, %v3182
      %s3249 = scalar_lea.vmem %s3, 8
      %v3250 = vld [vmem:[%s3249] sm:$0x1]
      %v3252 = vsel %vm744, %v3250, 0
      %3254 = vmatprep.subr.bf16.mxu0 0
      %3255 = vmatpush1.bf16.msra.mxu0 %v3252
      %3256 = vmatprep.subr.bf16.mxu0 0
      %3257 = vmatpush1.bf16.msra.mxu0 0
      %3258 = vmatprep.subr.bf16.mxu0 0
      %3259 = vmatpush1.bf16.msra.mxu0 0
      %3260 = vmatprep.subr.bf16.mxu0 0
      %3261 = vmatpush1.bf16.msra.mxu0 0
      %3262 = vmatprep.subr.bf16.mxu0 0
      %3263 = vmatpush1.bf16.msra.mxu0 0
      %3264 = vmatprep.subr.bf16.mxu0 0
      %3265 = vmatpush1.bf16.msra.mxu0 0
      %3266 = vmatprep.subr.bf16.mxu0 0
      %3267 = vmatpush1.bf16.msra.mxu0 0
      %3268 = vmatprep.subr.bf16.mxu0 0
      %3269 = vmatpush1.bf16.msra.mxu0 0
      %3270 = vmatprep.subr.bf16.mxu0 0
      %3271 = vmatpush1.bf16.msra.mxu0 0
      %3272 = vmatprep.subr.bf16.mxu0 0
      %3273 = vmatpush1.bf16.msra.mxu0 0
      %3274 = vmatprep.subr.bf16.mxu0 0
      %3275 = vmatpush1.bf16.msra.mxu0 0
      %3276 = vmatprep.subr.bf16.mxu0 0
      %3277 = vmatpush1.bf16.msra.mxu0 0
      %3278 = vmatprep.subr.bf16.mxu0 0
      %3279 = vmatpush1.bf16.msra.mxu0 0
      %3280 = vmatprep.subr.bf16.mxu0 0
      %3281 = vmatpush1.bf16.msra.mxu0 0
      %3282 = vmatprep.subr.bf16.mxu0 0
      %3283 = vmatpush1.bf16.msra.mxu0 0
      %3284 = vmatprep.subr.bf16.mxu0 0
      %3285 = vmatpush1.bf16.msra.mxu0 0
      %3286 = vmatprep.mubr.bf16.mxu0 0
      %3287 = vmatmul.mubr.bf16.gmra.mrb[0].mxu0 %v655
      %v3288 = vpop.f32.mrb[0].mxu0
      %v3289 = vadd.f32 0.0, %v3288
      %v3290 = vpop.f32.mrb[0].mxu0
      %v3291 = vpop.f32.mrb[0].mxu0
      %v3292 = vadd.f32 0.0, %v3291
      %v3293 = vpop.f32.mrb[0].mxu0
      %3294 = vmatprep.mubr.bf16.mxu0 0
      %3295 = vmatmul.mubr.bf16.gmra.mrb[0].mxu0 %v658
      %v3296 = vpop.f32.mrb[0].mxu0
      %v3297 = vadd.f32 0.0, %v3296
      %v3298 = vpop.f32.mrb[0].mxu0
      %v3299 = vpop.f32.mrb[0].mxu0
      %v3300 = vadd.f32 0.0, %v3299
      %v3301 = vpop.f32.mrb[0].mxu0
      %3302 = vmatprep.mubr.bf16.mxu0 0
      %3303 = vmatmul.mubr.bf16.gmra.mrb[0].mxu0 %v661
      %v3304 = vpop.f32.mrb[0].mxu0
      %v3305 = vadd.f32 0.0, %v3304
      %v3306 = vpop.f32.mrb[0].mxu0
      %v3307 = vpop.f32.mrb[0].mxu0
      %v3308 = vadd.f32 0.0, %v3307
      %v3309 = vpop.f32.mrb[0].mxu0
      %3310 = vmatprep.mubr.bf16.mxu0 0
      %3311 = vmatmul.mubr.bf16.gmra.mrb[0].mxu0 %v664
      %v3312 = vpop.f32.mrb[0].mxu0
      %v3313 = vadd.f32 0.0, %v3312
      %v3314 = vpop.f32.mrb[0].mxu0
      %v3315 = vpop.f32.mrb[0].mxu0
      %v3316 = vadd.f32 0.0, %v3315
      %v3317 = vpop.f32.mrb[0].mxu0
      %3318 = vmatprep.mubr.bf16.mxu0 0
      %3319 = vmatmul.mubr.bf16.gmra.mrb[0].mxu0 %v667
      %v3320 = vpop.f32.mrb[0].mxu0
      %v3321 = vadd.f32 0.0, %v3320
      %v3322 = vpop.f32.mrb[0].mxu0
      %v3323 = vpop.f32.mrb[0].mxu0
      %v3324 = vadd.f32 0.0, %v3323
      %v3325 = vpop.f32.mrb[0].mxu0
      %3326 = vmatprep.mubr.bf16.mxu0 0
      %3327 = vmatmul.mubr.bf16.gmra.mrb[0].mxu0 %v670
      %v3328 = vpop.f32.mrb[0].mxu0
      %v3329 = vadd.f32 0.0, %v3328
      %v3330 = vpop.f32.mrb[0].mxu0
      %v3331 = vpop.f32.mrb[0].mxu0
      %v3332 = vadd.f32 0.0, %v3331
      %v3333 = vpop.f32.mrb[0].mxu0
      %3334 = vmatprep.mubr.bf16.mxu0 0
      %3335 = vmatmul.mubr.bf16.gmra.mrb[0].mxu0 %v673
      %v3336 = vpop.f32.mrb[0].mxu0
      %v3337 = vadd.f32 0.0, %v3336
      %v3338 = vpop.f32.mrb[0].mxu0
      %v3339 = vpop.f32.mrb[0].mxu0
      %v3340 = vadd.f32 0.0, %v3339
      %v3341 = vpop.f32.mrb[0].mxu0
      %3342 = vmatprep.mubr.bf16.mxu0 0
      %3343 = vmatmul.mubr.bf16.gmra.mrb[0].mxu0 %v676
      %v3344 = vpop.f32.mrb[0].mxu0
      %v3345 = vadd.f32 0.0, %v3344
      %v3346 = vpop.f32.mrb[0].mxu0
      %v3347 = vpop.f32.mrb[0].mxu0
      %v3348 = vadd.f32 0.0, %v3347
      %v3349 = vpop.f32.mrb[0].mxu0
      %3350 = vmatprep.mubr.bf16.mxu0 0
      %3351 = vmatmul.mubr.bf16.gmra.mrb[0].mxu0 %v679
      %v3352 = vpop.f32.mrb[0].mxu0
      %v3353 = vadd.f32 0.0, %v3352
      %v3354 = vpop.f32.mrb[0].mxu0
      %v3355 = vpop.f32.mrb[0].mxu0
      %v3356 = vadd.f32 0.0, %v3355
      %v3357 = vpop.f32.mrb[0].mxu0
      %3358 = vmatprep.mubr.bf16.mxu0 0
      %3359 = vmatmul.mubr.bf16.gmra.mrb[0].mxu0 %v682
      %v3360 = vpop.f32.mrb[0].mxu0
      %v3361 = vadd.f32 0.0, %v3360
      %v3362 = vpop.f32.mrb[0].mxu0
      %v3363 = vpop.f32.mrb[0].mxu0
      %v3364 = vadd.f32 0.0, %v3363
      %v3365 = vpop.f32.mrb[0].mxu0
      %3366 = vmatprep.mubr.bf16.mxu0 0
      %3367 = vmatmul.mubr.bf16.gmra.mrb[0].mxu0 %v685
      %v3368 = vpop.f32.mrb[0].mxu0
      %v3369 = vadd.f32 0.0, %v3368
      %v3370 = vpop.f32.mrb[0].mxu0
      %v3371 = vpop.f32.mrb[0].mxu0
      %v3372 = vadd.f32 0.0, %v3371
      %v3373 = vpop.f32.mrb[0].mxu0
      %3374 = vmatprep.mubr.bf16.mxu0 0
      %3375 = vmatmul.mubr.bf16.gmra.mrb[0].mxu0 %v688
      %v3376 = vpop.f32.mrb[0].mxu0
      %v3377 = vadd.f32 0.0, %v3376
      %v3378 = vpop.f32.mrb[0].mxu0
      %v3379 = vpop.f32.mrb[0].mxu0
      %v3380 = vadd.f32 0.0, %v3379
      %v3381 = vpop.f32.mrb[0].mxu0
      %3382 = vmatprep.mubr.bf16.mxu0 0
      %3383 = vmatmul.mubr.bf16.gmra.mrb[0].mxu0 %v691
      %v3384 = vpop.f32.mrb[0].mxu0
      %v3385 = vadd.f32 0.0, %v3384
      %v3386 = vpop.f32.mrb[0].mxu0
      %v3387 = vpop.f32.mrb[0].mxu0
      %v3388 = vadd.f32 0.0, %v3387
      %v3389 = vpop.f32.mrb[0].mxu0
      %3390 = vmatprep.mubr.bf16.mxu0 0
      %3391 = vmatmul.mubr.bf16.gmra.mrb[0].mxu0 %v694
      %v3392 = vpop.f32.mrb[0].mxu0
      %v3393 = vadd.f32 0.0, %v3392
      %v3394 = vpop.f32.mrb[0].mxu0
      %v3395 = vpop.f32.mrb[0].mxu0
      %v3396 = vadd.f32 0.0, %v3395
      %v3397 = vpop.f32.mrb[0].mxu0
      %3398 = vmatprep.mubr.bf16.mxu0 0
      %3399 = vmatmul.mubr.bf16.gmra.mrb[0].mxu0 %v697
      %v3400 = vpop.f32.mrb[0].mxu0
      %v3401 = vadd.f32 0.0, %v3400
      %v3402 = vpop.f32.mrb[0].mxu0
      %v3403 = vpop.f32.mrb[0].mxu0
      %v3404 = vadd.f32 0.0, %v3403
      %v3405 = vpop.f32.mrb[0].mxu0
      %3406 = vmatprep.mubr.bf16.mxu0 0
      %3407 = vmatmul.mubr.bf16.gmra.mrb[0].mxu0 %v700
      %v3408 = vpop.f32.mrb[0].mxu0
      %v3409 = vadd.f32 0.0, %v3408
      %v3410 = vpop.f32.mrb[0].mxu0
      %v3411 = vpop.f32.mrb[0].mxu0
      %v3412 = vadd.f32 0.0, %v3411
      %v3413 = vpop.f32.mrb[0].mxu0
      %3414 = vmatprep.mubr.bf16.mxu0 0
      %3415 = vmatmul.mubr.bf16.gmra.mrb[0].mxu0 %v703
      %v3416 = vpop.f32.mrb[0].mxu0
      %v3417 = vadd.f32 0.0, %v3416
      %v3418 = vpop.f32.mrb[0].mxu0
      %v3419 = vpop.f32.mrb[0].mxu0
      %v3420 = vadd.f32 0.0, %v3419
      %v3421 = vpop.f32.mrb[0].mxu0
      %3422 = vmatprep.mubr.bf16.mxu0 0
      %3423 = vmatmul.mubr.bf16.gmra.mrb[0].mxu0 %v706
      %v3424 = vpop.f32.mrb[0].mxu0
      %v3425 = vadd.f32 0.0, %v3424
      %v3426 = vpop.f32.mrb[0].mxu0
      %v3427 = vpop.f32.mrb[0].mxu0
      %v3428 = vadd.f32 0.0, %v3427
      %v3429 = vpop.f32.mrb[0].mxu0
      %3430 = vmatprep.mubr.bf16.mxu0 0
      %3431 = vmatmul.mubr.bf16.gmra.mrb[0].mxu0 %v709
      %v3432 = vpop.f32.mrb[0].mxu0
      %v3433 = vadd.f32 0.0, %v3432
      %v3434 = vpop.f32.mrb[0].mxu0
      %v3435 = vpop.f32.mrb[0].mxu0
      %v3436 = vadd.f32 0.0, %v3435
      %v3437 = vpop.f32.mrb[0].mxu0
      %3438 = vmatprep.mubr.bf16.mxu0 0
      %3439 = vmatmul.mubr.bf16.gmra.mrb[0].mxu0 %v712
      %v3440 = vpop.f32.mrb[0].mxu0
      %v3441 = vadd.f32 0.0, %v3440
      %v3442 = vpop.f32.mrb[0].mxu0
      %v3443 = vpop.f32.mrb[0].mxu0
      %v3444 = vadd.f32 0.0, %v3443
      %v3445 = vpop.f32.mrb[0].mxu0
      %3446 = vmatprep.mubr.bf16.mxu0 0
      %3447 = vmatmul.mubr.bf16.gmra.mrb[0].mxu0 %v715
      %v3448 = vpop.f32.mrb[0].mxu0
      %v3449 = vadd.f32 0.0, %v3448
      %v3450 = vpop.f32.mrb[0].mxu0
      %v3451 = vpop.f32.mrb[0].mxu0
      %v3452 = vadd.f32 0.0, %v3451
      %v3453 = vpop.f32.mrb[0].mxu0
      %3454 = vmatprep.mubr.bf16.mxu0 0
      %3455 = vmatmul.mubr.bf16.gmra.mrb[0].mxu0 %v718
      %v3456 = vpop.f32.mrb[0].mxu0
      %v3457 = vadd.f32 0.0, %v3456
      %v3458 = vpop.f32.mrb[0].mxu0
      %v3459 = vpop.f32.mrb[0].mxu0
      %v3460 = vadd.f32 0.0, %v3459
      %v3461 = vpop.f32.mrb[0].mxu0
      %3462 = vmatprep.mubr.bf16.mxu0 0
      %3463 = vmatmul.mubr.bf16.gmra.mrb[0].mxu0 %v721
      %v3464 = vpop.f32.mrb[0].mxu0
      %v3465 = vadd.f32 0.0, %v3464
      %v3466 = vpop.f32.mrb[0].mxu0
      %v3467 = vpop.f32.mrb[0].mxu0
      %v3468 = vadd.f32 0.0, %v3467
      %v3469 = vpop.f32.mrb[0].mxu0
      %3470 = vmatprep.mubr.bf16.mxu0 0
      %3471 = vmatmul.mubr.bf16.gmra.mrb[0].mxu0 %v724
      %v3472 = vpop.f32.mrb[0].mxu0
      %v3473 = vadd.f32 0.0, %v3472
      %v3474 = vpop.f32.mrb[0].mxu0
      %v3475 = vpop.f32.mrb[0].mxu0
      %v3476 = vadd.f32 0.0, %v3475
      %v3477 = vpop.f32.mrb[0].mxu0
      %3478 = vmatprep.mubr.bf16.mxu0 0
      %3479 = vmatmul.mubr.bf16.gmra.mrb[0].mxu0 %v727
      %v3480 = vpop.f32.mrb[0].mxu0
      %v3481 = vadd.f32 0.0, %v3480
      %v3482 = vpop.f32.mrb[0].mxu0
      %v3483 = vpop.f32.mrb[0].mxu0
      %v3484 = vadd.f32 0.0, %v3483
      %v3485 = vpop.f32.mrb[0].mxu0
      %3486 = vmatprep.mubr.bf16.mxu0 0
      %3487 = vmatmul.mubr.bf16.gmra.mrb[0].mxu0 %v730
      %v3488 = vpop.f32.mrb[0].mxu0
      %v3489 = vadd.f32 0.0, %v3488
      %v3490 = vpop.f32.mrb[0].mxu0
      %v3491 = vpop.f32.mrb[0].mxu0
      %v3492 = vadd.f32 0.0, %v3491
      %v3493 = vpop.f32.mrb[0].mxu0
      %3494 = vmatprep.mubr.bf16.mxu0 0
      %3495 = vmatmul.mubr.bf16.gmra.mrb[0].mxu0 %v733
      %v3496 = vpop.f32.mrb[0].mxu0
      %v3497 = vadd.f32 0.0, %v3496
      %v3498 = vpop.f32.mrb[0].mxu0
      %v3499 = vpop.f32.mrb[0].mxu0
      %v3500 = vadd.f32 0.0, %v3499
      %v3501 = vpop.f32.mrb[0].mxu0
      %3502 = vmatprep.mubr.bf16.mxu0 0
      %3503 = vmatmul.mubr.bf16.gmra.mrb[0].mxu0 %v736
      %v3504 = vpop.f32.mrb[0].mxu0
      %v3505 = vadd.f32 0.0, %v3504
      %v3506 = vpop.f32.mrb[0].mxu0
      %v3507 = vpop.f32.mrb[0].mxu0
      %v3508 = vadd.f32 0.0, %v3507
      %v3509 = vpop.f32.mrb[0].mxu0
      %3510 = vmatprep.mubr.bf16.mxu0 0
      %3511 = vmatmul.mubr.bf16.gmra.mrb[0].mxu0 %v739
      %v3512 = vpop.f32.mrb[0].mxu0
      %v3513 = vadd.f32 0.0, %v3512
      %v3514 = vpop.f32.mrb[0].mxu0
      %v3515 = vpop.f32.mrb[0].mxu0
      %v3516 = vadd.f32 0.0, %v3515
      %v3517 = vpop.f32.mrb[0].mxu0
      %3518 = vmatprep.mubr.bf16.mxu0 0
      %3519 = vmatmul.mubr.bf16.gmra.mrb[0].mxu0 %v742
      %v3520 = vpop.f32.mrb[0].mxu0
      %v3521 = vadd.f32 0.0, %v3520
      %v3522 = vpop.f32.mrb[0].mxu0
      %v3523 = vpop.f32.mrb[0].mxu0
      %v3524 = vadd.f32 0.0, %v3523
      %v3525 = vpop.f32.mrb[0].mxu0
      %3526 = vmatprep.mubr.bf16.mxu0 0
      %3527 = vmatmul.mubr.bf16.gmra.mrb[0].mxu0 %v2530
      %v3528 = vpop.f32.mrb[0].mxu0
      %v3529 = vadd.f32 0.0, %v3528
      %v3530 = vpop.f32.mrb[0].mxu0
      %v3531 = vpop.f32.mrb[0].mxu0
      %v3532 = vadd.f32 0.0, %v3531
      %v3533 = vpop.f32.mrb[0].mxu0
      %3534 = vmatprep.mubr.bf16.mxu0 0
      %3535 = vmatmul.mubr.bf16.gmra.mrb[0].mxu0 %v2533
      %v3536 = vpop.f32.mrb[0].mxu0
      %v3537 = vadd.f32 0.0, %v3536
      %v3538 = vpop.f32.mrb[0].mxu0
      %v3539 = vpop.f32.mrb[0].mxu0
      %v3540 = vadd.f32 0.0, %v3539
      %v3541 = vpop.f32.mrb[0].mxu0
      %3542 = vdwg.mxu0
      %v3543 = vadd.f32 %v2263, %v3289
      %v3544 = vadd.f32 %v2266, %v3292
      %v3545 = vadd.f32 %v2271, %v3297
      %v3546 = vadd.f32 %v2274, %v3300
      %v3547 = vadd.f32 %v2279, %v3305
      %v3548 = vadd.f32 %v2282, %v3308
      %v3549 = vadd.f32 %v2287, %v3313
      %v3550 = vadd.f32 %v2290, %v3316
      %v3551 = vadd.f32 %v2295, %v3321
      %v3552 = vadd.f32 %v2298, %v3324
      %v3553 = vadd.f32 %v2303, %v3329
      %v3554 = vadd.f32 %v2306, %v3332
      %v3555 = vadd.f32 %v2311, %v3337
      %v3556 = vadd.f32 %v2314, %v3340
      %v3557 = vadd.f32 %v2319, %v3345
      %v3558 = vadd.f32 %v2322, %v3348
      %v3559 = vadd.f32 %v2327, %v3353
      %v3560 = vadd.f32 %v2330, %v3356
      %v3561 = vadd.f32 %v2335, %v3361
      %v3562 = vadd.f32 %v2338, %v3364
      %v3563 = vadd.f32 %v2343, %v3369
      %v3564 = vadd.f32 %v2346, %v3372
      %v3565 = vadd.f32 %v2351, %v3377
      %v3566 = vadd.f32 %v2354, %v3380
      %v3567 = vadd.f32 %v2359, %v3385
      %v3568 = vadd.f32 %v2362, %v3388
      %v3569 = vadd.f32 %v2367, %v3393
      %v3570 = vadd.f32 %v2370, %v3396
      %v3571 = vadd.f32 %v2375, %v3401
      %v3572 = vadd.f32 %v2378, %v3404
      %v3573 = vadd.f32 %v2383, %v3409
      %v3574 = vadd.f32 %v2386, %v3412
      %v3575 = vadd.f32 %v2391, %v3417
      %v3576 = vadd.f32 %v2394, %v3420
      %v3577 = vadd.f32 %v2399, %v3425
      %v3578 = vadd.f32 %v2402, %v3428
      %v3579 = vadd.f32 %v2407, %v3433
      %v3580 = vadd.f32 %v2410, %v3436
      %v3581 = vadd.f32 %v2415, %v3441
      %v3582 = vadd.f32 %v2418, %v3444
      %v3583 = vadd.f32 %v2423, %v3449
      %v3584 = vadd.f32 %v2426, %v3452
      %v3585 = vadd.f32 %v2431, %v3457
      %v3586 = vadd.f32 %v2434, %v3460
      %v3587 = vadd.f32 %v2439, %v3465
      %v3588 = vadd.f32 %v2442, %v3468
      %v3589 = vadd.f32 %v2447, %v3473
      %v3590 = vadd.f32 %v2450, %v3476
      %v3591 = vadd.f32 %v2455, %v3481
      %v3592 = vadd.f32 %v2458, %v3484
      %v3593 = vadd.f32 %v2463, %v3489
      %v3594 = vadd.f32 %v2466, %v3492
      %v3595 = vadd.f32 %v2471, %v3497
      %v3596 = vadd.f32 %v2474, %v3500
      %v3597 = vadd.f32 %v2479, %v3505
      %v3598 = vadd.f32 %v2482, %v3508
      %v3599 = vadd.f32 %v2487, %v3513
      %v3600 = vadd.f32 %v2490, %v3516
      %v3601 = vadd.f32 %v2495, %v3521
      %v3602 = vadd.f32 %v2498, %v3524
      %v3603 = vadd.f32 %v2503, %v3529
      %v3604 = vadd.f32 %v2506, %v3532
      %v3605 = vadd.f32 %v2511, %v3537
      %v3606 = vadd.f32 %v2514, %v3540
      %v3607 = vlaneseq
      %v3608 = vshrl.u32 %v3607, 7
      %v3609 = vadd.s32 %v3608, 8
      %v3610 = vadd.s32 %v3608, 16
      %v3611 = vadd.s32 %v3608, 24
      %vm3612 = vcmp.ge.s32.totalorder %v3608, 1
      %vm3613 = vcmp.ge.s32.totalorder %v3609, 1
      %vm3614 = vcmp.ge.s32.totalorder %v3610, 1
      %vm3615 = vcmp.ge.s32.totalorder %v3611, 1
      %v3616 = vrot.slane %v2827, 7
      %v3617 = vrot.slane %v2831, 7
      %v3618 = vrot.slane %v2835, 7
      %v3619 = vrot.slane %v2839, 7
      %v3620 = vrot.slane %v2843, 7
      %v3621 = vrot.slane %v2847, 7
      %v3622 = vrot.slane %v2851, 7
      %v3623 = vrot.slane %v2855, 7
      %v3624 = vrot.slane %v2859, 7
      %v3625 = vrot.slane %v2863, 7
      %v3626 = vrot.slane %v2867, 7
      %v3627 = vrot.slane %v2871, 7
      %v3628 = vrot.slane %v2875, 7
      %v3629 = vrot.slane %v2879, 7
      %v3630 = vrot.slane %v2883, 7
      %v3631 = vrot.slane %v2887, 7
      %v3632 = vrot.slane %v2828, 7
      %v3633 = vrot.slane %v2832, 7
      %v3634 = vrot.slane %v2836, 7
      %v3635 = vrot.slane %v2840, 7
      %v3636 = vrot.slane %v2844, 7
      %v3637 = vrot.slane %v2848, 7
      %v3638 = vrot.slane %v2852, 7
      %v3639 = vrot.slane %v2856, 7
      %v3640 = vrot.slane %v2860, 7
      %v3641 = vrot.slane %v2864, 7
      %v3642 = vrot.slane %v2868, 7
      %v3643 = vrot.slane %v2872, 7
      %v3644 = vrot.slane %v2876, 7
      %v3645 = vrot.slane %v2880, 7
      %v3646 = vrot.slane %v2884, 7
      %v3647 = vrot.slane %v2888, 7
      %v3648 = vrot.slane %v2829, 7
      %v3649 = vrot.slane %v2833, 7
      %v3650 = vrot.slane %v2837, 7
      %v3651 = vrot.slane %v2841, 7
      %v3652 = vrot.slane %v2845, 7
      %v3653 = vrot.slane %v2849, 7
      %v3654 = vrot.slane %v2853, 7
      %v3655 = vrot.slane %v2857, 7
      %v3656 = vrot.slane %v2861, 7
      %v3657 = vrot.slane %v2865, 7
      %v3658 = vrot.slane %v2869, 7
      %v3659 = vrot.slane %v2873, 7
      %v3660 = vrot.slane %v2877, 7
      %v3661 = vrot.slane %v2881, 7
      %v3662 = vrot.slane %v2885, 7
      %v3663 = vrot.slane %v2889, 7
      %v3664 = vrot.slane %v2830, 7
      %v3665 = vrot.slane %v2834, 7
      %v3666 = vrot.slane %v2838, 7
      %v3667 = vrot.slane %v2842, 7
      %v3668 = vrot.slane %v2846, 7
      %v3669 = vrot.slane %v2850, 7
      %v3670 = vrot.slane %v2854, 7
      %v3671 = vrot.slane %v2858, 7
      %v3672 = vrot.slane %v2862, 7
      %v3673 = vrot.slane %v2866, 7
      %v3674 = vrot.slane %v2870, 7
      %v3675 = vrot.slane %v2874, 7
      %v3676 = vrot.slane %v2878, 7
      %v3677 = vrot.slane %v2882, 7
      %v3678 = vrot.slane %v2886, 7
      %v3679 = vrot.slane %v2890, 7
      %vm3680 = vcmp.lt.s32.totalorder %v3608, 1
      %v3681 = vsel %vm3680, %v3648, %v3664
      %v3682 = vsel %vm3680, %v3649, %v3665
      %v3683 = vsel %vm3680, %v3650, %v3666
      %v3684 = vsel %vm3680, %v3651, %v3667
      %v3685 = vsel %vm3680, %v3652, %v3668
      %v3686 = vsel %vm3680, %v3653, %v3669
      %v3687 = vsel %vm3680, %v3654, %v3670
      %v3688 = vsel %vm3680, %v3655, %v3671
      %v3689 = vsel %vm3680, %v3656, %v3672
      %v3690 = vsel %vm3680, %v3657, %v3673
      %v3691 = vsel %vm3680, %v3658, %v3674
      %v3692 = vsel %vm3680, %v3659, %v3675
      %v3693 = vsel %vm3680, %v3660, %v3676
      %v3694 = vsel %vm3680, %v3661, %v3677
      %v3695 = vsel %vm3680, %v3662, %v3678
      %v3696 = vsel %vm3680, %v3663, %v3679
      %v3697 = vsel %vm3680, %v3632, %v3648
      %v3698 = vsel %vm3680, %v3633, %v3649
      %v3699 = vsel %vm3680, %v3634, %v3650
      %v3700 = vsel %vm3680, %v3635, %v3651
      %v3701 = vsel %vm3680, %v3636, %v3652
      %v3702 = vsel %vm3680, %v3637, %v3653
      %v3703 = vsel %vm3680, %v3638, %v3654
      %v3704 = vsel %vm3680, %v3639, %v3655
      %v3705 = vsel %vm3680, %v3640, %v3656
      %v3706 = vsel %vm3680, %v3641, %v3657
      %v3707 = vsel %vm3680, %v3642, %v3658
      %v3708 = vsel %vm3680, %v3643, %v3659
      %v3709 = vsel %vm3680, %v3644, %v3660
      %v3710 = vsel %vm3680, %v3645, %v3661
      %v3711 = vsel %vm3680, %v3646, %v3662
      %v3712 = vsel %vm3680, %v3647, %v3663
      %v3713 = vsel %vm3680, %v3616, %v3632
      %v3714 = vsel %vm3680, %v3617, %v3633
      %v3715 = vsel %vm3680, %v3618, %v3634
      %v3716 = vsel %vm3680, %v3619, %v3635
      %v3717 = vsel %vm3680, %v3620, %v3636
      %v3718 = vsel %vm3680, %v3621, %v3637
      %v3719 = vsel %vm3680, %v3622, %v3638
      %v3720 = vsel %vm3680, %v3623, %v3639
      %v3721 = vsel %vm3680, %v3624, %v3640
      %v3722 = vsel %vm3680, %v3625, %v3641
      %v3723 = vsel %vm3680, %v3626, %v3642
      %v3724 = vsel %vm3680, %v3627, %v3643
      %v3725 = vsel %vm3680, %v3628, %v3644
      %v3726 = vsel %vm3680, %v3629, %v3645
      %v3727 = vsel %vm3680, %v3630, %v3646
      %v3728 = vsel %vm3680, %v3631, %v3647
      %v3729 = vsel %vm3680, %v3664, %v3616
      %v3730 = vsel %vm3680, %v3665, %v3617
      %v3731 = vsel %vm3680, %v3666, %v3618
      %v3732 = vsel %vm3680, %v3667, %v3619
      %v3733 = vsel %vm3680, %v3668, %v3620
      %v3734 = vsel %vm3680, %v3669, %v3621
      %v3735 = vsel %vm3680, %v3670, %v3622
      %v3736 = vsel %vm3680, %v3671, %v3623
      %v3737 = vsel %vm3680, %v3672, %v3624
      %v3738 = vsel %vm3680, %v3673, %v3625
      %v3739 = vsel %vm3680, %v3674, %v3626
      %v3740 = vsel %vm3680, %v3675, %v3627
      %v3741 = vsel %vm3680, %v3676, %v3628
      %v3742 = vsel %vm3680, %v3677, %v3629
      %v3743 = vsel %vm3680, %v3678, %v3630
      %v3744 = vsel %vm3680, %v3679, %v3631
      %v3745 = vsel %vm3612, 1, 0
      %v3746 = vsel %vm3613, 1, 0
      %v3747 = vsel %vm3614, 1, 0
      %v3748 = vsel %vm3615, 1, 0
      %vm3749 = vcmp.eq.s32.totalorder %v3745, 1
      %vm3750 = vcmp.eq.s32.totalorder %v3746, 1
      %vm3751 = vcmp.eq.s32.totalorder %v3747, 1
      %vm3752 = vcmp.eq.s32.totalorder %v3748, 1
      %v3753 = vsel %vm3749, %v3729, 0.0
      %v3754 = vsel %vm3750, %v3713, 0.0
      %v3755 = vsel %vm3751, %v3697, 0.0
      %v3756 = vsel %vm3752, %v3681, 0.0
      %v3757 = vsel %vm3749, %v3730, 0.0
      %v3758 = vsel %vm3750, %v3714, 0.0
      %v3759 = vsel %vm3751, %v3698, 0.0
      %v3760 = vsel %vm3752, %v3682, 0.0
      %v3761 = vsel %vm3749, %v3731, 0.0
      %v3762 = vsel %vm3750, %v3715, 0.0
      %v3763 = vsel %vm3751, %v3699, 0.0
      %v3764 = vsel %vm3752, %v3683, 0.0
      %v3765 = vsel %vm3749, %v3732, 0.0
      %v3766 = vsel %vm3750, %v3716, 0.0
      %v3767 = vsel %vm3751, %v3700, 0.0
      %v3768 = vsel %vm3752, %v3684, 0.0
      %v3769 = vsel %vm3749, %v3733, 0.0
      %v3770 = vsel %vm3750, %v3717, 0.0
      %v3771 = vsel %vm3751, %v3701, 0.0
      %v3772 = vsel %vm3752, %v3685, 0.0
      %v3773 = vsel %vm3749, %v3734, 0.0
      %v3774 = vsel %vm3750, %v3718, 0.0
      %v3775 = vsel %vm3751, %v3702, 0.0
      %v3776 = vsel %vm3752, %v3686, 0.0
      %v3777 = vsel %vm3749, %v3735, 0.0
      %v3778 = vsel %vm3750, %v3719, 0.0
      %v3779 = vsel %vm3751, %v3703, 0.0
      %v3780 = vsel %vm3752, %v3687, 0.0
      %v3781 = vsel %vm3749, %v3736, 0.0
      %v3782 = vsel %vm3750, %v3720, 0.0
      %v3783 = vsel %vm3751, %v3704, 0.0
      %v3784 = vsel %vm3752, %v3688, 0.0
      %v3785 = vsel %vm3749, %v3737, 0.0
      %v3786 = vsel %vm3750, %v3721, 0.0
      %v3787 = vsel %vm3751, %v3705, 0.0
      %v3788 = vsel %vm3752, %v3689, 0.0
      %v3789 = vsel %vm3749, %v3738, 0.0
      %v3790 = vsel %vm3750, %v3722, 0.0
      %v3791 = vsel %vm3751, %v3706, 0.0
      %v3792 = vsel %vm3752, %v3690, 0.0
      %v3793 = vsel %vm3749, %v3739, 0.0
      %v3794 = vsel %vm3750, %v3723, 0.0
      %v3795 = vsel %vm3751, %v3707, 0.0
      %v3796 = vsel %vm3752, %v3691, 0.0
      %v3797 = vsel %vm3749, %v3740, 0.0
      %v3798 = vsel %vm3750, %v3724, 0.0
      %v3799 = vsel %vm3751, %v3708, 0.0
      %v3800 = vsel %vm3752, %v3692, 0.0
      %v3801 = vsel %vm3749, %v3741, 0.0
      %v3802 = vsel %vm3750, %v3725, 0.0
      %v3803 = vsel %vm3751, %v3709, 0.0
      %v3804 = vsel %vm3752, %v3693, 0.0
      %v3805 = vsel %vm3749, %v3742, 0.0
      %v3806 = vsel %vm3750, %v3726, 0.0
      %v3807 = vsel %vm3751, %v3710, 0.0
      %v3808 = vsel %vm3752, %v3694, 0.0
      %v3809 = vsel %vm3749, %v3743, 0.0
      %v3810 = vsel %vm3750, %v3727, 0.0
      %v3811 = vsel %vm3751, %v3711, 0.0
      %v3812 = vsel %vm3752, %v3695, 0.0
      %v3813 = vsel %vm3749, %v3744, 0.0
      %v3814 = vsel %vm3750, %v3728, 0.0
      %v3815 = vsel %vm3751, %v3712, 0.0
      %v3816 = vsel %vm3752, %v3696, 0.0
      %vm3817 = vcmp.le.s32.totalorder %v3608, 30
      %vm3818 = vcmp.le.s32.totalorder %v3609, 30
      %vm3819 = vcmp.le.s32.totalorder %v3610, 30
      %vm3820 = vcmp.le.s32.totalorder %v3611, 30
      %v3821 = vrot.slane %v3543, 1
      %v3822 = vrot.slane %v3547, 1
      %v3823 = vrot.slane %v3551, 1
      %v3824 = vrot.slane %v3555, 1
      %v3825 = vrot.slane %v3559, 1
      %v3826 = vrot.slane %v3563, 1
      %v3827 = vrot.slane %v3567, 1
      %v3828 = vrot.slane %v3571, 1
      %v3829 = vrot.slane %v3575, 1
      %v3830 = vrot.slane %v3579, 1
      %v3831 = vrot.slane %v3583, 1
      %v3832 = vrot.slane %v3587, 1
      %v3833 = vrot.slane %v3591, 1
      %v3834 = vrot.slane %v3595, 1
      %v3835 = vrot.slane %v3599, 1
      %v3836 = vrot.slane %v3603, 1
      %v3837 = vrot.slane %v3544, 1
      %v3838 = vrot.slane %v3548, 1
      %v3839 = vrot.slane %v3552, 1
      %v3840 = vrot.slane %v3556, 1
      %v3841 = vrot.slane %v3560, 1
      %v3842 = vrot.slane %v3564, 1
      %v3843 = vrot.slane %v3568, 1
      %v3844 = vrot.slane %v3572, 1
      %v3845 = vrot.slane %v3576, 1
      %v3846 = vrot.slane %v3580, 1
      %v3847 = vrot.slane %v3584, 1
      %v3848 = vrot.slane %v3588, 1
      %v3849 = vrot.slane %v3592, 1
      %v3850 = vrot.slane %v3596, 1
      %v3851 = vrot.slane %v3600, 1
      %v3852 = vrot.slane %v3604, 1
      %v3853 = vrot.slane %v3545, 1
      %v3854 = vrot.slane %v3549, 1
      %v3855 = vrot.slane %v3553, 1
      %v3856 = vrot.slane %v3557, 1
      %v3857 = vrot.slane %v3561, 1
      %v3858 = vrot.slane %v3565, 1
      %v3859 = vrot.slane %v3569, 1
      %v3860 = vrot.slane %v3573, 1
      %v3861 = vrot.slane %v3577, 1
      %v3862 = vrot.slane %v3581, 1
      %v3863 = vrot.slane %v3585, 1
      %v3864 = vrot.slane %v3589, 1
      %v3865 = vrot.slane %v3593, 1
      %v3866 = vrot.slane %v3597, 1
      %v3867 = vrot.slane %v3601, 1
      %v3868 = vrot.slane %v3605, 1
      %v3869 = vrot.slane %v3546, 1
      %v3870 = vrot.slane %v3550, 1
      %v3871 = vrot.slane %v3554, 1
      %v3872 = vrot.slane %v3558, 1
      %v3873 = vrot.slane %v3562, 1
      %v3874 = vrot.slane %v3566, 1
      %v3875 = vrot.slane %v3570, 1
      %v3876 = vrot.slane %v3574, 1
      %v3877 = vrot.slane %v3578, 1
      %v3878 = vrot.slane %v3582, 1
      %v3879 = vrot.slane %v3586, 1
      %v3880 = vrot.slane %v3590, 1
      %v3881 = vrot.slane %v3594, 1
      %v3882 = vrot.slane %v3598, 1
      %v3883 = vrot.slane %v3602, 1
      %v3884 = vrot.slane %v3606, 1
      %vm3885 = vcmp.lt.s32.totalorder %v3608, 7
      %v3886 = vsel %vm3885, %v3853, %v3869
      %v3887 = vsel %vm3885, %v3854, %v3870
      %v3888 = vsel %vm3885, %v3855, %v3871
      %v3889 = vsel %vm3885, %v3856, %v3872
      %v3890 = vsel %vm3885, %v3857, %v3873
      %v3891 = vsel %vm3885, %v3858, %v3874
      %v3892 = vsel %vm3885, %v3859, %v3875
      %v3893 = vsel %vm3885, %v3860, %v3876
      %v3894 = vsel %vm3885, %v3861, %v3877
      %v3895 = vsel %vm3885, %v3862, %v3878
      %v3896 = vsel %vm3885, %v3863, %v3879
      %v3897 = vsel %vm3885, %v3864, %v3880
      %v3898 = vsel %vm3885, %v3865, %v3881
      %v3899 = vsel %vm3885, %v3866, %v3882
      %v3900 = vsel %vm3885, %v3867, %v3883
      %v3901 = vsel %vm3885, %v3868, %v3884
      %v3902 = vsel %vm3885, %v3837, %v3853
      %v3903 = vsel %vm3885, %v3838, %v3854
      %v3904 = vsel %vm3885, %v3839, %v3855
      %v3905 = vsel %vm3885, %v3840, %v3856
      %v3906 = vsel %vm3885, %v3841, %v3857
      %v3907 = vsel %vm3885, %v3842, %v3858
      %v3908 = vsel %vm3885, %v3843, %v3859
      %v3909 = vsel %vm3885, %v3844, %v3860
      %v3910 = vsel %vm3885, %v3845, %v3861
      %v3911 = vsel %vm3885, %v3846, %v3862
      %v3912 = vsel %vm3885, %v3847, %v3863
      %v3913 = vsel %vm3885, %v3848, %v3864
      %v3914 = vsel %vm3885, %v3849, %v3865
      %v3915 = vsel %vm3885, %v3850, %v3866
      %v3916 = vsel %vm3885, %v3851, %v3867
      %v3917 = vsel %vm3885, %v3852, %v3868
      %v3918 = vsel %vm3885, %v3821, %v3837
      %v3919 = vsel %vm3885, %v3822, %v3838
      %v3920 = vsel %vm3885, %v3823, %v3839
      %v3921 = vsel %vm3885, %v3824, %v3840
      %v3922 = vsel %vm3885, %v3825, %v3841
      %v3923 = vsel %vm3885, %v3826, %v3842
      %v3924 = vsel %vm3885, %v3827, %v3843
      %v3925 = vsel %vm3885, %v3828, %v3844
      %v3926 = vsel %vm3885, %v3829, %v3845
      %v3927 = vsel %vm3885, %v3830, %v3846
      %v3928 = vsel %vm3885, %v3831, %v3847
      %v3929 = vsel %vm3885, %v3832, %v3848
      %v3930 = vsel %vm3885, %v3833, %v3849
      %v3931 = vsel %vm3885, %v3834, %v3850
      %v3932 = vsel %vm3885, %v3835, %v3851
      %v3933 = vsel %vm3885, %v3836, %v3852
      %v3934 = vsel %vm3885, %v3869, %v3821
      %v3935 = vsel %vm3885, %v3870, %v3822
      %v3936 = vsel %vm3885, %v3871, %v3823
      %v3937 = vsel %vm3885, %v3872, %v3824
      %v3938 = vsel %vm3885, %v3873, %v3825
      %v3939 = vsel %vm3885, %v3874, %v3826
      %v3940 = vsel %vm3885, %v3875, %v3827
      %v3941 = vsel %vm3885, %v3876, %v3828
      %v3942 = vsel %vm3885, %v3877, %v3829
      %v3943 = vsel %vm3885, %v3878, %v3830
      %v3944 = vsel %vm3885, %v3879, %v3831
      %v3945 = vsel %vm3885, %v3880, %v3832
      %v3946 = vsel %vm3885, %v3881, %v3833
      %v3947 = vsel %vm3885, %v3882, %v3834
      %v3948 = vsel %vm3885, %v3883, %v3835
      %v3949 = vsel %vm3885, %v3884, %v3836
      %v3950 = vsel %vm3817, 1, 0
      %v3951 = vsel %vm3818, 1, 0
      %v3952 = vsel %vm3819, 1, 0
      %v3953 = vsel %vm3820, 1, 0
      %vm3954 = vcmp.eq.s32.totalorder %v3950, 1
      %vm3955 = vcmp.eq.s32.totalorder %v3951, 1
      %vm3956 = vcmp.eq.s32.totalorder %v3952, 1
      %vm3957 = vcmp.eq.s32.totalorder %v3953, 1
      %v3958 = vsel %vm3954, %v3918, 0.0
      %v3959 = vsel %vm3955, %v3902, 0.0
      %v3960 = vsel %vm3956, %v3886, 0.0
      %v3961 = vsel %vm3957, %v3934, 0.0
      %v3962 = vsel %vm3954, %v3919, 0.0
      %v3963 = vsel %vm3955, %v3903, 0.0
      %v3964 = vsel %vm3956, %v3887, 0.0
      %v3965 = vsel %vm3957, %v3935, 0.0
      %v3966 = vsel %vm3954, %v3920, 0.0
      %v3967 = vsel %vm3955, %v3904, 0.0
      %v3968 = vsel %vm3956, %v3888, 0.0
      %v3969 = vsel %vm3957, %v3936, 0.0
      %v3970 = vsel %vm3954, %v3921, 0.0
      %v3971 = vsel %vm3955, %v3905, 0.0
      %v3972 = vsel %vm3956, %v3889, 0.0
      %v3973 = vsel %vm3957, %v3937, 0.0
      %v3974 = vsel %vm3954, %v3922, 0.0
      %v3975 = vsel %vm3955, %v3906, 0.0
      %v3976 = vsel %vm3956, %v3890, 0.0
      %v3977 = vsel %vm3957, %v3938, 0.0
      %v3978 = vsel %vm3954, %v3923, 0.0
      %v3979 = vsel %vm3955, %v3907, 0.0
      %v3980 = vsel %vm3956, %v3891, 0.0
      %v3981 = vsel %vm3957, %v3939, 0.0
      %v3982 = vsel %vm3954, %v3924, 0.0
      %v3983 = vsel %vm3955, %v3908, 0.0
      %v3984 = vsel %vm3956, %v3892, 0.0
      %v3985 = vsel %vm3957, %v3940, 0.0
      %v3986 = vsel %vm3954, %v3925, 0.0
      %v3987 = vsel %vm3955, %v3909, 0.0
      %v3988 = vsel %vm3956, %v3893, 0.0
      %v3989 = vsel %vm3957, %v3941, 0.0
      %v3990 = vsel %vm3954, %v3926, 0.0
      %v3991 = vsel %vm3955, %v3910, 0.0
      %v3992 = vsel %vm3956, %v3894, 0.0
      %v3993 = vsel %vm3957, %v3942, 0.0
      %v3994 = vsel %vm3954, %v3927, 0.0
      %v3995 = vsel %vm3955, %v3911, 0.0
      %v3996 = vsel %vm3956, %v3895, 0.0
      %v3997 = vsel %vm3957, %v3943, 0.0
      %v3998 = vsel %vm3954, %v3928, 0.0
      %v3999 = vsel %vm3955, %v3912, 0.0
      %v4000 = vsel %vm3956, %v3896, 0.0
      %v4001 = vsel %vm3957, %v3944, 0.0
      %v4002 = vsel %vm3954, %v3929, 0.0
      %v4003 = vsel %vm3955, %v3913, 0.0
      %v4004 = vsel %vm3956, %v3897, 0.0
      %v4005 = vsel %vm3957, %v3945, 0.0
      %v4006 = vsel %vm3954, %v3930, 0.0
      %v4007 = vsel %vm3955, %v3914, 0.0
      %v4008 = vsel %vm3956, %v3898, 0.0
      %v4009 = vsel %vm3957, %v3946, 0.0
      %v4010 = vsel %vm3954, %v3931, 0.0
      %v4011 = vsel %vm3955, %v3915, 0.0
      %v4012 = vsel %vm3956, %v3899, 0.0
      %v4013 = vsel %vm3957, %v3947, 0.0
      %v4014 = vsel %vm3954, %v3932, 0.0
      %v4015 = vsel %vm3955, %v3916, 0.0
      %v4016 = vsel %vm3956, %v3900, 0.0
      %v4017 = vsel %vm3957, %v3948, 0.0
      %v4018 = vsel %vm3954, %v3933, 0.0
      %v4019 = vsel %vm3955, %v3917, 0.0
      %v4020 = vsel %vm3956, %v3901, 0.0
      %v4021 = vsel %vm3957, %v3949, 0.0
      %v4022 = vadd.f32 %v3185, %v3753
      %v4023 = vadd.f32 %v3186, %v3754
      %v4024 = vadd.f32 %v3187, %v3755
      %v4025 = vadd.f32 %v3188, %v3756
      %v4026 = vadd.f32 %v3189, %v3757
      %v4027 = vadd.f32 %v3190, %v3758
      %v4028 = vadd.f32 %v3191, %v3759
      %v4029 = vadd.f32 %v3192, %v3760
      %v4030 = vadd.f32 %v3193, %v3761
      %v4031 = vadd.f32 %v3194, %v3762
      %v4032 = vadd.f32 %v3195, %v3763
      %v4033 = vadd.f32 %v3196, %v3764
      %v4034 = vadd.f32 %v3197, %v3765
      %v4035 = vadd.f32 %v3198, %v3766
      %v4036 = vadd.f32 %v3199, %v3767
      %v4037 = vadd.f32 %v3200, %v3768
      %v4038 = vadd.f32 %v3201, %v3769
      %v4039 = vadd.f32 %v3202, %v3770
      %v4040 = vadd.f32 %v3203, %v3771
      %v4041 = vadd.f32 %v3204, %v3772
      %v4042 = vadd.f32 %v3205, %v3773
      %v4043 = vadd.f32 %v3206, %v3774
      %v4044 = vadd.f32 %v3207, %v3775
      %v4045 = vadd.f32 %v3208, %v3776
      %v4046 = vadd.f32 %v3209, %v3777
      %v4047 = vadd.f32 %v3210, %v3778
      %v4048 = vadd.f32 %v3211, %v3779
      %v4049 = vadd.f32 %v3212, %v3780
      %v4050 = vadd.f32 %v3213, %v3781
      %v4051 = vadd.f32 %v3214, %v3782
      %v4052 = vadd.f32 %v3215, %v3783
      %v4053 = vadd.f32 %v3216, %v3784
      %v4054 = vadd.f32 %v3217, %v3785
      %v4055 = vadd.f32 %v3218, %v3786
      %v4056 = vadd.f32 %v3219, %v3787
      %v4057 = vadd.f32 %v3220, %v3788
      %v4058 = vadd.f32 %v3221, %v3789
      %v4059 = vadd.f32 %v3222, %v3790
      %v4060 = vadd.f32 %v3223, %v3791
      %v4061 = vadd.f32 %v3224, %v3792
      %v4062 = vadd.f32 %v3225, %v3793
      %v4063 = vadd.f32 %v3226, %v3794
      %v4064 = vadd.f32 %v3227, %v3795
      %v4065 = vadd.f32 %v3228, %v3796
      %v4066 = vadd.f32 %v3229, %v3797
      %v4067 = vadd.f32 %v3230, %v3798
      %v4068 = vadd.f32 %v3231, %v3799
      %v4069 = vadd.f32 %v3232, %v3800
      %v4070 = vadd.f32 %v3233, %v3801
      %v4071 = vadd.f32 %v3234, %v3802
      %v4072 = vadd.f32 %v3235, %v3803
      %v4073 = vadd.f32 %v3236, %v3804
      %v4074 = vadd.f32 %v3237, %v3805
      %v4075 = vadd.f32 %v3238, %v3806
      %v4076 = vadd.f32 %v3239, %v3807
      %v4077 = vadd.f32 %v3240, %v3808
      %v4078 = vadd.f32 %v3241, %v3809
      %v4079 = vadd.f32 %v3242, %v3810
      %v4080 = vadd.f32 %v3243, %v3811
      %v4081 = vadd.f32 %v3244, %v3812
      %v4082 = vadd.f32 %v3245, %v3813
      %v4083 = vadd.f32 %v3246, %v3814
      %v4084 = vadd.f32 %v3247, %v3815
      %v4085 = vadd.f32 %v3248, %v3816
      %v4086 = vadd.f32 %v4022, %v3958
      %v4087 = vadd.f32 %v4023, %v3959
      %v4088 = vadd.f32 %v4024, %v3960
      %v4089 = vadd.f32 %v4025, %v3961
      %v4090 = vadd.f32 %v4026, %v3962
      %v4091 = vadd.f32 %v4027, %v3963
      %v4092 = vadd.f32 %v4028, %v3964
      %v4093 = vadd.f32 %v4029, %v3965
      %v4094 = vadd.f32 %v4030, %v3966
      %v4095 = vadd.f32 %v4031, %v3967
      %v4096 = vadd.f32 %v4032, %v3968
      %v4097 = vadd.f32 %v4033, %v3969
      %v4098 = vadd.f32 %v4034, %v3970
      %v4099 = vadd.f32 %v4035, %v3971
      %v4100 = vadd.f32 %v4036, %v3972
      %v4101 = vadd.f32 %v4037, %v3973
      %v4102 = vadd.f32 %v4038, %v3974
      %v4103 = vadd.f32 %v4039, %v3975
      %v4104 = vadd.f32 %v4040, %v3976
      %v4105 = vadd.f32 %v4041, %v3977
      %v4106 = vadd.f32 %v4042, %v3978
      %v4107 = vadd.f32 %v4043, %v3979
      %v4108 = vadd.f32 %v4044, %v3980
      %v4109 = vadd.f32 %v4045, %v3981
      %v4110 = vadd.f32 %v4046, %v3982
      %v4111 = vadd.f32 %v4047, %v3983
      %v4112 = vadd.f32 %v4048, %v3984
      %v4113 = vadd.f32 %v4049, %v3985
      %v4114 = vadd.f32 %v4050, %v3986
      %v4115 = vadd.f32 %v4051, %v3987
      %v4116 = vadd.f32 %v4052, %v3988
      %v4117 = vadd.f32 %v4053, %v3989
      %v4118 = vadd.f32 %v4054, %v3990
      %v4119 = vadd.f32 %v4055, %v3991
      %v4120 = vadd.f32 %v4056, %v3992
      %v4121 = vadd.f32 %v4057, %v3993
      %v4122 = vadd.f32 %v4058, %v3994
      %v4123 = vadd.f32 %v4059, %v3995
      %v4124 = vadd.f32 %v4060, %v3996
      %v4125 = vadd.f32 %v4061, %v3997
      %v4126 = vadd.f32 %v4062, %v3998
      %v4127 = vadd.f32 %v4063, %v3999
      %v4128 = vadd.f32 %v4064, %v4000
      %v4129 = vadd.f32 %v4065, %v4001
      %v4130 = vadd.f32 %v4066, %v4002
      %v4131 = vadd.f32 %v4067, %v4003
      %v4132 = vadd.f32 %v4068, %v4004
      %v4133 = vadd.f32 %v4069, %v4005
      %v4134 = vadd.f32 %v4070, %v4006
      %v4135 = vadd.f32 %v4071, %v4007
      %v4136 = vadd.f32 %v4072, %v4008
      %v4137 = vadd.f32 %v4073, %v4009
      %v4138 = vadd.f32 %v4074, %v4010
      %v4139 = vadd.f32 %v4075, %v4011
      %v4140 = vadd.f32 %v4076, %v4012
      %v4141 = vadd.f32 %v4077, %v4013
      %v4142 = vadd.f32 %v4078, %v4014
      %v4143 = vadd.f32 %v4079, %v4015
      %v4144 = vadd.f32 %v4080, %v4016
      %v4145 = vadd.f32 %v4081, %v4017
      %v4146 = vadd.f32 %v4082, %v4018
      %v4147 = vadd.f32 %v4083, %v4019
      %v4148 = vadd.f32 %v4084, %v4020
      %v4149 = vadd.f32 %v4085, %v4021
      %v4150 = vpack.c.bf16 %v4087, %v4086
      %v4151 = vpack.c.bf16 %v4089, %v4088
      %v4152 = vpack.c.bf16 %v4091, %v4090
      %v4153 = vpack.c.bf16 %v4093, %v4092
      %v4154 = vpack.c.bf16 %v4095, %v4094
      %v4155 = vpack.c.bf16 %v4097, %v4096
      %v4156 = vpack.c.bf16 %v4099, %v4098
      %v4157 = vpack.c.bf16 %v4101, %v4100
      %v4158 = vpack.c.bf16 %v4103, %v4102
      %v4159 = vpack.c.bf16 %v4105, %v4104
      %v4160 = vpack.c.bf16 %v4107, %v4106
      %v4161 = vpack.c.bf16 %v4109, %v4108
      %v4162 = vpack.c.bf16 %v4111, %v4110
      %v4163 = vpack.c.bf16 %v4113, %v4112
      %v4164 = vpack.c.bf16 %v4115, %v4114
      %v4165 = vpack.c.bf16 %v4117, %v4116
      %v4166 = vpack.c.bf16 %v4119, %v4118
      %v4167 = vpack.c.bf16 %v4121, %v4120
      %v4168 = vpack.c.bf16 %v4123, %v4122
      %v4169 = vpack.c.bf16 %v4125, %v4124
      %v4170 = vpack.c.bf16 %v4127, %v4126
      %v4171 = vpack.c.bf16 %v4129, %v4128
      %v4172 = vpack.c.bf16 %v4131, %v4130
      %v4173 = vpack.c.bf16 %v4133, %v4132
      %v4174 = vpack.c.bf16 %v4135, %v4134
      %v4175 = vpack.c.bf16 %v4137, %v4136
      %v4176 = vpack.c.bf16 %v4139, %v4138
      %v4177 = vpack.c.bf16 %v4141, %v4140
      %v4178 = vpack.c.bf16 %v4143, %v4142
      %v4179 = vpack.c.bf16 %v4145, %v4144
      %v4180 = vpack.c.bf16 %v4147, %v4146
      %v4181 = vpack.c.bf16 %v4149, %v4148
      %v4182 = vld [vmem:[%s4] sm:$0x3]
      %vm4183 = vcmask 31744
      %v4185 = vsel %vm4183, %v4150, 0
      %v4188 = vsel %vm4183, %v4151, 0
      %v4191 = vsel %vm4183, %v4152, 0
      %v4194 = vsel %vm4183, %v4153, 0
      %v4197 = vsel %vm4183, %v4154, 0
      %v4200 = vsel %vm4183, %v4155, 0
      %v4203 = vsel %vm4183, %v4156, 0
      %v4206 = vsel %vm4183, %v4157, 0
      %v4209 = vsel %vm4183, %v4158, 0
      %v4212 = vsel %vm4183, %v4159, 0
      %v4215 = vsel %vm4183, %v4160, 0
      %v4218 = vsel %vm4183, %v4161, 0
      %v4221 = vsel %vm4183, %v4162, 0
      %v4224 = vsel %vm4183, %v4163, 0
      %v4227 = vsel %vm4183, %v4164, 0
      %v4230 = vsel %vm4183, %v4165, 0
      %v4233 = vsel %vm4183, %v4166, 0
      %v4236 = vsel %vm4183, %v4167, 0
      %v4239 = vsel %vm4183, %v4168, 0
      %v4242 = vsel %vm4183, %v4169, 0
      %v4245 = vsel %vm4183, %v4170, 0
      %v4248 = vsel %vm4183, %v4171, 0
      %v4251 = vsel %vm4183, %v4172, 0
      %v4254 = vsel %vm4183, %v4173, 0
      %v4257 = vsel %vm4183, %v4174, 0
      %v4260 = vsel %vm4183, %v4175, 0
      %v4263 = vsel %vm4183, %v4176, 0
      %v4266 = vsel %vm4183, %v4177, 0
      %v4269 = vsel %vm4183, %v4178, 0
      %v4272 = vsel %vm4183, %v4179, 0
      %v4275 = vsel %vm4183, %v4180, 0
      %v4278 = vsel %vm4183, %v4181, 0
      %vm4280 = vcmask 1041408
      %v4282 = vsel %vm4280, %v4182, 0
      %4284 = vmatprep.subr.bf16.mxu0 0
      %4285 = vmatpush1.bf16.msra.mxu0 %v4282
      %4286 = vmatprep.subr.bf16.mxu0 0
      %4287 = vmatpush1.bf16.msra.mxu0 0
      %4288 = vmatprep.subr.bf16.mxu0 0
      %4289 = vmatpush1.bf16.msra.mxu0 0
      %4290 = vmatprep.subr.bf16.mxu0 0
      %4291 = vmatpush1.bf16.msra.mxu0 0
      %4292 = vmatprep.subr.bf16.mxu0 0
      %4293 = vmatpush1.bf16.msra.mxu0 0
      %4294 = vmatprep.subr.bf16.mxu0 0
      %4295 = vmatpush1.bf16.msra.mxu0 0
      %4296 = vmatprep.subr.bf16.mxu0 0
      %4297 = vmatpush1.bf16.msra.mxu0 0
      %4298 = vmatprep.subr.bf16.mxu0 0
      %4299 = vmatpush1.bf16.msra.mxu0 0
      %4300 = vmatprep.subr.bf16.mxu0 0
      %4301 = vmatpush1.bf16.msra.mxu0 0
      %4302 = vmatprep.subr.bf16.mxu0 0
      %4303 = vmatpush1.bf16.msra.mxu0 0
      %4304 = vmatprep.subr.bf16.mxu0 0
      %4305 = vmatpush1.bf16.msra.mxu0 0
      %4306 = vmatprep.subr.bf16.mxu0 0
      %4307 = vmatpush1.bf16.msra.mxu0 0
      %4308 = vmatprep.subr.bf16.mxu0 0
      %4309 = vmatpush1.bf16.msra.mxu0 0
      %4310 = vmatprep.subr.bf16.mxu0 0
      %4311 = vmatpush1.bf16.msra.mxu0 0
      %4312 = vmatprep.subr.bf16.mxu0 0
      %4313 = vmatpush1.bf16.msra.mxu0 0
      %4314 = vmatprep.subr.bf16.mxu0 0
      %4315 = vmatpush1.bf16.msra.mxu0 0
      %4316 = vmatprep.mubr.bf16.mxu0 0
      %4317 = vmatmul.mubr.bf16.gmra.mrb[0].mxu0 %v4185
      %v4318 = vpop.f32.mrb[0].mxu0
      %v4319 = vadd.f32 0.0, %v4318
      %v4320 = vpop.f32.mrb[0].mxu0
      %v4321 = vpop.f32.mrb[0].mxu0
      %v4322 = vadd.f32 0.0, %v4321
      %v4323 = vpop.f32.mrb[0].mxu0
      %4324 = vmatprep.mubr.bf16.mxu0 0
      %4325 = vmatmul.mubr.bf16.gmra.mrb[0].mxu0 %v4188
      %v4326 = vpop.f32.mrb[0].mxu0
      %v4327 = vadd.f32 0.0, %v4326
      %v4328 = vpop.f32.mrb[0].mxu0
      %v4329 = vpop.f32.mrb[0].mxu0
      %v4330 = vadd.f32 0.0, %v4329
      %v4331 = vpop.f32.mrb[0].mxu0
      %4332 = vmatprep.mubr.bf16.mxu0 0
      %4333 = vmatmul.mubr.bf16.gmra.mrb[0].mxu0 %v4191
      %v4334 = vpop.f32.mrb[0].mxu0
      %v4335 = vadd.f32 0.0, %v4334
      %v4336 = vpop.f32.mrb[0].mxu0
      %v4337 = vpop.f32.mrb[0].mxu0
      %v4338 = vadd.f32 0.0, %v4337
      %v4339 = vpop.f32.mrb[0].mxu0
      %4340 = vmatprep.mubr.bf16.mxu0 0
      %4341 = vmatmul.mubr.bf16.gmra.mrb[0].mxu0 %v4194
      %v4342 = vpop.f32.mrb[0].mxu0
      %v4343 = vadd.f32 0.0, %v4342
      %v4344 = vpop.f32.mrb[0].mxu0
      %v4345 = vpop.f32.mrb[0].mxu0
      %v4346 = vadd.f32 0.0, %v4345
      %v4347 = vpop.f32.mrb[0].mxu0
      %4348 = vmatprep.mubr.bf16.mxu0 0
      %4349 = vmatmul.mubr.bf16.gmra.mrb[0].mxu0 %v4197
      %v4350 = vpop.f32.mrb[0].mxu0
      %v4351 = vadd.f32 0.0, %v4350
      %v4352 = vpop.f32.mrb[0].mxu0
      %v4353 = vpop.f32.mrb[0].mxu0
      %v4354 = vadd.f32 0.0, %v4353
      %v4355 = vpop.f32.mrb[0].mxu0
      %4356 = vmatprep.mubr.bf16.mxu0 0
      %4357 = vmatmul.mubr.bf16.gmra.mrb[0].mxu0 %v4200
      %v4358 = vpop.f32.mrb[0].mxu0
      %v4359 = vadd.f32 0.0, %v4358
      %v4360 = vpop.f32.mrb[0].mxu0
      %v4361 = vpop.f32.mrb[0].mxu0
      %v4362 = vadd.f32 0.0, %v4361
      %v4363 = vpop.f32.mrb[0].mxu0
      %4364 = vmatprep.mubr.bf16.mxu0 0
      %4365 = vmatmul.mubr.bf16.gmra.mrb[0].mxu0 %v4203
      %v4366 = vpop.f32.mrb[0].mxu0
      %v4367 = vadd.f32 0.0, %v4366
      %v4368 = vpop.f32.mrb[0].mxu0
      %v4369 = vpop.f32.mrb[0].mxu0
      %v4370 = vadd.f32 0.0, %v4369
      %v4371 = vpop.f32.mrb[0].mxu0
      %4372 = vmatprep.mubr.bf16.mxu0 0
      %4373 = vmatmul.mubr.bf16.gmra.mrb[0].mxu0 %v4206
      %v4374 = vpop.f32.mrb[0].mxu0
      %v4375 = vadd.f32 0.0, %v4374
      %v4376 = vpop.f32.mrb[0].mxu0
      %v4377 = vpop.f32.mrb[0].mxu0
      %v4378 = vadd.f32 0.0, %v4377
      %v4379 = vpop.f32.mrb[0].mxu0
      %4380 = vmatprep.mubr.bf16.mxu0 0
      %4381 = vmatmul.mubr.bf16.gmra.mrb[0].mxu0 %v4209
      %v4382 = vpop.f32.mrb[0].mxu0
      %v4383 = vadd.f32 0.0, %v4382
      %v4384 = vpop.f32.mrb[0].mxu0
      %v4385 = vpop.f32.mrb[0].mxu0
      %v4386 = vadd.f32 0.0, %v4385
      %v4387 = vpop.f32.mrb[0].mxu0
      %4388 = vmatprep.mubr.bf16.mxu0 0
      %4389 = vmatmul.mubr.bf16.gmra.mrb[0].mxu0 %v4212
      %v4390 = vpop.f32.mrb[0].mxu0
      %v4391 = vadd.f32 0.0, %v4390
      %v4392 = vpop.f32.mrb[0].mxu0
      %v4393 = vpop.f32.mrb[0].mxu0
      %v4394 = vadd.f32 0.0, %v4393
      %v4395 = vpop.f32.mrb[0].mxu0
      %4396 = vmatprep.mubr.bf16.mxu0 0
      %4397 = vmatmul.mubr.bf16.gmra.mrb[0].mxu0 %v4215
      %v4398 = vpop.f32.mrb[0].mxu0
      %v4399 = vadd.f32 0.0, %v4398
      %v4400 = vpop.f32.mrb[0].mxu0
      %v4401 = vpop.f32.mrb[0].mxu0
      %v4402 = vadd.f32 0.0, %v4401
      %v4403 = vpop.f32.mrb[0].mxu0
      %4404 = vmatprep.mubr.bf16.mxu0 0
      %4405 = vmatmul.mubr.bf16.gmra.mrb[0].mxu0 %v4218
      %v4406 = vpop.f32.mrb[0].mxu0
      %v4407 = vadd.f32 0.0, %v4406
      %v4408 = vpop.f32.mrb[0].mxu0
      %v4409 = vpop.f32.mrb[0].mxu0
      %v4410 = vadd.f32 0.0, %v4409
      %v4411 = vpop.f32.mrb[0].mxu0
      %4412 = vmatprep.mubr.bf16.mxu0 0
      %4413 = vmatmul.mubr.bf16.gmra.mrb[0].mxu0 %v4221
      %v4414 = vpop.f32.mrb[0].mxu0
      %v4415 = vadd.f32 0.0, %v4414
      %v4416 = vpop.f32.mrb[0].mxu0
      %v4417 = vpop.f32.mrb[0].mxu0
      %v4418 = vadd.f32 0.0, %v4417
      %v4419 = vpop.f32.mrb[0].mxu0
      %4420 = vmatprep.mubr.bf16.mxu0 0
      %4421 = vmatmul.mubr.bf16.gmra.mrb[0].mxu0 %v4224
      %v4422 = vpop.f32.mrb[0].mxu0
      %v4423 = vadd.f32 0.0, %v4422
      %v4424 = vpop.f32.mrb[0].mxu0
      %v4425 = vpop.f32.mrb[0].mxu0
      %v4426 = vadd.f32 0.0, %v4425
      %v4427 = vpop.f32.mrb[0].mxu0
      %4428 = vmatprep.mubr.bf16.mxu0 0
      %4429 = vmatmul.mubr.bf16.gmra.mrb[0].mxu0 %v4227
      %v4430 = vpop.f32.mrb[0].mxu0
      %v4431 = vadd.f32 0.0, %v4430
      %v4432 = vpop.f32.mrb[0].mxu0
      %v4433 = vpop.f32.mrb[0].mxu0
      %v4434 = vadd.f32 0.0, %v4433
      %v4435 = vpop.f32.mrb[0].mxu0
      %4436 = vmatprep.mubr.bf16.mxu0 0
      %4437 = vmatmul.mubr.bf16.gmra.mrb[0].mxu0 %v4230
      %v4438 = vpop.f32.mrb[0].mxu0
      %v4439 = vadd.f32 0.0, %v4438
      %v4440 = vpop.f32.mrb[0].mxu0
      %v4441 = vpop.f32.mrb[0].mxu0
      %v4442 = vadd.f32 0.0, %v4441
      %v4443 = vpop.f32.mrb[0].mxu0
      %4444 = vmatprep.mubr.bf16.mxu0 0
      %4445 = vmatmul.mubr.bf16.gmra.mrb[0].mxu0 %v4233
      %v4446 = vpop.f32.mrb[0].mxu0
      %v4447 = vadd.f32 0.0, %v4446
      %v4448 = vpop.f32.mrb[0].mxu0
      %v4449 = vpop.f32.mrb[0].mxu0
      %v4450 = vadd.f32 0.0, %v4449
      %v4451 = vpop.f32.mrb[0].mxu0
      %4452 = vmatprep.mubr.bf16.mxu0 0
      %4453 = vmatmul.mubr.bf16.gmra.mrb[0].mxu0 %v4236
      %v4454 = vpop.f32.mrb[0].mxu0
      %v4455 = vadd.f32 0.0, %v4454
      %v4456 = vpop.f32.mrb[0].mxu0
      %v4457 = vpop.f32.mrb[0].mxu0
      %v4458 = vadd.f32 0.0, %v4457
      %v4459 = vpop.f32.mrb[0].mxu0
      %4460 = vmatprep.mubr.bf16.mxu0 0
      %4461 = vmatmul.mubr.bf16.gmra.mrb[0].mxu0 %v4239
      %v4462 = vpop.f32.mrb[0].mxu0
      %v4463 = vadd.f32 0.0, %v4462
      %v4464 = vpop.f32.mrb[0].mxu0
      %v4465 = vpop.f32.mrb[0].mxu0
      %v4466 = vadd.f32 0.0, %v4465
      %v4467 = vpop.f32.mrb[0].mxu0
      %4468 = vmatprep.mubr.bf16.mxu0 0
      %4469 = vmatmul.mubr.bf16.gmra.mrb[0].mxu0 %v4242
      %v4470 = vpop.f32.mrb[0].mxu0
      %v4471 = vadd.f32 0.0, %v4470
      %v4472 = vpop.f32.mrb[0].mxu0
      %v4473 = vpop.f32.mrb[0].mxu0
      %v4474 = vadd.f32 0.0, %v4473
      %v4475 = vpop.f32.mrb[0].mxu0
      %4476 = vmatprep.mubr.bf16.mxu0 0
      %4477 = vmatmul.mubr.bf16.gmra.mrb[0].mxu0 %v4245
      %v4478 = vpop.f32.mrb[0].mxu0
      %v4479 = vadd.f32 0.0, %v4478
      %v4480 = vpop.f32.mrb[0].mxu0
      %v4481 = vpop.f32.mrb[0].mxu0
      %v4482 = vadd.f32 0.0, %v4481
      %v4483 = vpop.f32.mrb[0].mxu0
      %4484 = vmatprep.mubr.bf16.mxu0 0
      %4485 = vmatmul.mubr.bf16.gmra.mrb[0].mxu0 %v4248
      %v4486 = vpop.f32.mrb[0].mxu0
      %v4487 = vadd.f32 0.0, %v4486
      %v4488 = vpop.f32.mrb[0].mxu0
      %v4489 = vpop.f32.mrb[0].mxu0
      %v4490 = vadd.f32 0.0, %v4489
      %v4491 = vpop.f32.mrb[0].mxu0
      %4492 = vmatprep.mubr.bf16.mxu0 0
      %4493 = vmatmul.mubr.bf16.gmra.mrb[0].mxu0 %v4251
      %v4494 = vpop.f32.mrb[0].mxu0
      %v4495 = vadd.f32 0.0, %v4494
      %v4496 = vpop.f32.mrb[0].mxu0
      %v4497 = vpop.f32.mrb[0].mxu0
      %v4498 = vadd.f32 0.0, %v4497
      %v4499 = vpop.f32.mrb[0].mxu0
      %4500 = vmatprep.mubr.bf16.mxu0 0
      %4501 = vmatmul.mubr.bf16.gmra.mrb[0].mxu0 %v4254
      %v4502 = vpop.f32.mrb[0].mxu0
      %v4503 = vadd.f32 0.0, %v4502
      %v4504 = vpop.f32.mrb[0].mxu0
      %v4505 = vpop.f32.mrb[0].mxu0
      %v4506 = vadd.f32 0.0, %v4505
      %v4507 = vpop.f32.mrb[0].mxu0
      %4508 = vmatprep.mubr.bf16.mxu0 0
      %4509 = vmatmul.mubr.bf16.gmra.mrb[0].mxu0 %v4257
      %v4510 = vpop.f32.mrb[0].mxu0
      %v4511 = vadd.f32 0.0, %v4510
      %v4512 = vpop.f32.mrb[0].mxu0
      %v4513 = vpop.f32.mrb[0].mxu0
      %v4514 = vadd.f32 0.0, %v4513
      %v4515 = vpop.f32.mrb[0].mxu0
      %4516 = vmatprep.mubr.bf16.mxu0 0
      %4517 = vmatmul.mubr.bf16.gmra.mrb[0].mxu0 %v4260
      %v4518 = vpop.f32.mrb[0].mxu0
      %v4519 = vadd.f32 0.0, %v4518
      %v4520 = vpop.f32.mrb[0].mxu0
      %v4521 = vpop.f32.mrb[0].mxu0
      %v4522 = vadd.f32 0.0, %v4521
      %v4523 = vpop.f32.mrb[0].mxu0
      %4524 = vmatprep.mubr.bf16.mxu0 0
      %4525 = vmatmul.mubr.bf16.gmra.mrb[0].mxu0 %v4263
      %v4526 = vpop.f32.mrb[0].mxu0
      %v4527 = vadd.f32 0.0, %v4526
      %v4528 = vpop.f32.mrb[0].mxu0
      %v4529 = vpop.f32.mrb[0].mxu0
      %v4530 = vadd.f32 0.0, %v4529
      %v4531 = vpop.f32.mrb[0].mxu0
      %4532 = vmatprep.mubr.bf16.mxu0 0
      %4533 = vmatmul.mubr.bf16.gmra.mrb[0].mxu0 %v4266
      %v4534 = vpop.f32.mrb[0].mxu0
      %v4535 = vadd.f32 0.0, %v4534
      %v4536 = vpop.f32.mrb[0].mxu0
      %v4537 = vpop.f32.mrb[0].mxu0
      %v4538 = vadd.f32 0.0, %v4537
      %v4539 = vpop.f32.mrb[0].mxu0
      %4540 = vmatprep.mubr.bf16.mxu0 0
      %4541 = vmatmul.mubr.bf16.gmra.mrb[0].mxu0 %v4269
      %v4542 = vpop.f32.mrb[0].mxu0
      %v4543 = vadd.f32 0.0, %v4542
      %v4544 = vpop.f32.mrb[0].mxu0
      %v4545 = vpop.f32.mrb[0].mxu0
      %v4546 = vadd.f32 0.0, %v4545
      %v4547 = vpop.f32.mrb[0].mxu0
      %4548 = vmatprep.mubr.bf16.mxu0 0
      %4549 = vmatmul.mubr.bf16.gmra.mrb[0].mxu0 %v4272
      %v4550 = vpop.f32.mrb[0].mxu0
      %v4551 = vadd.f32 0.0, %v4550
      %v4552 = vpop.f32.mrb[0].mxu0
      %v4553 = vpop.f32.mrb[0].mxu0
      %v4554 = vadd.f32 0.0, %v4553
      %v4555 = vpop.f32.mrb[0].mxu0
      %4556 = vmatprep.mubr.bf16.mxu0 0
      %4557 = vmatmul.mubr.bf16.gmra.mrb[0].mxu0 %v4275
      %v4558 = vpop.f32.mrb[0].mxu0
      %v4559 = vadd.f32 0.0, %v4558
      %v4560 = vpop.f32.mrb[0].mxu0
      %v4561 = vpop.f32.mrb[0].mxu0
      %v4562 = vadd.f32 0.0, %v4561
      %v4563 = vpop.f32.mrb[0].mxu0
      %4564 = vmatprep.mubr.bf16.mxu0 0
      %4565 = vmatmul.mubr.bf16.gmra.mrb[0].mxu0 %v4278
      %v4566 = vpop.f32.mrb[0].mxu0
      %v4567 = vadd.f32 0.0, %v4566
      %v4568 = vpop.f32.mrb[0].mxu0
      %v4569 = vpop.f32.mrb[0].mxu0
      %v4570 = vadd.f32 0.0, %v4569
      %v4571 = vpop.f32.mrb[0].mxu0
      %4572 = vdwg.mxu0
      %v4573 = vpack.c.bf16 %v4322, %v4319
      %v4574 = vpack.c.bf16 %v4330, %v4327
      %v4575 = vpack.c.bf16 %v4338, %v4335
      %v4576 = vpack.c.bf16 %v4346, %v4343
      %v4577 = vpack.c.bf16 %v4354, %v4351
      %v4578 = vpack.c.bf16 %v4362, %v4359
      %v4579 = vpack.c.bf16 %v4370, %v4367
      %v4580 = vpack.c.bf16 %v4378, %v4375
      %v4581 = vpack.c.bf16 %v4386, %v4383
      %v4582 = vpack.c.bf16 %v4394, %v4391
      %v4583 = vpack.c.bf16 %v4402, %v4399
      %v4584 = vpack.c.bf16 %v4410, %v4407
      %v4585 = vpack.c.bf16 %v4418, %v4415
      %v4586 = vpack.c.bf16 %v4426, %v4423
      %v4587 = vpack.c.bf16 %v4434, %v4431
      %v4588 = vpack.c.bf16 %v4442, %v4439
      %v4589 = vpack.c.bf16 %v4450, %v4447
      %v4590 = vpack.c.bf16 %v4458, %v4455
      %v4591 = vpack.c.bf16 %v4466, %v4463
      %v4592 = vpack.c.bf16 %v4474, %v4471
      %v4593 = vpack.c.bf16 %v4482, %v4479
      %v4594 = vpack.c.bf16 %v4490, %v4487
      %v4595 = vpack.c.bf16 %v4498, %v4495
      %v4596 = vpack.c.bf16 %v4506, %v4503
      %v4597 = vpack.c.bf16 %v4514, %v4511
      %v4598 = vpack.c.bf16 %v4522, %v4519
      %v4599 = vpack.c.bf16 %v4530, %v4527
      %v4600 = vpack.c.bf16 %v4538, %v4535
      %v4601 = vpack.c.bf16 %v4546, %v4543
      %v4602 = vpack.c.bf16 %v4554, %v4551
      %v4603 = vpack.c.bf16 %v4562, %v4559
      %v4604 = vpack.c.bf16 %v4570, %v4567
      %v4637 = vunpack.c.l.b16 %v4573
      %v4638 = vunpack.c.h.b16 %v4573
      %v4639 = vunpack.c.l.b16 %v4574
      %v4640 = vunpack.c.h.b16 %v4574
      %v4641 = vunpack.c.l.b16 %v4575
      %v4642 = vunpack.c.h.b16 %v4575
      %v4643 = vunpack.c.l.b16 %v4576
      %v4644 = vunpack.c.h.b16 %v4576
      %v4645 = vunpack.c.l.b16 %v4577
      %v4646 = vunpack.c.h.b16 %v4577
      %v4647 = vunpack.c.l.b16 %v4578
      %v4648 = vunpack.c.h.b16 %v4578
      %v4649 = vunpack.c.l.b16 %v4579
      %v4650 = vunpack.c.h.b16 %v4579
      %v4651 = vunpack.c.l.b16 %v4580
      %v4652 = vunpack.c.h.b16 %v4580
      %v4653 = vunpack.c.l.b16 %v4581
      %v4654 = vunpack.c.h.b16 %v4581
      %v4655 = vunpack.c.l.b16 %v4582
      %v4656 = vunpack.c.h.b16 %v4582
      %v4657 = vunpack.c.l.b16 %v4583
      %v4658 = vunpack.c.h.b16 %v4583
      %v4659 = vunpack.c.l.b16 %v4584
      %v4660 = vunpack.c.h.b16 %v4584
      %v4661 = vunpack.c.l.b16 %v4585
      %v4662 = vunpack.c.h.b16 %v4585
      %v4663 = vunpack.c.l.b16 %v4586
      %v4664 = vunpack.c.h.b16 %v4586
      %v4665 = vunpack.c.l.b16 %v4587
      %v4666 = vunpack.c.h.b16 %v4587
      %v4667 = vunpack.c.l.b16 %v4588
      %v4668 = vunpack.c.h.b16 %v4588
      %v4669 = vunpack.c.l.b16 %v4589
      %v4670 = vunpack.c.h.b16 %v4589
      %v4671 = vunpack.c.l.b16 %v4590
      %v4672 = vunpack.c.h.b16 %v4590
      %v4673 = vunpack.c.l.b16 %v4591
      %v4674 = vunpack.c.h.b16 %v4591
      %v4675 = vunpack.c.l.b16 %v4592
      %v4676 = vunpack.c.h.b16 %v4592
      %v4677 = vunpack.c.l.b16 %v4593
      %v4678 = vunpack.c.h.b16 %v4593
      %v4679 = vunpack.c.l.b16 %v4594
      %v4680 = vunpack.c.h.b16 %v4594
      %v4681 = vunpack.c.l.b16 %v4595
      %v4682 = vunpack.c.h.b16 %v4595
      %v4683 = vunpack.c.l.b16 %v4596
      %v4684 = vunpack.c.h.b16 %v4596
      %v4685 = vunpack.c.l.b16 %v4597
      %v4686 = vunpack.c.h.b16 %v4597
      %v4687 = vunpack.c.l.b16 %v4598
      %v4688 = vunpack.c.h.b16 %v4598
      %v4689 = vunpack.c.l.b16 %v4599
      %v4690 = vunpack.c.h.b16 %v4599
      %v4691 = vunpack.c.l.b16 %v4600
      %v4692 = vunpack.c.h.b16 %v4600
      %v4693 = vunpack.c.l.b16 %v4601
      %v4694 = vunpack.c.h.b16 %v4601
      %v4695 = vunpack.c.l.b16 %v4602
      %v4696 = vunpack.c.h.b16 %v4602
      %v4697 = vunpack.c.l.b16 %v4603
      %v4698 = vunpack.c.h.b16 %v4603
      %v4699 = vunpack.c.l.b16 %v4604
      %v4700 = vunpack.c.h.b16 %v4604
      %v4701 = vpack.c.b16 %v4637, %v4637
      %v4702 = vpack.c.b16 %v4638, %v4638
      %v4703 = vpack.c.b16 %v4639, %v4639
      %v4704 = vpack.c.b16 %v4640, %v4640
      %v4705 = vpack.c.b16 %v4641, %v4641
      %v4706 = vpack.c.b16 %v4642, %v4642
      %v4707 = vpack.c.b16 %v4643, %v4643
      %v4708 = vpack.c.b16 %v4644, %v4644
      %v4709 = vpack.c.b16 %v4645, %v4645
      %v4710 = vpack.c.b16 %v4646, %v4646
      %v4711 = vpack.c.b16 %v4647, %v4647
      %v4712 = vpack.c.b16 %v4648, %v4648
      %v4713 = vpack.c.b16 %v4649, %v4649
      %v4714 = vpack.c.b16 %v4650, %v4650
      %v4715 = vpack.c.b16 %v4651, %v4651
      %v4716 = vpack.c.b16 %v4652, %v4652
      %v4717 = vpack.c.b16 %v4653, %v4653
      %v4718 = vpack.c.b16 %v4654, %v4654
      %v4719 = vpack.c.b16 %v4655, %v4655
      %v4720 = vpack.c.b16 %v4656, %v4656
      %v4721 = vpack.c.b16 %v4657, %v4657
      %v4722 = vpack.c.b16 %v4658, %v4658
      %v4723 = vpack.c.b16 %v4659, %v4659
      %v4724 = vpack.c.b16 %v4660, %v4660
      %v4725 = vpack.c.b16 %v4661, %v4661
      %v4726 = vpack.c.b16 %v4662, %v4662
      %v4727 = vpack.c.b16 %v4663, %v4663
      %v4728 = vpack.c.b16 %v4664, %v4664
      %v4729 = vpack.c.b16 %v4665, %v4665
      %v4730 = vpack.c.b16 %v4666, %v4666
      %v4731 = vpack.c.b16 %v4667, %v4667
      %v4732 = vpack.c.b16 %v4668, %v4668
      %v4733 = vpack.c.b16 %v4669, %v4669
      %v4734 = vpack.c.b16 %v4670, %v4670
      %v4735 = vpack.c.b16 %v4671, %v4671
      %v4736 = vpack.c.b16 %v4672, %v4672
      %v4737 = vpack.c.b16 %v4673, %v4673
      %v4738 = vpack.c.b16 %v4674, %v4674
      %v4739 = vpack.c.b16 %v4675, %v4675
      %v4740 = vpack.c.b16 %v4676, %v4676
      %v4741 = vpack.c.b16 %v4677, %v4677
      %v4742 = vpack.c.b16 %v4678, %v4678
      %v4743 = vpack.c.b16 %v4679, %v4679
      %v4744 = vpack.c.b16 %v4680, %v4680
      %v4745 = vpack.c.b16 %v4681, %v4681
      %v4746 = vpack.c.b16 %v4682, %v4682
      %v4747 = vpack.c.b16 %v4683, %v4683
      %v4748 = vpack.c.b16 %v4684, %v4684
      %v4749 = vpack.c.b16 %v4685, %v4685
      %v4750 = vpack.c.b16 %v4686, %v4686
      %v4751 = vpack.c.b16 %v4687, %v4687
      %v4752 = vpack.c.b16 %v4688, %v4688
      %v4753 = vpack.c.b16 %v4689, %v4689
      %v4754 = vpack.c.b16 %v4690, %v4690
      %v4755 = vpack.c.b16 %v4691, %v4691
      %v4756 = vpack.c.b16 %v4692, %v4692
      %v4757 = vpack.c.b16 %v4693, %v4693
      %v4758 = vpack.c.b16 %v4694, %v4694
      %v4759 = vpack.c.b16 %v4695, %v4695
      %v4760 = vpack.c.b16 %v4696, %v4696
      %v4761 = vpack.c.b16 %v4697, %v4697
      %v4762 = vpack.c.b16 %v4698, %v4698
      %v4763 = vpack.c.b16 %v4699, %v4699
      %v4764 = vpack.c.b16 %v4700, %v4700
      %vm4829 = vcmask 11264
      %4830 = vst.msk [vmem:[%s389] sm:$0xf] %vm4829, %v4701
      %4831 = vst.msk [vmem:[%s389 + $0x4] sm:$0xf] %vm4829, %v4702
      %4832 = vst.msk [vmem:[%s389 + $0x8] sm:$0xf] %vm4829, %v4703
      %4833 = vst.msk [vmem:[%s389 + $0xc] sm:$0xf] %vm4829, %v4704
      %4834 = vst.msk [vmem:[%s389 + $0x10] sm:$0xf] %vm4829, %v4705
      %4835 = vst.msk [vmem:[%s389 + $0x14] sm:$0xf] %vm4829, %v4706
      %4836 = vst.msk [vmem:[%s389 + $0x18] sm:$0xf] %vm4829, %v4707
      %4837 = vst.msk [vmem:[%s389 + $0x1c] sm:$0xf] %vm4829, %v4708
      %4838 = vst.msk [vmem:[%s389 + $0x20] sm:$0xf] %vm4829, %v4709
      %4839 = vst.msk [vmem:[%s389 + $0x24] sm:$0xf] %vm4829, %v4710
      %4840 = vst.msk [vmem:[%s389 + $0x28] sm:$0xf] %vm4829, %v4711
      %4841 = vst.msk [vmem:[%s389 + $0x2c] sm:$0xf] %vm4829, %v4712
      %4842 = vst.msk [vmem:[%s389 + $0x30] sm:$0xf] %vm4829, %v4713
      %4843 = vst.msk [vmem:[%s389 + $0x34] sm:$0xf] %vm4829, %v4714
      %4844 = vst.msk [vmem:[%s389 + $0x38] sm:$0xf] %vm4829, %v4715
      %4845 = vst.msk [vmem:[%s389 + $0x3c] sm:$0xf] %vm4829, %v4716
      %4846 = vst.msk [vmem:[%s389 + $0x40] sm:$0xf] %vm4829, %v4717
      %4847 = vst.msk [vmem:[%s389 + $0x44] sm:$0xf] %vm4829, %v4718
      %4848 = vst.msk [vmem:[%s389 + $0x48] sm:$0xf] %vm4829, %v4719
      %4849 = vst.msk [vmem:[%s389 + $0x4c] sm:$0xf] %vm4829, %v4720
      %4850 = vst.msk [vmem:[%s389 + $0x50] sm:$0xf] %vm4829, %v4721
      %4851 = vst.msk [vmem:[%s389 + $0x54] sm:$0xf] %vm4829, %v4722
      %4852 = vst.msk [vmem:[%s389 + $0x58] sm:$0xf] %vm4829, %v4723
      %4853 = vst.msk [vmem:[%s389 + $0x5c] sm:$0xf] %vm4829, %v4724
      %4854 = vst.msk [vmem:[%s389 + $0x60] sm:$0xf] %vm4829, %v4725
      %4855 = vst.msk [vmem:[%s389 + $0x64] sm:$0xf] %vm4829, %v4726
      %4856 = vst.msk [vmem:[%s389 + $0x68] sm:$0xf] %vm4829, %v4727
      %4857 = vst.msk [vmem:[%s389 + $0x6c] sm:$0xf] %vm4829, %v4728
      %4858 = vst.msk [vmem:[%s389 + $0x70] sm:$0xf] %vm4829, %v4729
      %4859 = vst.msk [vmem:[%s389 + $0x74] sm:$0xf] %vm4829, %v4730
      %4860 = vst.msk [vmem:[%s389 + $0x78] sm:$0xf] %vm4829, %v4731
      %4861 = vst.msk [vmem:[%s389 + $0x7c] sm:$0xf] %vm4829, %v4732
      %4862 = vst.msk [vmem:[%s389 + $0x80] sm:$0xf] %vm4829, %v4733
      %4863 = vst.msk [vmem:[%s389 + $0x84] sm:$0xf] %vm4829, %v4734
      %4864 = vst.msk [vmem:[%s389 + $0x88] sm:$0xf] %vm4829, %v4735
      %4865 = vst.msk [vmem:[%s389 + $0x8c] sm:$0xf] %vm4829, %v4736
      %4866 = vst.msk [vmem:[%s389 + $0x90] sm:$0xf] %vm4829, %v4737
      %4867 = vst.msk [vmem:[%s389 + $0x94] sm:$0xf] %vm4829, %v4738
      %4868 = vst.msk [vmem:[%s389 + $0x98] sm:$0xf] %vm4829, %v4739
      %4869 = vst.msk [vmem:[%s389 + $0x9c] sm:$0xf] %vm4829, %v4740
      %4870 = vst.msk [vmem:[%s389 + $0xa0] sm:$0xf] %vm4829, %v4741
      %4871 = vst.msk [vmem:[%s389 + $0xa4] sm:$0xf] %vm4829, %v4742
      %4872 = vst.msk [vmem:[%s389 + $0xa8] sm:$0xf] %vm4829, %v4743
      %4873 = vst.msk [vmem:[%s389 + $0xac] sm:$0xf] %vm4829, %v4744
      %4874 = vst.msk [vmem:[%s389 + $0xb0] sm:$0xf] %vm4829, %v4745
      %4875 = vst.msk [vmem:[%s389 + $0xb4] sm:$0xf] %vm4829, %v4746
      %4876 = vst.msk [vmem:[%s389 + $0xb8] sm:$0xf] %vm4829, %v4747
      %4877 = vst.msk [vmem:[%s389 + $0xbc] sm:$0xf] %vm4829, %v4748
      %4878 = vst.msk [vmem:[%s389 + $0xc0] sm:$0xf] %vm4829, %v4749
      %4879 = vst.msk [vmem:[%s389 + $0xc4] sm:$0xf] %vm4829, %v4750
      %4880 = vst.msk [vmem:[%s389 + $0xc8] sm:$0xf] %vm4829, %v4751
      %4881 = vst.msk [vmem:[%s389 + $0xcc] sm:$0xf] %vm4829, %v4752
      %4882 = vst.msk [vmem:[%s389 + $0xd0] sm:$0xf] %vm4829, %v4753
      %4883 = vst.msk [vmem:[%s389 + $0xd4] sm:$0xf] %vm4829, %v4754
      %4884 = vst.msk [vmem:[%s389 + $0xd8] sm:$0xf] %vm4829, %v4755
      %4885 = vst.msk [vmem:[%s389 + $0xdc] sm:$0xf] %vm4829, %v4756
      %4886 = vst.msk [vmem:[%s389 + $0xe0] sm:$0xf] %vm4829, %v4757
      %4887 = vst.msk [vmem:[%s389 + $0xe4] sm:$0xf] %vm4829, %v4758
      %4888 = vst.msk [vmem:[%s389 + $0xe8] sm:$0xf] %vm4829, %v4759
      %4889 = vst.msk [vmem:[%s389 + $0xec] sm:$0xf] %vm4829, %v4760
      %4890 = vst.msk [vmem:[%s389 + $0xf0] sm:$0xf] %vm4829, %v4761
      %4891 = vst.msk [vmem:[%s389 + $0xf4] sm:$0xf] %vm4829, %v4762
      %4892 = vst.msk [vmem:[%s389 + $0xf8] sm:$0xf] %vm4829, %v4763
      %4893 = vst.msk [vmem:[%s389 + $0xfc] sm:$0xf] %vm4829, %v4764
      %s4894 = smul.u32 64, %s21
      %p4895 = scmp.lt.s32.totalorder %s20, 1
      %s4896 = scalar_select %p4895, %s20, 1
      %p4897 = scmp.lt.s32.totalorder %s4894, 127
      %s4898 = scalar_select %p4897, %s4894, 127
      %s4899 = smul.addr %s4896, 128
      %s4900 = sadd.s32 %s4898, %s4899
      %s4901 = smul.addr %s4900, 4
      %s4902 = scalar_lea.vmem %s5, %s4901
      // Predicated region
      $region41: #{pan_forward.4} parent=39 // pred_check
        %p4903 = pneg %p190
      $region42: #{pan_forward.4} parent=39 // pred_check_branch
        %4905 = sbr.rel (%p4903) target = $region44
      $region43: #{pan_forward.4} parent=39 // pred_region
        %s4906 = smul.u32 64, %s21
      $region44: #{pan_forward.4} parent=39 // pred_fallthru
        _
    $region40: #{pan_forward.4} parent=5 // pred_fallthru
      _
    %p4907 = scmp.le.s32.totalorder 2, %s11
    // Predicated region
    $region45: #{pan_forward.4} parent=5 // pred_check
      %p4908 = pneg %p4907
    $region46: #{pan_forward.4} parent=5 // pred_check_branch
      %4910 = sbr.rel (%p4908) target = $region48
    $region47: #{pan_forward.4} parent=5 // pred_region
      %s4911 = ssub.s32 %s11, 2
      // Predicated region
      $region49: #{pan_forward.4} parent=47 // pred_check
        %p4912 = pneg %p196
      $region50: #{pan_forward.4} parent=47 // pred_check_branch
        %4914 = sbr.rel (%p4912) target = $region52
      $region51: #{pan_forward.4} parent=47 // pred_region
        %s4915 = smul.u32 64, %s23
        %p4916 = scmp.lt.s32.totalorder %s22, 1
        %s4917 = scalar_select %p4916, %s22, 1
        %p4918 = scmp.lt.s32.totalorder %s4915, 127
        %s4919 = scalar_select %p4918, %s4915, 127
        %s4920 = smul.addr %s4917, 128
        %s4921 = sadd.s32 %s4919, %s4920
        %s4922 = smul.addr %s4921, 4
        %s4923 = scalar_lea.vmem %s5, %s4922
      $region52: #{pan_forward.4} parent=47 // pred_fallthru
        _
    $region48: #{pan_forward.4} parent=5 // pred_fallthru
      _
  $region6: #{pan_forward.4} parent=0 // loop_footer
    %s15 = sadd.s32 1, %s11
  $region7: #{pan_forward.4} parent=0 // loop_footer_branch
    %10 = sbr.rel target = $region3
  $region8: #{pan_forward.4} parent=0 // loop_exit
    _

</llo_original>
